<compile_context>
chip_gen: v7x
topology: tpu7x:2x2x1
jax: 0.10.0
libtpu: 0.0.40
codegen_flags: <defaults>
</compile_context>

<pallas_src>
import functools
import math

import jax
import jax.numpy as jnp
from jax.experimental import pallas as pl
from jax.experimental.pallas import tpu as pltpu

_EPS = 1e-5    # PyTorch BatchNorm1d default eps
_PAD = 16      # sublane/packing-aligned front pad for the conv2 VMEM scratch


# ---------------------------------------------------------------------------
# small helpers
# ---------------------------------------------------------------------------
def _nbytes(shape, dtype):
    return math.prod(shape) * jnp.dtype(dtype).itemsize


def _compiler_params():
    # 32 MiB per-call VMEM budget: fits the per-step working set with headroom
    # on every gen (v5e/v6e: 128 MiB physical; v7x: 64 MiB physical).
    return pltpu.CompilerParams(dimension_semantics=("parallel",),
                                vmem_limit_bytes=32 * 1024 * 1024)


def _pick_tile(m, prefs=(512, 256, 128, 64, 32, 16, 8)):
    """Largest row-tile that evenly divides m (else the full dim)."""
    for p in prefs:
        if m >= p and m % p == 0:
            return p
    return m


# ---------------------------------------------------------------------------
# Pallas kernels
# ---------------------------------------------------------------------------
def _stem_kernel(a_ref, w_ref, scale_ref, shift_ref, o_ref):
    """Stem conv as matmul (contraction padded to 8) + folded BN + ReLU."""
    acc = jnp.dot(a_ref[...], w_ref[...], preferred_element_type=jnp.float32)
    out = jnp.maximum(acc * scale_ref[...] + shift_ref[...], 0.0)
    o_ref[...] = out.astype(o_ref.dtype)


def _max3_kernel(x0_ref, x1_ref, x2_ref, o_ref):
    """MaxPool1d(kernel=3): elementwise max of the three shifted windows."""
    o_ref[...] = jnp.maximum(jnp.maximum(x0_ref[...], x1_ref[...]), x2_ref[...])


def _conv3_from_scratch(y1p_ref, w_ref, L):
    """K=3 stride-1 conv read out of the zero-padded VMEM scratch."""
    acc = jnp.dot(y1p_ref[pl.ds(_PAD - 1, L), :], w_ref[0],
                  preferred_element_type=jnp.float32)
    acc += jnp.dot(y1p_ref[pl.ds(_PAD, L), :], w_ref[1],
                   preferred_element_type=jnp.float32)
    acc += jnp.dot(y1p_ref[pl.ds(_PAD + 1, L), :], w_ref[2],
                   preferred_element_type=jnp.float32)
    return acc


def _block_s1_kernel(x_ref, w1_ref, s1_ref, b1_ref, w2_ref, s2_ref, b2_ref,
                     o_ref, y1p_ref, *, L):
    """Whole stride-1 residual block, one batch element per grid step.

    x_ref: (L+2, C) padded input (bf16);  w*: (3, C, C) per-tap weights (bf16);
    s*/b*: folded BN scale/shift (1, C) f32;  y1p_ref: VMEM scratch.
    """
    # conv1: accumulate the 3 taps straight off the padded input (no im2col).
    acc = jnp.dot(x_ref[pl.ds(0, L), :], w1_ref[0], preferred_element_type=jnp.float32)
    acc += jnp.dot(x_ref[pl.ds(1, L), :], w1_ref[1], preferred_element_type=jnp.float32)
    acc += jnp.dot(x_ref[pl.ds(2, L), :], w1_ref[2], preferred_element_type=jnp.float32)
    y1 = jnp.maximum(acc * s1_ref[...] + b1_ref[...], 0.0)

    # conv1 output stays resident in VMEM, zero-padded for conv2's taps.
    y1p_ref[...] = jnp.zeros_like(y1p_ref)
    y1p_ref[pl.ds(_PAD, L), :] = y1.astype(y1p_ref.dtype)
    acc2 = _conv3_from_scratch(y1p_ref, w2_ref, L)

    identity = x_ref[pl.ds(1, L), :].astype(jnp.float32)   # centre slice == un-padded x
    out = jnp.maximum(acc2 * s2_ref[...] + b2_ref[...] + identity, 0.0)
    o_ref[...] = out.astype(o_ref.dtype)


def _block_s2_kernel(t0_ref, t1_ref, t2_ref,
                     w1_ref, s1_ref, b1_ref,
                     wd_ref, sd_ref, bd_ref,
                     w2_ref, s2_ref, b2_ref,
                     o_ref, y1p_ref, *, L):
    """Whole stride-2 residual block (with 1x1 downsample), one batch element per step.

    t0/t1/t2: the three stride-2 conv taps (L, Cin) bf16 (t1 == x[::2] feeds the
    downsample path);  w1: (3, Cin, Cout), w2: (3, Cout, Cout), wd: (Cin, Cout).
    """
    acc = jnp.dot(t0_ref[...], w1_ref[0], preferred_element_type=jnp.float32)
    acc += jnp.dot(t1_ref[...], w1_ref[1], preferred_element_type=jnp.float32)
    acc += jnp.dot(t2_ref[...], w1_ref[2], preferred_element_type=jnp.float32)
    y1 = jnp.maximum(acc * s1_ref[...] + b1_ref[...], 0.0)

    # downsample branch: 1x1 stride-2 conv == matmul on the centre tap.
    ident = (jnp.dot(t1_ref[...], wd_ref[...], preferred_element_type=jnp.float32)
             * sd_ref[...] + bd_ref[...])

    y1p_ref[...] = jnp.zeros_like(y1p_ref)
    y1p_ref[pl.ds(_PAD, L), :] = y1.astype(y1p_ref.dtype)
    acc2 = _conv3_from_scratch(y1p_ref, w2_ref, L)

    out = jnp.maximum(acc2 * s2_ref[...] + b2_ref[...] + ident, 0.0)
    o_ref[...] = out.astype(o_ref.dtype)


def _head_kernel(x_ref, w1_ref, b1_ref, w2_ref, b2_ref, o_ref):
    """AdaptiveAvgPool1d(1) + Linear(256,128) + ReLU + Linear(128,1) + Sigmoid."""
    pooled = jnp.mean(x_ref[...].astype(jnp.float32), axis=0, keepdims=True)  # (1, 256)
    h = jnp.dot(pooled.astype(jnp.bfloat16), w1_ref[...],
                preferred_element_type=jnp.float32) + b1_ref[...]
    h = jnp.maximum(h, 0.0)
    # TODO(synk): Dropout(0.2) is identity in inference mode (no-op here).
    y = jnp.sum(h * w2_ref[...], axis=1, keepdims=True) + b2_ref[...]          # (1, 1)
    o_ref[...] = jax.nn.sigmoid(y)


# ---------------------------------------------------------------------------
# Pallas wrappers
# ---------------------------------------------------------------------------
def stem_conv_pool(x, stem):
    """Conv1d(1,64,k=7,s=2,p=3)+BN+ReLU then MaxPool1d(3,2,1)."""
    B, L = x.shape
    Cout = 64
    L1 = (L + 6 - 7) // 2 + 1
    # im2col for the stem only (Cin=1, so this is tiny); pad contraction 7 -> 8.
    xp = jnp.pad(x, ((0, 0), (3, 3)))
    taps = jnp.stack([xp[:, k:k + 2 * (L1 - 1) + 1:2] for k in range(7)], axis=-1)
    a = jnp.pad(taps, ((0, 0), (0, 0), (0, 1))).reshape(B * L1, 8).astype(jnp.bfloat16)

    M = B * L1
    tm = _pick_tile(M)
    h = pl.pallas_call(
        _stem_kernel,
        grid=(M // tm,),
        in_specs=[pl.BlockSpec((tm, 8), lambda i: (i, 0)),
                  pl.BlockSpec((8, Cout), lambda i: (0, 0)),
                  pl.BlockSpec((1, Cout), lambda i: (0, 0)),
                  pl.BlockSpec((1, Cout), lambda i: (0, 0))],
        out_specs=pl.BlockSpec((tm, Cout), lambda i: (i, 0)),
        out_shape=jax.ShapeDtypeStruct((M, Cout), jnp.bfloat16),
        compiler_params=_compiler_params(),
        cost_estimate=pl.CostEstimate(
            flops=2 * M * 8 * Cout, transcendentals=0,
            bytes_accessed=(_nbytes((M, 8), jnp.bfloat16)
                            + _nbytes((8, Cout), jnp.bfloat16)
                            + 2 * _nbytes((1, Cout), jnp.float32)
                            + _nbytes((M, Cout), jnp.bfloat16))),
    )(a, stem["w"], stem["scale"], stem["shift"])
    h = h.reshape(B, L1, Cout)

    # MaxPool1d(kernel=3, stride=2, padding=1)
    L2 = (L1 + 2 - 3) // 2 + 1
    hp = jnp.pad(h, ((0, 0), (1, 1), (0, 0)), constant_values=-jnp.inf)
    wins = [hp[:, k:k + 2 * (L2 - 1) + 1:2, :].reshape(B * L2, Cout) for k in range(3)]
    M2 = B * L2
    tm2 = _pick_tile(M2)
    out = pl.pallas_call(
        _max3_kernel,
        grid=(M2 // tm2,),
        in_specs=[pl.BlockSpec((tm2, Cout), lambda i: (i, 0))] * 3,
        out_specs=pl.BlockSpec((tm2, Cout), lambda i: (i, 0)),
        out_shape=jax.ShapeDtypeStruct((M2, Cout), jnp.bfloat16),
        compiler_params=_compiler_params(),
    )(*wins)
    return out.reshape(B, L2, Cout)


def residual_block_s1(x, blk):
    """Fused stride-1 residual block: one pallas_call, batch-parallel grid."""
    B, L, C = x.shape
    xp = jnp.pad(x, ((0, 0), (1, 1), (0, 0)))
    vec = pl.BlockSpec((1, C), lambda b: (0, 0))
    wspec = pl.BlockSpec((3, C, C), lambda b: (0, 0, 0))
    flops = 2 * B * L * C * C * 6          # two K=3 convs
    bytes_acc = (_nbytes((B, L + 2, C), jnp.bfloat16)
                 + 2 * _nbytes((3, C, C), jnp.bfloat16)
                 + 4 * _nbytes((1, C), jnp.float32)
                 + _nbytes((B, L, C), jnp.bfloat16))
    return pl.pallas_call(
        functools.partial(_block_s1_kernel, L=L),
        grid=(B,),
        in_specs=[pl.BlockSpec((None, L + 2, C), lambda b: (b, 0, 0)),
                  wspec, vec, vec, wspec, vec, vec],
        out_specs=pl.BlockSpec((None, L, C), lambda b: (b, 0, 0)),
        out_shape=jax.ShapeDtypeStruct((B, L, C), jnp.bfloat16),
        scratch_shapes=[pltpu.VMEM((L + 2 * _PAD, C), jnp.bfloat16)],
        compiler_params=_compiler_params(),
        cost_estimate=pl.CostEstimate(flops=flops, transcendentals=0,
                                      bytes_accessed=bytes_acc),
    )(xp, blk["conv1"]["w"], blk["conv1"]["scale"], blk["conv1"]["shift"],
      blk["conv2"]["w"], blk["conv2"]["scale"], blk["conv2"]["shift"])


def residual_block_s2(x, blk):
    """Fused stride-2 residual block (conv1 s=2 + downsample), batch-parallel grid."""
    B, Lin, Cin = x.shape
    Lout = (Lin + 2 - 3) // 2 + 1
    Cout = blk["conv1"]["w"].shape[-1]
    xp = jnp.pad(x, ((0, 0), (1, 1), (0, 0)))
    # three stride-2 taps (t1 == x[::2] also feeds the 1x1 downsample conv)
    taps = [xp[:, k:k + 2 * (Lout - 1) + 1:2, :] for k in range(3)]

    tap_spec = pl.BlockSpec((None, Lout, Cin), lambda b: (b, 0, 0))
    vec = pl.BlockSpec((1, Cout), lambda b: (0, 0))
    flops = (2 * B * Lout * Cin * Cout * 3     # conv1
             + 2 * B * Lout * Cout * Cout * 3  # conv2
             + 2 * B * Lout * Cin * Cout)      # downsample
    bytes_acc = (3 * _nbytes((B, Lout, Cin), jnp.bfloat16)
                 + _nbytes((3, Cin, Cout), jnp.bfloat16)
                 + _nbytes((3, Cout, Cout), jnp.bfloat16)
                 + _nbytes((Cin, Cout), jnp.bfloat16)
                 + 6 * _nbytes((1, Cout), jnp.float32)
                 + _nbytes((B, Lout, Cout), jnp.bfloat16))
    return pl.pallas_call(
        functools.partial(_block_s2_kernel, L=Lout),
        grid=(B,),
        in_specs=[tap_spec, tap_spec, tap_spec,
                  pl.BlockSpec((3, Cin, Cout), lambda b: (0, 0, 0)), vec, vec,
                  pl.BlockSpec((Cin, Cout), lambda b: (0, 0)), vec, vec,
                  pl.BlockSpec((3, Cout, Cout), lambda b: (0, 0, 0)), vec, vec],
        out_specs=pl.BlockSpec((None, Lout, Cout), lambda b: (b, 0, 0)),
        out_shape=jax.ShapeDtypeStruct((B, Lout, Cout), jnp.bfloat16),
        scratch_shapes=[pltpu.VMEM((Lout + 2 * _PAD, Cout), jnp.bfloat16)],
        compiler_params=_compiler_params(),
        cost_estimate=pl.CostEstimate(flops=flops, transcendentals=0,
                                      bytes_accessed=bytes_acc),
    )(taps[0], taps[1], taps[2],
      blk["conv1"]["w"], blk["conv1"]["scale"], blk["conv1"]["shift"],
      blk["down"]["w"], blk["down"]["scale"], blk["down"]["shift"],
      blk["conv2"]["w"], blk["conv2"]["scale"], blk["conv2"]["shift"])


def residual_block(x, blk):
    return residual_block_s2(x, blk) if "down" in blk else residual_block_s1(x, blk)


def head(x, fc):
    """Fused global-avg-pool + FC head; one pallas_call, batch-parallel grid."""
    B, L3, C = x.shape
    out = pl.pallas_call(
        _head_kernel,
        grid=(B,),
        in_specs=[pl.BlockSpec((None, L3, C), lambda b: (b, 0, 0)),
                  pl.BlockSpec((C, 128), lambda b: (0, 0)),
                  pl.BlockSpec((1, 128), lambda b: (0, 0)),
                  pl.BlockSpec((1, 128), lambda b: (0, 0)),
                  pl.BlockSpec((1, 1), lambda b: (0, 0))],
        out_specs=pl.BlockSpec((None, 1, 1), lambda b: (b, 0, 0)),
        out_shape=jax.ShapeDtypeStruct((B, 1, 1), jnp.float32),
        compiler_params=_compiler_params(),
        cost_estimate=pl.CostEstimate(
            flops=2 * B * C * 128 + 2 * B * 128, transcendentals=B,
            bytes_accessed=(_nbytes((B, L3, C), jnp.bfloat16)
                            + _nbytes((C, 128), jnp.bfloat16)
                            + 2 * _nbytes((1, 128), jnp.float32) + B * 4)),
    )(x, fc["w1"], fc["b1"], fc["w2"], fc["b2"])
    return out.reshape(B)


# ---------------------------------------------------------------------------
# Deterministic parameter construction (Conv bias folded into BN shift,
# weights pre-packed per tap and cast to bf16 once at init)
# ---------------------------------------------------------------------------
def init_conv_bn(key, cin, cout, k):
    ks = jax.random.split(key, 6)
    w = 0.1 * jax.random.normal(ks[0], (cout, cin, k), jnp.float32)   # PyTorch layout
    b = 0.1 * jax.random.normal(ks[1], (cout,), jnp.float32)
    gamma = 1.0 + 0.1 * jax.random.normal(ks[2], (cout,), jnp.float32)
    beta = 0.1 * jax.random.normal(ks[3], (cout,), jnp.float32)
    mean = 0.1 * jax.random.normal(ks[4], (cout,), jnp.float32)
    var = 1.0 + 0.1 * jnp.abs(jax.random.normal(ks[5], (cout,), jnp.float32))
    # TODO(synk): BatchNorm uses inference-mode (running-stats) semantics.
    scale = gamma / jnp.sqrt(var + _EPS)
    shift = beta + scale * (b - mean)
    w_taps = jnp.transpose(w, (2, 1, 0)).astype(jnp.bfloat16)          # (k, cin, cout)
    return {"w": w_taps,
            "scale": scale.reshape(1, cout),
            "shift": shift.reshape(1, cout)}


def init_stem(key):
    p = init_conv_bn(key, 1, 64, 7)
    w = p["w"].reshape(7, 64)
    w = jnp.pad(w, ((0, 1), (0, 0)))            # contraction 7 -> 8 (sublane granule)
    return {"w": w.astype(jnp.bfloat16), "scale": p["scale"], "shift": p["shift"]}


def init_down(key, cin, cout):
    p = init_conv_bn(key, cin, cout, 1)
    return {"w": p["w"][0], "scale": p["scale"], "shift": p["shift"]}   # (cin, cout)


def init_block(key, cin, cout, k, stride):
    ks = jax.random.split(key, 3)
    blk = {"conv1": init_conv_bn(ks[0], cin, cout, k),
           "conv2": init_conv_bn(ks[1], cout, cout, k)}
    if stride != 1 or cin != cout:
        blk["down"] = init_down(ks[2], cin, cout)
    return blk


def init_fc(key):
    ks = jax.random.split(key, 4)
    return {"w1": (0.1 * jax.random.normal(ks[0], (256, 128), jnp.float32)).astype(jnp.bfloat16),
            "b1": 0.1 * jax.random.normal(ks[1], (1, 128), jnp.float32),
            "w2": 0.1 * jax.random.normal(ks[2], (1, 128), jnp.float32),
            "b2": 0.1 * jax.random.normal(ks[3], (1, 1), jnp.float32)}


def init_params(key):
    ks = jax.random.split(key, 8)
    return {
        "stem": init_stem(ks[0]),
        "layer1": [init_block(ks[1], 64, 64, 3, 1), init_block(ks[2], 64, 64, 3, 1)],
        "layer2": [init_block(ks[3], 64, 128, 3, 2), init_block(ks[4], 128, 128, 3, 1)],
        "layer3": [init_block(ks[5], 128, 256, 3, 2), init_block(ks[6], 256, 256, 3, 1)],
        "fc": init_fc(ks[7]),
    }


# ---------------------------------------------------------------------------
# Forward pass (mirrors Resnet.forward)
# ---------------------------------------------------------------------------
def resnet_forward(x, params):
    h = stem_conv_pool(x.astype(jnp.float32), params["stem"])   # (B, L/4, 64) bf16
    for layer in ("layer1", "layer2", "layer3"):
        for blk in params[layer]:
            h = residual_block(h, blk)
    return head(h, params["fc"])                                 # (B,)


if __name__ == "__main__":
    key = jax.random.PRNGKey(0)
    pkey, xkey = jax.random.split(key)
    params = init_params(pkey)

    B, L = 2, 64
    x = jax.random.normal(xkey, (B, L), jnp.float32)

    fwd = jax.jit(lambda inp: resnet_forward(inp, params))
    out = fwd(x)
    jax.block_until_ready(out)

    assert out.shape == (B,)
    assert bool(jnp.all(jnp.isfinite(out)))
    print("KERNEL_OK")
</pallas_src>

<mosaic_0001>
module attributes {stable_mosaic.version = 11 : i64} {
  func.func @_stem_kernel(%arg0: i32, %arg1: memref<64x8xbf16, #tpu.memory_space<vmem>>, %arg2: memref<8x64xbf16, #tpu.memory_space<vmem>>, %arg3: memref<1x64xf32, #tpu.memory_space<vmem>>, %arg4: memref<1x64xf32, #tpu.memory_space<vmem>>, %arg5: memref<64x64xbf16, #tpu.memory_space<vmem>>) attributes {dimension_semantics = [#tpu.dimension_semantics<parallel>], iteration_bounds = array<i64: 1>, scalar_prefetch = 0 : i64, scratch_operands = 0 : i64, tpu.core_type = #tpu.core_type<tc>, window_params = [{transform_indices = @transform_0, window_bounds = array<i64: 64, 8>}, {pipeline_mode = #tpu.pipeline_mode<synchronous>, transform_indices = @transform_1, window_bounds = array<i64: 8, 64>}, {pipeline_mode = #tpu.pipeline_mode<synchronous>, transform_indices = @transform_2, window_bounds = array<i64: 1, 64>}, {pipeline_mode = #tpu.pipeline_mode<synchronous>, transform_indices = @transform_3, window_bounds = array<i64: 1, 64>}, {transform_indices = @transform_4, window_bounds = array<i64: 64, 64>}]} {
    %c0 = arith.constant 0 : index
    %c0_0 = arith.constant 0 : index
    %0 = vector.load %arg1[%c0, %c0_0] : memref<64x8xbf16, #tpu.memory_space<vmem>>, vector<64x8xbf16>
    %c0_1 = arith.constant 0 : index
    %c0_2 = arith.constant 0 : index
    %1 = vector.load %arg2[%c0_1, %c0_2] : memref<8x64xbf16, #tpu.memory_space<vmem>>, vector<8x64xbf16>
    %cst = arith.constant dense<0.000000e+00> : vector<64x64xf32>
    %2 = tpu.matmul %0, %1, %cst {dimension_numbers = #tpu.dot_dimension_numbers<[1], [0], [0], [1], [0, 0, 1, 1], [], []>} : vector<64x8xbf16>, vector<8x64xbf16>, vector<64x64xf32> -> vector<64x64xf32>
    %c0_3 = arith.constant 0 : index
    %c0_4 = arith.constant 0 : index
    %3 = vector.load %arg3[%c0_3, %c0_4] : memref<1x64xf32, #tpu.memory_space<vmem>>, vector<1x64xf32>
    %4 = vector.broadcast %3 : vector<1x64xf32> to vector<64x64xf32>
    %5 = arith.mulf %2, %4 : vector<64x64xf32>
    %c0_5 = arith.constant 0 : index
    %c0_6 = arith.constant 0 : index
    %6 = vector.load %arg4[%c0_5, %c0_6] : memref<1x64xf32, #tpu.memory_space<vmem>>, vector<1x64xf32>
    %7 = vector.broadcast %6 : vector<1x64xf32> to vector<64x64xf32>
    %8 = arith.addf %5, %7 : vector<64x64xf32>
    %cst_7 = arith.constant 0.000000e+00 : f32
    %9 = vector.broadcast %cst_7 : f32 to vector<64x64xf32>
    %10 = arith.maximumf %8, %9 : vector<64x64xf32>
    %11 = arith.truncf %10 : vector<64x64xf32> to vector<64x64xbf16>
    %c0_8 = arith.constant 0 : index
    %c0_9 = arith.constant 0 : index
    %12 = vector.load %arg5[%c0_8, %c0_9] : memref<64x64xbf16, #tpu.memory_space<vmem>>, vector<64x64xbf16>
    tpu.vector_store %arg5[%c0_8, %c0_9], %11 {strides = array<i32>} : memref<64x64xbf16, #tpu.memory_space<vmem>>, vector<64x64xbf16>,
    return
  }
  func.func @transform_0(%arg0: i32) -> (i32, i32) {
    %c0_i32 = arith.constant 0 : i32
    %c0_i32_0 = arith.constant 0 : i32
    return %arg0, %c0_i32 : i32, i32
  }
  func.func @transform_1(%arg0: i32) -> (i32, i32) {
    %c0_i32 = arith.constant 0 : i32
    %c0_i32_0 = arith.constant 0 : i32
    %c0_i32_1 = arith.constant 0 : i32
    return %c0_i32, %c0_i32_0 : i32, i32
  }
  func.func @transform_2(%arg0: i32) -> (i32, i32) {
    %c0_i32 = arith.constant 0 : i32
    %c0_i32_0 = arith.constant 0 : i32
    %c0_i32_1 = arith.constant 0 : i32
    return %c0_i32, %c0_i32_0 : i32, i32
  }
  func.func @transform_3(%arg0: i32) -> (i32, i32) {
    %c0_i32 = arith.constant 0 : i32
    %c0_i32_0 = arith.constant 0 : i32
    %c0_i32_1 = arith.constant 0 : i32
    return %c0_i32, %c0_i32_0 : i32, i32
  }
  func.func @transform_4(%arg0: i32) -> (i32, i32) {
    %c0_i32 = arith.constant 0 : i32
    %c0_i32_0 = arith.constant 0 : i32
    return %arg0, %c0_i32 : i32, i32
  }
}

module attributes {stable_mosaic.version = 11 : i64} {
  func.func @_max3_kernel(%arg0: i32, %arg1: memref<32x64xbf16, #tpu.memory_space<vmem>>, %arg2: memref<32x64xbf16, #tpu.memory_space<vmem>>, %arg3: memref<32x64xbf16, #tpu.memory_space<vmem>>, %arg4: memref<32x64xbf16, #tpu.memory_space<vmem>>) attributes {dimension_semantics = [#tpu.dimension_semantics<parallel>], iteration_bounds = array<i64: 1>, scalar_prefetch = 0 : i64, scratch_operands = 0 : i64, tpu.core_type = #tpu.core_type<tc>, window_params = [{transform_indices = @transform_0, window_bounds = array<i64: 32, 64>}, {transform_indices = @transform_1, window_bounds = array<i64: 32, 64>}, {transform_indices = @transform_2, window_bounds = array<i64: 32, 64>}, {transform_indices = @transform_3, window_bounds = array<i64: 32, 64>}]} {
    %c0 = arith.constant 0 : index
    %c0_0 = arith.constant 0 : index
    %0 = vector.load %arg1[%c0, %c0_0] : memref<32x64xbf16, #tpu.memory_space<vmem>>, vector<32x64xbf16>
    %c0_1 = arith.constant 0 : index
    %c0_2 = arith.constant 0 : index
    %1 = vector.load %arg2[%c0_1, %c0_2] : memref<32x64xbf16, #tpu.memory_space<vmem>>, vector<32x64xbf16>
    %2 = arith.maximumf %0, %1 : vector<32x64xbf16>
    %c0_3 = arith.constant 0 : index
    %c0_4 = arith.constant 0 : index
    %3 = vector.load %arg3[%c0_3, %c0_4] : memref<32x64xbf16, #tpu.memory_space<vmem>>, vector<32x64xbf16>
    %4 = arith.maximumf %2, %3 : vector<32x64xbf16>
    %c0_5 = arith.constant 0 : index
    %c0_6 = arith.constant 0 : index
    %5 = vector.load %arg4[%c0_5, %c0_6] : memref<32x64xbf16, #tpu.memory_space<vmem>>, vector<32x64xbf16>
    tpu.vector_store %arg4[%c0_5, %c0_6], %4 {strides = array<i32>} : memref<32x64xbf16, #tpu.memory_space<vmem>>, vector<32x64xbf16>,
    return
  }
  func.func @transform_0(%arg0: i32) -> (i32, i32) {
    %c0_i32 = arith.constant 0 : i32
    %c0_i32_0 = arith.constant 0 : i32
    return %arg0, %c0_i32 : i32, i32
  }
  func.func @transform_1(%arg0: i32) -> (i32, i32) {
    %c0_i32 = arith.constant 0 : i32
    %c0_i32_0 = arith.constant 0 : i32
    return %arg0, %c0_i32 : i32, i32
  }
  func.func @transform_2(%arg0: i32) -> (i32, i32) {
    %c0_i32 = arith.constant 0 : i32
    %c0_i32_0 = arith.constant 0 : i32
    return %arg0, %c0_i32 : i32, i32
  }
  func.func @transform_3(%arg0: i32) -> (i32, i32) {
    %c0_i32 = arith.constant 0 : i32
    %c0_i32_0 = arith.constant 0 : i32
    return %arg0, %c0_i32 : i32, i32
  }
}

module attributes {stable_mosaic.version = 11 : i64} {
  func.func @_block_s1_kernel(%arg0: i32, %arg1: memref<1x18x64xbf16, #tpu.memory_space<vmem>>, %arg2: memref<3x64x64xbf16, #tpu.memory_space<vmem>>, %arg3: memref<1x64xf32, #tpu.memory_space<vmem>>, %arg4: memref<1x64xf32, #tpu.memory_space<vmem>>, %arg5: memref<3x64x64xbf16, #tpu.memory_space<vmem>>, %arg6: memref<1x64xf32, #tpu.memory_space<vmem>>, %arg7: memref<1x64xf32, #tpu.memory_space<vmem>>, %arg8: memref<1x16x64xbf16, #tpu.memory_space<vmem>>, %arg9: memref<48x64xbf16, #tpu.memory_space<vmem>>) attributes {dimension_semantics = [#tpu.dimension_semantics<parallel>], iteration_bounds = array<i64: 2>, scalar_prefetch = 0 : i64, scratch_operands = 1 : i64, tpu.core_type = #tpu.core_type<tc>, window_params = [{transform_indices = @transform_0, window_bounds = array<i64: 1, 18, 64>}, {pipeline_mode = #tpu.pipeline_mode<synchronous>, transform_indices = @transform_1, window_bounds = array<i64: 3, 64, 64>}, {pipeline_mode = #tpu.pipeline_mode<synchronous>, transform_indices = @transform_2, window_bounds = array<i64: 1, 64>}, {pipeline_mode = #tpu.pipeline_mode<synchronous>, transform_indices = @transform_3, window_bounds = array<i64: 1, 64>}, {pipeline_mode = #tpu.pipeline_mode<synchronous>, transform_indices = @transform_4, window_bounds = array<i64: 3, 64, 64>}, {pipeline_mode = #tpu.pipeline_mode<synchronous>, transform_indices = @transform_5, window_bounds = array<i64: 1, 64>}, {pipeline_mode = #tpu.pipeline_mode<synchronous>, transform_indices = @transform_6, window_bounds = array<i64: 1, 64>}, {transform_indices = @transform_7, window_bounds = array<i64: 1, 16, 64>}]} {
    %c0 = arith.constant 0 : index
    %c0_0 = arith.constant 0 : index
    %c0_1 = arith.constant 0 : index
    %0 = vector.load %arg1[%c0, %c0_0, %c0_1] : memref<1x18x64xbf16, #tpu.memory_space<vmem>>, vector<1x16x64xbf16>
    %1 = vector.shape_cast %0 : vector<1x16x64xbf16> to vector<16x64xbf16>
    %c0_2 = arith.constant 0 : index
    %c0_3 = arith.constant 0 : index
    %c0_4 = arith.constant 0 : index
    %2 = vector.load %arg2[%c0_2, %c0_3, %c0_4] : memref<3x64x64xbf16, #tpu.memory_space<vmem>>, vector<1x64x64xbf16>
    %3 = vector.shape_cast %2 : vector<1x64x64xbf16> to vector<64x64xbf16>
    %cst = arith.constant dense<0.000000e+00> : vector<16x64xf32>
    %4 = tpu.matmul %1, %3, %cst {dimension_numbers = #tpu.dot_dimension_numbers<[1], [0], [0], [1], [0, 0, 1, 1], [], []>} : vector<16x64xbf16>, vector<64x64xbf16>, vector<16x64xf32> -> vector<16x64xf32>
    %c0_5 = arith.constant 0 : index
    %c1 = arith.constant 1 : index
    %c0_6 = arith.constant 0 : index
    %5 = vector.load %arg1[%c0_5, %c1, %c0_6] : memref<1x18x64xbf16, #tpu.memory_space<vmem>>, vector<1x16x64xbf16>
    %6 = vector.shape_cast %5 : vector<1x16x64xbf16> to vector<16x64xbf16>
    %c1_7 = arith.constant 1 : index
    %c0_8 = arith.constant 0 : index
    %c0_9 = arith.constant 0 : index
    %7 = vector.load %arg2[%c1_7, %c0_8, %c0_9] : memref<3x64x64xbf16, #tpu.memory_space<vmem>>, vector<1x64x64xbf16>
    %8 = vector.shape_cast %7 : vector<1x64x64xbf16> to vector<64x64xbf16>
    %cst_10 = arith.constant dense<0.000000e+00> : vector<16x64xf32>
    %9 = tpu.matmul %6, %8, %cst_10 {dimension_numbers = #tpu.dot_dimension_numbers<[1], [0], [0], [1], [0, 0, 1, 1], [], []>} : vector<16x64xbf16>, vector<64x64xbf16>, vector<16x64xf32> -> vector<16x64xf32>
    %10 = arith.addf %4, %9 : vector<16x64xf32>
    %c0_11 = arith.constant 0 : index
    %c2 = arith.constant 2 : index
    %c0_12 = arith.constant 0 : index
    %11 = vector.load %arg1[%c0_11, %c2, %c0_12] : memref<1x18x64xbf16, #tpu.memory_space<vmem>>, vector<1x16x64xbf16>
    %12 = vector.shape_cast %11 : vector<1x16x64xbf16> to vector<16x64xbf16>
    %c2_13 = arith.constant 2 : index
    %c0_14 = arith.constant 0 : index
    %c0_15 = arith.constant 0 : index
    %13 = vector.load %arg2[%c2_13, %c0_14, %c0_15] : memref<3x64x64xbf16, #tpu.memory_space<vmem>>, vector<1x64x64xbf16>
    %14 = vector.shape_cast %13 : vector<1x64x64xbf16> to vector<64x64xbf16>
    %cst_16 = arith.constant dense<0.000000e+00> : vector<16x64xf32>
    %15 = tpu.matmul %12, %14, %cst_16 {dimension_numbers = #tpu.dot_dimension_numbers<[1], [0], [0], [1], [0, 0, 1, 1], [], []>} : vector<16x64xbf16>, vector<64x64xbf16>, vector<16x64xf32> -> vector<16x64xf32>
    %16 = arith.addf %10, %15 : vector<16x64xf32>
    %c0_17 = arith.constant 0 : index
    %c0_18 = arith.constant 0 : index
    %17 = vector.load %arg3[%c0_17, %c0_18] : memref<1x64xf32, #tpu.memory_space<vmem>>, vector<1x64xf32>
    %18 = vector.broadcast %17 : vector<1x64xf32> to vector<16x64xf32>
    %19 = arith.mulf %16, %18 : vector<16x64xf32>
    %c0_19 = arith.constant 0 : index
    %c0_20 = arith.constant 0 : index
    %20 = vector.load %arg4[%c0_19, %c0_20] : memref<1x64xf32, #tpu.memory_space<vmem>>, vector<1x64xf32>
    %21 = vector.broadcast %20 : vector<1x64xf32> to vector<16x64xf32>
    %22 = arith.addf %19, %21 : vector<16x64xf32>
    %cst_21 = arith.constant 0.000000e+00 : f32
    %23 = vector.broadcast %cst_21 : f32 to vector<16x64xf32>
    %24 = arith.maximumf %22, %23 : vector<16x64xf32>
    %cst_22 = arith.constant 0.000000e+00 : bf16
    %25 = vector.broadcast %cst_22 : bf16 to vector<48x64xbf16>
    %c0_23 = arith.constant 0 : index
    %c0_24 = arith.constant 0 : index
    %26 = vector.load %arg9[%c0_23, %c0_24] : memref<48x64xbf16, #tpu.memory_space<vmem>>, vector<48x64xbf16>
    tpu.vector_store %arg9[%c0_23, %c0_24], %25 {strides = array<i32>} : memref<48x64xbf16, #tpu.memory_space<vmem>>, vector<48x64xbf16>,
    %27 = arith.truncf %24 : vector<16x64xf32> to vector<16x64xbf16>
    %c16 = arith.constant 16 : index
    %c0_25 = arith.constant 0 : index
    %28 = vector.load %arg9[%c16, %c0_25] : memref<48x64xbf16, #tpu.memory_space<vmem>>, vector<16x64xbf16>
    tpu.vector_store %arg9[%c16, %c0_25], %27 {strides = array<i32>} : memref<48x64xbf16, #tpu.memory_space<vmem>>, vector<16x64xbf16>,
    %c15 = arith.constant 15 : index
    %c0_26 = arith.constant 0 : index
    %29 = vector.load %arg9[%c15, %c0_26] : memref<48x64xbf16, #tpu.memory_space<vmem>>, vector<16x64xbf16>
    %c0_27 = arith.constant 0 : index
    %c0_28 = arith.constant 0 : index
    %c0_29 = arith.constant 0 : index
    %30 = vector.load %arg5[%c0_27, %c0_28, %c0_29] : memref<3x64x64xbf16, #tpu.memory_space<vmem>>, vector<1x64x64xbf16>
    %31 = vector.shape_cast %30 : vector<1x64x64xbf16> to vector<64x64xbf16>
    %cst_30 = arith.constant dense<0.000000e+00> : vector<16x64xf32>
    %32 = tpu.matmul %29, %31, %cst_30 {dimension_numbers = #tpu.dot_dimension_numbers<[1], [0], [0], [1], [0, 0, 1, 1], [], []>} : vector<16x64xbf16>, vector<64x64xbf16>, vector<16x64xf32> -> vector<16x64xf32>
    %c16_31 = arith.constant 16 : index
    %c0_32 = arith.constant 0 : index
    %33 = vector.load %arg9[%c16_31, %c0_32] : memref<48x64xbf16, #tpu.memory_space<vmem>>, vector<16x64xbf16>
    %c1_33 = arith.constant 1 : index
    %c0_34 = arith.constant 0 : index
    %c0_35 = arith.constant 0 : index
    %34 = vector.load %arg5[%c1_33, %c0_34, %c0_35] : memref<3x64x64xbf16, #tpu.memory_space<vmem>>, vector<1x64x64xbf16>
    %35 = vector.shape_cast %34 : vector<1x64x64xbf16> to vector<64x64xbf16>
    %cst_36 = arith.constant dense<0.000000e+00> : vector<16x64xf32>
    %36 = tpu.matmul %33, %35, %cst_36 {dimension_numbers = #tpu.dot_dimension_numbers<[1], [0], [0], [1], [0, 0, 1, 1], [], []>} : vector<16x64xbf16>, vector<64x64xbf16>, vector<16x64xf32> -> vector<16x64xf32>
    %37 = arith.addf %32, %36 : vector<16x64xf32>
    %c17 = arith.constant 17 : index
    %c0_37 = arith.constant 0 : index
    %38 = vector.load %arg9[%c17, %c0_37] : memref<48x64xbf16, #tpu.memory_space<vmem>>, vector<16x64xbf16>
    %c2_38 = arith.constant 2 : index
    %c0_39 = arith.constant 0 : index
    %c0_40 = arith.constant 0 : index
    %39 = vector.load %arg5[%c2_38, %c0_39, %c0_40] : memref<3x64x64xbf16, #tpu.memory_space<vmem>>, vector<1x64x64xbf16>
    %40 = vector.shape_cast %39 : vector<1x64x64xbf16> to vector<64x64xbf16>
    %cst_41 = arith.constant dense<0.000000e+00> : vector<16x64xf32>
    %41 = tpu.matmul %38, %40, %cst_41 {dimension_numbers = #tpu.dot_dimension_numbers<[1], [0], [0], [1], [0, 0, 1, 1], [], []>} : vector<16x64xbf16>, vector<64x64xbf16>, vector<16x64xf32> -> vector<16x64xf32>
    %42 = arith.addf %37, %41 : vector<16x64xf32>
    %c0_42 = arith.constant 0 : index
    %c1_43 = arith.constant 1 : index
    %c0_44 = arith.constant 0 : index
    %43 = vector.load %arg1[%c0_42, %c1_43, %c0_44] : memref<1x18x64xbf16, #tpu.memory_space<vmem>>, vector<1x16x64xbf16>
    %44 = vector.shape_cast %43 : vector<1x16x64xbf16> to vector<16x64xbf16>
    %45 = arith.extf %44 : vector<16x64xbf16> to vector<16x64xf32>
    %c0_45 = arith.constant 0 : index
    %c0_46 = arith.constant 0 : index
    %46 = vector.load %arg6[%c0_45, %c0_46] : memref<1x64xf32, #tpu.memory_space<vmem>>, vector<1x64xf32>
    %47 = vector.broadcast %46 : vector<1x64xf32> to vector<16x64xf32>
    %48 = arith.mulf %42, %47 : vector<16x64xf32>
    %c0_47 = arith.constant 0 : index
    %c0_48 = arith.constant 0 : index
    %49 = vector.load %arg7[%c0_47, %c0_48] : memref<1x64xf32, #tpu.memory_space<vmem>>, vector<1x64xf32>
    %50 = vector.broadcast %49 : vector<1x64xf32> to vector<16x64xf32>
    %51 = arith.addf %48, %50 : vector<16x64xf32>
    %52 = arith.addf %51, %45 : vector<16x64xf32>
    %cst_49 = arith.constant 0.000000e+00 : f32
    %53 = vector.broadcast %cst_49 : f32 to vector<16x64xf32>
    %54 = arith.maximumf %52, %53 : vector<16x64xf32>
    %55 = arith.truncf %54 : vector<16x64xf32> to vector<16x64xbf16>
    %c0_50 = arith.constant 0 : index
    %c0_51 = arith.constant 0 : index
    %c0_52 = arith.constant 0 : index
    %56 = vector.load %arg8[%c0_50, %c0_51, %c0_52] : memref<1x16x64xbf16, #tpu.memory_space<vmem>>, vector<1x16x64xbf16>
    %57 = vector.shape_cast %56 : vector<1x16x64xbf16> to vector<16x64xbf16>
    %58 = vector.shape_cast %55 : vector<16x64xbf16> to vector<1x16x64xbf16>
    tpu.vector_store %arg8[%c0_50, %c0_51, %c0_52], %58 {strides = array<i32>} : memref<1x16x64xbf16, #tpu.memory_space<vmem>>, vector<1x16x64xbf16>,
    return
  }
  func.func @transform_0(%arg0: i32) -> (i32, i32, i32) {
    %c0_i32 = arith.constant 0 : i32
    %c0_i32_0 = arith.constant 0 : i32
    %c0_i32_1 = arith.constant 0 : i32
    return %arg0, %c0_i32, %c0_i32_0 : i32, i32, i32
  }
  func.func @transform_1(%arg0: i32) -> (i32, i32, i32) {
    %c0_i32 = arith.constant 0 : i32
    %c0_i32_0 = arith.constant 0 : i32
    %c0_i32_1 = arith.constant 0 : i32
    %c0_i32_2 = arith.constant 0 : i32
    return %c0_i32, %c0_i32_0, %c0_i32_1 : i32, i32, i32
  }
  func.func @transform_2(%arg0: i32) -> (i32, i32) {
    %c0_i32 = arith.constant 0 : i32
    %c0_i32_0 = arith.constant 0 : i32
    %c0_i32_1 = arith.constant 0 : i32
    return %c0_i32, %c0_i32_0 : i32, i32
  }
  func.func @transform_3(%arg0: i32) -> (i32, i32) {
    %c0_i32 = arith.constant 0 : i32
    %c0_i32_0 = arith.constant 0 : i32
    %c0_i32_1 = arith.constant 0 : i32
    return %c0_i32, %c0_i32_0 : i32, i32
  }
  func.func @transform_4(%arg0: i32) -> (i32, i32, i32) {
    %c0_i32 = arith.constant 0 : i32
    %c0_i32_0 = arith.constant 0 : i32
    %c0_i32_1 = arith.constant 0 : i32
    %c0_i32_2 = arith.constant 0 : i32
    return %c0_i32, %c0_i32_0, %c0_i32_1 : i32, i32, i32
  }
  func.func @transform_5(%arg0: i32) -> (i32, i32) {
    %c0_i32 = arith.constant 0 : i32
    %c0_i32_0 = arith.constant 0 : i32
    %c0_i32_1 = arith.constant 0 : i32
    return %c0_i32, %c0_i32_0 : i32, i32
  }
  func.func @transform_6(%arg0: i32) -> (i32, i32) {
    %c0_i32 = arith.constant 0 : i32
    %c0_i32_0 = arith.constant 0 : i32
    %c0_i32_1 = arith.constant 0 : i32
    return %c0_i32, %c0_i32_0 : i32, i32
  }
  func.func @transform_7(%arg0: i32) -> (i32, i32, i32) {
    %c0_i32 = arith.constant 0 : i32
    %c0_i32_0 = arith.constant 0 : i32
    %c0_i32_1 = arith.constant 0 : i32
    return %arg0, %c0_i32, %c0_i32_0 : i32, i32, i32
  }
}

module attributes {stable_mosaic.version = 11 : i64} {
  func.func @_block_s2_kernel(%arg0: i32, %arg1: memref<1x8x64xbf16, #tpu.memory_space<vmem>>, %arg2: memref<1x8x64xbf16, #tpu.memory_space<vmem>>, %arg3: memref<1x8x64xbf16, #tpu.memory_space<vmem>>, %arg4: memref<3x64x128xbf16, #tpu.memory_space<vmem>>, %arg5: memref<1x128xf32, #tpu.memory_space<vmem>>, %arg6: memref<1x128xf32, #tpu.memory_space<vmem>>, %arg7: memref<64x128xbf16, #tpu.memory_space<vmem>>, %arg8: memref<1x128xf32, #tpu.memory_space<vmem>>, %arg9: memref<1x128xf32, #tpu.memory_space<vmem>>, %arg10: memref<3x128x128xbf16, #tpu.memory_space<vmem>>, %arg11: memref<1x128xf32, #tpu.memory_space<vmem>>, %arg12: memref<1x128xf32, #tpu.memory_space<vmem>>, %arg13: memref<1x8x128xbf16, #tpu.memory_space<vmem>>, %arg14: memref<40x128xbf16, #tpu.memory_space<vmem>>) attributes {dimension_semantics = [#tpu.dimension_semantics<parallel>], iteration_bounds = array<i64: 2>, scalar_prefetch = 0 : i64, scratch_operands = 1 : i64, tpu.core_type = #tpu.core_type<tc>, window_params = [{transform_indices = @transform_0, window_bounds = array<i64: 1, 8, 64>}, {transform_indices = @transform_1, window_bounds = array<i64: 1, 8, 64>}, {transform_indices = @transform_2, window_bounds = array<i64: 1, 8, 64>}, {pipeline_mode = #tpu.pipeline_mode<synchronous>, transform_indices = @transform_3, window_bounds = array<i64: 3, 64, 128>}, {pipeline_mode = #tpu.pipeline_mode<synchronous>, transform_indices = @transform_4, window_bounds = array<i64: 1, 128>}, {pipeline_mode = #tpu.pipeline_mode<synchronous>, transform_indices = @transform_5, window_bounds = array<i64: 1, 128>}, {pipeline_mode = #tpu.pipeline_mode<synchronous>, transform_indices = @transform_6, window_bounds = array<i64: 64, 128>}, {pipeline_mode = #tpu.pipeline_mode<synchronous>, transform_indices = @transform_7, window_bounds = array<i64: 1, 128>}, {pipeline_mode = #tpu.pipeline_mode<synchronous>, transform_indices = @transform_8, window_bounds = array<i64: 1, 128>}, {pipeline_mode = #tpu.pipeline_mode<synchronous>, transform_indices = @transform_9, window_bounds = array<i64: 3, 128, 128>}, {pipeline_mode = #tpu.pipeline_mode<synchronous>, transform_indices = @transform_10, window_bounds = array<i64: 1, 128>}, {pipeline_mode = #tpu.pipeline_mode<synchronous>, transform_indices = @transform_11, window_bounds = array<i64: 1, 128>}, {transform_indices = @transform_12, window_bounds = array<i64: 1, 8, 128>}]} {
    %c0 = arith.constant 0 : index
    %c0_0 = arith.constant 0 : index
    %c0_1 = arith.constant 0 : index
    %0 = vector.load %arg1[%c0, %c0_0, %c0_1] : memref<1x8x64xbf16, #tpu.memory_space<vmem>>, vector<1x8x64xbf16>
    %1 = vector.shape_cast %0 : vector<1x8x64xbf16> to vector<8x64xbf16>
    %c0_2 = arith.constant 0 : index
    %c0_3 = arith.constant 0 : index
    %c0_4 = arith.constant 0 : index
    %2 = vector.load %arg4[%c0_2, %c0_3, %c0_4] : memref<3x64x128xbf16, #tpu.memory_space<vmem>>, vector<1x64x128xbf16>
    %3 = vector.shape_cast %2 : vector<1x64x128xbf16> to vector<64x128xbf16>
    %cst = arith.constant dense<0.000000e+00> : vector<8x128xf32>
    %4 = tpu.matmul %1, %3, %cst {dimension_numbers = #tpu.dot_dimension_numbers<[1], [0], [0], [1], [0, 0, 1, 1], [], []>} : vector<8x64xbf16>, vector<64x128xbf16>, vector<8x128xf32> -> vector<8x128xf32>
    %c0_5 = arith.constant 0 : index
    %c0_6 = arith.constant 0 : index
    %c0_7 = arith.constant 0 : index
    %5 = vector.load %arg2[%c0_5, %c0_6, %c0_7] : memref<1x8x64xbf16, #tpu.memory_space<vmem>>, vector<1x8x64xbf16>
    %6 = vector.shape_cast %5 : vector<1x8x64xbf16> to vector<8x64xbf16>
    %c1 = arith.constant 1 : index
    %c0_8 = arith.constant 0 : index
    %c0_9 = arith.constant 0 : index
    %7 = vector.load %arg4[%c1, %c0_8, %c0_9] : memref<3x64x128xbf16, #tpu.memory_space<vmem>>, vector<1x64x128xbf16>
    %8 = vector.shape_cast %7 : vector<1x64x128xbf16> to vector<64x128xbf16>
    %cst_10 = arith.constant dense<0.000000e+00> : vector<8x128xf32>
    %9 = tpu.matmul %6, %8, %cst_10 {dimension_numbers = #tpu.dot_dimension_numbers<[1], [0], [0], [1], [0, 0, 1, 1], [], []>} : vector<8x64xbf16>, vector<64x128xbf16>, vector<8x128xf32> -> vector<8x128xf32>
    %10 = arith.addf %4, %9 : vector<8x128xf32>
    %c0_11 = arith.constant 0 : index
    %c0_12 = arith.constant 0 : index
    %c0_13 = arith.constant 0 : index
    %11 = vector.load %arg3[%c0_11, %c0_12, %c0_13] : memref<1x8x64xbf16, #tpu.memory_space<vmem>>, vector<1x8x64xbf16>
    %12 = vector.shape_cast %11 : vector<1x8x64xbf16> to vector<8x64xbf16>
    %c2 = arith.constant 2 : index
    %c0_14 = arith.constant 0 : index
    %c0_15 = arith.constant 0 : index
    %13 = vector.load %arg4[%c2, %c0_14, %c0_15] : memref<3x64x128xbf16, #tpu.memory_space<vmem>>, vector<1x64x128xbf16>
    %14 = vector.shape_cast %13 : vector<1x64x128xbf16> to vector<64x128xbf16>
    %cst_16 = arith.constant dense<0.000000e+00> : vector<8x128xf32>
    %15 = tpu.matmul %12, %14, %cst_16 {dimension_numbers = #tpu.dot_dimension_numbers<[1], [0], [0], [1], [0, 0, 1, 1], [], []>} : vector<8x64xbf16>, vector<64x128xbf16>, vector<8x128xf32> -> vector<8x128xf32>
    %16 = arith.addf %10, %15 : vector<8x128xf32>
    %c0_17 = arith.constant 0 : index
    %c0_18 = arith.constant 0 : index
    %17 = vector.load %arg5[%c0_17, %c0_18] : memref<1x128xf32, #tpu.memory_space<vmem>>, vector<1x128xf32>
    %18 = vector.broadcast %17 : vector<1x128xf32> to vector<8x128xf32>
    %19 = arith.mulf %16, %18 : vector<8x128xf32>
    %c0_19 = arith.constant 0 : index
    %c0_20 = arith.constant 0 : index
    %20 = vector.load %arg6[%c0_19, %c0_20] : memref<1x128xf32, #tpu.memory_space<vmem>>, vector<1x128xf32>
    %21 = vector.broadcast %20 : vector<1x128xf32> to vector<8x128xf32>
    %22 = arith.addf %19, %21 : vector<8x128xf32>
    %cst_21 = arith.constant 0.000000e+00 : f32
    %23 = vector.broadcast %cst_21 : f32 to vector<8x128xf32>
    %24 = arith.maximumf %22, %23 : vector<8x128xf32>
    %c0_22 = arith.constant 0 : index
    %c0_23 = arith.constant 0 : index
    %c0_24 = arith.constant 0 : index
    %25 = vector.load %arg2[%c0_22, %c0_23, %c0_24] : memref<1x8x64xbf16, #tpu.memory_space<vmem>>, vector<1x8x64xbf16>
    %26 = vector.shape_cast %25 : vector<1x8x64xbf16> to vector<8x64xbf16>
    %c0_25 = arith.constant 0 : index
    %c0_26 = arith.constant 0 : index
    %27 = vector.load %arg7[%c0_25, %c0_26] : memref<64x128xbf16, #tpu.memory_space<vmem>>, vector<64x128xbf16>
    %cst_27 = arith.constant dense<0.000000e+00> : vector<8x128xf32>
    %28 = tpu.matmul %26, %27, %cst_27 {dimension_numbers = #tpu.dot_dimension_numbers<[1], [0], [0], [1], [0, 0, 1, 1], [], []>} : vector<8x64xbf16>, vector<64x128xbf16>, vector<8x128xf32> -> vector<8x128xf32>
    %c0_28 = arith.constant 0 : index
    %c0_29 = arith.constant 0 : index
    %29 = vector.load %arg8[%c0_28, %c0_29] : memref<1x128xf32, #tpu.memory_space<vmem>>, vector<1x128xf32>
    %30 = vector.broadcast %29 : vector<1x128xf32> to vector<8x128xf32>
    %31 = arith.mulf %28, %30 : vector<8x128xf32>
    %c0_30 = arith.constant 0 : index
    %c0_31 = arith.constant 0 : index
    %32 = vector.load %arg9[%c0_30, %c0_31] : memref<1x128xf32, #tpu.memory_space<vmem>>, vector<1x128xf32>
    %33 = vector.broadcast %32 : vector<1x128xf32> to vector<8x128xf32>
    %34 = arith.addf %31, %33 : vector<8x128xf32>
    %cst_32 = arith.constant 0.000000e+00 : bf16
    %35 = vector.broadcast %cst_32 : bf16 to vector<40x128xbf16>
    %c0_33 = arith.constant 0 : index
    %c0_34 = arith.constant 0 : index
    %36 = vector.load %arg14[%c0_33, %c0_34] : memref<40x128xbf16, #tpu.memory_space<vmem>>, vector<40x128xbf16>
    tpu.vector_store %arg14[%c0_33, %c0_34], %35 {strides = array<i32>} : memref<40x128xbf16, #tpu.memory_space<vmem>>, vector<40x128xbf16>,
    %37 = arith.truncf %24 : vector<8x128xf32> to vector<8x128xbf16>
    %c16 = arith.constant 16 : index
    %c0_35 = arith.constant 0 : index
    %38 = vector.load %arg14[%c16, %c0_35] : memref<40x128xbf16, #tpu.memory_space<vmem>>, vector<8x128xbf16>
    tpu.vector_store %arg14[%c16, %c0_35], %37 {strides = array<i32>} : memref<40x128xbf16, #tpu.memory_space<vmem>>, vector<8x128xbf16>,
    %c15 = arith.constant 15 : index
    %c0_36 = arith.constant 0 : index
    %39 = vector.load %arg14[%c15, %c0_36] : memref<40x128xbf16, #tpu.memory_space<vmem>>, vector<8x128xbf16>
    %c0_37 = arith.constant 0 : index
    %c0_38 = arith.constant 0 : index
    %c0_39 = arith.constant 0 : index
    %40 = vector.load %arg10[%c0_37, %c0_38, %c0_39] : memref<3x128x128xbf16, #tpu.memory_space<vmem>>, vector<1x128x128xbf16>
    %41 = vector.shape_cast %40 : vector<1x128x128xbf16> to vector<128x128xbf16>
    %cst_40 = arith.constant dense<0.000000e+00> : vector<8x128xf32>
    %42 = tpu.matmul %39, %41, %cst_40 {dimension_numbers = #tpu.dot_dimension_numbers<[1], [0], [0], [1], [0, 0, 1, 1], [], []>} : vector<8x128xbf16>, vector<128x128xbf16>, vector<8x128xf32> -> vector<8x128xf32>
    %c16_41 = arith.constant 16 : index
    %c0_42 = arith.constant 0 : index
    %43 = vector.load %arg14[%c16_41, %c0_42] : memref<40x128xbf16, #tpu.memory_space<vmem>>, vector<8x128xbf16>
    %c1_43 = arith.constant 1 : index
    %c0_44 = arith.constant 0 : index
    %c0_45 = arith.constant 0 : index
    %44 = vector.load %arg10[%c1_43, %c0_44, %c0_45] : memref<3x128x128xbf16, #tpu.memory_space<vmem>>, vector<1x128x128xbf16>
    %45 = vector.shape_cast %44 : vector<1x128x128xbf16> to vector<128x128xbf16>
    %cst_46 = arith.constant dense<0.000000e+00> : vector<8x128xf32>
    %46 = tpu.matmul %43, %45, %cst_46 {dimension_numbers = #tpu.dot_dimension_numbers<[1], [0], [0], [1], [0, 0, 1, 1], [], []>} : vector<8x128xbf16>, vector<128x128xbf16>, vector<8x128xf32> -> vector<8x128xf32>
    %47 = arith.addf %42, %46 : vector<8x128xf32>
    %c17 = arith.constant 17 : index
    %c0_47 = arith.constant 0 : index
    %48 = vector.load %arg14[%c17, %c0_47] : memref<40x128xbf16, #tpu.memory_space<vmem>>, vector<8x128xbf16>
    %c2_48 = arith.constant 2 : index
    %c0_49 = arith.constant 0 : index
    %c0_50 = arith.constant 0 : index
    %49 = vector.load %arg10[%c2_48, %c0_49, %c0_50] : memref<3x128x128xbf16, #tpu.memory_space<vmem>>, vector<1x128x128xbf16>
    %50 = vector.shape_cast %49 : vector<1x128x128xbf16> to vector<128x128xbf16>
    %cst_51 = arith.constant dense<0.000000e+00> : vector<8x128xf32>
    %51 = tpu.matmul %48, %50, %cst_51 {dimension_numbers = #tpu.dot_dimension_numbers<[1], [0], [0], [1], [0, 0, 1, 1], [], []>} : vector<8x128xbf16>, vector<128x128xbf16>, vector<8x128xf32> -> vector<8x128xf32>
    %52 = arith.addf %47, %51 : vector<8x128xf32>
    %c0_52 = arith.constant 0 : index
    %c0_53 = arith.constant 0 : index
    %53 = vector.load %arg11[%c0_52, %c0_53] : memref<1x128xf32, #tpu.memory_space<vmem>>, vector<1x128xf32>
    %54 = vector.broadcast %53 : vector<1x128xf32> to vector<8x128xf32>
    %55 = arith.mulf %52, %54 : vector<8x128xf32>
    %c0_54 = arith.constant 0 : index
    %c0_55 = arith.constant 0 : index
    %56 = vector.load %arg12[%c0_54, %c0_55] : memref<1x128xf32, #tpu.memory_space<vmem>>, vector<1x128xf32>
    %57 = vector.broadcast %56 : vector<1x128xf32> to vector<8x128xf32>
    %58 = arith.addf %55, %57 : vector<8x128xf32>
    %59 = arith.addf %58, %34 : vector<8x128xf32>
    %cst_56 = arith.constant 0.000000e+00 : f32
    %60 = vector.broadcast %cst_56 : f32 to vector<8x128xf32>
    %61 = arith.maximumf %59, %60 : vector<8x128xf32>
    %62 = arith.truncf %61 : vector<8x128xf32> to vector<8x128xbf16>
    %c0_57 = arith.constant 0 : index
    %c0_58 = arith.constant 0 : index
    %c0_59 = arith.constant 0 : index
    %63 = vector.load %arg13[%c0_57, %c0_58, %c0_59] : memref<1x8x128xbf16, #tpu.memory_space<vmem>>, vector<1x8x128xbf16>
    %64 = vector.shape_cast %63 : vector<1x8x128xbf16> to vector<8x128xbf16>
    %65 = vector.shape_cast %62 : vector<8x128xbf16> to vector<1x8x128xbf16>
    tpu.vector_store %arg13[%c0_57, %c0_58, %c0_59], %65 {strides = array<i32>} : memref<1x8x128xbf16, #tpu.memory_space<vmem>>, vector<1x8x128xbf16>,
    return
  }
  func.func @transform_0(%arg0: i32) -> (i32, i32, i32) {
    %c0_i32 = arith.constant 0 : i32
    %c0_i32_0 = arith.constant 0 : i32
    %c0_i32_1 = arith.constant 0 : i32
    return %arg0, %c0_i32, %c0_i32_0 : i32, i32, i32
  }
  func.func @transform_1(%arg0: i32) -> (i32, i32, i32) {
    %c0_i32 = arith.constant 0 : i32
    %c0_i32_0 = arith.constant 0 : i32
    %c0_i32_1 = arith.constant 0 : i32
    return %arg0, %c0_i32, %c0_i32_0 : i32, i32, i32
  }
  func.func @transform_2(%arg0: i32) -> (i32, i32, i32) {
    %c0_i32 = arith.constant 0 : i32
    %c0_i32_0 = arith.constant 0 : i32
    %c0_i32_1 = arith.constant 0 : i32
    return %arg0, %c0_i32, %c0_i32_0 : i32, i32, i32
  }
  func.func @transform_3(%arg0: i32) -> (i32, i32, i32) {
    %c0_i32 = arith.constant 0 : i32
    %c0_i32_0 = arith.constant 0 : i32
    %c0_i32_1 = arith.constant 0 : i32
    %c0_i32_2 = arith.constant 0 : i32
    return %c0_i32, %c0_i32_0, %c0_i32_1 : i32, i32, i32
  }
  func.func @transform_4(%arg0: i32) -> (i32, i32) {
    %c0_i32 = arith.constant 0 : i32
    %c0_i32_0 = arith.constant 0 : i32
    %c0_i32_1 = arith.constant 0 : i32
    return %c0_i32, %c0_i32_0 : i32, i32
  }
  func.func @transform_5(%arg0: i32) -> (i32, i32) {
    %c0_i32 = arith.constant 0 : i32
    %c0_i32_0 = arith.constant 0 : i32
    %c0_i32_1 = arith.constant 0 : i32
    return %c0_i32, %c0_i32_0 : i32, i32
  }
  func.func @transform_6(%arg0: i32) -> (i32, i32) {
    %c0_i32 = arith.constant 0 : i32
    %c0_i32_0 = arith.constant 0 : i32
    %c0_i32_1 = arith.constant 0 : i32
    return %c0_i32, %c0_i32_0 : i32, i32
  }
  func.func @transform_7(%arg0: i32) -> (i32, i32) {
    %c0_i32 = arith.constant 0 : i32
    %c0_i32_0 = arith.constant 0 : i32
    %c0_i32_1 = arith.constant 0 : i32
    return %c0_i32, %c0_i32_0 : i32, i32
  }
  func.func @transform_8(%arg0: i32) -> (i32, i32) {
    %c0_i32 = arith.constant 0 : i32
    %c0_i32_0 = arith.constant 0 : i32
    %c0_i32_1 = arith.constant 0 : i32
    return %c0_i32, %c0_i32_0 : i32, i32
  }
  func.func @transform_9(%arg0: i32) -> (i32, i32, i32) {
    %c0_i32 = arith.constant 0 : i32
    %c0_i32_0 = arith.constant 0 : i32
    %c0_i32_1 = arith.constant 0 : i32
    %c0_i32_2 = arith.constant 0 : i32
    return %c0_i32, %c0_i32_0, %c0_i32_1 : i32, i32, i32
  }
  func.func @transform_10(%arg0: i32) -> (i32, i32) {
    %c0_i32 = arith.constant 0 : i32
    %c0_i32_0 = arith.constant 0 : i32
    %c0_i32_1 = arith.constant 0 : i32
    return %c0_i32, %c0_i32_0 : i32, i32
  }
  func.func @transform_11(%arg0: i32) -> (i32, i32) {
    %c0_i32 = arith.constant 0 : i32
    %c0_i32_0 = arith.constant 0 : i32
    %c0_i32_1 = arith.constant 0 : i32
    return %c0_i32, %c0_i32_0 : i32, i32
  }
  func.func @transform_12(%arg0: i32) -> (i32, i32, i32) {
    %c0_i32 = arith.constant 0 : i32
    %c0_i32_0 = arith.constant 0 : i32
    %c0_i32_1 = arith.constant 0 : i32
    return %arg0, %c0_i32, %c0_i32_0 : i32, i32, i32
  }
}

module attributes {stable_mosaic.version = 11 : i64} {
  func.func @_block_s1_kernel(%arg0: i32, %arg1: memref<1x10x128xbf16, #tpu.memory_space<vmem>>, %arg2: memref<3x128x128xbf16, #tpu.memory_space<vmem>>, %arg3: memref<1x128xf32, #tpu.memory_space<vmem>>, %arg4: memref<1x128xf32, #tpu.memory_space<vmem>>, %arg5: memref<3x128x128xbf16, #tpu.memory_space<vmem>>, %arg6: memref<1x128xf32, #tpu.memory_space<vmem>>, %arg7: memref<1x128xf32, #tpu.memory_space<vmem>>, %arg8: memref<1x8x128xbf16, #tpu.memory_space<vmem>>, %arg9: memref<40x128xbf16, #tpu.memory_space<vmem>>) attributes {dimension_semantics = [#tpu.dimension_semantics<parallel>], iteration_bounds = array<i64: 2>, scalar_prefetch = 0 : i64, scratch_operands = 1 : i64, tpu.core_type = #tpu.core_type<tc>, window_params = [{transform_indices = @transform_0, window_bounds = array<i64: 1, 10, 128>}, {pipeline_mode = #tpu.pipeline_mode<synchronous>, transform_indices = @transform_1, window_bounds = array<i64: 3, 128, 128>}, {pipeline_mode = #tpu.pipeline_mode<synchronous>, transform_indices = @transform_2, window_bounds = array<i64: 1, 128>}, {pipeline_mode = #tpu.pipeline_mode<synchronous>, transform_indices = @transform_3, window_bounds = array<i64: 1, 128>}, {pipeline_mode = #tpu.pipeline_mode<synchronous>, transform_indices = @transform_4, window_bounds = array<i64: 3, 128, 128>}, {pipeline_mode = #tpu.pipeline_mode<synchronous>, transform_indices = @transform_5, window_bounds = array<i64: 1, 128>}, {pipeline_mode = #tpu.pipeline_mode<synchronous>, transform_indices = @transform_6, window_bounds = array<i64: 1, 128>}, {transform_indices = @transform_7, window_bounds = array<i64: 1, 8, 128>}]} {
    %c0 = arith.constant 0 : index
    %c0_0 = arith.constant 0 : index
    %c0_1 = arith.constant 0 : index
    %0 = vector.load %arg1[%c0, %c0_0, %c0_1] : memref<1x10x128xbf16, #tpu.memory_space<vmem>>, vector<1x8x128xbf16>
    %1 = vector.shape_cast %0 : vector<1x8x128xbf16> to vector<8x128xbf16>
    %c0_2 = arith.constant 0 : index
    %c0_3 = arith.constant 0 : index
    %c0_4 = arith.constant 0 : index
    %2 = vector.load %arg2[%c0_2, %c0_3, %c0_4] : memref<3x128x128xbf16, #tpu.memory_space<vmem>>, vector<1x128x128xbf16>
    %3 = vector.shape_cast %2 : vector<1x128x128xbf16> to vector<128x128xbf16>
    %cst = arith.constant dense<0.000000e+00> : vector<8x128xf32>
    %4 = tpu.matmul %1, %3, %cst {dimension_numbers = #tpu.dot_dimension_numbers<[1], [0], [0], [1], [0, 0, 1, 1], [], []>} : vector<8x128xbf16>, vector<128x128xbf16>, vector<8x128xf32> -> vector<8x128xf32>
    %c0_5 = arith.constant 0 : index
    %c1 = arith.constant 1 : index
    %c0_6 = arith.constant 0 : index
    %5 = vector.load %arg1[%c0_5, %c1, %c0_6] : memref<1x10x128xbf16, #tpu.memory_space<vmem>>, vector<1x8x128xbf16>
    %6 = vector.shape_cast %5 : vector<1x8x128xbf16> to vector<8x128xbf16>
    %c1_7 = arith.constant 1 : index
    %c0_8 = arith.constant 0 : index
    %c0_9 = arith.constant 0 : index
    %7 = vector.load %arg2[%c1_7, %c0_8, %c0_9] : memref<3x128x128xbf16, #tpu.memory_space<vmem>>, vector<1x128x128xbf16>
    %8 = vector.shape_cast %7 : vector<1x128x128xbf16> to vector<128x128xbf16>
    %cst_10 = arith.constant dense<0.000000e+00> : vector<8x128xf32>
    %9 = tpu.matmul %6, %8, %cst_10 {dimension_numbers = #tpu.dot_dimension_numbers<[1], [0], [0], [1], [0, 0, 1, 1], [], []>} : vector<8x128xbf16>, vector<128x128xbf16>, vector<8x128xf32> -> vector<8x128xf32>
    %10 = arith.addf %4, %9 : vector<8x128xf32>
    %c0_11 = arith.constant 0 : index
    %c2 = arith.constant 2 : index
    %c0_12 = arith.constant 0 : index
    %11 = vector.load %arg1[%c0_11, %c2, %c0_12] : memref<1x10x128xbf16, #tpu.memory_space<vmem>>, vector<1x8x128xbf16>
    %12 = vector.shape_cast %11 : vector<1x8x128xbf16> to vector<8x128xbf16>
    %c2_13 = arith.constant 2 : index
    %c0_14 = arith.constant 0 : index
    %c0_15 = arith.constant 0 : index
    %13 = vector.load %arg2[%c2_13, %c0_14, %c0_15] : memref<3x128x128xbf16, #tpu.memory_space<vmem>>, vector<1x128x128xbf16>
    %14 = vector.shape_cast %13 : vector<1x128x128xbf16> to vector<128x128xbf16>
    %cst_16 = arith.constant dense<0.000000e+00> : vector<8x128xf32>
    %15 = tpu.matmul %12, %14, %cst_16 {dimension_numbers = #tpu.dot_dimension_numbers<[1], [0], [0], [1], [0, 0, 1, 1], [], []>} : vector<8x128xbf16>, vector<128x128xbf16>, vector<8x128xf32> -> vector<8x128xf32>
    %16 = arith.addf %10, %15 : vector<8x128xf32>
    %c0_17 = arith.constant 0 : index
    %c0_18 = arith.constant 0 : index
    %17 = vector.load %arg3[%c0_17, %c0_18] : memref<1x128xf32, #tpu.memory_space<vmem>>, vector<1x128xf32>
    %18 = vector.broadcast %17 : vector<1x128xf32> to vector<8x128xf32>
    %19 = arith.mulf %16, %18 : vector<8x128xf32>
    %c0_19 = arith.constant 0 : index
    %c0_20 = arith.constant 0 : index
    %20 = vector.load %arg4[%c0_19, %c0_20] : memref<1x128xf32, #tpu.memory_space<vmem>>, vector<1x128xf32>
    %21 = vector.broadcast %20 : vector<1x128xf32> to vector<8x128xf32>
    %22 = arith.addf %19, %21 : vector<8x128xf32>
    %cst_21 = arith.constant 0.000000e+00 : f32
    %23 = vector.broadcast %cst_21 : f32 to vector<8x128xf32>
    %24 = arith.maximumf %22, %23 : vector<8x128xf32>
    %cst_22 = arith.constant 0.000000e+00 : bf16
    %25 = vector.broadcast %cst_22 : bf16 to vector<40x128xbf16>
    %c0_23 = arith.constant 0 : index
    %c0_24 = arith.constant 0 : index
    %26 = vector.load %arg9[%c0_23, %c0_24] : memref<40x128xbf16, #tpu.memory_space<vmem>>, vector<40x128xbf16>
    tpu.vector_store %arg9[%c0_23, %c0_24], %25 {strides = array<i32>} : memref<40x128xbf16, #tpu.memory_space<vmem>>, vector<40x128xbf16>,
    %27 = arith.truncf %24 : vector<8x128xf32> to vector<8x128xbf16>
    %c16 = arith.constant 16 : index
    %c0_25 = arith.constant 0 : index
    %28 = vector.load %arg9[%c16, %c0_25] : memref<40x128xbf16, #tpu.memory_space<vmem>>, vector<8x128xbf16>
    tpu.vector_store %arg9[%c16, %c0_25], %27 {strides = array<i32>} : memref<40x128xbf16, #tpu.memory_space<vmem>>, vector<8x128xbf16>,
    %c15 = arith.constant 15 : index
    %c0_26 = arith.constant 0 : index
    %29 = vector.load %arg9[%c15, %c0_26] : memref<40x128xbf16, #tpu.memory_space<vmem>>, vector<8x128xbf16>
    %c0_27 = arith.constant 0 : index
    %c0_28 = arith.constant 0 : index
    %c0_29 = arith.constant 0 : index
    %30 = vector.load %arg5[%c0_27, %c0_28, %c0_29] : memref<3x128x128xbf16, #tpu.memory_space<vmem>>, vector<1x128x128xbf16>
    %31 = vector.shape_cast %30 : vector<1x128x128xbf16> to vector<128x128xbf16>
    %cst_30 = arith.constant dense<0.000000e+00> : vector<8x128xf32>
    %32 = tpu.matmul %29, %31, %cst_30 {dimension_numbers = #tpu.dot_dimension_numbers<[1], [0], [0], [1], [0, 0, 1, 1], [], []>} : vector<8x128xbf16>, vector<128x128xbf16>, vector<8x128xf32> -> vector<8x128xf32>
    %c16_31 = arith.constant 16 : index
    %c0_32 = arith.constant 0 : index
    %33 = vector.load %arg9[%c16_31, %c0_32] : memref<40x128xbf16, #tpu.memory_space<vmem>>, vector<8x128xbf16>
    %c1_33 = arith.constant 1 : index
    %c0_34 = arith.constant 0 : index
    %c0_35 = arith.constant 0 : index
    %34 = vector.load %arg5[%c1_33, %c0_34, %c0_35] : memref<3x128x128xbf16, #tpu.memory_space<vmem>>, vector<1x128x128xbf16>
    %35 = vector.shape_cast %34 : vector<1x128x128xbf16> to vector<128x128xbf16>
    %cst_36 = arith.constant dense<0.000000e+00> : vector<8x128xf32>
    %36 = tpu.matmul %33, %35, %cst_36 {dimension_numbers = #tpu.dot_dimension_numbers<[1], [0], [0], [1], [0, 0, 1, 1], [], []>} : vector<8x128xbf16>, vector<128x128xbf16>, vector<8x128xf32> -> vector<8x128xf32>
    %37 = arith.addf %32, %36 : vector<8x128xf32>
    %c17 = arith.constant 17 : index
    %c0_37 = arith.constant 0 : index
    %38 = vector.load %arg9[%c17, %c0_37] : memref<40x128xbf16, #tpu.memory_space<vmem>>, vector<8x128xbf16>
    %c2_38 = arith.constant 2 : index
    %c0_39 = arith.constant 0 : index
    %c0_40 = arith.constant 0 : index
    %39 = vector.load %arg5[%c2_38, %c0_39, %c0_40] : memref<3x128x128xbf16, #tpu.memory_space<vmem>>, vector<1x128x128xbf16>
    %40 = vector.shape_cast %39 : vector<1x128x128xbf16> to vector<128x128xbf16>
    %cst_41 = arith.constant dense<0.000000e+00> : vector<8x128xf32>
    %41 = tpu.matmul %38, %40, %cst_41 {dimension_numbers = #tpu.dot_dimension_numbers<[1], [0], [0], [1], [0, 0, 1, 1], [], []>} : vector<8x128xbf16>, vector<128x128xbf16>, vector<8x128xf32> -> vector<8x128xf32>
    %42 = arith.addf %37, %41 : vector<8x128xf32>
    %c0_42 = arith.constant 0 : index
    %c1_43 = arith.constant 1 : index
    %c0_44 = arith.constant 0 : index
    %43 = vector.load %arg1[%c0_42, %c1_43, %c0_44] : memref<1x10x128xbf16, #tpu.memory_space<vmem>>, vector<1x8x128xbf16>
    %44 = vector.shape_cast %43 : vector<1x8x128xbf16> to vector<8x128xbf16>
    %45 = arith.extf %44 : vector<8x128xbf16> to vector<8x128xf32>
    %c0_45 = arith.constant 0 : index
    %c0_46 = arith.constant 0 : index
    %46 = vector.load %arg6[%c0_45, %c0_46] : memref<1x128xf32, #tpu.memory_space<vmem>>, vector<1x128xf32>
    %47 = vector.broadcast %46 : vector<1x128xf32> to vector<8x128xf32>
    %48 = arith.mulf %42, %47 : vector<8x128xf32>
    %c0_47 = arith.constant 0 : index
    %c0_48 = arith.constant 0 : index
    %49 = vector.load %arg7[%c0_47, %c0_48] : memref<1x128xf32, #tpu.memory_space<vmem>>, vector<1x128xf32>
    %50 = vector.broadcast %49 : vector<1x128xf32> to vector<8x128xf32>
    %51 = arith.addf %48, %50 : vector<8x128xf32>
    %52 = arith.addf %51, %45 : vector<8x128xf32>
    %cst_49 = arith.constant 0.000000e+00 : f32
    %53 = vector.broadcast %cst_49 : f32 to vector<8x128xf32>
    %54 = arith.maximumf %52, %53 : vector<8x128xf32>
    %55 = arith.truncf %54 : vector<8x128xf32> to vector<8x128xbf16>
    %c0_50 = arith.constant 0 : index
    %c0_51 = arith.constant 0 : index
    %c0_52 = arith.constant 0 : index
    %56 = vector.load %arg8[%c0_50, %c0_51, %c0_52] : memref<1x8x128xbf16, #tpu.memory_space<vmem>>, vector<1x8x128xbf16>
    %57 = vector.shape_cast %56 : vector<1x8x128xbf16> to vector<8x128xbf16>
    %58 = vector.shape_cast %55 : vector<8x128xbf16> to vector<1x8x128xbf16>
    tpu.vector_store %arg8[%c0_50, %c0_51, %c0_52], %58 {strides = array<i32>} : memref<1x8x128xbf16, #tpu.memory_space<vmem>>, vector<1x8x128xbf16>,
    return
  }
  func.func @transform_0(%arg0: i32) -> (i32, i32, i32) {
    %c0_i32 = arith.constant 0 : i32
    %c0_i32_0 = arith.constant 0 : i32
    %c0_i32_1 = arith.constant 0 : i32
    return %arg0, %c0_i32, %c0_i32_0 : i32, i32, i32
  }
  func.func @transform_1(%arg0: i32) -> (i32, i32, i32) {
    %c0_i32 = arith.constant 0 : i32
    %c0_i32_0 = arith.constant 0 : i32
    %c0_i32_1 = arith.constant 0 : i32
    %c0_i32_2 = arith.constant 0 : i32
    return %c0_i32, %c0_i32_0, %c0_i32_1 : i32, i32, i32
  }
  func.func @transform_2(%arg0: i32) -> (i32, i32) {
    %c0_i32 = arith.constant 0 : i32
    %c0_i32_0 = arith.constant 0 : i32
    %c0_i32_1 = arith.constant 0 : i32
    return %c0_i32, %c0_i32_0 : i32, i32
  }
  func.func @transform_3(%arg0: i32) -> (i32, i32) {
    %c0_i32 = arith.constant 0 : i32
    %c0_i32_0 = arith.constant 0 : i32
    %c0_i32_1 = arith.constant 0 : i32
    return %c0_i32, %c0_i32_0 : i32, i32
  }
  func.func @transform_4(%arg0: i32) -> (i32, i32, i32) {
    %c0_i32 = arith.constant 0 : i32
    %c0_i32_0 = arith.constant 0 : i32
    %c0_i32_1 = arith.constant 0 : i32
    %c0_i32_2 = arith.constant 0 : i32
    return %c0_i32, %c0_i32_0, %c0_i32_1 : i32, i32, i32
  }
  func.func @transform_5(%arg0: i32) -> (i32, i32) {
    %c0_i32 = arith.constant 0 : i32
    %c0_i32_0 = arith.constant 0 : i32
    %c0_i32_1 = arith.constant 0 : i32
    return %c0_i32, %c0_i32_0 : i32, i32
  }
  func.func @transform_6(%arg0: i32) -> (i32, i32) {
    %c0_i32 = arith.constant 0 : i32
    %c0_i32_0 = arith.constant 0 : i32
    %c0_i32_1 = arith.constant 0 : i32
    return %c0_i32, %c0_i32_0 : i32, i32
  }
  func.func @transform_7(%arg0: i32) -> (i32, i32, i32) {
    %c0_i32 = arith.constant 0 : i32
    %c0_i32_0 = arith.constant 0 : i32
    %c0_i32_1 = arith.constant 0 : i32
    return %arg0, %c0_i32, %c0_i32_0 : i32, i32, i32
  }
}

module attributes {stable_mosaic.version = 11 : i64} {
  func.func @_block_s2_kernel(%arg0: i32, %arg1: memref<1x4x128xbf16, #tpu.memory_space<vmem>>, %arg2: memref<1x4x128xbf16, #tpu.memory_space<vmem>>, %arg3: memref<1x4x128xbf16, #tpu.memory_space<vmem>>, %arg4: memref<3x128x256xbf16, #tpu.memory_space<vmem>>, %arg5: memref<1x256xf32, #tpu.memory_space<vmem>>, %arg6: memref<1x256xf32, #tpu.memory_space<vmem>>, %arg7: memref<128x256xbf16, #tpu.memory_space<vmem>>, %arg8: memref<1x256xf32, #tpu.memory_space<vmem>>, %arg9: memref<1x256xf32, #tpu.memory_space<vmem>>, %arg10: memref<3x256x256xbf16, #tpu.memory_space<vmem>>, %arg11: memref<1x256xf32, #tpu.memory_space<vmem>>, %arg12: memref<1x256xf32, #tpu.memory_space<vmem>>, %arg13: memref<1x4x256xbf16, #tpu.memory_space<vmem>>, %arg14: memref<36x256xbf16, #tpu.memory_space<vmem>>) attributes {dimension_semantics = [#tpu.dimension_semantics<parallel>], iteration_bounds = array<i64: 2>, scalar_prefetch = 0 : i64, scratch_operands = 1 : i64, tpu.core_type = #tpu.core_type<tc>, window_params = [{transform_indices = @transform_0, window_bounds = array<i64: 1, 4, 128>}, {transform_indices = @transform_1, window_bounds = array<i64: 1, 4, 128>}, {transform_indices = @transform_2, window_bounds = array<i64: 1, 4, 128>}, {pipeline_mode = #tpu.pipeline_mode<synchronous>, transform_indices = @transform_3, window_bounds = array<i64: 3, 128, 256>}, {pipeline_mode = #tpu.pipeline_mode<synchronous>, transform_indices = @transform_4, window_bounds = array<i64: 1, 256>}, {pipeline_mode = #tpu.pipeline_mode<synchronous>, transform_indices = @transform_5, window_bounds = array<i64: 1, 256>}, {pipeline_mode = #tpu.pipeline_mode<synchronous>, transform_indices = @transform_6, window_bounds = array<i64: 128, 256>}, {pipeline_mode = #tpu.pipeline_mode<synchronous>, transform_indices = @transform_7, window_bounds = array<i64: 1, 256>}, {pipeline_mode = #tpu.pipeline_mode<synchronous>, transform_indices = @transform_8, window_bounds = array<i64: 1, 256>}, {pipeline_mode = #tpu.pipeline_mode<synchronous>, transform_indices = @transform_9, window_bounds = array<i64: 3, 256, 256>}, {pipeline_mode = #tpu.pipeline_mode<synchronous>, transform_indices = @transform_10, window_bounds = array<i64: 1, 256>}, {pipeline_mode = #tpu.pipeline_mode<synchronous>, transform_indices = @transform_11, window_bounds = array<i64: 1, 256>}, {transform_indices = @transform_12, window_bounds = array<i64: 1, 4, 256>}]} {
    %c0 = arith.constant 0 : index
    %c0_0 = arith.constant 0 : index
    %c0_1 = arith.constant 0 : index
    %0 = vector.load %arg1[%c0, %c0_0, %c0_1] : memref<1x4x128xbf16, #tpu.memory_space<vmem>>, vector<1x4x128xbf16>
    %1 = vector.shape_cast %0 : vector<1x4x128xbf16> to vector<4x128xbf16>
    %c0_2 = arith.constant 0 : index
    %c0_3 = arith.constant 0 : index
    %c0_4 = arith.constant 0 : index
    %2 = vector.load %arg4[%c0_2, %c0_3, %c0_4] : memref<3x128x256xbf16, #tpu.memory_space<vmem>>, vector<1x128x256xbf16>
    %3 = vector.shape_cast %2 : vector<1x128x256xbf16> to vector<128x256xbf16>
    %cst = arith.constant dense<0.000000e+00> : vector<4x256xf32>
    %4 = tpu.matmul %1, %3, %cst {dimension_numbers = #tpu.dot_dimension_numbers<[1], [0], [0], [1], [0, 0, 1, 1], [], []>} : vector<4x128xbf16>, vector<128x256xbf16>, vector<4x256xf32> -> vector<4x256xf32>
    %c0_5 = arith.constant 0 : index
    %c0_6 = arith.constant 0 : index
    %c0_7 = arith.constant 0 : index
    %5 = vector.load %arg2[%c0_5, %c0_6, %c0_7] : memref<1x4x128xbf16, #tpu.memory_space<vmem>>, vector<1x4x128xbf16>
    %6 = vector.shape_cast %5 : vector<1x4x128xbf16> to vector<4x128xbf16>
    %c1 = arith.constant 1 : index
    %c0_8 = arith.constant 0 : index
    %c0_9 = arith.constant 0 : index
    %7 = vector.load %arg4[%c1, %c0_8, %c0_9] : memref<3x128x256xbf16, #tpu.memory_space<vmem>>, vector<1x128x256xbf16>
    %8 = vector.shape_cast %7 : vector<1x128x256xbf16> to vector<128x256xbf16>
    %cst_10 = arith.constant dense<0.000000e+00> : vector<4x256xf32>
    %9 = tpu.matmul %6, %8, %cst_10 {dimension_numbers = #tpu.dot_dimension_numbers<[1], [0], [0], [1], [0, 0, 1, 1], [], []>} : vector<4x128xbf16>, vector<128x256xbf16>, vector<4x256xf32> -> vector<4x256xf32>
    %10 = arith.addf %4, %9 : vector<4x256xf32>
    %c0_11 = arith.constant 0 : index
    %c0_12 = arith.constant 0 : index
    %c0_13 = arith.constant 0 : index
    %11 = vector.load %arg3[%c0_11, %c0_12, %c0_13] : memref<1x4x128xbf16, #tpu.memory_space<vmem>>, vector<1x4x128xbf16>
    %12 = vector.shape_cast %11 : vector<1x4x128xbf16> to vector<4x128xbf16>
    %c2 = arith.constant 2 : index
    %c0_14 = arith.constant 0 : index
    %c0_15 = arith.constant 0 : index
    %13 = vector.load %arg4[%c2, %c0_14, %c0_15] : memref<3x128x256xbf16, #tpu.memory_space<vmem>>, vector<1x128x256xbf16>
    %14 = vector.shape_cast %13 : vector<1x128x256xbf16> to vector<128x256xbf16>
    %cst_16 = arith.constant dense<0.000000e+00> : vector<4x256xf32>
    %15 = tpu.matmul %12, %14, %cst_16 {dimension_numbers = #tpu.dot_dimension_numbers<[1], [0], [0], [1], [0, 0, 1, 1], [], []>} : vector<4x128xbf16>, vector<128x256xbf16>, vector<4x256xf32> -> vector<4x256xf32>
    %16 = arith.addf %10, %15 : vector<4x256xf32>
    %c0_17 = arith.constant 0 : index
    %c0_18 = arith.constant 0 : index
    %17 = vector.load %arg5[%c0_17, %c0_18] : memref<1x256xf32, #tpu.memory_space<vmem>>, vector<1x256xf32>
    %18 = vector.broadcast %17 : vector<1x256xf32> to vector<4x256xf32>
    %19 = arith.mulf %16, %18 : vector<4x256xf32>
    %c0_19 = arith.constant 0 : index
    %c0_20 = arith.constant 0 : index
    %20 = vector.load %arg6[%c0_19, %c0_20] : memref<1x256xf32, #tpu.memory_space<vmem>>, vector<1x256xf32>
    %21 = vector.broadcast %20 : vector<1x256xf32> to vector<4x256xf32>
    %22 = arith.addf %19, %21 : vector<4x256xf32>
    %cst_21 = arith.constant 0.000000e+00 : f32
    %23 = vector.broadcast %cst_21 : f32 to vector<4x256xf32>
    %24 = arith.maximumf %22, %23 : vector<4x256xf32>
    %c0_22 = arith.constant 0 : index
    %c0_23 = arith.constant 0 : index
    %c0_24 = arith.constant 0 : index
    %25 = vector.load %arg2[%c0_22, %c0_23, %c0_24] : memref<1x4x128xbf16, #tpu.memory_space<vmem>>, vector<1x4x128xbf16>
    %26 = vector.shape_cast %25 : vector<1x4x128xbf16> to vector<4x128xbf16>
    %c0_25 = arith.constant 0 : index
    %c0_26 = arith.constant 0 : index
    %27 = vector.load %arg7[%c0_25, %c0_26] : memref<128x256xbf16, #tpu.memory_space<vmem>>, vector<128x256xbf16>
    %cst_27 = arith.constant dense<0.000000e+00> : vector<4x256xf32>
    %28 = tpu.matmul %26, %27, %cst_27 {dimension_numbers = #tpu.dot_dimension_numbers<[1], [0], [0], [1], [0, 0, 1, 1], [], []>} : vector<4x128xbf16>, vector<128x256xbf16>, vector<4x256xf32> -> vector<4x256xf32>
    %c0_28 = arith.constant 0 : index
    %c0_29 = arith.constant 0 : index
    %29 = vector.load %arg8[%c0_28, %c0_29] : memref<1x256xf32, #tpu.memory_space<vmem>>, vector<1x256xf32>
    %30 = vector.broadcast %29 : vector<1x256xf32> to vector<4x256xf32>
    %31 = arith.mulf %28, %30 : vector<4x256xf32>
    %c0_30 = arith.constant 0 : index
    %c0_31 = arith.constant 0 : index
    %32 = vector.load %arg9[%c0_30, %c0_31] : memref<1x256xf32, #tpu.memory_space<vmem>>, vector<1x256xf32>
    %33 = vector.broadcast %32 : vector<1x256xf32> to vector<4x256xf32>
    %34 = arith.addf %31, %33 : vector<4x256xf32>
    %cst_32 = arith.constant 0.000000e+00 : bf16
    %35 = vector.broadcast %cst_32 : bf16 to vector<36x256xbf16>
    %c0_33 = arith.constant 0 : index
    %c0_34 = arith.constant 0 : index
    %36 = vector.load %arg14[%c0_33, %c0_34] : memref<36x256xbf16, #tpu.memory_space<vmem>>, vector<36x256xbf16>
    tpu.vector_store %arg14[%c0_33, %c0_34], %35 {strides = array<i32>} : memref<36x256xbf16, #tpu.memory_space<vmem>>, vector<36x256xbf16>,
    %37 = arith.truncf %24 : vector<4x256xf32> to vector<4x256xbf16>
    %c16 = arith.constant 16 : index
    %c0_35 = arith.constant 0 : index
    %38 = vector.load %arg14[%c16, %c0_35] : memref<36x256xbf16, #tpu.memory_space<vmem>>, vector<4x256xbf16>
    tpu.vector_store %arg14[%c16, %c0_35], %37 {strides = array<i32>} : memref<36x256xbf16, #tpu.memory_space<vmem>>, vector<4x256xbf16>,
    %c15 = arith.constant 15 : index
    %c0_36 = arith.constant 0 : index
    %39 = vector.load %arg14[%c15, %c0_36] : memref<36x256xbf16, #tpu.memory_space<vmem>>, vector<4x256xbf16>
    %c0_37 = arith.constant 0 : index
    %c0_38 = arith.constant 0 : index
    %c0_39 = arith.constant 0 : index
    %40 = vector.load %arg10[%c0_37, %c0_38, %c0_39] : memref<3x256x256xbf16, #tpu.memory_space<vmem>>, vector<1x256x256xbf16>
    %41 = vector.shape_cast %40 : vector<1x256x256xbf16> to vector<256x256xbf16>
    %cst_40 = arith.constant dense<0.000000e+00> : vector<4x256xf32>
    %42 = tpu.matmul %39, %41, %cst_40 {dimension_numbers = #tpu.dot_dimension_numbers<[1], [0], [0], [1], [0, 0, 1, 1], [], []>} : vector<4x256xbf16>, vector<256x256xbf16>, vector<4x256xf32> -> vector<4x256xf32>
    %c16_41 = arith.constant 16 : index
    %c0_42 = arith.constant 0 : index
    %43 = vector.load %arg14[%c16_41, %c0_42] : memref<36x256xbf16, #tpu.memory_space<vmem>>, vector<4x256xbf16>
    %c1_43 = arith.constant 1 : index
    %c0_44 = arith.constant 0 : index
    %c0_45 = arith.constant 0 : index
    %44 = vector.load %arg10[%c1_43, %c0_44, %c0_45] : memref<3x256x256xbf16, #tpu.memory_space<vmem>>, vector<1x256x256xbf16>
    %45 = vector.shape_cast %44 : vector<1x256x256xbf16> to vector<256x256xbf16>
    %cst_46 = arith.constant dense<0.000000e+00> : vector<4x256xf32>
    %46 = tpu.matmul %43, %45, %cst_46 {dimension_numbers = #tpu.dot_dimension_numbers<[1], [0], [0], [1], [0, 0, 1, 1], [], []>} : vector<4x256xbf16>, vector<256x256xbf16>, vector<4x256xf32> -> vector<4x256xf32>
    %47 = arith.addf %42, %46 : vector<4x256xf32>
    %c17 = arith.constant 17 : index
    %c0_47 = arith.constant 0 : index
    %48 = vector.load %arg14[%c17, %c0_47] : memref<36x256xbf16, #tpu.memory_space<vmem>>, vector<4x256xbf16>
    %c2_48 = arith.constant 2 : index
    %c0_49 = arith.constant 0 : index
    %c0_50 = arith.constant 0 : index
    %49 = vector.load %arg10[%c2_48, %c0_49, %c0_50] : memref<3x256x256xbf16, #tpu.memory_space<vmem>>, vector<1x256x256xbf16>
    %50 = vector.shape_cast %49 : vector<1x256x256xbf16> to vector<256x256xbf16>
    %cst_51 = arith.constant dense<0.000000e+00> : vector<4x256xf32>
    %51 = tpu.matmul %48, %50, %cst_51 {dimension_numbers = #tpu.dot_dimension_numbers<[1], [0], [0], [1], [0, 0, 1, 1], [], []>} : vector<4x256xbf16>, vector<256x256xbf16>, vector<4x256xf32> -> vector<4x256xf32>
    %52 = arith.addf %47, %51 : vector<4x256xf32>
    %c0_52 = arith.constant 0 : index
    %c0_53 = arith.constant 0 : index
    %53 = vector.load %arg11[%c0_52, %c0_53] : memref<1x256xf32, #tpu.memory_space<vmem>>, vector<1x256xf32>
    %54 = vector.broadcast %53 : vector<1x256xf32> to vector<4x256xf32>
    %55 = arith.mulf %52, %54 : vector<4x256xf32>
    %c0_54 = arith.constant 0 : index
    %c0_55 = arith.constant 0 : index
    %56 = vector.load %arg12[%c0_54, %c0_55] : memref<1x256xf32, #tpu.memory_space<vmem>>, vector<1x256xf32>
    %57 = vector.broadcast %56 : vector<1x256xf32> to vector<4x256xf32>
    %58 = arith.addf %55, %57 : vector<4x256xf32>
    %59 = arith.addf %58, %34 : vector<4x256xf32>
    %cst_56 = arith.constant 0.000000e+00 : f32
    %60 = vector.broadcast %cst_56 : f32 to vector<4x256xf32>
    %61 = arith.maximumf %59, %60 : vector<4x256xf32>
    %62 = arith.truncf %61 : vector<4x256xf32> to vector<4x256xbf16>
    %c0_57 = arith.constant 0 : index
    %c0_58 = arith.constant 0 : index
    %c0_59 = arith.constant 0 : index
    %63 = vector.load %arg13[%c0_57, %c0_58, %c0_59] : memref<1x4x256xbf16, #tpu.memory_space<vmem>>, vector<1x4x256xbf16>
    %64 = vector.shape_cast %63 : vector<1x4x256xbf16> to vector<4x256xbf16>
    %65 = vector.shape_cast %62 : vector<4x256xbf16> to vector<1x4x256xbf16>
    tpu.vector_store %arg13[%c0_57, %c0_58, %c0_59], %65 {strides = array<i32>} : memref<1x4x256xbf16, #tpu.memory_space<vmem>>, vector<1x4x256xbf16>,
    return
  }
  func.func @transform_0(%arg0: i32) -> (i32, i32, i32) {
    %c0_i32 = arith.constant 0 : i32
    %c0_i32_0 = arith.constant 0 : i32
    %c0_i32_1 = arith.constant 0 : i32
    return %arg0, %c0_i32, %c0_i32_0 : i32, i32, i32
  }
  func.func @transform_1(%arg0: i32) -> (i32, i32, i32) {
    %c0_i32 = arith.constant 0 : i32
    %c0_i32_0 = arith.constant 0 : i32
    %c0_i32_1 = arith.constant 0 : i32
    return %arg0, %c0_i32, %c0_i32_0 : i32, i32, i32
  }
  func.func @transform_2(%arg0: i32) -> (i32, i32, i32) {
    %c0_i32 = arith.constant 0 : i32
    %c0_i32_0 = arith.constant 0 : i32
    %c0_i32_1 = arith.constant 0 : i32
    return %arg0, %c0_i32, %c0_i32_0 : i32, i32, i32
  }
  func.func @transform_3(%arg0: i32) -> (i32, i32, i32) {
    %c0_i32 = arith.constant 0 : i32
    %c0_i32_0 = arith.constant 0 : i32
    %c0_i32_1 = arith.constant 0 : i32
    %c0_i32_2 = arith.constant 0 : i32
    return %c0_i32, %c0_i32_0, %c0_i32_1 : i32, i32, i32
  }
  func.func @transform_4(%arg0: i32) -> (i32, i32) {
    %c0_i32 = arith.constant 0 : i32
    %c0_i32_0 = arith.constant 0 : i32
    %c0_i32_1 = arith.constant 0 : i32
    return %c0_i32, %c0_i32_0 : i32, i32
  }
  func.func @transform_5(%arg0: i32) -> (i32, i32) {
    %c0_i32 = arith.constant 0 : i32
    %c0_i32_0 = arith.constant 0 : i32
    %c0_i32_1 = arith.constant 0 : i32
    return %c0_i32, %c0_i32_0 : i32, i32
  }
  func.func @transform_6(%arg0: i32) -> (i32, i32) {
    %c0_i32 = arith.constant 0 : i32
    %c0_i32_0 = arith.constant 0 : i32
    %c0_i32_1 = arith.constant 0 : i32
    return %c0_i32, %c0_i32_0 : i32, i32
  }
  func.func @transform_7(%arg0: i32) -> (i32, i32) {
    %c0_i32 = arith.constant 0 : i32
    %c0_i32_0 = arith.constant 0 : i32
    %c0_i32_1 = arith.constant 0 : i32
    return %c0_i32, %c0_i32_0 : i32, i32
  }
  func.func @transform_8(%arg0: i32) -> (i32, i32) {
    %c0_i32 = arith.constant 0 : i32
    %c0_i32_0 = arith.constant 0 : i32
    %c0_i32_1 = arith.constant 0 : i32
    return %c0_i32, %c0_i32_0 : i32, i32
  }
  func.func @transform_9(%arg0: i32) -> (i32, i32, i32) {
    %c0_i32 = arith.constant 0 : i32
    %c0_i32_0 = arith.constant 0 : i32
    %c0_i32_1 = arith.constant 0 : i32
    %c0_i32_2 = arith.constant 0 : i32
    return %c0_i32, %c0_i32_0, %c0_i32_1 : i32, i32, i32
  }
  func.func @transform_10(%arg0: i32) -> (i32, i32) {
    %c0_i32 = arith.constant 0 : i32
    %c0_i32_0 = arith.constant 0 : i32
    %c0_i32_1 = arith.constant 0 : i32
    return %c0_i32, %c0_i32_0 : i32, i32
  }
  func.func @transform_11(%arg0: i32) -> (i32, i32) {
    %c0_i32 = arith.constant 0 : i32
    %c0_i32_0 = arith.constant 0 : i32
    %c0_i32_1 = arith.constant 0 : i32
    return %c0_i32, %c0_i32_0 : i32, i32
  }
  func.func @transform_12(%arg0: i32) -> (i32, i32, i32) {
    %c0_i32 = arith.constant 0 : i32
    %c0_i32_0 = arith.constant 0 : i32
    %c0_i32_1 = arith.constant 0 : i32
    return %arg0, %c0_i32, %c0_i32_0 : i32, i32, i32
  }
}

module attributes {stable_mosaic.version = 11 : i64} {
  func.func @_block_s1_kernel(%arg0: i32, %arg1: memref<1x6x256xbf16, #tpu.memory_space<vmem>>, %arg2: memref<3x256x256xbf16, #tpu.memory_space<vmem>>, %arg3: memref<1x256xf32, #tpu.memory_space<vmem>>, %arg4: memref<1x256xf32, #tpu.memory_space<vmem>>, %arg5: memref<3x256x256xbf16, #tpu.memory_space<vmem>>, %arg6: memref<1x256xf32, #tpu.memory_space<vmem>>, %arg7: memref<1x256xf32, #tpu.memory_space<vmem>>, %arg8: memref<1x4x256xbf16, #tpu.memory_space<vmem>>, %arg9: memref<36x256xbf16, #tpu.memory_space<vmem>>) attributes {dimension_semantics = [#tpu.dimension_semantics<parallel>], iteration_bounds = array<i64: 2>, scalar_prefetch = 0 : i64, scratch_operands = 1 : i64, tpu.core_type = #tpu.core_type<tc>, window_params = [{transform_indices = @transform_0, window_bounds = array<i64: 1, 6, 256>}, {pipeline_mode = #tpu.pipeline_mode<synchronous>, transform_indices = @transform_1, window_bounds = array<i64: 3, 256, 256>}, {pipeline_mode = #tpu.pipeline_mode<synchronous>, transform_indices = @transform_2, window_bounds = array<i64: 1, 256>}, {pipeline_mode = #tpu.pipeline_mode<synchronous>, transform_indices = @transform_3, window_bounds = array<i64: 1, 256>}, {pipeline_mode = #tpu.pipeline_mode<synchronous>, transform_indices = @transform_4, window_bounds = array<i64: 3, 256, 256>}, {pipeline_mode = #tpu.pipeline_mode<synchronous>, transform_indices = @transform_5, window_bounds = array<i64: 1, 256>}, {pipeline_mode = #tpu.pipeline_mode<synchronous>, transform_indices = @transform_6, window_bounds = array<i64: 1, 256>}, {transform_indices = @transform_7, window_bounds = array<i64: 1, 4, 256>}]} {
    %c0 = arith.constant 0 : index
    %c0_0 = arith.constant 0 : index
    %c0_1 = arith.constant 0 : index
    %0 = vector.load %arg1[%c0, %c0_0, %c0_1] : memref<1x6x256xbf16, #tpu.memory_space<vmem>>, vector<1x4x256xbf16>
    %1 = vector.shape_cast %0 : vector<1x4x256xbf16> to vector<4x256xbf16>
    %c0_2 = arith.constant 0 : index
    %c0_3 = arith.constant 0 : index
    %c0_4 = arith.constant 0 : index
    %2 = vector.load %arg2[%c0_2, %c0_3, %c0_4] : memref<3x256x256xbf16, #tpu.memory_space<vmem>>, vector<1x256x256xbf16>
    %3 = vector.shape_cast %2 : vector<1x256x256xbf16> to vector<256x256xbf16>
    %cst = arith.constant dense<0.000000e+00> : vector<4x256xf32>
    %4 = tpu.matmul %1, %3, %cst {dimension_numbers = #tpu.dot_dimension_numbers<[1], [0], [0], [1], [0, 0, 1, 1], [], []>} : vector<4x256xbf16>, vector<256x256xbf16>, vector<4x256xf32> -> vector<4x256xf32>
    %c0_5 = arith.constant 0 : index
    %c1 = arith.constant 1 : index
    %c0_6 = arith.constant 0 : index
    %5 = vector.load %arg1[%c0_5, %c1, %c0_6] : memref<1x6x256xbf16, #tpu.memory_space<vmem>>, vector<1x4x256xbf16>
    %6 = vector.shape_cast %5 : vector<1x4x256xbf16> to vector<4x256xbf16>
    %c1_7 = arith.constant 1 : index
    %c0_8 = arith.constant 0 : index
    %c0_9 = arith.constant 0 : index
    %7 = vector.load %arg2[%c1_7, %c0_8, %c0_9] : memref<3x256x256xbf16, #tpu.memory_space<vmem>>, vector<1x256x256xbf16>
    %8 = vector.shape_cast %7 : vector<1x256x256xbf16> to vector<256x256xbf16>
    %cst_10 = arith.constant dense<0.000000e+00> : vector<4x256xf32>
    %9 = tpu.matmul %6, %8, %cst_10 {dimension_numbers = #tpu.dot_dimension_numbers<[1], [0], [0], [1], [0, 0, 1, 1], [], []>} : vector<4x256xbf16>, vector<256x256xbf16>, vector<4x256xf32> -> vector<4x256xf32>
    %10 = arith.addf %4, %9 : vector<4x256xf32>
    %c0_11 = arith.constant 0 : index
    %c2 = arith.constant 2 : index
    %c0_12 = arith.constant 0 : index
    %11 = vector.load %arg1[%c0_11, %c2, %c0_12] : memref<1x6x256xbf16, #tpu.memory_space<vmem>>, vector<1x4x256xbf16>
    %12 = vector.shape_cast %11 : vector<1x4x256xbf16> to vector<4x256xbf16>
    %c2_13 = arith.constant 2 : index
    %c0_14 = arith.constant 0 : index
    %c0_15 = arith.constant 0 : index
    %13 = vector.load %arg2[%c2_13, %c0_14, %c0_15] : memref<3x256x256xbf16, #tpu.memory_space<vmem>>, vector<1x256x256xbf16>
    %14 = vector.shape_cast %13 : vector<1x256x256xbf16> to vector<256x256xbf16>
    %cst_16 = arith.constant dense<0.000000e+00> : vector<4x256xf32>
    %15 = tpu.matmul %12, %14, %cst_16 {dimension_numbers = #tpu.dot_dimension_numbers<[1], [0], [0], [1], [0, 0, 1, 1], [], []>} : vector<4x256xbf16>, vector<256x256xbf16>, vector<4x256xf32> -> vector<4x256xf32>
    %16 = arith.addf %10, %15 : vector<4x256xf32>
    %c0_17 = arith.constant 0 : index
    %c0_18 = arith.constant 0 : index
    %17 = vector.load %arg3[%c0_17, %c0_18] : memref<1x256xf32, #tpu.memory_space<vmem>>, vector<1x256xf32>
    %18 = vector.broadcast %17 : vector<1x256xf32> to vector<4x256xf32>
    %19 = arith.mulf %16, %18 : vector<4x256xf32>
    %c0_19 = arith.constant 0 : index
    %c0_20 = arith.constant 0 : index
    %20 = vector.load %arg4[%c0_19, %c0_20] : memref<1x256xf32, #tpu.memory_space<vmem>>, vector<1x256xf32>
    %21 = vector.broadcast %20 : vector<1x256xf32> to vector<4x256xf32>
    %22 = arith.addf %19, %21 : vector<4x256xf32>
    %cst_21 = arith.constant 0.000000e+00 : f32
    %23 = vector.broadcast %cst_21 : f32 to vector<4x256xf32>
    %24 = arith.maximumf %22, %23 : vector<4x256xf32>
    %cst_22 = arith.constant 0.000000e+00 : bf16
    %25 = vector.broadcast %cst_22 : bf16 to vector<36x256xbf16>
    %c0_23 = arith.constant 0 : index
    %c0_24 = arith.constant 0 : index
    %26 = vector.load %arg9[%c0_23, %c0_24] : memref<36x256xbf16, #tpu.memory_space<vmem>>, vector<36x256xbf16>
    tpu.vector_store %arg9[%c0_23, %c0_24], %25 {strides = array<i32>} : memref<36x256xbf16, #tpu.memory_space<vmem>>, vector<36x256xbf16>,
    %27 = arith.truncf %24 : vector<4x256xf32> to vector<4x256xbf16>
    %c16 = arith.constant 16 : index
    %c0_25 = arith.constant 0 : index
    %28 = vector.load %arg9[%c16, %c0_25] : memref<36x256xbf16, #tpu.memory_space<vmem>>, vector<4x256xbf16>
    tpu.vector_store %arg9[%c16, %c0_25], %27 {strides = array<i32>} : memref<36x256xbf16, #tpu.memory_space<vmem>>, vector<4x256xbf16>,
    %c15 = arith.constant 15 : index
    %c0_26 = arith.constant 0 : index
    %29 = vector.load %arg9[%c15, %c0_26] : memref<36x256xbf16, #tpu.memory_space<vmem>>, vector<4x256xbf16>
    %c0_27 = arith.constant 0 : index
    %c0_28 = arith.constant 0 : index
    %c0_29 = arith.constant 0 : index
    %30 = vector.load %arg5[%c0_27, %c0_28, %c0_29] : memref<3x256x256xbf16, #tpu.memory_space<vmem>>, vector<1x256x256xbf16>
    %31 = vector.shape_cast %30 : vector<1x256x256xbf16> to vector<256x256xbf16>
    %cst_30 = arith.constant dense<0.000000e+00> : vector<4x256xf32>
    %32 = tpu.matmul %29, %31, %cst_30 {dimension_numbers = #tpu.dot_dimension_numbers<[1], [0], [0], [1], [0, 0, 1, 1], [], []>} : vector<4x256xbf16>, vector<256x256xbf16>, vector<4x256xf32> -> vector<4x256xf32>
    %c16_31 = arith.constant 16 : index
    %c0_32 = arith.constant 0 : index
    %33 = vector.load %arg9[%c16_31, %c0_32] : memref<36x256xbf16, #tpu.memory_space<vmem>>, vector<4x256xbf16>
    %c1_33 = arith.constant 1 : index
    %c0_34 = arith.constant 0 : index
    %c0_35 = arith.constant 0 : index
    %34 = vector.load %arg5[%c1_33, %c0_34, %c0_35] : memref<3x256x256xbf16, #tpu.memory_space<vmem>>, vector<1x256x256xbf16>
    %35 = vector.shape_cast %34 : vector<1x256x256xbf16> to vector<256x256xbf16>
    %cst_36 = arith.constant dense<0.000000e+00> : vector<4x256xf32>
    %36 = tpu.matmul %33, %35, %cst_36 {dimension_numbers = #tpu.dot_dimension_numbers<[1], [0], [0], [1], [0, 0, 1, 1], [], []>} : vector<4x256xbf16>, vector<256x256xbf16>, vector<4x256xf32> -> vector<4x256xf32>
    %37 = arith.addf %32, %36 : vector<4x256xf32>
    %c17 = arith.constant 17 : index
    %c0_37 = arith.constant 0 : index
    %38 = vector.load %arg9[%c17, %c0_37] : memref<36x256xbf16, #tpu.memory_space<vmem>>, vector<4x256xbf16>
    %c2_38 = arith.constant 2 : index
    %c0_39 = arith.constant 0 : index
    %c0_40 = arith.constant 0 : index
    %39 = vector.load %arg5[%c2_38, %c0_39, %c0_40] : memref<3x256x256xbf16, #tpu.memory_space<vmem>>, vector<1x256x256xbf16>
    %40 = vector.shape_cast %39 : vector<1x256x256xbf16> to vector<256x256xbf16>
    %cst_41 = arith.constant dense<0.000000e+00> : vector<4x256xf32>
    %41 = tpu.matmul %38, %40, %cst_41 {dimension_numbers = #tpu.dot_dimension_numbers<[1], [0], [0], [1], [0, 0, 1, 1], [], []>} : vector<4x256xbf16>, vector<256x256xbf16>, vector<4x256xf32> -> vector<4x256xf32>
    %42 = arith.addf %37, %41 : vector<4x256xf32>
    %c0_42 = arith.constant 0 : index
    %c1_43 = arith.constant 1 : index
    %c0_44 = arith.constant 0 : index
    %43 = vector.load %arg1[%c0_42, %c1_43, %c0_44] : memref<1x6x256xbf16, #tpu.memory_space<vmem>>, vector<1x4x256xbf16>
    %44 = vector.shape_cast %43 : vector<1x4x256xbf16> to vector<4x256xbf16>
    %45 = arith.extf %44 : vector<4x256xbf16> to vector<4x256xf32>
    %c0_45 = arith.constant 0 : index
    %c0_46 = arith.constant 0 : index
    %46 = vector.load %arg6[%c0_45, %c0_46] : memref<1x256xf32, #tpu.memory_space<vmem>>, vector<1x256xf32>
    %47 = vector.broadcast %46 : vector<1x256xf32> to vector<4x256xf32>
    %48 = arith.mulf %42, %47 : vector<4x256xf32>
    %c0_47 = arith.constant 0 : index
    %c0_48 = arith.constant 0 : index
    %49 = vector.load %arg7[%c0_47, %c0_48] : memref<1x256xf32, #tpu.memory_space<vmem>>, vector<1x256xf32>
    %50 = vector.broadcast %49 : vector<1x256xf32> to vector<4x256xf32>
    %51 = arith.addf %48, %50 : vector<4x256xf32>
    %52 = arith.addf %51, %45 : vector<4x256xf32>
    %cst_49 = arith.constant 0.000000e+00 : f32
    %53 = vector.broadcast %cst_49 : f32 to vector<4x256xf32>
    %54 = arith.maximumf %52, %53 : vector<4x256xf32>
    %55 = arith.truncf %54 : vector<4x256xf32> to vector<4x256xbf16>
    %c0_50 = arith.constant 0 : index
    %c0_51 = arith.constant 0 : index
    %c0_52 = arith.constant 0 : index
    %56 = vector.load %arg8[%c0_50, %c0_51, %c0_52] : memref<1x4x256xbf16, #tpu.memory_space<vmem>>, vector<1x4x256xbf16>
    %57 = vector.shape_cast %56 : vector<1x4x256xbf16> to vector<4x256xbf16>
    %58 = vector.shape_cast %55 : vector<4x256xbf16> to vector<1x4x256xbf16>
    tpu.vector_store %arg8[%c0_50, %c0_51, %c0_52], %58 {strides = array<i32>} : memref<1x4x256xbf16, #tpu.memory_space<vmem>>, vector<1x4x256xbf16>,
    return
  }
  func.func @transform_0(%arg0: i32) -> (i32, i32, i32) {
    %c0_i32 = arith.constant 0 : i32
    %c0_i32_0 = arith.constant 0 : i32
    %c0_i32_1 = arith.constant 0 : i32
    return %arg0, %c0_i32, %c0_i32_0 : i32, i32, i32
  }
  func.func @transform_1(%arg0: i32) -> (i32, i32, i32) {
    %c0_i32 = arith.constant 0 : i32
    %c0_i32_0 = arith.constant 0 : i32
    %c0_i32_1 = arith.constant 0 : i32
    %c0_i32_2 = arith.constant 0 : i32
    return %c0_i32, %c0_i32_0, %c0_i32_1 : i32, i32, i32
  }
  func.func @transform_2(%arg0: i32) -> (i32, i32) {
    %c0_i32 = arith.constant 0 : i32
    %c0_i32_0 = arith.constant 0 : i32
    %c0_i32_1 = arith.constant 0 : i32
    return %c0_i32, %c0_i32_0 : i32, i32
  }
  func.func @transform_3(%arg0: i32) -> (i32, i32) {
    %c0_i32 = arith.constant 0 : i32
    %c0_i32_0 = arith.constant 0 : i32
    %c0_i32_1 = arith.constant 0 : i32
    return %c0_i32, %c0_i32_0 : i32, i32
  }
  func.func @transform_4(%arg0: i32) -> (i32, i32, i32) {
    %c0_i32 = arith.constant 0 : i32
    %c0_i32_0 = arith.constant 0 : i32
    %c0_i32_1 = arith.constant 0 : i32
    %c0_i32_2 = arith.constant 0 : i32
    return %c0_i32, %c0_i32_0, %c0_i32_1 : i32, i32, i32
  }
  func.func @transform_5(%arg0: i32) -> (i32, i32) {
    %c0_i32 = arith.constant 0 : i32
    %c0_i32_0 = arith.constant 0 : i32
    %c0_i32_1 = arith.constant 0 : i32
    return %c0_i32, %c0_i32_0 : i32, i32
  }
  func.func @transform_6(%arg0: i32) -> (i32, i32) {
    %c0_i32 = arith.constant 0 : i32
    %c0_i32_0 = arith.constant 0 : i32
    %c0_i32_1 = arith.constant 0 : i32
    return %c0_i32, %c0_i32_0 : i32, i32
  }
  func.func @transform_7(%arg0: i32) -> (i32, i32, i32) {
    %c0_i32 = arith.constant 0 : i32
    %c0_i32_0 = arith.constant 0 : i32
    %c0_i32_1 = arith.constant 0 : i32
    return %arg0, %c0_i32, %c0_i32_0 : i32, i32, i32
  }
}

module attributes {stable_mosaic.version = 11 : i64} {
  func.func @_head_kernel(%arg0: i32, %arg1: memref<1x4x256xbf16, #tpu.memory_space<vmem>>, %arg2: memref<256x128xbf16, #tpu.memory_space<vmem>>, %arg3: memref<1x128xf32, #tpu.memory_space<vmem>>, %arg4: memref<1x128xf32, #tpu.memory_space<vmem>>, %arg5: memref<1x1xf32, #tpu.memory_space<vmem>>, %arg6: memref<1x1x1xf32, #tpu.memory_space<vmem>>) attributes {dimension_semantics = [#tpu.dimension_semantics<parallel>], iteration_bounds = array<i64: 2>, scalar_prefetch = 0 : i64, scratch_operands = 0 : i64, tpu.core_type = #tpu.core_type<tc>, window_params = [{transform_indices = @transform_0, window_bounds = array<i64: 1, 4, 256>}, {pipeline_mode = #tpu.pipeline_mode<synchronous>, transform_indices = @transform_1, window_bounds = array<i64: 256, 128>}, {pipeline_mode = #tpu.pipeline_mode<synchronous>, transform_indices = @transform_2, window_bounds = array<i64: 1, 128>}, {pipeline_mode = #tpu.pipeline_mode<synchronous>, transform_indices = @transform_3, window_bounds = array<i64: 1, 128>}, {pipeline_mode = #tpu.pipeline_mode<synchronous>, transform_indices = @transform_4, window_bounds = array<i64: 1, 1>}, {transform_indices = @transform_5, window_bounds = array<i64: 1, 1, 1>}]} {
    %c0 = arith.constant 0 : index
    %c0_0 = arith.constant 0 : index
    %c0_1 = arith.constant 0 : index
    %0 = vector.load %arg1[%c0, %c0_0, %c0_1] : memref<1x4x256xbf16, #tpu.memory_space<vmem>>, vector<1x4x256xbf16>
    %1 = vector.shape_cast %0 : vector<1x4x256xbf16> to vector<4x256xbf16>
    %2 = arith.extf %1 : vector<4x256xbf16> to vector<4x256xf32>
    %cst = arith.constant dense<0.000000e+00> : vector<256xf32>
    %3 = vector.multi_reduction <add>, %2, %cst [0] : vector<4x256xf32> to vector<256xf32>
    %4 = vector.shape_cast %3 : vector<256xf32> to vector<1x256xf32>
    %cst_2 = arith.constant 4.000000e+00 : f32
    %5 = vector.broadcast %cst_2 : f32 to vector<1x256xf32>
    %6 = arith.divf %4, %5 : vector<1x256xf32>
    %7 = arith.truncf %6 : vector<1x256xf32> to vector<1x256xbf16>
    %c0_3 = arith.constant 0 : index
    %c0_4 = arith.constant 0 : index
    %8 = vector.load %arg2[%c0_3, %c0_4] : memref<256x128xbf16, #tpu.memory_space<vmem>>, vector<256x128xbf16>
    %cst_5 = arith.constant dense<0.000000e+00> : vector<1x128xf32>
    %9 = tpu.matmul %7, %8, %cst_5 {dimension_numbers = #tpu.dot_dimension_numbers<[1], [0], [0], [1], [0, 0, 1, 1], [], []>} : vector<1x256xbf16>, vector<256x128xbf16>, vector<1x128xf32> -> vector<1x128xf32>
    %c0_6 = arith.constant 0 : index
    %c0_7 = arith.constant 0 : index
    %10 = vector.load %arg3[%c0_6, %c0_7] : memref<1x128xf32, #tpu.memory_space<vmem>>, vector<1x128xf32>
    %11 = arith.addf %9, %10 : vector<1x128xf32>
    %cst_8 = arith.constant 0.000000e+00 : f32
    %12 = vector.broadcast %cst_8 : f32 to vector<1x128xf32>
    %13 = arith.maximumf %11, %12 : vector<1x128xf32>
    %c0_9 = arith.constant 0 : index
    %c0_10 = arith.constant 0 : index
    %14 = vector.load %arg4[%c0_9, %c0_10] : memref<1x128xf32, #tpu.memory_space<vmem>>, vector<1x128xf32>
    %15 = arith.mulf %13, %14 : vector<1x128xf32>
    %cst_11 = arith.constant dense<0.000000e+00> : vector<1xf32>
    %16 = vector.multi_reduction <add>, %15, %cst_11 [1] : vector<1x128xf32> to vector<1xf32>
    %17 = vector.shape_cast %16 : vector<1xf32> to vector<1x1xf32>
    %c0_12 = arith.constant 0 : index
    %c0_13 = arith.constant 0 : index
    %18 = vector.load %arg5[%c0_12, %c0_13] : memref<1x1xf32, #tpu.memory_space<vmem>>, vector<1x1xf32>
    %19 = arith.addf %17, %18 : vector<1x1xf32>
    %20 = arith.negf %19 : vector<1x1xf32>
    %21 = math.exp %20 : vector<1x1xf32>
    %cst_14 = arith.constant 1.000000e+00 : f32
    %22 = vector.broadcast %cst_14 : f32 to vector<1x1xf32>
    %23 = arith.addf %22, %21 : vector<1x1xf32>
    %24 = arith.divf %22, %23 : vector<1x1xf32>
    %c0_15 = arith.constant 0 : index
    %c0_16 = arith.constant 0 : index
    %c0_17 = arith.constant 0 : index
    %25 = vector.load %arg6[%c0_15, %c0_16, %c0_17] : memref<1x1x1xf32, #tpu.memory_space<vmem>>, vector<1x1x1xf32>
    %26 = vector.shape_cast %25 : vector<1x1x1xf32> to vector<1x1xf32>
    %27 = vector.shape_cast %24 : vector<1x1xf32> to vector<1x1x1xf32>
    tpu.vector_store %arg6[%c0_15, %c0_16, %c0_17], %27 {strides = array<i32>} : memref<1x1x1xf32, #tpu.memory_space<vmem>>, vector<1x1x1xf32>,
    return
  }
  func.func @transform_0(%arg0: i32) -> (i32, i32, i32) {
    %c0_i32 = arith.constant 0 : i32
    %c0_i32_0 = arith.constant 0 : i32
    %c0_i32_1 = arith.constant 0 : i32
    return %arg0, %c0_i32, %c0_i32_0 : i32, i32, i32
  }
  func.func @transform_1(%arg0: i32) -> (i32, i32) {
    %c0_i32 = arith.constant 0 : i32
    %c0_i32_0 = arith.constant 0 : i32
    %c0_i32_1 = arith.constant 0 : i32
    return %c0_i32, %c0_i32_0 : i32, i32
  }
  func.func @transform_2(%arg0: i32) -> (i32, i32) {
    %c0_i32 = arith.constant 0 : i32
    %c0_i32_0 = arith.constant 0 : i32
    %c0_i32_1 = arith.constant 0 : i32
    return %c0_i32, %c0_i32_0 : i32, i32
  }
  func.func @transform_3(%arg0: i32) -> (i32, i32) {
    %c0_i32 = arith.constant 0 : i32
    %c0_i32_0 = arith.constant 0 : i32
    %c0_i32_1 = arith.constant 0 : i32
    return %c0_i32, %c0_i32_0 : i32, i32
  }
  func.func @transform_4(%arg0: i32) -> (i32, i32) {
    %c0_i32 = arith.constant 0 : i32
    %c0_i32_0 = arith.constant 0 : i32
    %c0_i32_1 = arith.constant 0 : i32
    return %c0_i32, %c0_i32_0 : i32, i32
  }
  func.func @transform_5(%arg0: i32) -> (i32, i32, i32) {
    %c0_i32 = arith.constant 0 : i32
    %c0_i32_0 = arith.constant 0 : i32
    %c0_i32_1 = arith.constant 0 : i32
    return %arg0, %c0_i32, %c0_i32_0 : i32, i32, i32
  }
}

</mosaic_0001>

<llo_original>
// kernel: _lambda_.10
$region0: #{_lambda_.10}
  #allocation0 [shape = 'u32[]', space=smem, size = 0x4, offset = 0x4, fixed_abs, tag = 'smem constant byte address 0x4 - core index']
  #allocation1 [shape = 'u32[144,128]{1,0:T(1,128)}', space=vmem, size = 0x12000, scoped, tag = 'internal scratch']
  %s0 = inlined_call_operand.vmem [shape: bf16[32,64], index: 0, kind: input, shape index: {}]
  %s1 = inlined_call_operand.vmem [shape: bf16[32,64], index: 1, kind: input, shape index: {}]
  %s2 = inlined_call_operand.vmem [shape: bf16[32,64], index: 2, kind: input, shape index: {}]
  %s3 = inlined_call_operand.vmem [shape: bf16[32,64], index: 3, kind: output, shape index: {}]
  %s4 = sld [smem:[#allocation0]]
  $region22: #{_lambda_.10} parent=0
    _
  %s6 = ssub.s32 1, %s4
  %s7 = scalar_select 0, %s6, %s4
  // Predicated region
  $region2: #{_lambda_.10} parent=0 // pred_check
    _
  $region3: #{_lambda_.10} parent=0 // pred_check_branch
    %9 = sbr.rel (0) target = $region5
  $region4: #{_lambda_.10} parent=0 // pred_region
    _
  $region5: #{_lambda_.10} parent=0 // pred_fallthru
    _
  // Predicated region
  $region6: #{_lambda_.10} parent=0 // pred_check
    _
  $region7: #{_lambda_.10} parent=0 // pred_check_branch
    %11 = sbr.rel (0) target = $region9
  $region8: #{_lambda_.10} parent=0 // pred_region
    _
  $region9: #{_lambda_.10} parent=0 // pred_fallthru
    _
  // Predicated region
  $region10: #{_lambda_.10} parent=0 // pred_check
    _
  $region11: #{_lambda_.10} parent=0 // pred_check_branch
    %13 = sbr.rel (0) target = $region13
  $region12: #{_lambda_.10} parent=0 // pred_region
    _
  $region13: #{_lambda_.10} parent=0 // pred_fallthru
    _
  %v14 = vld [vmem:[%s0] sm:$0xf]
  %v15 = vld [vmem:[%s0 + $0x4] sm:$0xf]
  %v16 = vld [vmem:[%s0 + $0x8] sm:$0xf]
  %v17 = vld [vmem:[%s0 + $0xc] sm:$0xf]
  %v18 = vld [vmem:[%s1] sm:$0xf]
  %v19 = vld [vmem:[%s1 + $0x4] sm:$0xf]
  %v20 = vld [vmem:[%s1 + $0x8] sm:$0xf]
  %v21 = vld [vmem:[%s1 + $0xc] sm:$0xf]
  %v22 = vmax.bf16 %v14, %v18
  %v23 = vmax.bf16 %v15, %v19
  %v24 = vmax.bf16 %v16, %v20
  %v25 = vmax.bf16 %v17, %v21
  %v26 = vld [vmem:[%s2] sm:$0xf]
  %v27 = vld [vmem:[%s2 + $0x4] sm:$0xf]
  %v28 = vld [vmem:[%s2 + $0x8] sm:$0xf]
  %v29 = vld [vmem:[%s2 + $0xc] sm:$0xf]
  %v30 = vmax.bf16 %v22, %v26
  %v31 = vmax.bf16 %v23, %v27
  %v32 = vmax.bf16 %v24, %v28
  %v33 = vmax.bf16 %v25, %v29
  %vm34 = vcmask 519168
  %35 = vst.msk [vmem:[%s3] sm:$0xf] %vm34, %v30
  %36 = vst.msk [vmem:[%s3 + $0x4] sm:$0xf] %vm34, %v31
  %37 = vst.msk [vmem:[%s3 + $0x8] sm:$0xf] %vm34, %v32
  %38 = vst.msk [vmem:[%s3 + $0xc] sm:$0xf] %vm34, %v33
  // Predicated region
  $region14: #{_lambda_.10} parent=0 // pred_check
    _
  $region15: #{_lambda_.10} parent=0 // pred_check_branch
    %40 = sbr.rel (0) target = $region17
  $region16: #{_lambda_.10} parent=0 // pred_region
    _
  $region17: #{_lambda_.10} parent=0 // pred_fallthru
    _
  // Predicated region
  $region18: #{_lambda_.10} parent=0 // pred_check
    _
  $region19: #{_lambda_.10} parent=0 // pred_check_branch
    %42 = sbr.rel (0) target = $region21
  $region20: #{_lambda_.10} parent=0 // pred_region
    _
  $region21: #{_lambda_.10} parent=0 // pred_fallthru
    _

// kernel: _lambda_.9
$region0: #{_lambda_.9}
  #allocation0 [shape = 'u32[]', space=smem, size = 0x4, offset = 0x4, fixed_abs, tag = 'smem constant byte address 0x4 - core index']
  #allocation1 [shape = 'u32[144,128]{1,0:T(1,128)}', space=vmem, size = 0x12000, scoped, tag = 'internal scratch']
  %s0 = inlined_call_operand.vmem [shape: bf16[64,8], index: 0, kind: input, shape index: {}]
  %s1 = inlined_call_operand.vmem [shape: bf16[8,64], index: 1, kind: input, shape index: {}]
  %s2 = inlined_call_operand.vmem [shape: f32[1,64], index: 2, kind: input, shape index: {}]
  %s3 = inlined_call_operand.vmem [shape: f32[1,64], index: 3, kind: input, shape index: {}]
  %s4 = inlined_call_operand.vmem [shape: bf16[64,64], index: 4, kind: output, shape index: {}]
  %s5 = sld [smem:[#allocation0]]
  $region26: #{_lambda_.9} parent=0
    _
  %s7 = ssub.s32 1, %s5
  %s8 = scalar_select 0, %s7, %s5
  // Predicated region
  $region2: #{_lambda_.9} parent=0 // pred_check
    _
  $region3: #{_lambda_.9} parent=0 // pred_check_branch
    %10 = sbr.rel (0) target = $region5
  $region4: #{_lambda_.9} parent=0 // pred_region
    _
  $region5: #{_lambda_.9} parent=0 // pred_fallthru
    _
  // Predicated region
  $region6: #{_lambda_.9} parent=0 // pred_check
    _
  $region7: #{_lambda_.9} parent=0 // pred_check_branch
    %12 = sbr.rel (0) target = $region9
  $region8: #{_lambda_.9} parent=0 // pred_region
    _
  $region9: #{_lambda_.9} parent=0 // pred_fallthru
    _
  // Predicated region
  $region10: #{_lambda_.9} parent=0 // pred_check
    _
  $region11: #{_lambda_.9} parent=0 // pred_check_branch
    %14 = sbr.rel (0) target = $region13
  $region12: #{_lambda_.9} parent=0 // pred_region
    _
  $region13: #{_lambda_.9} parent=0 // pred_fallthru
    _
  // Predicated region
  $region14: #{_lambda_.9} parent=0 // pred_check
    _
  $region15: #{_lambda_.9} parent=0 // pred_check_branch
    %16 = sbr.rel (0) target = $region17
  $region16: #{_lambda_.9} parent=0 // pred_region
    _
  $region17: #{_lambda_.9} parent=0 // pred_fallthru
    _
  %v18 = vld [vmem:[%s0] sm:$0xf]
  %v19 = vld [vmem:[%s0 + $0x4] sm:$0xf]
  %v20 = vld [vmem:[%s0 + $0x8] sm:$0xf]
  %v21 = vld [vmem:[%s0 + $0xc] sm:$0xf]
  %v22 = vld [vmem:[%s0 + $0x10] sm:$0xf]
  %v23 = vld [vmem:[%s0 + $0x14] sm:$0xf]
  %v24 = vld [vmem:[%s0 + $0x18] sm:$0xf]
  %v25 = vld [vmem:[%s0 + $0x1c] sm:$0xf]
  %v26 = vld [vmem:[%s1] sm:$0xf]
  %v35 = vunpack.c.l.b16 %v18
  %v36 = vunpack.c.l.b16 %v19
  %v37 = vunpack.c.l.b16 %v20
  %v38 = vunpack.c.l.b16 %v21
  %v39 = vunpack.c.l.b16 %v22
  %v40 = vunpack.c.l.b16 %v23
  %v41 = vunpack.c.l.b16 %v24
  %v42 = vunpack.c.l.b16 %v25
  %v43 = vpack.c.b16 %v36, %v35
  %v44 = vpack.c.b16 %v38, %v37
  %v45 = vpack.c.b16 %v40, %v39
  %v46 = vpack.c.b16 %v42, %v41
  %vm47 = vcmask 64512
  %v49 = vsel %vm47, %v43, 0
  %v52 = vsel %vm47, %v44, 0
  %v55 = vsel %vm47, %v45, 0
  %v58 = vsel %vm47, %v46, 0
  %vm60 = vcmask 1043456
  %v62 = vsel %vm60, %v26, 0
  %64 = vmatprep.subr.bf16.mxu0 0
  %65 = vmatpush1.bf16.msra.mxu0 %v62
  %66 = vmatprep.subr.bf16.mxu0 0
  %67 = vmatpush1.bf16.msra.mxu0 0
  %68 = vmatprep.subr.bf16.mxu0 0
  %69 = vmatpush1.bf16.msra.mxu0 0
  %70 = vmatprep.subr.bf16.mxu0 0
  %71 = vmatpush1.bf16.msra.mxu0 0
  %72 = vmatprep.subr.bf16.mxu0 0
  %73 = vmatpush1.bf16.msra.mxu0 0
  %74 = vmatprep.subr.bf16.mxu0 0
  %75 = vmatpush1.bf16.msra.mxu0 0
  %76 = vmatprep.subr.bf16.mxu0 0
  %77 = vmatpush1.bf16.msra.mxu0 0
  %78 = vmatprep.subr.bf16.mxu0 0
  %79 = vmatpush1.bf16.msra.mxu0 0
  %80 = vmatprep.subr.bf16.mxu0 0
  %81 = vmatpush1.bf16.msra.mxu0 0
  %82 = vmatprep.subr.bf16.mxu0 0
  %83 = vmatpush1.bf16.msra.mxu0 0
  %84 = vmatprep.subr.bf16.mxu0 0
  %85 = vmatpush1.bf16.msra.mxu0 0
  %86 = vmatprep.subr.bf16.mxu0 0
  %87 = vmatpush1.bf16.msra.mxu0 0
  %88 = vmatprep.subr.bf16.mxu0 0
  %89 = vmatpush1.bf16.msra.mxu0 0
  %90 = vmatprep.subr.bf16.mxu0 0
  %91 = vmatpush1.bf16.msra.mxu0 0
  %92 = vmatprep.subr.bf16.mxu0 0
  %93 = vmatpush1.bf16.msra.mxu0 0
  %94 = vmatprep.subr.bf16.mxu0 0
  %95 = vmatpush1.bf16.msra.mxu0 0
  %96 = vmatprep.mubr.bf16.mxu0 0
  %97 = vmatmul.mubr.bf16.gmra.mrb[0].mxu0 %v49
  %v98 = vpop.f32.mrb[0].mxu0
  %v99 = vadd.f32 0.0, %v98
  %v100 = vpop.f32.mrb[0].mxu0
  %v101 = vpop.f32.mrb[0].mxu0
  %v102 = vadd.f32 0.0, %v101
  %v103 = vpop.f32.mrb[0].mxu0
  %104 = vmatprep.mubr.bf16.mxu0 0
  %105 = vmatmul.mubr.bf16.gmra.mrb[0].mxu0 %v52
  %v106 = vpop.f32.mrb[0].mxu0
  %v107 = vadd.f32 0.0, %v106
  %v108 = vpop.f32.mrb[0].mxu0
  %v109 = vpop.f32.mrb[0].mxu0
  %v110 = vadd.f32 0.0, %v109
  %v111 = vpop.f32.mrb[0].mxu0
  %112 = vmatprep.mubr.bf16.mxu0 0
  %113 = vmatmul.mubr.bf16.gmra.mrb[0].mxu0 %v55
  %v114 = vpop.f32.mrb[0].mxu0
  %v115 = vadd.f32 0.0, %v114
  %v116 = vpop.f32.mrb[0].mxu0
  %v117 = vpop.f32.mrb[0].mxu0
  %v118 = vadd.f32 0.0, %v117
  %v119 = vpop.f32.mrb[0].mxu0
  %120 = vmatprep.mubr.bf16.mxu0 0
  %121 = vmatmul.mubr.bf16.gmra.mrb[0].mxu0 %v58
  %v122 = vpop.f32.mrb[0].mxu0
  %v123 = vadd.f32 0.0, %v122
  %v124 = vpop.f32.mrb[0].mxu0
  %v125 = vpop.f32.mrb[0].mxu0
  %v126 = vadd.f32 0.0, %v125
  %v127 = vpop.f32.mrb[0].mxu0
  %128 = vdwg.mxu0
  %v129 = vld [vmem:[%s2] sm:$0x1]
  %v131 = vlaneseq
  %v132 = vshrl.u32 %v131, 7
  %v133 = vsub.s32 0, %v132
  %v134 = vrot.slane %v129, %v133
  %v136 = vmul.f32 %v99, %v134
  %v137 = vmul.f32 %v102, %v134
  %v138 = vmul.f32 %v107, %v134
  %v139 = vmul.f32 %v110, %v134
  %v140 = vmul.f32 %v115, %v134
  %v141 = vmul.f32 %v118, %v134
  %v142 = vmul.f32 %v123, %v134
  %v143 = vmul.f32 %v126, %v134
  %v144 = vld [vmem:[%s3] sm:$0x1]
  %v146 = vlaneseq
  %v147 = vshrl.u32 %v146, 7
  %v148 = vsub.s32 0, %v147
  %v149 = vrot.slane %v144, %v148
  %v151 = vadd.f32 %v136, %v149
  %v152 = vadd.f32 %v137, %v149
  %v153 = vadd.f32 %v138, %v149
  %v154 = vadd.f32 %v139, %v149
  %v155 = vadd.f32 %v140, %v149
  %v156 = vadd.f32 %v141, %v149
  %v157 = vadd.f32 %v142, %v149
  %v158 = vadd.f32 %v143, %v149
  %v159 = vmax.f32 %v151, 0.0
  %v160 = vmax.f32 %v152, 0.0
  %v161 = vmax.f32 %v153, 0.0
  %v162 = vmax.f32 %v154, 0.0
  %v163 = vmax.f32 %v155, 0.0
  %v164 = vmax.f32 %v156, 0.0
  %v165 = vmax.f32 %v157, 0.0
  %v166 = vmax.f32 %v158, 0.0
  %v167 = vpack.c.bf16 %v160, %v159
  %v168 = vpack.c.bf16 %v162, %v161
  %v169 = vpack.c.bf16 %v164, %v163
  %v170 = vpack.c.bf16 %v166, %v165
  %v175 = vunpack.c.l.b16 %v167
  %v176 = vunpack.c.h.b16 %v167
  %v177 = vunpack.c.l.b16 %v168
  %v178 = vunpack.c.h.b16 %v168
  %v179 = vunpack.c.l.b16 %v169
  %v180 = vunpack.c.h.b16 %v169
  %v181 = vunpack.c.l.b16 %v170
  %v182 = vunpack.c.h.b16 %v170
  %v183 = vpack.c.b16 %v175, %v175
  %v184 = vpack.c.b16 %v176, %v176
  %v185 = vpack.c.b16 %v177, %v177
  %v186 = vpack.c.b16 %v178, %v178
  %v187 = vpack.c.b16 %v179, %v179
  %v188 = vpack.c.b16 %v180, %v180
  %v189 = vpack.c.b16 %v181, %v181
  %v190 = vpack.c.b16 %v182, %v182
  %vm199 = vcmask 519168
  %200 = vst.msk [vmem:[%s4] sm:$0xf] %vm199, %v183
  %201 = vst.msk [vmem:[%s4 + $0x4] sm:$0xf] %vm199, %v184
  %202 = vst.msk [vmem:[%s4 + $0x8] sm:$0xf] %vm199, %v185
  %203 = vst.msk [vmem:[%s4 + $0xc] sm:$0xf] %vm199, %v186
  %204 = vst.msk [vmem:[%s4 + $0x10] sm:$0xf] %vm199, %v187
  %205 = vst.msk [vmem:[%s4 + $0x14] sm:$0xf] %vm199, %v188
  %206 = vst.msk [vmem:[%s4 + $0x18] sm:$0xf] %vm199, %v189
  %207 = vst.msk [vmem:[%s4 + $0x1c] sm:$0xf] %vm199, %v190
  // Predicated region
  $region18: #{_lambda_.9} parent=0 // pred_check
    _
  $region19: #{_lambda_.9} parent=0 // pred_check_branch
    %209 = sbr.rel (0) target = $region21
  $region20: #{_lambda_.9} parent=0 // pred_region
    _
  $region21: #{_lambda_.9} parent=0 // pred_fallthru
    _
  // Predicated region
  $region22: #{_lambda_.9} parent=0 // pred_check
    _
  $region23: #{_lambda_.9} parent=0 // pred_check_branch
    %211 = sbr.rel (0) target = $region25
  $region24: #{_lambda_.9} parent=0 // pred_region
    _
  $region25: #{_lambda_.9} parent=0 // pred_fallthru
    _

// kernel: _lambda_.11
$region0: #{_lambda_.11}
  #allocation0 [shape = 'u32[]', space=smem, size = 0x4, offset = 0x4, fixed_abs, tag = 'smem constant byte address 0x4 - core index']
  #allocation1 [shape = 'u32[144,128]{1,0:T(1,128)}', space=vmem, size = 0x12000, scoped, tag = 'internal scratch']
  #allocation2 [shape = 'bf16[48,64]{1,0:T(16,128)(2,1)}', space=vmem, size = 0x3000, scoped, tag = 'scratch operand']
  %s0 = inlined_call_operand.vmem [shape: bf16[2,18,64], index: 0, kind: input, shape index: {}]
  %s1 = inlined_call_operand.vmem [shape: bf16[3,64,64], index: 1, kind: input, shape index: {}]
  %s2 = inlined_call_operand.vmem [shape: f32[1,64], index: 2, kind: input, shape index: {}]
  %s3 = inlined_call_operand.vmem [shape: f32[1,64], index: 3, kind: input, shape index: {}]
  %s4 = inlined_call_operand.vmem [shape: bf16[3,64,64], index: 4, kind: input, shape index: {}]
  %s5 = inlined_call_operand.vmem [shape: f32[1,64], index: 5, kind: input, shape index: {}]
  %s6 = inlined_call_operand.vmem [shape: f32[1,64], index: 6, kind: input, shape index: {}]
  %s7 = inlined_call_operand.vmem [shape: bf16[2,16,64], index: 7, kind: output, shape index: {}]
  %s8 = sld [smem:[#allocation0]]
  $region61: #{_lambda_.11} parent=0
    _
  %s10 = ssub.s32 1, %s8
  %s11 = scalar_select 0, %s10, %s8
  loop: start=0, step=1, limit=4
  $region2: #{_lambda_.11} parent=0 // loop_pre_header
    _
  $region3: #{_lambda_.11} parent=0 // loop_header
    %s13 = sphi 0, %s17
    %p14 = scmp.ge.s32.totalorder %s13, 4
    %s23 = sphi 0, %s25
    %s26 = sphi 0, %s23
    %s27 = sphi 0, %s26
    %s43 = sphi 0, %s27
    %s47 = sphi 0, %s47
    %s49 = sphi 0, %s47
    %s50 = sphi 0, %s49
    %s64 = sphi 0, %s50
    %s68 = sphi 0, %s68
    %s70 = sphi 0, %s68
    %s71 = sphi 0, %s70
    %s85 = sphi 0, %s71
    %s89 = sphi 0, %s89
    %s91 = sphi 0, %s89
    %s92 = sphi 0, %s91
    %s106 = sphi 0, %s92
    %s110 = sphi 0, %s110
    %s112 = sphi 0, %s110
    %s113 = sphi 0, %s112
    %s127 = sphi 0, %s113
    %s131 = sphi 0, %s131
    %s133 = sphi 0, %s131
    %s134 = sphi 0, %s133
    %s148 = sphi 0, %s134
    %s152 = sphi 0, %s152
    %s154 = sphi 0, %s152
    %s155 = sphi 0, %s154
    %s169 = sphi 0, %s155
    %s175 = sphi 0, %s177
    %s178 = sphi 0, %s175
    %s179 = sphi 0, %s178
    %s195 = sphi 0, %s179
  $region4: #{_lambda_.11} parent=0 // loop_header_branch
    %16 = sbr.rel (%p14) target = $region8
  $region5: #{_lambda_.11} parent=0 // loop_body
    %s18 = ssub.s32 %s13, 1
    %s19 = ssub.s32 %s13, 2
    %s20 = sadd.s32 %s13, 1
    %s21 = ssub.s32 %s13, %s20
    %p22 = scmp.eq.s32.totalorder %s21, 0
    %s24 = sadd.s32 %s23, 1
    %s25 = scalar_select %p22, %s23, %s24
    %p28 = pneg %p22
    %p29 = scmp.eq.s32.totalorder %s13, 1
    %p30 = por %p28, %p29
    %p31 = scmp.ne.s32.totalorder %s23, %s26
    %p32 = scmp.eq.s32.totalorder %s13, 0
    %p33 = por %p31, %p32
    %p34 = scmp.ne.s32.totalorder %s23, %s26
    %p35 = scmp.eq.s32.totalorder %s18, 1
    %p36 = por %p34, %p35
    %p37 = scmp.ne.s32.totalorder %s26, %s27
    %p38 = scmp.eq.s32.totalorder %s18, 0
    %p39 = por %p37, %p38
    %p40 = scmp.ne.s32.totalorder %s26, %s27
    %p41 = scmp.eq.s32.totalorder %s19, 1
    %p42 = por %p40, %p41
    %p44 = scmp.ne.s32.totalorder %s27, %s43
    %p45 = scmp.eq.s32.totalorder %s19, 0
    %p46 = por %p44, %p45
    %s48 = sadd.s32 %s47, 1
    %p51 = scmp.eq.s32.totalorder %s13, 1
    %p52 = scmp.ne.s32.totalorder %s47, %s49
    %p53 = scmp.eq.s32.totalorder %s13, 0
    %p54 = por %p52, %p53
    %p55 = scmp.ne.s32.totalorder %s47, %s49
    %p56 = scmp.eq.s32.totalorder %s18, 1
    %p57 = por %p55, %p56
    %p58 = scmp.ne.s32.totalorder %s49, %s50
    %p59 = scmp.eq.s32.totalorder %s18, 0
    %p60 = por %p58, %p59
    %p61 = scmp.ne.s32.totalorder %s49, %s50
    %p62 = scmp.eq.s32.totalorder %s19, 1
    %p63 = por %p61, %p62
    %p65 = scmp.ne.s32.totalorder %s50, %s64
    %p66 = scmp.eq.s32.totalorder %s19, 0
    %p67 = por %p65, %p66
    %s69 = sadd.s32 %s68, 1
    %p72 = scmp.eq.s32.totalorder %s13, 1
    %p73 = scmp.ne.s32.totalorder %s68, %s70
    %p74 = scmp.eq.s32.totalorder %s13, 0
    %p75 = por %p73, %p74
    %p76 = scmp.ne.s32.totalorder %s68, %s70
    %p77 = scmp.eq.s32.totalorder %s18, 1
    %p78 = por %p76, %p77
    %p79 = scmp.ne.s32.totalorder %s70, %s71
    %p80 = scmp.eq.s32.totalorder %s18, 0
    %p81 = por %p79, %p80
    %p82 = scmp.ne.s32.totalorder %s70, %s71
    %p83 = scmp.eq.s32.totalorder %s19, 1
    %p84 = por %p82, %p83
    %p86 = scmp.ne.s32.totalorder %s71, %s85
    %p87 = scmp.eq.s32.totalorder %s19, 0
    %p88 = por %p86, %p87
    %s90 = sadd.s32 %s89, 1
    %p93 = scmp.eq.s32.totalorder %s13, 1
    %p94 = scmp.ne.s32.totalorder %s89, %s91
    %p95 = scmp.eq.s32.totalorder %s13, 0
    %p96 = por %p94, %p95
    %p97 = scmp.ne.s32.totalorder %s89, %s91
    %p98 = scmp.eq.s32.totalorder %s18, 1
    %p99 = por %p97, %p98
    %p100 = scmp.ne.s32.totalorder %s91, %s92
    %p101 = scmp.eq.s32.totalorder %s18, 0
    %p102 = por %p100, %p101
    %p103 = scmp.ne.s32.totalorder %s91, %s92
    %p104 = scmp.eq.s32.totalorder %s19, 1
    %p105 = por %p103, %p104
    %p107 = scmp.ne.s32.totalorder %s92, %s106
    %p108 = scmp.eq.s32.totalorder %s19, 0
    %p109 = por %p107, %p108
    %s111 = sadd.s32 %s110, 1
    %p114 = scmp.eq.s32.totalorder %s13, 1
    %p115 = scmp.ne.s32.totalorder %s110, %s112
    %p116 = scmp.eq.s32.totalorder %s13, 0
    %p117 = por %p115, %p116
    %p118 = scmp.ne.s32.totalorder %s110, %s112
    %p119 = scmp.eq.s32.totalorder %s18, 1
    %p120 = por %p118, %p119
    %p121 = scmp.ne.s32.totalorder %s112, %s113
    %p122 = scmp.eq.s32.totalorder %s18, 0
    %p123 = por %p121, %p122
    %p124 = scmp.ne.s32.totalorder %s112, %s113
    %p125 = scmp.eq.s32.totalorder %s19, 1
    %p126 = por %p124, %p125
    %p128 = scmp.ne.s32.totalorder %s113, %s127
    %p129 = scmp.eq.s32.totalorder %s19, 0
    %p130 = por %p128, %p129
    %s132 = sadd.s32 %s131, 1
    %p135 = scmp.eq.s32.totalorder %s13, 1
    %p136 = scmp.ne.s32.totalorder %s131, %s133
    %p137 = scmp.eq.s32.totalorder %s13, 0
    %p138 = por %p136, %p137
    %p139 = scmp.ne.s32.totalorder %s131, %s133
    %p140 = scmp.eq.s32.totalorder %s18, 1
    %p141 = por %p139, %p140
    %p142 = scmp.ne.s32.totalorder %s133, %s134
    %p143 = scmp.eq.s32.totalorder %s18, 0
    %p144 = por %p142, %p143
    %p145 = scmp.ne.s32.totalorder %s133, %s134
    %p146 = scmp.eq.s32.totalorder %s19, 1
    %p147 = por %p145, %p146
    %p149 = scmp.ne.s32.totalorder %s134, %s148
    %p150 = scmp.eq.s32.totalorder %s19, 0
    %p151 = por %p149, %p150
    %s153 = sadd.s32 %s152, 1
    %p156 = scmp.eq.s32.totalorder %s13, 1
    %p157 = scmp.ne.s32.totalorder %s152, %s154
    %p158 = scmp.eq.s32.totalorder %s13, 0
    %p159 = por %p157, %p158
    %p160 = scmp.ne.s32.totalorder %s152, %s154
    %p161 = scmp.eq.s32.totalorder %s18, 1
    %p162 = por %p160, %p161
    %p163 = scmp.ne.s32.totalorder %s154, %s155
    %p164 = scmp.eq.s32.totalorder %s18, 0
    %p165 = por %p163, %p164
    %p166 = scmp.ne.s32.totalorder %s154, %s155
    %p167 = scmp.eq.s32.totalorder %s19, 1
    %p168 = por %p166, %p167
    %p170 = scmp.ne.s32.totalorder %s155, %s169
    %p171 = scmp.eq.s32.totalorder %s19, 0
    %p172 = por %p170, %p171
    %s173 = ssub.s32 %s13, %s20
    %p174 = scmp.eq.s32.totalorder %s173, 0
    %s176 = sadd.s32 %s175, 1
    %s177 = scalar_select %p174, %s175, %s176
    %p180 = pneg %p174
    %p181 = scmp.eq.s32.totalorder %s13, 1
    %p182 = por %p180, %p181
    %p183 = scmp.ne.s32.totalorder %s175, %s178
    %p184 = scmp.eq.s32.totalorder %s13, 0
    %p185 = por %p183, %p184
    %p186 = scmp.ne.s32.totalorder %s175, %s178
    %p187 = scmp.eq.s32.totalorder %s18, 1
    %p188 = por %p186, %p187
    %p189 = scmp.ne.s32.totalorder %s178, %s179
    %p190 = scmp.eq.s32.totalorder %s18, 0
    %p191 = por %p189, %p190
    %p192 = scmp.ne.s32.totalorder %s178, %s179
    %p193 = scmp.eq.s32.totalorder %s19, 1
    %p194 = por %p192, %p193
    %p196 = scmp.ne.s32.totalorder %s179, %s195
    %p197 = scmp.eq.s32.totalorder %s19, 0
    %p198 = por %p196, %p197
    %p199 = scmp.le.s32.totalorder 1, %s13
    %p200 = scmp.lt.s32.totalorder %s13, 3
    %p201 = pnand %p199, %p200
    %p202 = pneg %p201
    // Predicated region
    $region9: #{_lambda_.11} parent=5 // pred_check
      _
    $region10: #{_lambda_.11} parent=5 // pred_check_branch
      %204 = sbr.rel (%p201) target = $region12
    $region11: #{_lambda_.11} parent=5 // pred_region
      %s205 = ssub.s32 %s13, 1
      // Predicated region
      $region13: #{_lambda_.11} parent=11 // pred_check
        %p206 = pneg %p60
      $region14: #{_lambda_.11} parent=11 // pred_check_branch
        %208 = sbr.rel (%p206) target = $region16
      $region15: #{_lambda_.11} parent=11 // pred_region
        _
      $region16: #{_lambda_.11} parent=11 // pred_fallthru
        _
      // Predicated region
      $region17: #{_lambda_.11} parent=11 // pred_check
        %p209 = pneg %p81
      $region18: #{_lambda_.11} parent=11 // pred_check_branch
        %211 = sbr.rel (%p209) target = $region20
      $region19: #{_lambda_.11} parent=11 // pred_region
        _
      $region20: #{_lambda_.11} parent=11 // pred_fallthru
        _
      // Predicated region
      $region21: #{_lambda_.11} parent=11 // pred_check
        %p212 = pneg %p102
      $region22: #{_lambda_.11} parent=11 // pred_check_branch
        %214 = sbr.rel (%p212) target = $region24
      $region23: #{_lambda_.11} parent=11 // pred_region
        _
      $region24: #{_lambda_.11} parent=11 // pred_fallthru
        _
      // Predicated region
      $region25: #{_lambda_.11} parent=11 // pred_check
        %p215 = pneg %p123
      $region26: #{_lambda_.11} parent=11 // pred_check_branch
        %217 = sbr.rel (%p215) target = $region28
      $region27: #{_lambda_.11} parent=11 // pred_region
        _
      $region28: #{_lambda_.11} parent=11 // pred_fallthru
        _
      // Predicated region
      $region29: #{_lambda_.11} parent=11 // pred_check
        %p218 = pneg %p144
      $region30: #{_lambda_.11} parent=11 // pred_check_branch
        %220 = sbr.rel (%p218) target = $region32
      $region31: #{_lambda_.11} parent=11 // pred_region
        _
      $region32: #{_lambda_.11} parent=11 // pred_fallthru
        _
      // Predicated region
      $region33: #{_lambda_.11} parent=11 // pred_check
        %p221 = pneg %p165
      $region34: #{_lambda_.11} parent=11 // pred_check_branch
        %223 = sbr.rel (%p221) target = $region36
      $region35: #{_lambda_.11} parent=11 // pred_region
        _
      $region36: #{_lambda_.11} parent=11 // pred_fallthru
        _
    $region12: #{_lambda_.11} parent=5 // pred_fallthru
      _
    %p224 = scmp.lt.s32.totalorder %s13, 2
    // Predicated region
    $region37: #{_lambda_.11} parent=5 // pred_check
      %p225 = pneg %p224
    $region38: #{_lambda_.11} parent=5 // pred_check_branch
      %227 = sbr.rel (%p225) target = $region40
    $region39: #{_lambda_.11} parent=5 // pred_region
      // Predicated region
      $region41: #{_lambda_.11} parent=39 // pred_check
        %p228 = pneg %p33
      $region42: #{_lambda_.11} parent=39 // pred_check_branch
        %230 = sbr.rel (%p228) target = $region44
      $region43: #{_lambda_.11} parent=39 // pred_region
        %p231 = scmp.lt.s32.totalorder %s13, 1
        %s232 = scalar_select %p231, %s13, 1
        %s233 = smul.addr %s232, 3
        %s234 = smul.addr %s233, 4
        %s235 = scalar_lea.vmem %s0, %s234
      $region44: #{_lambda_.11} parent=39 // pred_fallthru
        _
    $region40: #{_lambda_.11} parent=5 // pred_fallthru
      _
    %p236 = scmp.le.s32.totalorder 1, %s13
    %p237 = scmp.lt.s32.totalorder %s13, 3
    %p238 = pnand %p236, %p237
    %p239 = pneg %p238
    // Predicated region
    $region45: #{_lambda_.11} parent=5 // pred_check
      _
    $region46: #{_lambda_.11} parent=5 // pred_check_branch
      %241 = sbr.rel (%p238) target = $region48
    $region47: #{_lambda_.11} parent=5 // pred_region
      %s242 = ssub.s32 %s13, 1
      %p243 = scmp.lt.s32.totalorder %s18, 1
      %s244 = scalar_select %p243, %s18, 1
      %s245 = smul.addr %s244, 3
      %s246 = smul.addr %s245, 4
      %s247 = scalar_lea.vmem %s0, %s246
      %p248 = pneg %p39
      %p249 = pneg %p36
      %p250 = pneg %p60
      %p251 = pneg %p57
      %p252 = pneg %p81
      %p253 = pneg %p78
      %p254 = pneg %p102
      %p255 = pneg %p99
      %p256 = pneg %p123
      %p257 = pneg %p120
      %p258 = pneg %p144
      %p259 = pneg %p141
      %p260 = pneg %p165
      %p261 = pneg %p162
      %p262 = pneg %p191
      %p263 = pneg %p188
      %p264 = scmp.lt.s32.totalorder %s18, 1
      %s265 = scalar_select %p264, %s18, 1
      %s266 = smul.addr %s265, 2
      %s267 = smul.addr %s266, 4
      %s268 = scalar_lea.vmem %s7, %s267
      %p269 = scmp.lt.s32.totalorder %s18, 1
      %s270 = scalar_select %p269, %s18, 1
      %s271 = smul.addr %s270, 3
      %s272 = smul.addr %s271, 4
      %s273 = scalar_lea.vmem %s0, %s272
      %p274 = scmp.lt.s32.totalorder %s18, 1
      %s275 = scalar_select %p274, %s18, 1
      %s276 = smul.addr %s275, 2
      %s277 = smul.addr %s276, 4
      %s278 = scalar_lea.vmem %s7, %s277
      %v280 = vld [vmem:[%s273] sm:$0xf]
      %v281 = vld [vmem:[%s273 + $0x4] sm:$0xf]
      %v282 = vld [vmem:[%s1] sm:$0xf]
      %v283 = vld [vmem:[%s1 + $0x4] sm:$0xf]
      %v284 = vld [vmem:[%s1 + $0x8] sm:$0xf]
      %v285 = vld [vmem:[%s1 + $0xc] sm:$0xf]
      %v286 = vld [vmem:[%s1 + $0x10] sm:$0xf]
      %v287 = vld [vmem:[%s1 + $0x14] sm:$0xf]
      %v288 = vld [vmem:[%s1 + $0x18] sm:$0xf]
      %v289 = vld [vmem:[%s1 + $0x1c] sm:$0xf]
      %v290 = vld [vmem:[%s273 + $0x8] sm:$0x1]
      %s291 = scalar_lea.vmem %s1, 32
      %v292 = vld [vmem:[%s291] sm:$0xf]
      %v293 = vld [vmem:[%s291 + $0x4] sm:$0xf]
      %v294 = vld [vmem:[%s291 + $0x8] sm:$0xf]
      %v295 = vld [vmem:[%s291 + $0xc] sm:$0xf]
      %v296 = vld [vmem:[%s291 + $0x10] sm:$0xf]
      %v297 = vld [vmem:[%s291 + $0x14] sm:$0xf]
      %v298 = vld [vmem:[%s291 + $0x18] sm:$0xf]
      %v299 = vld [vmem:[%s291 + $0x1c] sm:$0xf]
      %v303 = vunpack.c.l.b16 %v280
      %v304 = vunpack.c.l.b16 %v281
      %v305 = vunpack.c.l.b16 %v290
      %v306 = vpack.c.b16 %v304, %v303
      %v307 = vpack.c.b16 %v305, %v305
      %vm308 = vsmask.f32 7424
      %v310 = vshrl.u32 %v306, 16
      %v312 = vshll.u32 %v306, 16
      %v314 = vrot.slane %v312, 1
      %v315 = vor.u32 %v310, %v314
      %v317 = vshll.u32 %v307, 16
      %v319 = vrot.slane %v317, 1
      %v320 = vsel %vm308, %v315, %v319
      %v329 = vunpack.c.l.b16 %v292
      %v330 = vunpack.c.l.b16 %v293
      %v331 = vunpack.c.l.b16 %v294
      %v332 = vunpack.c.l.b16 %v295
      %v333 = vunpack.c.l.b16 %v296
      %v334 = vunpack.c.l.b16 %v297
      %v335 = vunpack.c.l.b16 %v298
      %v336 = vunpack.c.l.b16 %v299
      %v337 = vpack.c.b16 %v330, %v329
      %v338 = vpack.c.b16 %v332, %v331
      %v339 = vpack.c.b16 %v334, %v333
      %v340 = vpack.c.b16 %v336, %v335
      %vm345 = vcmask 523264
      %v347 = vsel %vm345, %v320, 0
      %349 = vmatprep.subr.bf16.mxu0 0
      %350 = vmatpush1.bf16.msra.mxu0 %v337
      %351 = vmatprep.subr.bf16.mxu0 0
      %352 = vmatpush1.bf16.msra.mxu0 %v338
      %353 = vmatprep.subr.bf16.mxu0 0
      %354 = vmatpush1.bf16.msra.mxu0 %v339
      %355 = vmatprep.subr.bf16.mxu0 0
      %356 = vmatpush1.bf16.msra.mxu0 %v340
      %357 = vmatprep.subr.bf16.mxu0 0
      %358 = vmatpush1.bf16.msra.mxu0 0
      %359 = vmatprep.subr.bf16.mxu0 0
      %360 = vmatpush1.bf16.msra.mxu0 0
      %361 = vmatprep.subr.bf16.mxu0 0
      %362 = vmatpush1.bf16.msra.mxu0 0
      %363 = vmatprep.subr.bf16.mxu0 0
      %364 = vmatpush1.bf16.msra.mxu0 0
      %365 = vmatprep.subr.bf16.mxu0 0
      %366 = vmatpush1.bf16.msra.mxu0 0
      %367 = vmatprep.subr.bf16.mxu0 0
      %368 = vmatpush1.bf16.msra.mxu0 0
      %369 = vmatprep.subr.bf16.mxu0 0
      %370 = vmatpush1.bf16.msra.mxu0 0
      %371 = vmatprep.subr.bf16.mxu0 0
      %372 = vmatpush1.bf16.msra.mxu0 0
      %373 = vmatprep.subr.bf16.mxu0 0
      %374 = vmatpush1.bf16.msra.mxu0 0
      %375 = vmatprep.subr.bf16.mxu0 0
      %376 = vmatpush1.bf16.msra.mxu0 0
      %377 = vmatprep.subr.bf16.mxu0 0
      %378 = vmatpush1.bf16.msra.mxu0 0
      %379 = vmatprep.subr.bf16.mxu0 0
      %380 = vmatpush1.bf16.msra.mxu0 0
      %381 = vmatprep.mubr.bf16.mxu0 0
      %382 = vmatmul.mubr.bf16.gmra.mrb[0].mxu0 %v347
      %v383 = vpop.f32.mrb[0].mxu0
      %v384 = vadd.f32 0.0, %v383
      %v385 = vpop.f32.mrb[0].mxu0
      %v386 = vpop.f32.mrb[0].mxu0
      %v387 = vadd.f32 0.0, %v386
      %v388 = vpop.f32.mrb[0].mxu0
      %389 = vdwg.mxu0
      %v398 = vunpack.c.l.b16 %v282
      %v399 = vunpack.c.l.b16 %v283
      %v400 = vunpack.c.l.b16 %v284
      %v401 = vunpack.c.l.b16 %v285
      %v402 = vunpack.c.l.b16 %v286
      %v403 = vunpack.c.l.b16 %v287
      %v404 = vunpack.c.l.b16 %v288
      %v405 = vunpack.c.l.b16 %v289
      %v406 = vpack.c.b16 %v399, %v398
      %v407 = vpack.c.b16 %v401, %v400
      %v408 = vpack.c.b16 %v403, %v402
      %v409 = vpack.c.b16 %v405, %v404
      %v414 = vsel %vm345, %v306, 0
      %416 = vmatprep.subr.bf16.mxu0 0
      %417 = vmatpush1.bf16.msra.mxu0 %v406
      %418 = vmatprep.subr.bf16.mxu0 0
      %419 = vmatpush1.bf16.msra.mxu0 %v407
      %420 = vmatprep.subr.bf16.mxu0 0
      %421 = vmatpush1.bf16.msra.mxu0 %v408
      %422 = vmatprep.subr.bf16.mxu0 0
      %423 = vmatpush1.bf16.msra.mxu0 %v409
      %424 = vmatprep.subr.bf16.mxu0 0
      %425 = vmatpush1.bf16.msra.mxu0 0
      %426 = vmatprep.subr.bf16.mxu0 0
      %427 = vmatpush1.bf16.msra.mxu0 0
      %428 = vmatprep.subr.bf16.mxu0 0
      %429 = vmatpush1.bf16.msra.mxu0 0
      %430 = vmatprep.subr.bf16.mxu0 0
      %431 = vmatpush1.bf16.msra.mxu0 0
      %432 = vmatprep.subr.bf16.mxu0 0
      %433 = vmatpush1.bf16.msra.mxu0 0
      %434 = vmatprep.subr.bf16.mxu0 0
      %435 = vmatpush1.bf16.msra.mxu0 0
      %436 = vmatprep.subr.bf16.mxu0 0
      %437 = vmatpush1.bf16.msra.mxu0 0
      %438 = vmatprep.subr.bf16.mxu0 0
      %439 = vmatpush1.bf16.msra.mxu0 0
      %440 = vmatprep.subr.bf16.mxu0 0
      %441 = vmatpush1.bf16.msra.mxu0 0
      %442 = vmatprep.subr.bf16.mxu0 0
      %443 = vmatpush1.bf16.msra.mxu0 0
      %444 = vmatprep.subr.bf16.mxu0 0
      %445 = vmatpush1.bf16.msra.mxu0 0
      %446 = vmatprep.subr.bf16.mxu0 0
      %447 = vmatpush1.bf16.msra.mxu0 0
      %448 = vmatprep.mubr.bf16.mxu0 0
      %449 = vmatmul.mubr.bf16.gmra.mrb[0].mxu0 %v414
      %v450 = vpop.f32.mrb[0].mxu0
      %v451 = vadd.f32 %v384, %v450
      %v452 = vpop.f32.mrb[0].mxu0
      %v453 = vpop.f32.mrb[0].mxu0
      %v454 = vadd.f32 %v387, %v453
      %v455 = vpop.f32.mrb[0].mxu0
      %456 = vdwg.mxu0
      %v457 = vld [vmem:[%s273] sm:$0xe]
      %s458 = scalar_lea.vmem %s1, 64
      %v459 = vld [vmem:[%s458] sm:$0xf]
      %v460 = vld [vmem:[%s458 + $0x4] sm:$0xf]
      %v461 = vld [vmem:[%s458 + $0x8] sm:$0xf]
      %v462 = vld [vmem:[%s458 + $0xc] sm:$0xf]
      %v463 = vld [vmem:[%s458 + $0x10] sm:$0xf]
      %v464 = vld [vmem:[%s458 + $0x14] sm:$0xf]
      %v465 = vld [vmem:[%s458 + $0x18] sm:$0xf]
      %v466 = vld [vmem:[%s458 + $0x1c] sm:$0xf]
      %v468 = vunpack.c.l.b16 %v457
      %v469 = vpack.c.b16 %v304, %v468
      %vm470 = vcmask 1046528
      %v471 = vrot.slane %v469, 1
      %v472 = vrot.slane %v307, 1
      %v473 = vsel %vm470, %v471, %v472
      %v482 = vunpack.c.l.b16 %v459
      %v483 = vunpack.c.l.b16 %v460
      %v484 = vunpack.c.l.b16 %v461
      %v485 = vunpack.c.l.b16 %v462
      %v486 = vunpack.c.l.b16 %v463
      %v487 = vunpack.c.l.b16 %v464
      %v488 = vunpack.c.l.b16 %v465
      %v489 = vunpack.c.l.b16 %v466
      %v490 = vpack.c.b16 %v483, %v482
      %v491 = vpack.c.b16 %v485, %v484
      %v492 = vpack.c.b16 %v487, %v486
      %v493 = vpack.c.b16 %v489, %v488
      %v499 = vsel %vm345, %v473, 0
      %501 = vmatprep.subr.bf16.mxu0 0
      %502 = vmatpush1.bf16.msra.mxu0 %v490
      %503 = vmatprep.subr.bf16.mxu0 0
      %504 = vmatpush1.bf16.msra.mxu0 %v491
      %505 = vmatprep.subr.bf16.mxu0 0
      %506 = vmatpush1.bf16.msra.mxu0 %v492
      %507 = vmatprep.subr.bf16.mxu0 0
      %508 = vmatpush1.bf16.msra.mxu0 %v493
      %509 = vmatprep.subr.bf16.mxu0 0
      %510 = vmatpush1.bf16.msra.mxu0 0
      %511 = vmatprep.subr.bf16.mxu0 0
      %512 = vmatpush1.bf16.msra.mxu0 0
      %513 = vmatprep.subr.bf16.mxu0 0
      %514 = vmatpush1.bf16.msra.mxu0 0
      %515 = vmatprep.subr.bf16.mxu0 0
      %516 = vmatpush1.bf16.msra.mxu0 0
      %517 = vmatprep.subr.bf16.mxu0 0
      %518 = vmatpush1.bf16.msra.mxu0 0
      %519 = vmatprep.subr.bf16.mxu0 0
      %520 = vmatpush1.bf16.msra.mxu0 0
      %521 = vmatprep.subr.bf16.mxu0 0
      %522 = vmatpush1.bf16.msra.mxu0 0
      %523 = vmatprep.subr.bf16.mxu0 0
      %524 = vmatpush1.bf16.msra.mxu0 0
      %525 = vmatprep.subr.bf16.mxu0 0
      %526 = vmatpush1.bf16.msra.mxu0 0
      %527 = vmatprep.subr.bf16.mxu0 0
      %528 = vmatpush1.bf16.msra.mxu0 0
      %529 = vmatprep.subr.bf16.mxu0 0
      %530 = vmatpush1.bf16.msra.mxu0 0
      %531 = vmatprep.subr.bf16.mxu0 0
      %532 = vmatpush1.bf16.msra.mxu0 0
      %533 = vmatprep.mubr.bf16.mxu0 0
      %534 = vmatmul.mubr.bf16.gmra.mrb[0].mxu0 %v499
      %v535 = vpop.f32.mrb[0].mxu0
      %v536 = vadd.f32 0.0, %v535
      %v537 = vpop.f32.mrb[0].mxu0
      %v538 = vpop.f32.mrb[0].mxu0
      %v539 = vadd.f32 0.0, %v538
      %v540 = vpop.f32.mrb[0].mxu0
      %541 = vdwg.mxu0
      %v542 = vadd.f32 %v451, %v536
      %v543 = vadd.f32 %v454, %v539
      %v544 = vld [vmem:[%s2] sm:$0x1]
      %v546 = vlaneseq
      %v547 = vshrl.u32 %v546, 7
      %v548 = vsub.s32 0, %v547
      %v549 = vrot.slane %v544, %v548
      %v551 = vmul.f32 %v542, %v549
      %v552 = vmul.f32 %v543, %v549
      %v553 = vld [vmem:[%s3] sm:$0x1]
      %v555 = vlaneseq
      %v556 = vshrl.u32 %v555, 7
      %v557 = vsub.s32 0, %v556
      %v558 = vrot.slane %v553, %v557
      %v560 = vadd.f32 %v551, %v558
      %v561 = vadd.f32 %v552, %v558
      %v562 = vmax.f32 %v560, 0.0
      %v563 = vmax.f32 %v561, 0.0
      %564 = vst.msk [vmem:[#allocation2] sm:$0xff] %vm345, 0
      %565 = vst.msk [vmem:[#allocation2 + $0x8] sm:$0xff] %vm345, 0
      %566 = vst.msk [vmem:[#allocation2 + $0x10] sm:$0xff] %vm345, 0
      %v567 = vpack.c.bf16 %v563, %v562
      %568 = vst.msk [vmem:[#allocation2 + $0x8] sm:$0xff] %vm345, %v567
      %v569 = vld [vmem:[#allocation2] sm:$0x80]
      %v570 = vld [vmem:[#allocation2 + $0x8] sm:$0xff]
      %v571 = vld [vmem:[%s4] sm:$0xf]
      %v572 = vld [vmem:[%s4 + $0x4] sm:$0xf]
      %v573 = vld [vmem:[%s4 + $0x8] sm:$0xf]
      %v574 = vld [vmem:[%s4 + $0xc] sm:$0xf]
      %v575 = vld [vmem:[%s4 + $0x10] sm:$0xf]
      %v576 = vld [vmem:[%s4 + $0x14] sm:$0xf]
      %v577 = vld [vmem:[%s4 + $0x18] sm:$0xf]
      %v578 = vld [vmem:[%s4 + $0x1c] sm:$0xf]
      %s579 = scalar_lea.vmem %s4, 32
      %v580 = vld [vmem:[%s579] sm:$0xf]
      %v581 = vld [vmem:[%s579 + $0x4] sm:$0xf]
      %v582 = vld [vmem:[%s579 + $0x8] sm:$0xf]
      %v583 = vld [vmem:[%s579 + $0xc] sm:$0xf]
      %v584 = vld [vmem:[%s579 + $0x10] sm:$0xf]
      %v585 = vld [vmem:[%s579 + $0x14] sm:$0xf]
      %v586 = vld [vmem:[%s579 + $0x18] sm:$0xf]
      %v587 = vld [vmem:[%s579 + $0x1c] sm:$0xf]
      %v596 = vunpack.c.l.b16 %v580
      %v597 = vunpack.c.l.b16 %v581
      %v598 = vunpack.c.l.b16 %v582
      %v599 = vunpack.c.l.b16 %v583
      %v600 = vunpack.c.l.b16 %v584
      %v601 = vunpack.c.l.b16 %v585
      %v602 = vunpack.c.l.b16 %v586
      %v603 = vunpack.c.l.b16 %v587
      %v604 = vpack.c.b16 %v597, %v596
      %v605 = vpack.c.b16 %v599, %v598
      %v606 = vpack.c.b16 %v601, %v600
      %v607 = vpack.c.b16 %v603, %v602
      %v613 = vsel %vm345, %v570, 0
      %615 = vmatprep.subr.bf16.mxu0 0
      %616 = vmatpush1.bf16.msra.mxu0 %v604
      %617 = vmatprep.subr.bf16.mxu0 0
      %618 = vmatpush1.bf16.msra.mxu0 %v605
      %619 = vmatprep.subr.bf16.mxu0 0
      %620 = vmatpush1.bf16.msra.mxu0 %v606
      %621 = vmatprep.subr.bf16.mxu0 0
      %622 = vmatpush1.bf16.msra.mxu0 %v607
      %623 = vmatprep.subr.bf16.mxu0 0
      %624 = vmatpush1.bf16.msra.mxu0 0
      %625 = vmatprep.subr.bf16.mxu0 0
      %626 = vmatpush1.bf16.msra.mxu0 0
      %627 = vmatprep.subr.bf16.mxu0 0
      %628 = vmatpush1.bf16.msra.mxu0 0
      %629 = vmatprep.subr.bf16.mxu0 0
      %630 = vmatpush1.bf16.msra.mxu0 0
      %631 = vmatprep.subr.bf16.mxu0 0
      %632 = vmatpush1.bf16.msra.mxu0 0
      %633 = vmatprep.subr.bf16.mxu0 0
      %634 = vmatpush1.bf16.msra.mxu0 0
      %635 = vmatprep.subr.bf16.mxu0 0
      %636 = vmatpush1.bf16.msra.mxu0 0
      %637 = vmatprep.subr.bf16.mxu0 0
      %638 = vmatpush1.bf16.msra.mxu0 0
      %639 = vmatprep.subr.bf16.mxu0 0
      %640 = vmatpush1.bf16.msra.mxu0 0
      %641 = vmatprep.subr.bf16.mxu0 0
      %642 = vmatpush1.bf16.msra.mxu0 0
      %643 = vmatprep.subr.bf16.mxu0 0
      %644 = vmatpush1.bf16.msra.mxu0 0
      %645 = vmatprep.subr.bf16.mxu0 0
      %646 = vmatpush1.bf16.msra.mxu0 0
      %647 = vmatprep.mubr.bf16.mxu0 0
      %648 = vmatmul.mubr.bf16.gmra.mrb[0].mxu0 %v613
      %v649 = vpop.f32.mrb[0].mxu0
      %v650 = vadd.f32 0.0, %v649
      %v651 = vpop.f32.mrb[0].mxu0
      %v652 = vpop.f32.mrb[0].mxu0
      %v653 = vadd.f32 0.0, %v652
      %v654 = vpop.f32.mrb[0].mxu0
      %655 = vdwg.mxu0
      %vm656 = vsmask.f32 256
      %v658 = vshrl.u32 %v569, 16
      %v660 = vrot.slane %v658, 7
      %v661 = vshrl.u32 %v570, 16
      %v663 = vrot.slane %v661, 7
      %v664 = vshll.u32 %v570, 16
      %v666 = vor.u32 %v663, %v664
      %v667 = vsel %vm656, %v660, %v666
      %v676 = vunpack.c.l.b16 %v571
      %v677 = vunpack.c.l.b16 %v572
      %v678 = vunpack.c.l.b16 %v573
      %v679 = vunpack.c.l.b16 %v574
      %v680 = vunpack.c.l.b16 %v575
      %v681 = vunpack.c.l.b16 %v576
      %v682 = vunpack.c.l.b16 %v577
      %v683 = vunpack.c.l.b16 %v578
      %v684 = vpack.c.b16 %v677, %v676
      %v685 = vpack.c.b16 %v679, %v678
      %v686 = vpack.c.b16 %v681, %v680
      %v687 = vpack.c.b16 %v683, %v682
      %v693 = vsel %vm345, %v667, 0
      %695 = vmatprep.subr.bf16.mxu0 0
      %696 = vmatpush1.bf16.msra.mxu0 %v684
      %697 = vmatprep.subr.bf16.mxu0 0
      %698 = vmatpush1.bf16.msra.mxu0 %v685
      %699 = vmatprep.subr.bf16.mxu0 0
      %700 = vmatpush1.bf16.msra.mxu0 %v686
      %701 = vmatprep.subr.bf16.mxu0 0
      %702 = vmatpush1.bf16.msra.mxu0 %v687
      %703 = vmatprep.subr.bf16.mxu0 0
      %704 = vmatpush1.bf16.msra.mxu0 0
      %705 = vmatprep.subr.bf16.mxu0 0
      %706 = vmatpush1.bf16.msra.mxu0 0
      %707 = vmatprep.subr.bf16.mxu0 0
      %708 = vmatpush1.bf16.msra.mxu0 0
      %709 = vmatprep.subr.bf16.mxu0 0
      %710 = vmatpush1.bf16.msra.mxu0 0
      %711 = vmatprep.subr.bf16.mxu0 0
      %712 = vmatpush1.bf16.msra.mxu0 0
      %713 = vmatprep.subr.bf16.mxu0 0
      %714 = vmatpush1.bf16.msra.mxu0 0
      %715 = vmatprep.subr.bf16.mxu0 0
      %716 = vmatpush1.bf16.msra.mxu0 0
      %717 = vmatprep.subr.bf16.mxu0 0
      %718 = vmatpush1.bf16.msra.mxu0 0
      %719 = vmatprep.subr.bf16.mxu0 0
      %720 = vmatpush1.bf16.msra.mxu0 0
      %721 = vmatprep.subr.bf16.mxu0 0
      %722 = vmatpush1.bf16.msra.mxu0 0
      %723 = vmatprep.subr.bf16.mxu0 0
      %724 = vmatpush1.bf16.msra.mxu0 0
      %725 = vmatprep.subr.bf16.mxu0 0
      %726 = vmatpush1.bf16.msra.mxu0 0
      %727 = vmatprep.mubr.bf16.mxu0 0
      %728 = vmatmul.mubr.bf16.gmra.mrb[0].mxu0 %v693
      %v729 = vpop.f32.mrb[0].mxu0
      %v730 = vadd.f32 %v650, %v729
      %v731 = vpop.f32.mrb[0].mxu0
      %v732 = vpop.f32.mrb[0].mxu0
      %v733 = vadd.f32 %v653, %v732
      %v734 = vpop.f32.mrb[0].mxu0
      %735 = vdwg.mxu0
      %v736 = vld [vmem:[#allocation2 + $0x8] sm:$0xff]
      %v737 = vld [vmem:[#allocation2 + $0x10] sm:$0x1]
      %s738 = scalar_lea.vmem %s4, 64
      %v739 = vld [vmem:[%s738] sm:$0xf]
      %v740 = vld [vmem:[%s738 + $0x4] sm:$0xf]
      %v741 = vld [vmem:[%s738 + $0x8] sm:$0xf]
      %v742 = vld [vmem:[%s738 + $0xc] sm:$0xf]
      %v743 = vld [vmem:[%s738 + $0x10] sm:$0xf]
      %v744 = vld [vmem:[%s738 + $0x14] sm:$0xf]
      %v745 = vld [vmem:[%s738 + $0x18] sm:$0xf]
      %v746 = vld [vmem:[%s738 + $0x1c] sm:$0xf]
      %v748 = vshrl.u32 %v736, 16
      %v750 = vshll.u32 %v736, 16
      %v752 = vrot.slane %v750, 1
      %v753 = vor.u32 %v748, %v752
      %v755 = vshll.u32 %v737, 16
      %v757 = vrot.slane %v755, 1
      %v758 = vsel %vm308, %v753, %v757
      %v767 = vunpack.c.l.b16 %v739
      %v768 = vunpack.c.l.b16 %v740
      %v769 = vunpack.c.l.b16 %v741
      %v770 = vunpack.c.l.b16 %v742
      %v771 = vunpack.c.l.b16 %v743
      %v772 = vunpack.c.l.b16 %v744
      %v773 = vunpack.c.l.b16 %v745
      %v774 = vunpack.c.l.b16 %v746
      %v775 = vpack.c.b16 %v768, %v767
      %v776 = vpack.c.b16 %v770, %v769
      %v777 = vpack.c.b16 %v772, %v771
      %v778 = vpack.c.b16 %v774, %v773
      %v784 = vsel %vm345, %v758, 0
      %786 = vmatprep.subr.bf16.mxu0 0
      %787 = vmatpush1.bf16.msra.mxu0 %v775
      %788 = vmatprep.subr.bf16.mxu0 0
      %789 = vmatpush1.bf16.msra.mxu0 %v776
      %790 = vmatprep.subr.bf16.mxu0 0
      %791 = vmatpush1.bf16.msra.mxu0 %v777
      %792 = vmatprep.subr.bf16.mxu0 0
      %793 = vmatpush1.bf16.msra.mxu0 %v778
      %794 = vmatprep.subr.bf16.mxu0 0
      %795 = vmatpush1.bf16.msra.mxu0 0
      %796 = vmatprep.subr.bf16.mxu0 0
      %797 = vmatpush1.bf16.msra.mxu0 0
      %798 = vmatprep.subr.bf16.mxu0 0
      %799 = vmatpush1.bf16.msra.mxu0 0
      %800 = vmatprep.subr.bf16.mxu0 0
      %801 = vmatpush1.bf16.msra.mxu0 0
      %802 = vmatprep.subr.bf16.mxu0 0
      %803 = vmatpush1.bf16.msra.mxu0 0
      %804 = vmatprep.subr.bf16.mxu0 0
      %805 = vmatpush1.bf16.msra.mxu0 0
      %806 = vmatprep.subr.bf16.mxu0 0
      %807 = vmatpush1.bf16.msra.mxu0 0
      %808 = vmatprep.subr.bf16.mxu0 0
      %809 = vmatpush1.bf16.msra.mxu0 0
      %810 = vmatprep.subr.bf16.mxu0 0
      %811 = vmatpush1.bf16.msra.mxu0 0
      %812 = vmatprep.subr.bf16.mxu0 0
      %813 = vmatpush1.bf16.msra.mxu0 0
      %814 = vmatprep.subr.bf16.mxu0 0
      %815 = vmatpush1.bf16.msra.mxu0 0
      %816 = vmatprep.subr.bf16.mxu0 0
      %817 = vmatpush1.bf16.msra.mxu0 0
      %818 = vmatprep.mubr.bf16.mxu0 0
      %819 = vmatmul.mubr.bf16.gmra.mrb[0].mxu0 %v784
      %v820 = vpop.f32.mrb[0].mxu0
      %v821 = vadd.f32 0.0, %v820
      %v822 = vpop.f32.mrb[0].mxu0
      %v823 = vpop.f32.mrb[0].mxu0
      %v824 = vadd.f32 0.0, %v823
      %v825 = vpop.f32.mrb[0].mxu0
      %826 = vdwg.mxu0
      %v827 = vadd.f32 %v730, %v821
      %v828 = vadd.f32 %v733, %v824
      %v829 = vld [vmem:[%s273] sm:$0xf]
      %v830 = vld [vmem:[%s273 + $0x4] sm:$0xf]
      %v831 = vld [vmem:[%s273 + $0x8] sm:$0x1]
      %v832 = vunpack.c.l.bf16 %v829
      %v833 = vunpack.c.l.bf16 %v830
      %v834 = vunpack.c.l.bf16 %v831
      %v835 = vld [vmem:[%s5] sm:$0x1]
      %v837 = vlaneseq
      %v838 = vshrl.u32 %v837, 7
      %v839 = vsub.s32 0, %v838
      %v840 = vrot.slane %v835, %v839
      %v842 = vmul.f32 %v827, %v840
      %v843 = vmul.f32 %v828, %v840
      %v844 = vld [vmem:[%s6] sm:$0x1]
      %v846 = vlaneseq
      %v847 = vshrl.u32 %v846, 7
      %v848 = vsub.s32 0, %v847
      %v849 = vrot.slane %v844, %v848
      %v851 = vadd.f32 %v842, %v849
      %v852 = vadd.f32 %v843, %v849
      %vm856 = vcmask 1046528
      %v857 = vrot.slane %v832, 1
      %v858 = vrot.slane %v833, 1
      %v859 = vsel %vm856, %v857, %v858
      %v860 = vrot.slane %v834, 1
      %v861 = vsel %vm856, %v858, %v860
      %v864 = vadd.f32 %v851, %v859
      %v865 = vadd.f32 %v852, %v861
      %v866 = vmax.f32 %v864, 0.0
      %v867 = vmax.f32 %v865, 0.0
      %v868 = vpack.c.bf16 %v867, %v866
      %v870 = vunpack.c.l.b16 %v868
      %v871 = vunpack.c.h.b16 %v868
      %v872 = vpack.c.b16 %v870, %v870
      %v873 = vpack.c.b16 %v871, %v871
      %vm876 = vcmask 519168
      %877 = vst.msk [vmem:[%s278] sm:$0xf] %vm876, %v872
      %878 = vst.msk [vmem:[%s278 + $0x4] sm:$0xf] %vm876, %v873
      %p879 = scmp.lt.s32.totalorder %s18, 1
      %s880 = scalar_select %p879, %s18, 1
      %s881 = smul.addr %s880, 2
      %s882 = smul.addr %s881, 4
      %s883 = scalar_lea.vmem %s7, %s882
      // Predicated region
      $region49: #{_lambda_.11} parent=47 // pred_check
        %p884 = pneg %p188
      $region50: #{_lambda_.11} parent=47 // pred_check_branch
        %886 = sbr.rel (%p884) target = $region52
      $region51: #{_lambda_.11} parent=47 // pred_region
        _
      $region52: #{_lambda_.11} parent=47 // pred_fallthru
        _
    $region48: #{_lambda_.11} parent=5 // pred_fallthru
      _
    %p887 = scmp.le.s32.totalorder 2, %s13
    // Predicated region
    $region53: #{_lambda_.11} parent=5 // pred_check
      %p888 = pneg %p887
    $region54: #{_lambda_.11} parent=5 // pred_check_branch
      %890 = sbr.rel (%p888) target = $region56
    $region55: #{_lambda_.11} parent=5 // pred_region
      %s891 = ssub.s32 %s13, 2
      // Predicated region
      $region57: #{_lambda_.11} parent=55 // pred_check
        %p892 = pneg %p194
      $region58: #{_lambda_.11} parent=55 // pred_check_branch
        %894 = sbr.rel (%p892) target = $region60
      $region59: #{_lambda_.11} parent=55 // pred_region
        %p895 = scmp.lt.s32.totalorder %s19, 1
        %s896 = scalar_select %p895, %s19, 1
        %s897 = smul.addr %s896, 2
        %s898 = smul.addr %s897, 4
        %s899 = scalar_lea.vmem %s7, %s898
      $region60: #{_lambda_.11} parent=55 // pred_fallthru
        _
    $region56: #{_lambda_.11} parent=5 // pred_fallthru
      _
  $region6: #{_lambda_.11} parent=0 // loop_footer
    %s17 = sadd.s32 1, %s13
  $region7: #{_lambda_.11} parent=0 // loop_footer_branch
    %12 = sbr.rel target = $region3
  $region8: #{_lambda_.11} parent=0 // loop_exit
    _

// kernel: _lambda_.13
$region0: #{_lambda_.13}
  #allocation0 [shape = 'u32[]', space=smem, size = 0x4, offset = 0x4, fixed_abs, tag = 'smem constant byte address 0x4 - core index']
  #allocation1 [shape = 'u32[144,128]{1,0:T(1,128)}', space=vmem, size = 0x12000, scoped, tag = 'internal scratch']
  #allocation2 [shape = 'bf16[40,128]{1,0:T(8,128)(2,1)}', space=vmem, size = 0x2800, scoped, tag = 'scratch operand']
  %s0 = inlined_call_operand.vmem [shape: bf16[2,8,64], index: 0, kind: input, shape index: {}]
  %s1 = inlined_call_operand.vmem [shape: bf16[2,8,64], index: 1, kind: input, shape index: {}]
  %s2 = inlined_call_operand.vmem [shape: bf16[2,8,64], index: 2, kind: input, shape index: {}]
  %s3 = inlined_call_operand.vmem [shape: bf16[3,64,128], index: 3, kind: input, shape index: {}]
  %s4 = inlined_call_operand.vmem [shape: f32[1,128], index: 4, kind: input, shape index: {}]
  %s5 = inlined_call_operand.vmem [shape: f32[1,128], index: 5, kind: input, shape index: {}]
  %s6 = inlined_call_operand.vmem [shape: bf16[64,128], index: 6, kind: input, shape index: {}]
  %s7 = inlined_call_operand.vmem [shape: f32[1,128], index: 7, kind: input, shape index: {}]
  %s8 = inlined_call_operand.vmem [shape: f32[1,128], index: 8, kind: input, shape index: {}]
  %s9 = inlined_call_operand.vmem [shape: bf16[3,128,128], index: 9, kind: input, shape index: {}]
  %s10 = inlined_call_operand.vmem [shape: f32[1,128], index: 10, kind: input, shape index: {}]
  %s11 = inlined_call_operand.vmem [shape: f32[1,128], index: 11, kind: input, shape index: {}]
  %s12 = inlined_call_operand.vmem [shape: bf16[2,8,128], index: 12, kind: output, shape index: {}]
  %s13 = sld [smem:[#allocation0]]
  $region81: #{_lambda_.13} parent=0
    _
  %s15 = ssub.s32 1, %s13
  %s16 = scalar_select 0, %s15, %s13
  loop: start=0, step=1, limit=4
  $region2: #{_lambda_.13} parent=0 // loop_pre_header
    _
  $region3: #{_lambda_.13} parent=0 // loop_header
    %s18 = sphi 0, %s22
    %p19 = scmp.ge.s32.totalorder %s18, 4
    %s28 = sphi 0, %s30
    %s31 = sphi 0, %s28
    %s32 = sphi 0, %s31
    %s48 = sphi 0, %s32
    %s54 = sphi 0, %s56
    %s57 = sphi 0, %s54
    %s58 = sphi 0, %s57
    %s74 = sphi 0, %s58
    %s80 = sphi 0, %s82
    %s83 = sphi 0, %s80
    %s84 = sphi 0, %s83
    %s100 = sphi 0, %s84
    %s104 = sphi 0, %s104
    %s106 = sphi 0, %s104
    %s107 = sphi 0, %s106
    %s121 = sphi 0, %s107
    %s125 = sphi 0, %s125
    %s127 = sphi 0, %s125
    %s128 = sphi 0, %s127
    %s142 = sphi 0, %s128
    %s146 = sphi 0, %s146
    %s148 = sphi 0, %s146
    %s149 = sphi 0, %s148
    %s163 = sphi 0, %s149
    %s167 = sphi 0, %s167
    %s169 = sphi 0, %s167
    %s170 = sphi 0, %s169
    %s184 = sphi 0, %s170
    %s188 = sphi 0, %s188
    %s190 = sphi 0, %s188
    %s191 = sphi 0, %s190
    %s205 = sphi 0, %s191
    %s209 = sphi 0, %s209
    %s211 = sphi 0, %s209
    %s212 = sphi 0, %s211
    %s226 = sphi 0, %s212
    %s230 = sphi 0, %s230
    %s232 = sphi 0, %s230
    %s233 = sphi 0, %s232
    %s247 = sphi 0, %s233
    %s251 = sphi 0, %s251
    %s253 = sphi 0, %s251
    %s254 = sphi 0, %s253
    %s268 = sphi 0, %s254
    %s272 = sphi 0, %s272
    %s274 = sphi 0, %s272
    %s275 = sphi 0, %s274
    %s289 = sphi 0, %s275
    %s295 = sphi 0, %s297
    %s298 = sphi 0, %s295
    %s299 = sphi 0, %s298
    %s315 = sphi 0, %s299
  $region4: #{_lambda_.13} parent=0 // loop_header_branch
    %21 = sbr.rel (%p19) target = $region8
  $region5: #{_lambda_.13} parent=0 // loop_body
    %s23 = ssub.s32 %s18, 1
    %s24 = ssub.s32 %s18, 2
    %s25 = sadd.s32 %s18, 1
    %s26 = ssub.s32 %s18, %s25
    %p27 = scmp.eq.s32.totalorder %s26, 0
    %s29 = sadd.s32 %s28, 1
    %s30 = scalar_select %p27, %s28, %s29
    %p33 = pneg %p27
    %p34 = scmp.eq.s32.totalorder %s18, 1
    %p35 = por %p33, %p34
    %p36 = scmp.ne.s32.totalorder %s28, %s31
    %p37 = scmp.eq.s32.totalorder %s18, 0
    %p38 = por %p36, %p37
    %p39 = scmp.ne.s32.totalorder %s28, %s31
    %p40 = scmp.eq.s32.totalorder %s23, 1
    %p41 = por %p39, %p40
    %p42 = scmp.ne.s32.totalorder %s31, %s32
    %p43 = scmp.eq.s32.totalorder %s23, 0
    %p44 = por %p42, %p43
    %p45 = scmp.ne.s32.totalorder %s31, %s32
    %p46 = scmp.eq.s32.totalorder %s24, 1
    %p47 = por %p45, %p46
    %p49 = scmp.ne.s32.totalorder %s32, %s48
    %p50 = scmp.eq.s32.totalorder %s24, 0
    %p51 = por %p49, %p50
    %s52 = ssub.s32 %s18, %s25
    %p53 = scmp.eq.s32.totalorder %s52, 0
    %s55 = sadd.s32 %s54, 1
    %s56 = scalar_select %p53, %s54, %s55
    %p59 = pneg %p53
    %p60 = scmp.eq.s32.totalorder %s18, 1
    %p61 = por %p59, %p60
    %p62 = scmp.ne.s32.totalorder %s54, %s57
    %p63 = scmp.eq.s32.totalorder %s18, 0
    %p64 = por %p62, %p63
    %p65 = scmp.ne.s32.totalorder %s54, %s57
    %p66 = scmp.eq.s32.totalorder %s23, 1
    %p67 = por %p65, %p66
    %p68 = scmp.ne.s32.totalorder %s57, %s58
    %p69 = scmp.eq.s32.totalorder %s23, 0
    %p70 = por %p68, %p69
    %p71 = scmp.ne.s32.totalorder %s57, %s58
    %p72 = scmp.eq.s32.totalorder %s24, 1
    %p73 = por %p71, %p72
    %p75 = scmp.ne.s32.totalorder %s58, %s74
    %p76 = scmp.eq.s32.totalorder %s24, 0
    %p77 = por %p75, %p76
    %s78 = ssub.s32 %s18, %s25
    %p79 = scmp.eq.s32.totalorder %s78, 0
    %s81 = sadd.s32 %s80, 1
    %s82 = scalar_select %p79, %s80, %s81
    %p85 = pneg %p79
    %p86 = scmp.eq.s32.totalorder %s18, 1
    %p87 = por %p85, %p86
    %p88 = scmp.ne.s32.totalorder %s80, %s83
    %p89 = scmp.eq.s32.totalorder %s18, 0
    %p90 = por %p88, %p89
    %p91 = scmp.ne.s32.totalorder %s80, %s83
    %p92 = scmp.eq.s32.totalorder %s23, 1
    %p93 = por %p91, %p92
    %p94 = scmp.ne.s32.totalorder %s83, %s84
    %p95 = scmp.eq.s32.totalorder %s23, 0
    %p96 = por %p94, %p95
    %p97 = scmp.ne.s32.totalorder %s83, %s84
    %p98 = scmp.eq.s32.totalorder %s24, 1
    %p99 = por %p97, %p98
    %p101 = scmp.ne.s32.totalorder %s84, %s100
    %p102 = scmp.eq.s32.totalorder %s24, 0
    %p103 = por %p101, %p102
    %s105 = sadd.s32 %s104, 1
    %p108 = scmp.eq.s32.totalorder %s18, 1
    %p109 = scmp.ne.s32.totalorder %s104, %s106
    %p110 = scmp.eq.s32.totalorder %s18, 0
    %p111 = por %p109, %p110
    %p112 = scmp.ne.s32.totalorder %s104, %s106
    %p113 = scmp.eq.s32.totalorder %s23, 1
    %p114 = por %p112, %p113
    %p115 = scmp.ne.s32.totalorder %s106, %s107
    %p116 = scmp.eq.s32.totalorder %s23, 0
    %p117 = por %p115, %p116
    %p118 = scmp.ne.s32.totalorder %s106, %s107
    %p119 = scmp.eq.s32.totalorder %s24, 1
    %p120 = por %p118, %p119
    %p122 = scmp.ne.s32.totalorder %s107, %s121
    %p123 = scmp.eq.s32.totalorder %s24, 0
    %p124 = por %p122, %p123
    %s126 = sadd.s32 %s125, 1
    %p129 = scmp.eq.s32.totalorder %s18, 1
    %p130 = scmp.ne.s32.totalorder %s125, %s127
    %p131 = scmp.eq.s32.totalorder %s18, 0
    %p132 = por %p130, %p131
    %p133 = scmp.ne.s32.totalorder %s125, %s127
    %p134 = scmp.eq.s32.totalorder %s23, 1
    %p135 = por %p133, %p134
    %p136 = scmp.ne.s32.totalorder %s127, %s128
    %p137 = scmp.eq.s32.totalorder %s23, 0
    %p138 = por %p136, %p137
    %p139 = scmp.ne.s32.totalorder %s127, %s128
    %p140 = scmp.eq.s32.totalorder %s24, 1
    %p141 = por %p139, %p140
    %p143 = scmp.ne.s32.totalorder %s128, %s142
    %p144 = scmp.eq.s32.totalorder %s24, 0
    %p145 = por %p143, %p144
    %s147 = sadd.s32 %s146, 1
    %p150 = scmp.eq.s32.totalorder %s18, 1
    %p151 = scmp.ne.s32.totalorder %s146, %s148
    %p152 = scmp.eq.s32.totalorder %s18, 0
    %p153 = por %p151, %p152
    %p154 = scmp.ne.s32.totalorder %s146, %s148
    %p155 = scmp.eq.s32.totalorder %s23, 1
    %p156 = por %p154, %p155
    %p157 = scmp.ne.s32.totalorder %s148, %s149
    %p158 = scmp.eq.s32.totalorder %s23, 0
    %p159 = por %p157, %p158
    %p160 = scmp.ne.s32.totalorder %s148, %s149
    %p161 = scmp.eq.s32.totalorder %s24, 1
    %p162 = por %p160, %p161
    %p164 = scmp.ne.s32.totalorder %s149, %s163
    %p165 = scmp.eq.s32.totalorder %s24, 0
    %p166 = por %p164, %p165
    %s168 = sadd.s32 %s167, 1
    %p171 = scmp.eq.s32.totalorder %s18, 1
    %p172 = scmp.ne.s32.totalorder %s167, %s169
    %p173 = scmp.eq.s32.totalorder %s18, 0
    %p174 = por %p172, %p173
    %p175 = scmp.ne.s32.totalorder %s167, %s169
    %p176 = scmp.eq.s32.totalorder %s23, 1
    %p177 = por %p175, %p176
    %p178 = scmp.ne.s32.totalorder %s169, %s170
    %p179 = scmp.eq.s32.totalorder %s23, 0
    %p180 = por %p178, %p179
    %p181 = scmp.ne.s32.totalorder %s169, %s170
    %p182 = scmp.eq.s32.totalorder %s24, 1
    %p183 = por %p181, %p182
    %p185 = scmp.ne.s32.totalorder %s170, %s184
    %p186 = scmp.eq.s32.totalorder %s24, 0
    %p187 = por %p185, %p186
    %s189 = sadd.s32 %s188, 1
    %p192 = scmp.eq.s32.totalorder %s18, 1
    %p193 = scmp.ne.s32.totalorder %s188, %s190
    %p194 = scmp.eq.s32.totalorder %s18, 0
    %p195 = por %p193, %p194
    %p196 = scmp.ne.s32.totalorder %s188, %s190
    %p197 = scmp.eq.s32.totalorder %s23, 1
    %p198 = por %p196, %p197
    %p199 = scmp.ne.s32.totalorder %s190, %s191
    %p200 = scmp.eq.s32.totalorder %s23, 0
    %p201 = por %p199, %p200
    %p202 = scmp.ne.s32.totalorder %s190, %s191
    %p203 = scmp.eq.s32.totalorder %s24, 1
    %p204 = por %p202, %p203
    %p206 = scmp.ne.s32.totalorder %s191, %s205
    %p207 = scmp.eq.s32.totalorder %s24, 0
    %p208 = por %p206, %p207
    %s210 = sadd.s32 %s209, 1
    %p213 = scmp.eq.s32.totalorder %s18, 1
    %p214 = scmp.ne.s32.totalorder %s209, %s211
    %p215 = scmp.eq.s32.totalorder %s18, 0
    %p216 = por %p214, %p215
    %p217 = scmp.ne.s32.totalorder %s209, %s211
    %p218 = scmp.eq.s32.totalorder %s23, 1
    %p219 = por %p217, %p218
    %p220 = scmp.ne.s32.totalorder %s211, %s212
    %p221 = scmp.eq.s32.totalorder %s23, 0
    %p222 = por %p220, %p221
    %p223 = scmp.ne.s32.totalorder %s211, %s212
    %p224 = scmp.eq.s32.totalorder %s24, 1
    %p225 = por %p223, %p224
    %p227 = scmp.ne.s32.totalorder %s212, %s226
    %p228 = scmp.eq.s32.totalorder %s24, 0
    %p229 = por %p227, %p228
    %s231 = sadd.s32 %s230, 1
    %p234 = scmp.eq.s32.totalorder %s18, 1
    %p235 = scmp.ne.s32.totalorder %s230, %s232
    %p236 = scmp.eq.s32.totalorder %s18, 0
    %p237 = por %p235, %p236
    %p238 = scmp.ne.s32.totalorder %s230, %s232
    %p239 = scmp.eq.s32.totalorder %s23, 1
    %p240 = por %p238, %p239
    %p241 = scmp.ne.s32.totalorder %s232, %s233
    %p242 = scmp.eq.s32.totalorder %s23, 0
    %p243 = por %p241, %p242
    %p244 = scmp.ne.s32.totalorder %s232, %s233
    %p245 = scmp.eq.s32.totalorder %s24, 1
    %p246 = por %p244, %p245
    %p248 = scmp.ne.s32.totalorder %s233, %s247
    %p249 = scmp.eq.s32.totalorder %s24, 0
    %p250 = por %p248, %p249
    %s252 = sadd.s32 %s251, 1
    %p255 = scmp.eq.s32.totalorder %s18, 1
    %p256 = scmp.ne.s32.totalorder %s251, %s253
    %p257 = scmp.eq.s32.totalorder %s18, 0
    %p258 = por %p256, %p257
    %p259 = scmp.ne.s32.totalorder %s251, %s253
    %p260 = scmp.eq.s32.totalorder %s23, 1
    %p261 = por %p259, %p260
    %p262 = scmp.ne.s32.totalorder %s253, %s254
    %p263 = scmp.eq.s32.totalorder %s23, 0
    %p264 = por %p262, %p263
    %p265 = scmp.ne.s32.totalorder %s253, %s254
    %p266 = scmp.eq.s32.totalorder %s24, 1
    %p267 = por %p265, %p266
    %p269 = scmp.ne.s32.totalorder %s254, %s268
    %p270 = scmp.eq.s32.totalorder %s24, 0
    %p271 = por %p269, %p270
    %s273 = sadd.s32 %s272, 1
    %p276 = scmp.eq.s32.totalorder %s18, 1
    %p277 = scmp.ne.s32.totalorder %s272, %s274
    %p278 = scmp.eq.s32.totalorder %s18, 0
    %p279 = por %p277, %p278
    %p280 = scmp.ne.s32.totalorder %s272, %s274
    %p281 = scmp.eq.s32.totalorder %s23, 1
    %p282 = por %p280, %p281
    %p283 = scmp.ne.s32.totalorder %s274, %s275
    %p284 = scmp.eq.s32.totalorder %s23, 0
    %p285 = por %p283, %p284
    %p286 = scmp.ne.s32.totalorder %s274, %s275
    %p287 = scmp.eq.s32.totalorder %s24, 1
    %p288 = por %p286, %p287
    %p290 = scmp.ne.s32.totalorder %s275, %s289
    %p291 = scmp.eq.s32.totalorder %s24, 0
    %p292 = por %p290, %p291
    %s293 = ssub.s32 %s18, %s25
    %p294 = scmp.eq.s32.totalorder %s293, 0
    %s296 = sadd.s32 %s295, 1
    %s297 = scalar_select %p294, %s295, %s296
    %p300 = pneg %p294
    %p301 = scmp.eq.s32.totalorder %s18, 1
    %p302 = por %p300, %p301
    %p303 = scmp.ne.s32.totalorder %s295, %s298
    %p304 = scmp.eq.s32.totalorder %s18, 0
    %p305 = por %p303, %p304
    %p306 = scmp.ne.s32.totalorder %s295, %s298
    %p307 = scmp.eq.s32.totalorder %s23, 1
    %p308 = por %p306, %p307
    %p309 = scmp.ne.s32.totalorder %s298, %s299
    %p310 = scmp.eq.s32.totalorder %s23, 0
    %p311 = por %p309, %p310
    %p312 = scmp.ne.s32.totalorder %s298, %s299
    %p313 = scmp.eq.s32.totalorder %s24, 1
    %p314 = por %p312, %p313
    %p316 = scmp.ne.s32.totalorder %s299, %s315
    %p317 = scmp.eq.s32.totalorder %s24, 0
    %p318 = por %p316, %p317
    %p319 = scmp.le.s32.totalorder 1, %s18
    %p320 = scmp.lt.s32.totalorder %s18, 3
    %p321 = pnand %p319, %p320
    %p322 = pneg %p321
    // Predicated region
    $region9: #{_lambda_.13} parent=5 // pred_check
      _
    $region10: #{_lambda_.13} parent=5 // pred_check_branch
      %324 = sbr.rel (%p321) target = $region12
    $region11: #{_lambda_.13} parent=5 // pred_region
      %s325 = ssub.s32 %s18, 1
      // Predicated region
      $region13: #{_lambda_.13} parent=11 // pred_check
        %p326 = pneg %p117
      $region14: #{_lambda_.13} parent=11 // pred_check_branch
        %328 = sbr.rel (%p326) target = $region16
      $region15: #{_lambda_.13} parent=11 // pred_region
        _
      $region16: #{_lambda_.13} parent=11 // pred_fallthru
        _
      // Predicated region
      $region17: #{_lambda_.13} parent=11 // pred_check
        %p329 = pneg %p138
      $region18: #{_lambda_.13} parent=11 // pred_check_branch
        %331 = sbr.rel (%p329) target = $region20
      $region19: #{_lambda_.13} parent=11 // pred_region
        _
      $region20: #{_lambda_.13} parent=11 // pred_fallthru
        _
      // Predicated region
      $region21: #{_lambda_.13} parent=11 // pred_check
        %p332 = pneg %p159
      $region22: #{_lambda_.13} parent=11 // pred_check_branch
        %334 = sbr.rel (%p332) target = $region24
      $region23: #{_lambda_.13} parent=11 // pred_region
        _
      $region24: #{_lambda_.13} parent=11 // pred_fallthru
        _
      // Predicated region
      $region25: #{_lambda_.13} parent=11 // pred_check
        %p335 = pneg %p180
      $region26: #{_lambda_.13} parent=11 // pred_check_branch
        %337 = sbr.rel (%p335) target = $region28
      $region27: #{_lambda_.13} parent=11 // pred_region
        _
      $region28: #{_lambda_.13} parent=11 // pred_fallthru
        _
      // Predicated region
      $region29: #{_lambda_.13} parent=11 // pred_check
        %p338 = pneg %p201
      $region30: #{_lambda_.13} parent=11 // pred_check_branch
        %340 = sbr.rel (%p338) target = $region32
      $region31: #{_lambda_.13} parent=11 // pred_region
        _
      $region32: #{_lambda_.13} parent=11 // pred_fallthru
        _
      // Predicated region
      $region33: #{_lambda_.13} parent=11 // pred_check
        %p341 = pneg %p222
      $region34: #{_lambda_.13} parent=11 // pred_check_branch
        %343 = sbr.rel (%p341) target = $region36
      $region35: #{_lambda_.13} parent=11 // pred_region
        _
      $region36: #{_lambda_.13} parent=11 // pred_fallthru
        _
      // Predicated region
      $region37: #{_lambda_.13} parent=11 // pred_check
        %p344 = pneg %p243
      $region38: #{_lambda_.13} parent=11 // pred_check_branch
        %346 = sbr.rel (%p344) target = $region40
      $region39: #{_lambda_.13} parent=11 // pred_region
        _
      $region40: #{_lambda_.13} parent=11 // pred_fallthru
        _
      // Predicated region
      $region41: #{_lambda_.13} parent=11 // pred_check
        %p347 = pneg %p264
      $region42: #{_lambda_.13} parent=11 // pred_check_branch
        %349 = sbr.rel (%p347) target = $region44
      $region43: #{_lambda_.13} parent=11 // pred_region
        _
      $region44: #{_lambda_.13} parent=11 // pred_fallthru
        _
      // Predicated region
      $region45: #{_lambda_.13} parent=11 // pred_check
        %p350 = pneg %p285
      $region46: #{_lambda_.13} parent=11 // pred_check_branch
        %352 = sbr.rel (%p350) target = $region48
      $region47: #{_lambda_.13} parent=11 // pred_region
        _
      $region48: #{_lambda_.13} parent=11 // pred_fallthru
        _
    $region12: #{_lambda_.13} parent=5 // pred_fallthru
      _
    %p353 = scmp.lt.s32.totalorder %s18, 2
    // Predicated region
    $region49: #{_lambda_.13} parent=5 // pred_check
      %p354 = pneg %p353
    $region50: #{_lambda_.13} parent=5 // pred_check_branch
      %356 = sbr.rel (%p354) target = $region52
    $region51: #{_lambda_.13} parent=5 // pred_region
      // Predicated region
      $region53: #{_lambda_.13} parent=51 // pred_check
        %p357 = pneg %p38
      $region54: #{_lambda_.13} parent=51 // pred_check_branch
        %359 = sbr.rel (%p357) target = $region56
      $region55: #{_lambda_.13} parent=51 // pred_region
        %p360 = scmp.lt.s32.totalorder %s18, 1
        %s361 = scalar_select %p360, %s18, 1
        %s362 = smul.addr %s361, 4
        %s363 = scalar_lea.vmem %s0, %s362
      $region56: #{_lambda_.13} parent=51 // pred_fallthru
        _
      // Predicated region
      $region57: #{_lambda_.13} parent=51 // pred_check
        %p364 = pneg %p64
      $region58: #{_lambda_.13} parent=51 // pred_check_branch
        %366 = sbr.rel (%p364) target = $region60
      $region59: #{_lambda_.13} parent=51 // pred_region
        %p367 = scmp.lt.s32.totalorder %s18, 1
        %s368 = scalar_select %p367, %s18, 1
        %s369 = smul.addr %s368, 4
        %s370 = scalar_lea.vmem %s1, %s369
      $region60: #{_lambda_.13} parent=51 // pred_fallthru
        _
      // Predicated region
      $region61: #{_lambda_.13} parent=51 // pred_check
        %p371 = pneg %p90
      $region62: #{_lambda_.13} parent=51 // pred_check_branch
        %373 = sbr.rel (%p371) target = $region64
      $region63: #{_lambda_.13} parent=51 // pred_region
        %p374 = scmp.lt.s32.totalorder %s18, 1
        %s375 = scalar_select %p374, %s18, 1
        %s376 = smul.addr %s375, 4
        %s377 = scalar_lea.vmem %s2, %s376
      $region64: #{_lambda_.13} parent=51 // pred_fallthru
        _
    $region52: #{_lambda_.13} parent=5 // pred_fallthru
      _
    %p378 = scmp.le.s32.totalorder 1, %s18
    %p379 = scmp.lt.s32.totalorder %s18, 3
    %p380 = pnand %p378, %p379
    %p381 = pneg %p380
    // Predicated region
    $region65: #{_lambda_.13} parent=5 // pred_check
      _
    $region66: #{_lambda_.13} parent=5 // pred_check_branch
      %383 = sbr.rel (%p380) target = $region68
    $region67: #{_lambda_.13} parent=5 // pred_region
      %s384 = ssub.s32 %s18, 1
      %p385 = scmp.lt.s32.totalorder %s23, 1
      %s386 = scalar_select %p385, %s23, 1
      %s387 = smul.addr %s386, 4
      %s388 = scalar_lea.vmem %s0, %s387
      %p389 = pneg %p44
      %p390 = pneg %p41
      %p391 = scmp.lt.s32.totalorder %s23, 1
      %s392 = scalar_select %p391, %s23, 1
      %s393 = smul.addr %s392, 4
      %s394 = scalar_lea.vmem %s1, %s393
      %p395 = pneg %p70
      %p396 = pneg %p67
      %p397 = scmp.lt.s32.totalorder %s23, 1
      %s398 = scalar_select %p397, %s23, 1
      %s399 = smul.addr %s398, 4
      %s400 = scalar_lea.vmem %s2, %s399
      %p401 = pneg %p96
      %p402 = pneg %p93
      %p403 = pneg %p117
      %p404 = pneg %p114
      %p405 = pneg %p138
      %p406 = pneg %p135
      %p407 = pneg %p159
      %p408 = pneg %p156
      %p409 = pneg %p180
      %p410 = pneg %p177
      %p411 = pneg %p201
      %p412 = pneg %p198
      %p413 = pneg %p222
      %p414 = pneg %p219
      %p415 = pneg %p243
      %p416 = pneg %p240
      %p417 = pneg %p264
      %p418 = pneg %p261
      %p419 = pneg %p285
      %p420 = pneg %p282
      %p421 = pneg %p311
      %p422 = pneg %p308
      %p423 = scmp.lt.s32.totalorder %s23, 1
      %s424 = scalar_select %p423, %s23, 1
      %s425 = smul.addr %s424, 4
      %s426 = scalar_lea.vmem %s12, %s425
      %p427 = scmp.lt.s32.totalorder %s23, 1
      %s428 = scalar_select %p427, %s23, 1
      %s429 = smul.addr %s428, 4
      %s430 = scalar_lea.vmem %s0, %s429
      %p431 = scmp.lt.s32.totalorder %s23, 1
      %s432 = scalar_select %p431, %s23, 1
      %s433 = smul.addr %s432, 4
      %s434 = scalar_lea.vmem %s1, %s433
      %p435 = scmp.lt.s32.totalorder %s23, 1
      %s436 = scalar_select %p435, %s23, 1
      %s437 = smul.addr %s436, 4
      %s438 = scalar_lea.vmem %s2, %s437
      %p439 = scmp.lt.s32.totalorder %s23, 1
      %s440 = scalar_select %p439, %s23, 1
      %s441 = smul.addr %s440, 4
      %s442 = scalar_lea.vmem %s12, %s441
      %v444 = vld [vmem:[%s430] sm:$0xf]
      %v445 = vld [vmem:[%s3] sm:$0xf]
      %v446 = vld [vmem:[%s3 + $0x4] sm:$0xf]
      %v447 = vld [vmem:[%s3 + $0x8] sm:$0xf]
      %v448 = vld [vmem:[%s3 + $0xc] sm:$0xf]
      %v449 = vld [vmem:[%s3 + $0x10] sm:$0xf]
      %v450 = vld [vmem:[%s3 + $0x14] sm:$0xf]
      %v451 = vld [vmem:[%s3 + $0x18] sm:$0xf]
      %v452 = vld [vmem:[%s3 + $0x1c] sm:$0xf]
      %v453 = vld [vmem:[%s434] sm:$0xf]
      %s454 = scalar_lea.vmem %s3, 32
      %v455 = vld [vmem:[%s454] sm:$0xf]
      %v456 = vld [vmem:[%s454 + $0x4] sm:$0xf]
      %v457 = vld [vmem:[%s454 + $0x8] sm:$0xf]
      %v458 = vld [vmem:[%s454 + $0xc] sm:$0xf]
      %v459 = vld [vmem:[%s454 + $0x10] sm:$0xf]
      %v460 = vld [vmem:[%s454 + $0x14] sm:$0xf]
      %v461 = vld [vmem:[%s454 + $0x18] sm:$0xf]
      %v462 = vld [vmem:[%s454 + $0x1c] sm:$0xf]
      %v471 = vunpack.c.l.b16 %v455
      %v472 = vunpack.c.l.b16 %v456
      %v473 = vunpack.c.l.b16 %v457
      %v474 = vunpack.c.l.b16 %v458
      %v475 = vunpack.c.l.b16 %v459
      %v476 = vunpack.c.l.b16 %v460
      %v477 = vunpack.c.l.b16 %v461
      %v478 = vunpack.c.l.b16 %v462
      %v479 = vpack.c.b16 %v472, %v471
      %v480 = vpack.c.b16 %v474, %v473
      %v481 = vpack.c.b16 %v476, %v475
      %v482 = vpack.c.b16 %v478, %v477
      %vm487 = vcmask 523264
      %v489 = vsel %vm487, %v453, 0
      %491 = vmatprep.subr.bf16.mxu0 0
      %492 = vmatpush1.bf16.msra.mxu0 %v479
      %493 = vmatprep.subr.bf16.mxu0 0
      %494 = vmatpush1.bf16.msra.mxu0 %v480
      %495 = vmatprep.subr.bf16.mxu0 0
      %496 = vmatpush1.bf16.msra.mxu0 %v481
      %497 = vmatprep.subr.bf16.mxu0 0
      %498 = vmatpush1.bf16.msra.mxu0 %v482
      %499 = vmatprep.subr.bf16.mxu0 0
      %500 = vmatpush1.bf16.msra.mxu0 0
      %501 = vmatprep.subr.bf16.mxu0 0
      %502 = vmatpush1.bf16.msra.mxu0 0
      %503 = vmatprep.subr.bf16.mxu0 0
      %504 = vmatpush1.bf16.msra.mxu0 0
      %505 = vmatprep.subr.bf16.mxu0 0
      %506 = vmatpush1.bf16.msra.mxu0 0
      %507 = vmatprep.subr.bf16.mxu0 0
      %508 = vmatpush1.bf16.msra.mxu0 0
      %509 = vmatprep.subr.bf16.mxu0 0
      %510 = vmatpush1.bf16.msra.mxu0 0
      %511 = vmatprep.subr.bf16.mxu0 0
      %512 = vmatpush1.bf16.msra.mxu0 0
      %513 = vmatprep.subr.bf16.mxu0 0
      %514 = vmatpush1.bf16.msra.mxu0 0
      %515 = vmatprep.subr.bf16.mxu0 0
      %516 = vmatpush1.bf16.msra.mxu0 0
      %517 = vmatprep.subr.bf16.mxu0 0
      %518 = vmatpush1.bf16.msra.mxu0 0
      %519 = vmatprep.subr.bf16.mxu0 0
      %520 = vmatpush1.bf16.msra.mxu0 0
      %521 = vmatprep.subr.bf16.mxu0 0
      %522 = vmatpush1.bf16.msra.mxu0 0
      %523 = vmatprep.mubr.bf16.mxu0 0
      %524 = vmatmul.mubr.bf16.gmra.mrb[0].mxu0 %v489
      %v525 = vpop.f32.mrb[0].mxu0
      %v526 = vadd.f32 0.0, %v525
      %v527 = vpop.f32.mrb[0].mxu0
      %v528 = vpop.f32.mrb[0].mxu0
      %v529 = vpop.f32.mrb[0].mxu0
      %530 = vdwg.mxu0
      %v539 = vunpack.c.l.b16 %v445
      %v540 = vunpack.c.l.b16 %v446
      %v541 = vunpack.c.l.b16 %v447
      %v542 = vunpack.c.l.b16 %v448
      %v543 = vunpack.c.l.b16 %v449
      %v544 = vunpack.c.l.b16 %v450
      %v545 = vunpack.c.l.b16 %v451
      %v546 = vunpack.c.l.b16 %v452
      %v547 = vpack.c.b16 %v540, %v539
      %v548 = vpack.c.b16 %v542, %v541
      %v549 = vpack.c.b16 %v544, %v543
      %v550 = vpack.c.b16 %v546, %v545
      %v556 = vsel %vm487, %v444, 0
      %558 = vmatprep.subr.bf16.mxu0 0
      %559 = vmatpush1.bf16.msra.mxu0 %v547
      %560 = vmatprep.subr.bf16.mxu0 0
      %561 = vmatpush1.bf16.msra.mxu0 %v548
      %562 = vmatprep.subr.bf16.mxu0 0
      %563 = vmatpush1.bf16.msra.mxu0 %v549
      %564 = vmatprep.subr.bf16.mxu0 0
      %565 = vmatpush1.bf16.msra.mxu0 %v550
      %566 = vmatprep.subr.bf16.mxu0 0
      %567 = vmatpush1.bf16.msra.mxu0 0
      %568 = vmatprep.subr.bf16.mxu0 0
      %569 = vmatpush1.bf16.msra.mxu0 0
      %570 = vmatprep.subr.bf16.mxu0 0
      %571 = vmatpush1.bf16.msra.mxu0 0
      %572 = vmatprep.subr.bf16.mxu0 0
      %573 = vmatpush1.bf16.msra.mxu0 0
      %574 = vmatprep.subr.bf16.mxu0 0
      %575 = vmatpush1.bf16.msra.mxu0 0
      %576 = vmatprep.subr.bf16.mxu0 0
      %577 = vmatpush1.bf16.msra.mxu0 0
      %578 = vmatprep.subr.bf16.mxu0 0
      %579 = vmatpush1.bf16.msra.mxu0 0
      %580 = vmatprep.subr.bf16.mxu0 0
      %581 = vmatpush1.bf16.msra.mxu0 0
      %582 = vmatprep.subr.bf16.mxu0 0
      %583 = vmatpush1.bf16.msra.mxu0 0
      %584 = vmatprep.subr.bf16.mxu0 0
      %585 = vmatpush1.bf16.msra.mxu0 0
      %586 = vmatprep.subr.bf16.mxu0 0
      %587 = vmatpush1.bf16.msra.mxu0 0
      %588 = vmatprep.subr.bf16.mxu0 0
      %589 = vmatpush1.bf16.msra.mxu0 0
      %590 = vmatprep.mubr.bf16.mxu0 0
      %591 = vmatmul.mubr.bf16.gmra.mrb[0].mxu0 %v556
      %v592 = vpop.f32.mrb[0].mxu0
      %v593 = vadd.f32 %v526, %v592
      %v594 = vpop.f32.mrb[0].mxu0
      %v595 = vpop.f32.mrb[0].mxu0
      %v596 = vpop.f32.mrb[0].mxu0
      %597 = vdwg.mxu0
      %v598 = vld [vmem:[%s438] sm:$0xf]
      %s599 = scalar_lea.vmem %s3, 64
      %v600 = vld [vmem:[%s599] sm:$0xf]
      %v601 = vld [vmem:[%s599 + $0x4] sm:$0xf]
      %v602 = vld [vmem:[%s599 + $0x8] sm:$0xf]
      %v603 = vld [vmem:[%s599 + $0xc] sm:$0xf]
      %v604 = vld [vmem:[%s599 + $0x10] sm:$0xf]
      %v605 = vld [vmem:[%s599 + $0x14] sm:$0xf]
      %v606 = vld [vmem:[%s599 + $0x18] sm:$0xf]
      %v607 = vld [vmem:[%s599 + $0x1c] sm:$0xf]
      %v616 = vunpack.c.l.b16 %v600
      %v617 = vunpack.c.l.b16 %v601
      %v618 = vunpack.c.l.b16 %v602
      %v619 = vunpack.c.l.b16 %v603
      %v620 = vunpack.c.l.b16 %v604
      %v621 = vunpack.c.l.b16 %v605
      %v622 = vunpack.c.l.b16 %v606
      %v623 = vunpack.c.l.b16 %v607
      %v624 = vpack.c.b16 %v617, %v616
      %v625 = vpack.c.b16 %v619, %v618
      %v626 = vpack.c.b16 %v621, %v620
      %v627 = vpack.c.b16 %v623, %v622
      %v633 = vsel %vm487, %v598, 0
      %635 = vmatprep.subr.bf16.mxu0 0
      %636 = vmatpush1.bf16.msra.mxu0 %v624
      %637 = vmatprep.subr.bf16.mxu0 0
      %638 = vmatpush1.bf16.msra.mxu0 %v625
      %639 = vmatprep.subr.bf16.mxu0 0
      %640 = vmatpush1.bf16.msra.mxu0 %v626
      %641 = vmatprep.subr.bf16.mxu0 0
      %642 = vmatpush1.bf16.msra.mxu0 %v627
      %643 = vmatprep.subr.bf16.mxu0 0
      %644 = vmatpush1.bf16.msra.mxu0 0
      %645 = vmatprep.subr.bf16.mxu0 0
      %646 = vmatpush1.bf16.msra.mxu0 0
      %647 = vmatprep.subr.bf16.mxu0 0
      %648 = vmatpush1.bf16.msra.mxu0 0
      %649 = vmatprep.subr.bf16.mxu0 0
      %650 = vmatpush1.bf16.msra.mxu0 0
      %651 = vmatprep.subr.bf16.mxu0 0
      %652 = vmatpush1.bf16.msra.mxu0 0
      %653 = vmatprep.subr.bf16.mxu0 0
      %654 = vmatpush1.bf16.msra.mxu0 0
      %655 = vmatprep.subr.bf16.mxu0 0
      %656 = vmatpush1.bf16.msra.mxu0 0
      %657 = vmatprep.subr.bf16.mxu0 0
      %658 = vmatpush1.bf16.msra.mxu0 0
      %659 = vmatprep.subr.bf16.mxu0 0
      %660 = vmatpush1.bf16.msra.mxu0 0
      %661 = vmatprep.subr.bf16.mxu0 0
      %662 = vmatpush1.bf16.msra.mxu0 0
      %663 = vmatprep.subr.bf16.mxu0 0
      %664 = vmatpush1.bf16.msra.mxu0 0
      %665 = vmatprep.subr.bf16.mxu0 0
      %666 = vmatpush1.bf16.msra.mxu0 0
      %667 = vmatprep.mubr.bf16.mxu0 0
      %668 = vmatmul.mubr.bf16.gmra.mrb[0].mxu0 %v633
      %v669 = vpop.f32.mrb[0].mxu0
      %v670 = vadd.f32 0.0, %v669
      %v671 = vpop.f32.mrb[0].mxu0
      %v672 = vpop.f32.mrb[0].mxu0
      %v673 = vpop.f32.mrb[0].mxu0
      %674 = vdwg.mxu0
      %v675 = vadd.f32 %v593, %v670
      %v676 = vld [vmem:[%s4] sm:$0x1]
      %v678 = vlaneseq
      %v679 = vshrl.u32 %v678, 7
      %v680 = vsub.s32 0, %v679
      %v681 = vrot.slane %v676, %v680
      %v683 = vmul.f32 %v675, %v681
      %v684 = vld [vmem:[%s5] sm:$0x1]
      %v686 = vlaneseq
      %v687 = vshrl.u32 %v686, 7
      %v688 = vsub.s32 0, %v687
      %v689 = vrot.slane %v684, %v688
      %v691 = vadd.f32 %v683, %v689
      %v692 = vmax.f32 %v691, 0.0
      %v693 = vld [vmem:[%s6] sm:$0xf]
      %v694 = vld [vmem:[%s6 + $0x4] sm:$0xf]
      %v695 = vld [vmem:[%s6 + $0x8] sm:$0xf]
      %v696 = vld [vmem:[%s6 + $0xc] sm:$0xf]
      %v697 = vld [vmem:[%s6 + $0x10] sm:$0xf]
      %v698 = vld [vmem:[%s6 + $0x14] sm:$0xf]
      %v699 = vld [vmem:[%s6 + $0x18] sm:$0xf]
      %v700 = vld [vmem:[%s6 + $0x1c] sm:$0xf]
      %v709 = vunpack.c.l.b16 %v693
      %v710 = vunpack.c.l.b16 %v694
      %v711 = vunpack.c.l.b16 %v695
      %v712 = vunpack.c.l.b16 %v696
      %v713 = vunpack.c.l.b16 %v697
      %v714 = vunpack.c.l.b16 %v698
      %v715 = vunpack.c.l.b16 %v699
      %v716 = vunpack.c.l.b16 %v700
      %v717 = vpack.c.b16 %v710, %v709
      %v718 = vpack.c.b16 %v712, %v711
      %v719 = vpack.c.b16 %v714, %v713
      %v720 = vpack.c.b16 %v716, %v715
      %725 = vmatprep.subr.bf16.mxu0 0
      %726 = vmatpush1.bf16.msra.mxu0 %v717
      %727 = vmatprep.subr.bf16.mxu0 0
      %728 = vmatpush1.bf16.msra.mxu0 %v718
      %729 = vmatprep.subr.bf16.mxu0 0
      %730 = vmatpush1.bf16.msra.mxu0 %v719
      %731 = vmatprep.subr.bf16.mxu0 0
      %732 = vmatpush1.bf16.msra.mxu0 %v720
      %733 = vmatprep.subr.bf16.mxu0 0
      %734 = vmatpush1.bf16.msra.mxu0 0
      %735 = vmatprep.subr.bf16.mxu0 0
      %736 = vmatpush1.bf16.msra.mxu0 0
      %737 = vmatprep.subr.bf16.mxu0 0
      %738 = vmatpush1.bf16.msra.mxu0 0
      %739 = vmatprep.subr.bf16.mxu0 0
      %740 = vmatpush1.bf16.msra.mxu0 0
      %741 = vmatprep.subr.bf16.mxu0 0
      %742 = vmatpush1.bf16.msra.mxu0 0
      %743 = vmatprep.subr.bf16.mxu0 0
      %744 = vmatpush1.bf16.msra.mxu0 0
      %745 = vmatprep.subr.bf16.mxu0 0
      %746 = vmatpush1.bf16.msra.mxu0 0
      %747 = vmatprep.subr.bf16.mxu0 0
      %748 = vmatpush1.bf16.msra.mxu0 0
      %749 = vmatprep.subr.bf16.mxu0 0
      %750 = vmatpush1.bf16.msra.mxu0 0
      %751 = vmatprep.subr.bf16.mxu0 0
      %752 = vmatpush1.bf16.msra.mxu0 0
      %753 = vmatprep.subr.bf16.mxu0 0
      %754 = vmatpush1.bf16.msra.mxu0 0
      %755 = vmatprep.subr.bf16.mxu0 0
      %756 = vmatpush1.bf16.msra.mxu0 0
      %757 = vmatprep.mubr.bf16.mxu0 0
      %758 = vmatmul.mubr.bf16.gmra.mrb[0].mxu0 %v489
      %v759 = vpop.f32.mrb[0].mxu0
      %v760 = vadd.f32 0.0, %v759
      %v761 = vpop.f32.mrb[0].mxu0
      %v762 = vpop.f32.mrb[0].mxu0
      %v763 = vpop.f32.mrb[0].mxu0
      %764 = vdwg.mxu0
      %v765 = vld [vmem:[%s7] sm:$0x1]
      %v767 = vlaneseq
      %v768 = vshrl.u32 %v767, 7
      %v769 = vsub.s32 0, %v768
      %v770 = vrot.slane %v765, %v769
      %v772 = vmul.f32 %v760, %v770
      %v773 = vld [vmem:[%s8] sm:$0x1]
      %v775 = vlaneseq
      %v776 = vshrl.u32 %v775, 7
      %v777 = vsub.s32 0, %v776
      %v778 = vrot.slane %v773, %v777
      %v780 = vadd.f32 %v772, %v778
      %781 = vst [vmem:[#allocation2] sm:$0xf] 0
      %782 = vst [vmem:[#allocation2 + $0x4] sm:$0xf] 0
      %783 = vst [vmem:[#allocation2 + $0x8] sm:$0xf] 0
      %784 = vst [vmem:[#allocation2 + $0xc] sm:$0xf] 0
      %785 = vst [vmem:[#allocation2 + $0x10] sm:$0xf] 0
      %v786 = vpack.c.bf16 %v692, %v692
      %787 = vst [vmem:[#allocation2 + $0x8] sm:$0xf] %v786
      %v788 = vld [vmem:[#allocation2 + $0x4] sm:$0x8]
      %v789 = vld [vmem:[#allocation2 + $0x8] sm:$0xf]
      %v790 = vld [vmem:[%s9] sm:$0xf]
      %v791 = vld [vmem:[%s9 + $0x4] sm:$0xf]
      %v792 = vld [vmem:[%s9 + $0x8] sm:$0xf]
      %v793 = vld [vmem:[%s9 + $0xc] sm:$0xf]
      %v794 = vld [vmem:[%s9 + $0x10] sm:$0xf]
      %v795 = vld [vmem:[%s9 + $0x14] sm:$0xf]
      %v796 = vld [vmem:[%s9 + $0x18] sm:$0xf]
      %v797 = vld [vmem:[%s9 + $0x1c] sm:$0xf]
      %v798 = vld [vmem:[%s9 + $0x20] sm:$0xf]
      %v799 = vld [vmem:[%s9 + $0x24] sm:$0xf]
      %v800 = vld [vmem:[%s9 + $0x28] sm:$0xf]
      %v801 = vld [vmem:[%s9 + $0x2c] sm:$0xf]
      %v802 = vld [vmem:[%s9 + $0x30] sm:$0xf]
      %v803 = vld [vmem:[%s9 + $0x34] sm:$0xf]
      %v804 = vld [vmem:[%s9 + $0x38] sm:$0xf]
      %v805 = vld [vmem:[%s9 + $0x3c] sm:$0xf]
      %s806 = scalar_lea.vmem %s9, 64
      %v807 = vld [vmem:[%s806] sm:$0xf]
      %v808 = vld [vmem:[%s806 + $0x4] sm:$0xf]
      %v809 = vld [vmem:[%s806 + $0x8] sm:$0xf]
      %v810 = vld [vmem:[%s806 + $0xc] sm:$0xf]
      %v811 = vld [vmem:[%s806 + $0x10] sm:$0xf]
      %v812 = vld [vmem:[%s806 + $0x14] sm:$0xf]
      %v813 = vld [vmem:[%s806 + $0x18] sm:$0xf]
      %v814 = vld [vmem:[%s806 + $0x1c] sm:$0xf]
      %v815 = vld [vmem:[%s806 + $0x20] sm:$0xf]
      %v816 = vld [vmem:[%s806 + $0x24] sm:$0xf]
      %v817 = vld [vmem:[%s806 + $0x28] sm:$0xf]
      %v818 = vld [vmem:[%s806 + $0x2c] sm:$0xf]
      %v819 = vld [vmem:[%s806 + $0x30] sm:$0xf]
      %v820 = vld [vmem:[%s806 + $0x34] sm:$0xf]
      %v821 = vld [vmem:[%s806 + $0x38] sm:$0xf]
      %v822 = vld [vmem:[%s806 + $0x3c] sm:$0xf]
      %v839 = vunpack.c.l.b16 %v807
      %v840 = vunpack.c.l.b16 %v808
      %v841 = vunpack.c.l.b16 %v809
      %v842 = vunpack.c.l.b16 %v810
      %v843 = vunpack.c.l.b16 %v811
      %v844 = vunpack.c.l.b16 %v812
      %v845 = vunpack.c.l.b16 %v813
      %v846 = vunpack.c.l.b16 %v814
      %v847 = vunpack.c.l.b16 %v815
      %v848 = vunpack.c.l.b16 %v816
      %v849 = vunpack.c.l.b16 %v817
      %v850 = vunpack.c.l.b16 %v818
      %v851 = vunpack.c.l.b16 %v819
      %v852 = vunpack.c.l.b16 %v820
      %v853 = vunpack.c.l.b16 %v821
      %v854 = vunpack.c.l.b16 %v822
      %v855 = vpack.c.b16 %v840, %v839
      %v856 = vpack.c.b16 %v842, %v841
      %v857 = vpack.c.b16 %v844, %v843
      %v858 = vpack.c.b16 %v846, %v845
      %v859 = vpack.c.b16 %v848, %v847
      %v860 = vpack.c.b16 %v850, %v849
      %v861 = vpack.c.b16 %v852, %v851
      %v862 = vpack.c.b16 %v854, %v853
      %871 = vmatprep.subr.bf16.mxu0 0
      %872 = vmatpush1.bf16.msra.mxu0 %v855
      %873 = vmatprep.subr.bf16.mxu0 0
      %874 = vmatpush1.bf16.msra.mxu0 %v856
      %875 = vmatprep.subr.bf16.mxu0 0
      %876 = vmatpush1.bf16.msra.mxu0 %v857
      %877 = vmatprep.subr.bf16.mxu0 0
      %878 = vmatpush1.bf16.msra.mxu0 %v858
      %879 = vmatprep.subr.bf16.mxu0 0
      %880 = vmatpush1.bf16.msra.mxu0 %v859
      %881 = vmatprep.subr.bf16.mxu0 0
      %882 = vmatpush1.bf16.msra.mxu0 %v860
      %883 = vmatprep.subr.bf16.mxu0 0
      %884 = vmatpush1.bf16.msra.mxu0 %v861
      %885 = vmatprep.subr.bf16.mxu0 0
      %886 = vmatpush1.bf16.msra.mxu0 %v862
      %887 = vmatprep.subr.bf16.mxu0 0
      %888 = vmatpush1.bf16.msra.mxu0 0
      %889 = vmatprep.subr.bf16.mxu0 0
      %890 = vmatpush1.bf16.msra.mxu0 0
      %891 = vmatprep.subr.bf16.mxu0 0
      %892 = vmatpush1.bf16.msra.mxu0 0
      %893 = vmatprep.subr.bf16.mxu0 0
      %894 = vmatpush1.bf16.msra.mxu0 0
      %895 = vmatprep.subr.bf16.mxu0 0
      %896 = vmatpush1.bf16.msra.mxu0 0
      %897 = vmatprep.subr.bf16.mxu0 0
      %898 = vmatpush1.bf16.msra.mxu0 0
      %899 = vmatprep.subr.bf16.mxu0 0
      %900 = vmatpush1.bf16.msra.mxu0 0
      %901 = vmatprep.subr.bf16.mxu0 0
      %902 = vmatpush1.bf16.msra.mxu0 0
      %903 = vmatprep.mubr.bf16.mxu0 0
      %904 = vmatmul.mubr.bf16.gmra.mrb[0].mxu0 %v789
      %v905 = vpop.f32.mrb[0].mxu0
      %v906 = vadd.f32 0.0, %v905
      %v907 = vpop.f32.mrb[0].mxu0
      %v908 = vpop.f32.mrb[0].mxu0
      %v909 = vpop.f32.mrb[0].mxu0
      %910 = vdwg.mxu0
      %v913 = vunpack.c.l.b16 %v788
      %v914 = vunpack.c.l.b16 %v789
      %v915 = vpack.c.b16 %v914, %v913
      %v917 = vshrl.u32 %v915, 16
      %v919 = vrot.slane %v917, 3
      %v920 = vshll.u32 %v915, 16
      %v922 = vrot.slane %v920, 4
      %v923 = vor.u32 %v919, %v922
      %v941 = vunpack.c.l.b16 %v790
      %v942 = vunpack.c.l.b16 %v791
      %v943 = vunpack.c.l.b16 %v792
      %v944 = vunpack.c.l.b16 %v793
      %v945 = vunpack.c.l.b16 %v794
      %v946 = vunpack.c.l.b16 %v795
      %v947 = vunpack.c.l.b16 %v796
      %v948 = vunpack.c.l.b16 %v797
      %v949 = vunpack.c.l.b16 %v798
      %v950 = vunpack.c.l.b16 %v799
      %v951 = vunpack.c.l.b16 %v800
      %v952 = vunpack.c.l.b16 %v801
      %v953 = vunpack.c.l.b16 %v802
      %v954 = vunpack.c.l.b16 %v803
      %v955 = vunpack.c.l.b16 %v804
      %v956 = vunpack.c.l.b16 %v805
      %v957 = vpack.c.b16 %v942, %v941
      %v958 = vpack.c.b16 %v944, %v943
      %v959 = vpack.c.b16 %v946, %v945
      %v960 = vpack.c.b16 %v948, %v947
      %v961 = vpack.c.b16 %v950, %v949
      %v962 = vpack.c.b16 %v952, %v951
      %v963 = vpack.c.b16 %v954, %v953
      %v964 = vpack.c.b16 %v956, %v955
      %973 = vmatprep.subr.bf16.mxu0 0
      %974 = vmatpush1.bf16.msra.mxu0 %v957
      %975 = vmatprep.subr.bf16.mxu0 0
      %976 = vmatpush1.bf16.msra.mxu0 %v958
      %977 = vmatprep.subr.bf16.mxu0 0
      %978 = vmatpush1.bf16.msra.mxu0 %v959
      %979 = vmatprep.subr.bf16.mxu0 0
      %980 = vmatpush1.bf16.msra.mxu0 %v960
      %981 = vmatprep.subr.bf16.mxu0 0
      %982 = vmatpush1.bf16.msra.mxu0 %v961
      %983 = vmatprep.subr.bf16.mxu0 0
      %984 = vmatpush1.bf16.msra.mxu0 %v962
      %985 = vmatprep.subr.bf16.mxu0 0
      %986 = vmatpush1.bf16.msra.mxu0 %v963
      %987 = vmatprep.subr.bf16.mxu0 0
      %988 = vmatpush1.bf16.msra.mxu0 %v964
      %989 = vmatprep.subr.bf16.mxu0 0
      %990 = vmatpush1.bf16.msra.mxu0 0
      %991 = vmatprep.subr.bf16.mxu0 0
      %992 = vmatpush1.bf16.msra.mxu0 0
      %993 = vmatprep.subr.bf16.mxu0 0
      %994 = vmatpush1.bf16.msra.mxu0 0
      %995 = vmatprep.subr.bf16.mxu0 0
      %996 = vmatpush1.bf16.msra.mxu0 0
      %997 = vmatprep.subr.bf16.mxu0 0
      %998 = vmatpush1.bf16.msra.mxu0 0
      %999 = vmatprep.subr.bf16.mxu0 0
      %1000 = vmatpush1.bf16.msra.mxu0 0
      %1001 = vmatprep.subr.bf16.mxu0 0
      %1002 = vmatpush1.bf16.msra.mxu0 0
      %1003 = vmatprep.subr.bf16.mxu0 0
      %1004 = vmatpush1.bf16.msra.mxu0 0
      %1005 = vmatprep.mubr.bf16.mxu0 0
      %1006 = vmatmul.mubr.bf16.gmra.mrb[0].mxu0 %v923
      %v1007 = vpop.f32.mrb[0].mxu0
      %v1008 = vadd.f32 %v906, %v1007
      %v1009 = vpop.f32.mrb[0].mxu0
      %v1010 = vpop.f32.mrb[0].mxu0
      %v1011 = vpop.f32.mrb[0].mxu0
      %1012 = vdwg.mxu0
      %v1013 = vld [vmem:[#allocation2 + $0x8] sm:$0xf]
      %v1014 = vld [vmem:[#allocation2 + $0xc] sm:$0x1]
      %s1015 = scalar_lea.vmem %s9, 128
      %v1016 = vld [vmem:[%s1015] sm:$0xf]
      %v1017 = vld [vmem:[%s1015 + $0x4] sm:$0xf]
      %v1018 = vld [vmem:[%s1015 + $0x8] sm:$0xf]
      %v1019 = vld [vmem:[%s1015 + $0xc] sm:$0xf]
      %v1020 = vld [vmem:[%s1015 + $0x10] sm:$0xf]
      %v1021 = vld [vmem:[%s1015 + $0x14] sm:$0xf]
      %v1022 = vld [vmem:[%s1015 + $0x18] sm:$0xf]
      %v1023 = vld [vmem:[%s1015 + $0x1c] sm:$0xf]
      %v1024 = vld [vmem:[%s1015 + $0x20] sm:$0xf]
      %v1025 = vld [vmem:[%s1015 + $0x24] sm:$0xf]
      %v1026 = vld [vmem:[%s1015 + $0x28] sm:$0xf]
      %v1027 = vld [vmem:[%s1015 + $0x2c] sm:$0xf]
      %v1028 = vld [vmem:[%s1015 + $0x30] sm:$0xf]
      %v1029 = vld [vmem:[%s1015 + $0x34] sm:$0xf]
      %v1030 = vld [vmem:[%s1015 + $0x38] sm:$0xf]
      %v1031 = vld [vmem:[%s1015 + $0x3c] sm:$0xf]
      %v1034 = vunpack.c.l.b16 %v1013
      %v1035 = vunpack.c.l.b16 %v1014
      %v1036 = vpack.c.b16 %v1035, %v1034
      %v1038 = vshrl.u32 %v1036, 16
      %v1040 = vshll.u32 %v1036, 16
      %v1042 = vrot.slane %v1040, 1
      %v1043 = vor.u32 %v1038, %v1042
      %v1061 = vunpack.c.l.b16 %v1016
      %v1062 = vunpack.c.l.b16 %v1017
      %v1063 = vunpack.c.l.b16 %v1018
      %v1064 = vunpack.c.l.b16 %v1019
      %v1065 = vunpack.c.l.b16 %v1020
      %v1066 = vunpack.c.l.b16 %v1021
      %v1067 = vunpack.c.l.b16 %v1022
      %v1068 = vunpack.c.l.b16 %v1023
      %v1069 = vunpack.c.l.b16 %v1024
      %v1070 = vunpack.c.l.b16 %v1025
      %v1071 = vunpack.c.l.b16 %v1026
      %v1072 = vunpack.c.l.b16 %v1027
      %v1073 = vunpack.c.l.b16 %v1028
      %v1074 = vunpack.c.l.b16 %v1029
      %v1075 = vunpack.c.l.b16 %v1030
      %v1076 = vunpack.c.l.b16 %v1031
      %v1077 = vpack.c.b16 %v1062, %v1061
      %v1078 = vpack.c.b16 %v1064, %v1063
      %v1079 = vpack.c.b16 %v1066, %v1065
      %v1080 = vpack.c.b16 %v1068, %v1067
      %v1081 = vpack.c.b16 %v1070, %v1069
      %v1082 = vpack.c.b16 %v1072, %v1071
      %v1083 = vpack.c.b16 %v1074, %v1073
      %v1084 = vpack.c.b16 %v1076, %v1075
      %1093 = vmatprep.subr.bf16.mxu0 0
      %1094 = vmatpush1.bf16.msra.mxu0 %v1077
      %1095 = vmatprep.subr.bf16.mxu0 0
      %1096 = vmatpush1.bf16.msra.mxu0 %v1078
      %1097 = vmatprep.subr.bf16.mxu0 0
      %1098 = vmatpush1.bf16.msra.mxu0 %v1079
      %1099 = vmatprep.subr.bf16.mxu0 0
      %1100 = vmatpush1.bf16.msra.mxu0 %v1080
      %1101 = vmatprep.subr.bf16.mxu0 0
      %1102 = vmatpush1.bf16.msra.mxu0 %v1081
      %1103 = vmatprep.subr.bf16.mxu0 0
      %1104 = vmatpush1.bf16.msra.mxu0 %v1082
      %1105 = vmatprep.subr.bf16.mxu0 0
      %1106 = vmatpush1.bf16.msra.mxu0 %v1083
      %1107 = vmatprep.subr.bf16.mxu0 0
      %1108 = vmatpush1.bf16.msra.mxu0 %v1084
      %1109 = vmatprep.subr.bf16.mxu0 0
      %1110 = vmatpush1.bf16.msra.mxu0 0
      %1111 = vmatprep.subr.bf16.mxu0 0
      %1112 = vmatpush1.bf16.msra.mxu0 0
      %1113 = vmatprep.subr.bf16.mxu0 0
      %1114 = vmatpush1.bf16.msra.mxu0 0
      %1115 = vmatprep.subr.bf16.mxu0 0
      %1116 = vmatpush1.bf16.msra.mxu0 0
      %1117 = vmatprep.subr.bf16.mxu0 0
      %1118 = vmatpush1.bf16.msra.mxu0 0
      %1119 = vmatprep.subr.bf16.mxu0 0
      %1120 = vmatpush1.bf16.msra.mxu0 0
      %1121 = vmatprep.subr.bf16.mxu0 0
      %1122 = vmatpush1.bf16.msra.mxu0 0
      %1123 = vmatprep.subr.bf16.mxu0 0
      %1124 = vmatpush1.bf16.msra.mxu0 0
      %1125 = vmatprep.mubr.bf16.mxu0 0
      %1126 = vmatmul.mubr.bf16.gmra.mrb[0].mxu0 %v1043
      %v1127 = vpop.f32.mrb[0].mxu0
      %v1128 = vadd.f32 0.0, %v1127
      %v1129 = vpop.f32.mrb[0].mxu0
      %v1130 = vpop.f32.mrb[0].mxu0
      %v1131 = vpop.f32.mrb[0].mxu0
      %1132 = vdwg.mxu0
      %v1133 = vadd.f32 %v1008, %v1128
      %v1134 = vld [vmem:[%s10] sm:$0x1]
      %v1136 = vlaneseq
      %v1137 = vshrl.u32 %v1136, 7
      %v1138 = vsub.s32 0, %v1137
      %v1139 = vrot.slane %v1134, %v1138
      %v1141 = vmul.f32 %v1133, %v1139
      %v1142 = vld [vmem:[%s11] sm:$0x1]
      %v1144 = vlaneseq
      %v1145 = vshrl.u32 %v1144, 7
      %v1146 = vsub.s32 0, %v1145
      %v1147 = vrot.slane %v1142, %v1146
      %v1149 = vadd.f32 %v1141, %v1147
      %v1150 = vadd.f32 %v1149, %v780
      %v1151 = vmax.f32 %v1150, 0.0
      %v1152 = vpack.c.bf16 %v1151, %v1151
      %1153 = vst [vmem:[%s442] sm:$0xf] %v1152
      %p1154 = scmp.lt.s32.totalorder %s23, 1
      %s1155 = scalar_select %p1154, %s23, 1
      %s1156 = smul.addr %s1155, 4
      %s1157 = scalar_lea.vmem %s12, %s1156
      // Predicated region
      $region69: #{_lambda_.13} parent=67 // pred_check
        %p1158 = pneg %p308
      $region70: #{_lambda_.13} parent=67 // pred_check_branch
        %1160 = sbr.rel (%p1158) target = $region72
      $region71: #{_lambda_.13} parent=67 // pred_region
        _
      $region72: #{_lambda_.13} parent=67 // pred_fallthru
        _
    $region68: #{_lambda_.13} parent=5 // pred_fallthru
      _
    %p1161 = scmp.le.s32.totalorder 2, %s18
    // Predicated region
    $region73: #{_lambda_.13} parent=5 // pred_check
      %p1162 = pneg %p1161
    $region74: #{_lambda_.13} parent=5 // pred_check_branch
      %1164 = sbr.rel (%p1162) target = $region76
    $region75: #{_lambda_.13} parent=5 // pred_region
      %s1165 = ssub.s32 %s18, 2
      // Predicated region
      $region77: #{_lambda_.13} parent=75 // pred_check
        %p1166 = pneg %p314
      $region78: #{_lambda_.13} parent=75 // pred_check_branch
        %1168 = sbr.rel (%p1166) target = $region80
      $region79: #{_lambda_.13} parent=75 // pred_region
        %p1169 = scmp.lt.s32.totalorder %s24, 1
        %s1170 = scalar_select %p1169, %s24, 1
        %s1171 = smul.addr %s1170, 4
        %s1172 = scalar_lea.vmem %s12, %s1171
      $region80: #{_lambda_.13} parent=75 // pred_fallthru
        _
    $region76: #{_lambda_.13} parent=5 // pred_fallthru
      _
  $region6: #{_lambda_.13} parent=0 // loop_footer
    %s22 = sadd.s32 1, %s18
  $region7: #{_lambda_.13} parent=0 // loop_footer_branch
    %17 = sbr.rel target = $region3
  $region8: #{_lambda_.13} parent=0 // loop_exit
    _

// kernel: _lambda_.14
$region0: #{_lambda_.14}
  #allocation0 [shape = 'u32[]', space=smem, size = 0x4, offset = 0x4, fixed_abs, tag = 'smem constant byte address 0x4 - core index']
  #allocation1 [shape = 'u32[144,128]{1,0:T(1,128)}', space=vmem, size = 0x12000, scoped, tag = 'internal scratch']
  #allocation2 [shape = 'bf16[40,128]{1,0:T(8,128)(2,1)}', space=vmem, size = 0x2800, scoped, tag = 'scratch operand']
  %s0 = inlined_call_operand.vmem [shape: bf16[2,10,128], index: 0, kind: input, shape index: {}]
  %s1 = inlined_call_operand.vmem [shape: bf16[3,128,128], index: 1, kind: input, shape index: {}]
  %s2 = inlined_call_operand.vmem [shape: f32[1,128], index: 2, kind: input, shape index: {}]
  %s3 = inlined_call_operand.vmem [shape: f32[1,128], index: 3, kind: input, shape index: {}]
  %s4 = inlined_call_operand.vmem [shape: bf16[3,128,128], index: 4, kind: input, shape index: {}]
  %s5 = inlined_call_operand.vmem [shape: f32[1,128], index: 5, kind: input, shape index: {}]
  %s6 = inlined_call_operand.vmem [shape: f32[1,128], index: 6, kind: input, shape index: {}]
  %s7 = inlined_call_operand.vmem [shape: bf16[2,8,128], index: 7, kind: output, shape index: {}]
  %s8 = sld [smem:[#allocation0]]
  $region61: #{_lambda_.14} parent=0
    _
  %s10 = ssub.s32 1, %s8
  %s11 = scalar_select 0, %s10, %s8
  loop: start=0, step=1, limit=4
  $region2: #{_lambda_.14} parent=0 // loop_pre_header
    _
  $region3: #{_lambda_.14} parent=0 // loop_header
    %s13 = sphi 0, %s17
    %p14 = scmp.ge.s32.totalorder %s13, 4
    %s23 = sphi 0, %s25
    %s26 = sphi 0, %s23
    %s27 = sphi 0, %s26
    %s43 = sphi 0, %s27
    %s47 = sphi 0, %s47
    %s49 = sphi 0, %s47
    %s50 = sphi 0, %s49
    %s64 = sphi 0, %s50
    %s68 = sphi 0, %s68
    %s70 = sphi 0, %s68
    %s71 = sphi 0, %s70
    %s85 = sphi 0, %s71
    %s89 = sphi 0, %s89
    %s91 = sphi 0, %s89
    %s92 = sphi 0, %s91
    %s106 = sphi 0, %s92
    %s110 = sphi 0, %s110
    %s112 = sphi 0, %s110
    %s113 = sphi 0, %s112
    %s127 = sphi 0, %s113
    %s131 = sphi 0, %s131
    %s133 = sphi 0, %s131
    %s134 = sphi 0, %s133
    %s148 = sphi 0, %s134
    %s152 = sphi 0, %s152
    %s154 = sphi 0, %s152
    %s155 = sphi 0, %s154
    %s169 = sphi 0, %s155
    %s175 = sphi 0, %s177
    %s178 = sphi 0, %s175
    %s179 = sphi 0, %s178
    %s195 = sphi 0, %s179
  $region4: #{_lambda_.14} parent=0 // loop_header_branch
    %16 = sbr.rel (%p14) target = $region8
  $region5: #{_lambda_.14} parent=0 // loop_body
    %s18 = ssub.s32 %s13, 1
    %s19 = ssub.s32 %s13, 2
    %s20 = sadd.s32 %s13, 1
    %s21 = ssub.s32 %s13, %s20
    %p22 = scmp.eq.s32.totalorder %s21, 0
    %s24 = sadd.s32 %s23, 1
    %s25 = scalar_select %p22, %s23, %s24
    %p28 = pneg %p22
    %p29 = scmp.eq.s32.totalorder %s13, 1
    %p30 = por %p28, %p29
    %p31 = scmp.ne.s32.totalorder %s23, %s26
    %p32 = scmp.eq.s32.totalorder %s13, 0
    %p33 = por %p31, %p32
    %p34 = scmp.ne.s32.totalorder %s23, %s26
    %p35 = scmp.eq.s32.totalorder %s18, 1
    %p36 = por %p34, %p35
    %p37 = scmp.ne.s32.totalorder %s26, %s27
    %p38 = scmp.eq.s32.totalorder %s18, 0
    %p39 = por %p37, %p38
    %p40 = scmp.ne.s32.totalorder %s26, %s27
    %p41 = scmp.eq.s32.totalorder %s19, 1
    %p42 = por %p40, %p41
    %p44 = scmp.ne.s32.totalorder %s27, %s43
    %p45 = scmp.eq.s32.totalorder %s19, 0
    %p46 = por %p44, %p45
    %s48 = sadd.s32 %s47, 1
    %p51 = scmp.eq.s32.totalorder %s13, 1
    %p52 = scmp.ne.s32.totalorder %s47, %s49
    %p53 = scmp.eq.s32.totalorder %s13, 0
    %p54 = por %p52, %p53
    %p55 = scmp.ne.s32.totalorder %s47, %s49
    %p56 = scmp.eq.s32.totalorder %s18, 1
    %p57 = por %p55, %p56
    %p58 = scmp.ne.s32.totalorder %s49, %s50
    %p59 = scmp.eq.s32.totalorder %s18, 0
    %p60 = por %p58, %p59
    %p61 = scmp.ne.s32.totalorder %s49, %s50
    %p62 = scmp.eq.s32.totalorder %s19, 1
    %p63 = por %p61, %p62
    %p65 = scmp.ne.s32.totalorder %s50, %s64
    %p66 = scmp.eq.s32.totalorder %s19, 0
    %p67 = por %p65, %p66
    %s69 = sadd.s32 %s68, 1
    %p72 = scmp.eq.s32.totalorder %s13, 1
    %p73 = scmp.ne.s32.totalorder %s68, %s70
    %p74 = scmp.eq.s32.totalorder %s13, 0
    %p75 = por %p73, %p74
    %p76 = scmp.ne.s32.totalorder %s68, %s70
    %p77 = scmp.eq.s32.totalorder %s18, 1
    %p78 = por %p76, %p77
    %p79 = scmp.ne.s32.totalorder %s70, %s71
    %p80 = scmp.eq.s32.totalorder %s18, 0
    %p81 = por %p79, %p80
    %p82 = scmp.ne.s32.totalorder %s70, %s71
    %p83 = scmp.eq.s32.totalorder %s19, 1
    %p84 = por %p82, %p83
    %p86 = scmp.ne.s32.totalorder %s71, %s85
    %p87 = scmp.eq.s32.totalorder %s19, 0
    %p88 = por %p86, %p87
    %s90 = sadd.s32 %s89, 1
    %p93 = scmp.eq.s32.totalorder %s13, 1
    %p94 = scmp.ne.s32.totalorder %s89, %s91
    %p95 = scmp.eq.s32.totalorder %s13, 0
    %p96 = por %p94, %p95
    %p97 = scmp.ne.s32.totalorder %s89, %s91
    %p98 = scmp.eq.s32.totalorder %s18, 1
    %p99 = por %p97, %p98
    %p100 = scmp.ne.s32.totalorder %s91, %s92
    %p101 = scmp.eq.s32.totalorder %s18, 0
    %p102 = por %p100, %p101
    %p103 = scmp.ne.s32.totalorder %s91, %s92
    %p104 = scmp.eq.s32.totalorder %s19, 1
    %p105 = por %p103, %p104
    %p107 = scmp.ne.s32.totalorder %s92, %s106
    %p108 = scmp.eq.s32.totalorder %s19, 0
    %p109 = por %p107, %p108
    %s111 = sadd.s32 %s110, 1
    %p114 = scmp.eq.s32.totalorder %s13, 1
    %p115 = scmp.ne.s32.totalorder %s110, %s112
    %p116 = scmp.eq.s32.totalorder %s13, 0
    %p117 = por %p115, %p116
    %p118 = scmp.ne.s32.totalorder %s110, %s112
    %p119 = scmp.eq.s32.totalorder %s18, 1
    %p120 = por %p118, %p119
    %p121 = scmp.ne.s32.totalorder %s112, %s113
    %p122 = scmp.eq.s32.totalorder %s18, 0
    %p123 = por %p121, %p122
    %p124 = scmp.ne.s32.totalorder %s112, %s113
    %p125 = scmp.eq.s32.totalorder %s19, 1
    %p126 = por %p124, %p125
    %p128 = scmp.ne.s32.totalorder %s113, %s127
    %p129 = scmp.eq.s32.totalorder %s19, 0
    %p130 = por %p128, %p129
    %s132 = sadd.s32 %s131, 1
    %p135 = scmp.eq.s32.totalorder %s13, 1
    %p136 = scmp.ne.s32.totalorder %s131, %s133
    %p137 = scmp.eq.s32.totalorder %s13, 0
    %p138 = por %p136, %p137
    %p139 = scmp.ne.s32.totalorder %s131, %s133
    %p140 = scmp.eq.s32.totalorder %s18, 1
    %p141 = por %p139, %p140
    %p142 = scmp.ne.s32.totalorder %s133, %s134
    %p143 = scmp.eq.s32.totalorder %s18, 0
    %p144 = por %p142, %p143
    %p145 = scmp.ne.s32.totalorder %s133, %s134
    %p146 = scmp.eq.s32.totalorder %s19, 1
    %p147 = por %p145, %p146
    %p149 = scmp.ne.s32.totalorder %s134, %s148
    %p150 = scmp.eq.s32.totalorder %s19, 0
    %p151 = por %p149, %p150
    %s153 = sadd.s32 %s152, 1
    %p156 = scmp.eq.s32.totalorder %s13, 1
    %p157 = scmp.ne.s32.totalorder %s152, %s154
    %p158 = scmp.eq.s32.totalorder %s13, 0
    %p159 = por %p157, %p158
    %p160 = scmp.ne.s32.totalorder %s152, %s154
    %p161 = scmp.eq.s32.totalorder %s18, 1
    %p162 = por %p160, %p161
    %p163 = scmp.ne.s32.totalorder %s154, %s155
    %p164 = scmp.eq.s32.totalorder %s18, 0
    %p165 = por %p163, %p164
    %p166 = scmp.ne.s32.totalorder %s154, %s155
    %p167 = scmp.eq.s32.totalorder %s19, 1
    %p168 = por %p166, %p167
    %p170 = scmp.ne.s32.totalorder %s155, %s169
    %p171 = scmp.eq.s32.totalorder %s19, 0
    %p172 = por %p170, %p171
    %s173 = ssub.s32 %s13, %s20
    %p174 = scmp.eq.s32.totalorder %s173, 0
    %s176 = sadd.s32 %s175, 1
    %s177 = scalar_select %p174, %s175, %s176
    %p180 = pneg %p174
    %p181 = scmp.eq.s32.totalorder %s13, 1
    %p182 = por %p180, %p181
    %p183 = scmp.ne.s32.totalorder %s175, %s178
    %p184 = scmp.eq.s32.totalorder %s13, 0
    %p185 = por %p183, %p184
    %p186 = scmp.ne.s32.totalorder %s175, %s178
    %p187 = scmp.eq.s32.totalorder %s18, 1
    %p188 = por %p186, %p187
    %p189 = scmp.ne.s32.totalorder %s178, %s179
    %p190 = scmp.eq.s32.totalorder %s18, 0
    %p191 = por %p189, %p190
    %p192 = scmp.ne.s32.totalorder %s178, %s179
    %p193 = scmp.eq.s32.totalorder %s19, 1
    %p194 = por %p192, %p193
    %p196 = scmp.ne.s32.totalorder %s179, %s195
    %p197 = scmp.eq.s32.totalorder %s19, 0
    %p198 = por %p196, %p197
    %p199 = scmp.le.s32.totalorder 1, %s13
    %p200 = scmp.lt.s32.totalorder %s13, 3
    %p201 = pnand %p199, %p200
    %p202 = pneg %p201
    // Predicated region
    $region9: #{_lambda_.14} parent=5 // pred_check
      _
    $region10: #{_lambda_.14} parent=5 // pred_check_branch
      %204 = sbr.rel (%p201) target = $region12
    $region11: #{_lambda_.14} parent=5 // pred_region
      %s205 = ssub.s32 %s13, 1
      // Predicated region
      $region13: #{_lambda_.14} parent=11 // pred_check
        %p206 = pneg %p60
      $region14: #{_lambda_.14} parent=11 // pred_check_branch
        %208 = sbr.rel (%p206) target = $region16
      $region15: #{_lambda_.14} parent=11 // pred_region
        _
      $region16: #{_lambda_.14} parent=11 // pred_fallthru
        _
      // Predicated region
      $region17: #{_lambda_.14} parent=11 // pred_check
        %p209 = pneg %p81
      $region18: #{_lambda_.14} parent=11 // pred_check_branch
        %211 = sbr.rel (%p209) target = $region20
      $region19: #{_lambda_.14} parent=11 // pred_region
        _
      $region20: #{_lambda_.14} parent=11 // pred_fallthru
        _
      // Predicated region
      $region21: #{_lambda_.14} parent=11 // pred_check
        %p212 = pneg %p102
      $region22: #{_lambda_.14} parent=11 // pred_check_branch
        %214 = sbr.rel (%p212) target = $region24
      $region23: #{_lambda_.14} parent=11 // pred_region
        _
      $region24: #{_lambda_.14} parent=11 // pred_fallthru
        _
      // Predicated region
      $region25: #{_lambda_.14} parent=11 // pred_check
        %p215 = pneg %p123
      $region26: #{_lambda_.14} parent=11 // pred_check_branch
        %217 = sbr.rel (%p215) target = $region28
      $region27: #{_lambda_.14} parent=11 // pred_region
        _
      $region28: #{_lambda_.14} parent=11 // pred_fallthru
        _
      // Predicated region
      $region29: #{_lambda_.14} parent=11 // pred_check
        %p218 = pneg %p144
      $region30: #{_lambda_.14} parent=11 // pred_check_branch
        %220 = sbr.rel (%p218) target = $region32
      $region31: #{_lambda_.14} parent=11 // pred_region
        _
      $region32: #{_lambda_.14} parent=11 // pred_fallthru
        _
      // Predicated region
      $region33: #{_lambda_.14} parent=11 // pred_check
        %p221 = pneg %p165
      $region34: #{_lambda_.14} parent=11 // pred_check_branch
        %223 = sbr.rel (%p221) target = $region36
      $region35: #{_lambda_.14} parent=11 // pred_region
        _
      $region36: #{_lambda_.14} parent=11 // pred_fallthru
        _
    $region12: #{_lambda_.14} parent=5 // pred_fallthru
      _
    %p224 = scmp.lt.s32.totalorder %s13, 2
    // Predicated region
    $region37: #{_lambda_.14} parent=5 // pred_check
      %p225 = pneg %p224
    $region38: #{_lambda_.14} parent=5 // pred_check_branch
      %227 = sbr.rel (%p225) target = $region40
    $region39: #{_lambda_.14} parent=5 // pred_region
      // Predicated region
      $region41: #{_lambda_.14} parent=39 // pred_check
        %p228 = pneg %p33
      $region42: #{_lambda_.14} parent=39 // pred_check_branch
        %230 = sbr.rel (%p228) target = $region44
      $region43: #{_lambda_.14} parent=39 // pred_region
        %p231 = scmp.lt.s32.totalorder %s13, 1
        %s232 = scalar_select %p231, %s13, 1
        %s233 = smul.addr %s232, 2
        %s234 = smul.addr %s233, 4
        %s235 = scalar_lea.vmem %s0, %s234
      $region44: #{_lambda_.14} parent=39 // pred_fallthru
        _
    $region40: #{_lambda_.14} parent=5 // pred_fallthru
      _
    %p236 = scmp.le.s32.totalorder 1, %s13
    %p237 = scmp.lt.s32.totalorder %s13, 3
    %p238 = pnand %p236, %p237
    %p239 = pneg %p238
    // Predicated region
    $region45: #{_lambda_.14} parent=5 // pred_check
      _
    $region46: #{_lambda_.14} parent=5 // pred_check_branch
      %241 = sbr.rel (%p238) target = $region48
    $region47: #{_lambda_.14} parent=5 // pred_region
      %s242 = ssub.s32 %s13, 1
      %p243 = scmp.lt.s32.totalorder %s18, 1
      %s244 = scalar_select %p243, %s18, 1
      %s245 = smul.addr %s244, 2
      %s246 = smul.addr %s245, 4
      %s247 = scalar_lea.vmem %s0, %s246
      %p248 = pneg %p39
      %p249 = pneg %p36
      %p250 = pneg %p60
      %p251 = pneg %p57
      %p252 = pneg %p81
      %p253 = pneg %p78
      %p254 = pneg %p102
      %p255 = pneg %p99
      %p256 = pneg %p123
      %p257 = pneg %p120
      %p258 = pneg %p144
      %p259 = pneg %p141
      %p260 = pneg %p165
      %p261 = pneg %p162
      %p262 = pneg %p191
      %p263 = pneg %p188
      %p264 = scmp.lt.s32.totalorder %s18, 1
      %s265 = scalar_select %p264, %s18, 1
      %s266 = smul.addr %s265, 4
      %s267 = scalar_lea.vmem %s7, %s266
      %p268 = scmp.lt.s32.totalorder %s18, 1
      %s269 = scalar_select %p268, %s18, 1
      %s270 = smul.addr %s269, 2
      %s271 = smul.addr %s270, 4
      %s272 = scalar_lea.vmem %s0, %s271
      %p273 = scmp.lt.s32.totalorder %s18, 1
      %s274 = scalar_select %p273, %s18, 1
      %s275 = smul.addr %s274, 4
      %s276 = scalar_lea.vmem %s7, %s275
      %v278 = vld [vmem:[%s272] sm:$0xf]
      %v279 = vld [vmem:[%s1] sm:$0xf]
      %v280 = vld [vmem:[%s1 + $0x4] sm:$0xf]
      %v281 = vld [vmem:[%s1 + $0x8] sm:$0xf]
      %v282 = vld [vmem:[%s1 + $0xc] sm:$0xf]
      %v283 = vld [vmem:[%s1 + $0x10] sm:$0xf]
      %v284 = vld [vmem:[%s1 + $0x14] sm:$0xf]
      %v285 = vld [vmem:[%s1 + $0x18] sm:$0xf]
      %v286 = vld [vmem:[%s1 + $0x1c] sm:$0xf]
      %v287 = vld [vmem:[%s1 + $0x20] sm:$0xf]
      %v288 = vld [vmem:[%s1 + $0x24] sm:$0xf]
      %v289 = vld [vmem:[%s1 + $0x28] sm:$0xf]
      %v290 = vld [vmem:[%s1 + $0x2c] sm:$0xf]
      %v291 = vld [vmem:[%s1 + $0x30] sm:$0xf]
      %v292 = vld [vmem:[%s1 + $0x34] sm:$0xf]
      %v293 = vld [vmem:[%s1 + $0x38] sm:$0xf]
      %v294 = vld [vmem:[%s1 + $0x3c] sm:$0xf]
      %v295 = vld [vmem:[%s272 + $0x4] sm:$0x1]
      %s296 = scalar_lea.vmem %s1, 64
      %v297 = vld [vmem:[%s296] sm:$0xf]
      %v298 = vld [vmem:[%s296 + $0x4] sm:$0xf]
      %v299 = vld [vmem:[%s296 + $0x8] sm:$0xf]
      %v300 = vld [vmem:[%s296 + $0xc] sm:$0xf]
      %v301 = vld [vmem:[%s296 + $0x10] sm:$0xf]
      %v302 = vld [vmem:[%s296 + $0x14] sm:$0xf]
      %v303 = vld [vmem:[%s296 + $0x18] sm:$0xf]
      %v304 = vld [vmem:[%s296 + $0x1c] sm:$0xf]
      %v305 = vld [vmem:[%s296 + $0x20] sm:$0xf]
      %v306 = vld [vmem:[%s296 + $0x24] sm:$0xf]
      %v307 = vld [vmem:[%s296 + $0x28] sm:$0xf]
      %v308 = vld [vmem:[%s296 + $0x2c] sm:$0xf]
      %v309 = vld [vmem:[%s296 + $0x30] sm:$0xf]
      %v310 = vld [vmem:[%s296 + $0x34] sm:$0xf]
      %v311 = vld [vmem:[%s296 + $0x38] sm:$0xf]
      %v312 = vld [vmem:[%s296 + $0x3c] sm:$0xf]
      %v315 = vunpack.c.l.b16 %v278
      %v316 = vunpack.c.l.b16 %v295
      %v317 = vpack.c.b16 %v316, %v315
      %v319 = vshrl.u32 %v317, 16
      %v321 = vshll.u32 %v317, 16
      %v323 = vrot.slane %v321, 1
      %v324 = vor.u32 %v319, %v323
      %v342 = vunpack.c.l.b16 %v297
      %v343 = vunpack.c.l.b16 %v298
      %v344 = vunpack.c.l.b16 %v299
      %v345 = vunpack.c.l.b16 %v300
      %v346 = vunpack.c.l.b16 %v301
      %v347 = vunpack.c.l.b16 %v302
      %v348 = vunpack.c.l.b16 %v303
      %v349 = vunpack.c.l.b16 %v304
      %v350 = vunpack.c.l.b16 %v305
      %v351 = vunpack.c.l.b16 %v306
      %v352 = vunpack.c.l.b16 %v307
      %v353 = vunpack.c.l.b16 %v308
      %v354 = vunpack.c.l.b16 %v309
      %v355 = vunpack.c.l.b16 %v310
      %v356 = vunpack.c.l.b16 %v311
      %v357 = vunpack.c.l.b16 %v312
      %v358 = vpack.c.b16 %v343, %v342
      %v359 = vpack.c.b16 %v345, %v344
      %v360 = vpack.c.b16 %v347, %v346
      %v361 = vpack.c.b16 %v349, %v348
      %v362 = vpack.c.b16 %v351, %v350
      %v363 = vpack.c.b16 %v353, %v352
      %v364 = vpack.c.b16 %v355, %v354
      %v365 = vpack.c.b16 %v357, %v356
      %374 = vmatprep.subr.bf16.mxu0 0
      %375 = vmatpush1.bf16.msra.mxu0 %v358
      %376 = vmatprep.subr.bf16.mxu0 0
      %377 = vmatpush1.bf16.msra.mxu0 %v359
      %378 = vmatprep.subr.bf16.mxu0 0
      %379 = vmatpush1.bf16.msra.mxu0 %v360
      %380 = vmatprep.subr.bf16.mxu0 0
      %381 = vmatpush1.bf16.msra.mxu0 %v361
      %382 = vmatprep.subr.bf16.mxu0 0
      %383 = vmatpush1.bf16.msra.mxu0 %v362
      %384 = vmatprep.subr.bf16.mxu0 0
      %385 = vmatpush1.bf16.msra.mxu0 %v363
      %386 = vmatprep.subr.bf16.mxu0 0
      %387 = vmatpush1.bf16.msra.mxu0 %v364
      %388 = vmatprep.subr.bf16.mxu0 0
      %389 = vmatpush1.bf16.msra.mxu0 %v365
      %390 = vmatprep.subr.bf16.mxu0 0
      %391 = vmatpush1.bf16.msra.mxu0 0
      %392 = vmatprep.subr.bf16.mxu0 0
      %393 = vmatpush1.bf16.msra.mxu0 0
      %394 = vmatprep.subr.bf16.mxu0 0
      %395 = vmatpush1.bf16.msra.mxu0 0
      %396 = vmatprep.subr.bf16.mxu0 0
      %397 = vmatpush1.bf16.msra.mxu0 0
      %398 = vmatprep.subr.bf16.mxu0 0
      %399 = vmatpush1.bf16.msra.mxu0 0
      %400 = vmatprep.subr.bf16.mxu0 0
      %401 = vmatpush1.bf16.msra.mxu0 0
      %402 = vmatprep.subr.bf16.mxu0 0
      %403 = vmatpush1.bf16.msra.mxu0 0
      %404 = vmatprep.subr.bf16.mxu0 0
      %405 = vmatpush1.bf16.msra.mxu0 0
      %406 = vmatprep.mubr.bf16.mxu0 0
      %407 = vmatmul.mubr.bf16.gmra.mrb[0].mxu0 %v324
      %v408 = vpop.f32.mrb[0].mxu0
      %v409 = vadd.f32 0.0, %v408
      %v410 = vpop.f32.mrb[0].mxu0
      %v411 = vpop.f32.mrb[0].mxu0
      %v412 = vpop.f32.mrb[0].mxu0
      %413 = vdwg.mxu0
      %v430 = vunpack.c.l.b16 %v279
      %v431 = vunpack.c.l.b16 %v280
      %v432 = vunpack.c.l.b16 %v281
      %v433 = vunpack.c.l.b16 %v282
      %v434 = vunpack.c.l.b16 %v283
      %v435 = vunpack.c.l.b16 %v284
      %v436 = vunpack.c.l.b16 %v285
      %v437 = vunpack.c.l.b16 %v286
      %v438 = vunpack.c.l.b16 %v287
      %v439 = vunpack.c.l.b16 %v288
      %v440 = vunpack.c.l.b16 %v289
      %v441 = vunpack.c.l.b16 %v290
      %v442 = vunpack.c.l.b16 %v291
      %v443 = vunpack.c.l.b16 %v292
      %v444 = vunpack.c.l.b16 %v293
      %v445 = vunpack.c.l.b16 %v294
      %v446 = vpack.c.b16 %v431, %v430
      %v447 = vpack.c.b16 %v433, %v432
      %v448 = vpack.c.b16 %v435, %v434
      %v449 = vpack.c.b16 %v437, %v436
      %v450 = vpack.c.b16 %v439, %v438
      %v451 = vpack.c.b16 %v441, %v440
      %v452 = vpack.c.b16 %v443, %v442
      %v453 = vpack.c.b16 %v445, %v444
      %462 = vmatprep.subr.bf16.mxu0 0
      %463 = vmatpush1.bf16.msra.mxu0 %v446
      %464 = vmatprep.subr.bf16.mxu0 0
      %465 = vmatpush1.bf16.msra.mxu0 %v447
      %466 = vmatprep.subr.bf16.mxu0 0
      %467 = vmatpush1.bf16.msra.mxu0 %v448
      %468 = vmatprep.subr.bf16.mxu0 0
      %469 = vmatpush1.bf16.msra.mxu0 %v449
      %470 = vmatprep.subr.bf16.mxu0 0
      %471 = vmatpush1.bf16.msra.mxu0 %v450
      %472 = vmatprep.subr.bf16.mxu0 0
      %473 = vmatpush1.bf16.msra.mxu0 %v451
      %474 = vmatprep.subr.bf16.mxu0 0
      %475 = vmatpush1.bf16.msra.mxu0 %v452
      %476 = vmatprep.subr.bf16.mxu0 0
      %477 = vmatpush1.bf16.msra.mxu0 %v453
      %478 = vmatprep.subr.bf16.mxu0 0
      %479 = vmatpush1.bf16.msra.mxu0 0
      %480 = vmatprep.subr.bf16.mxu0 0
      %481 = vmatpush1.bf16.msra.mxu0 0
      %482 = vmatprep.subr.bf16.mxu0 0
      %483 = vmatpush1.bf16.msra.mxu0 0
      %484 = vmatprep.subr.bf16.mxu0 0
      %485 = vmatpush1.bf16.msra.mxu0 0
      %486 = vmatprep.subr.bf16.mxu0 0
      %487 = vmatpush1.bf16.msra.mxu0 0
      %488 = vmatprep.subr.bf16.mxu0 0
      %489 = vmatpush1.bf16.msra.mxu0 0
      %490 = vmatprep.subr.bf16.mxu0 0
      %491 = vmatpush1.bf16.msra.mxu0 0
      %492 = vmatprep.subr.bf16.mxu0 0
      %493 = vmatpush1.bf16.msra.mxu0 0
      %494 = vmatprep.mubr.bf16.mxu0 0
      %495 = vmatmul.mubr.bf16.gmra.mrb[0].mxu0 %v278
      %v496 = vpop.f32.mrb[0].mxu0
      %v497 = vadd.f32 %v409, %v496
      %v498 = vpop.f32.mrb[0].mxu0
      %v499 = vpop.f32.mrb[0].mxu0
      %v500 = vpop.f32.mrb[0].mxu0
      %501 = vdwg.mxu0
      %v502 = vld [vmem:[%s272] sm:$0xe]
      %s503 = scalar_lea.vmem %s1, 128
      %v504 = vld [vmem:[%s503] sm:$0xf]
      %v505 = vld [vmem:[%s503 + $0x4] sm:$0xf]
      %v506 = vld [vmem:[%s503 + $0x8] sm:$0xf]
      %v507 = vld [vmem:[%s503 + $0xc] sm:$0xf]
      %v508 = vld [vmem:[%s503 + $0x10] sm:$0xf]
      %v509 = vld [vmem:[%s503 + $0x14] sm:$0xf]
      %v510 = vld [vmem:[%s503 + $0x18] sm:$0xf]
      %v511 = vld [vmem:[%s503 + $0x1c] sm:$0xf]
      %v512 = vld [vmem:[%s503 + $0x20] sm:$0xf]
      %v513 = vld [vmem:[%s503 + $0x24] sm:$0xf]
      %v514 = vld [vmem:[%s503 + $0x28] sm:$0xf]
      %v515 = vld [vmem:[%s503 + $0x2c] sm:$0xf]
      %v516 = vld [vmem:[%s503 + $0x30] sm:$0xf]
      %v517 = vld [vmem:[%s503 + $0x34] sm:$0xf]
      %v518 = vld [vmem:[%s503 + $0x38] sm:$0xf]
      %v519 = vld [vmem:[%s503 + $0x3c] sm:$0xf]
      %v521 = vunpack.c.l.b16 %v502
      %v522 = vpack.c.b16 %v316, %v521
      %v523 = vrot.slane %v522, 1
      %v541 = vunpack.c.l.b16 %v504
      %v542 = vunpack.c.l.b16 %v505
      %v543 = vunpack.c.l.b16 %v506
      %v544 = vunpack.c.l.b16 %v507
      %v545 = vunpack.c.l.b16 %v508
      %v546 = vunpack.c.l.b16 %v509
      %v547 = vunpack.c.l.b16 %v510
      %v548 = vunpack.c.l.b16 %v511
      %v549 = vunpack.c.l.b16 %v512
      %v550 = vunpack.c.l.b16 %v513
      %v551 = vunpack.c.l.b16 %v514
      %v552 = vunpack.c.l.b16 %v515
      %v553 = vunpack.c.l.b16 %v516
      %v554 = vunpack.c.l.b16 %v517
      %v555 = vunpack.c.l.b16 %v518
      %v556 = vunpack.c.l.b16 %v519
      %v557 = vpack.c.b16 %v542, %v541
      %v558 = vpack.c.b16 %v544, %v543
      %v559 = vpack.c.b16 %v546, %v545
      %v560 = vpack.c.b16 %v548, %v547
      %v561 = vpack.c.b16 %v550, %v549
      %v562 = vpack.c.b16 %v552, %v551
      %v563 = vpack.c.b16 %v554, %v553
      %v564 = vpack.c.b16 %v556, %v555
      %573 = vmatprep.subr.bf16.mxu0 0
      %574 = vmatpush1.bf16.msra.mxu0 %v557
      %575 = vmatprep.subr.bf16.mxu0 0
      %576 = vmatpush1.bf16.msra.mxu0 %v558
      %577 = vmatprep.subr.bf16.mxu0 0
      %578 = vmatpush1.bf16.msra.mxu0 %v559
      %579 = vmatprep.subr.bf16.mxu0 0
      %580 = vmatpush1.bf16.msra.mxu0 %v560
      %581 = vmatprep.subr.bf16.mxu0 0
      %582 = vmatpush1.bf16.msra.mxu0 %v561
      %583 = vmatprep.subr.bf16.mxu0 0
      %584 = vmatpush1.bf16.msra.mxu0 %v562
      %585 = vmatprep.subr.bf16.mxu0 0
      %586 = vmatpush1.bf16.msra.mxu0 %v563
      %587 = vmatprep.subr.bf16.mxu0 0
      %588 = vmatpush1.bf16.msra.mxu0 %v564
      %589 = vmatprep.subr.bf16.mxu0 0
      %590 = vmatpush1.bf16.msra.mxu0 0
      %591 = vmatprep.subr.bf16.mxu0 0
      %592 = vmatpush1.bf16.msra.mxu0 0
      %593 = vmatprep.subr.bf16.mxu0 0
      %594 = vmatpush1.bf16.msra.mxu0 0
      %595 = vmatprep.subr.bf16.mxu0 0
      %596 = vmatpush1.bf16.msra.mxu0 0
      %597 = vmatprep.subr.bf16.mxu0 0
      %598 = vmatpush1.bf16.msra.mxu0 0
      %599 = vmatprep.subr.bf16.mxu0 0
      %600 = vmatpush1.bf16.msra.mxu0 0
      %601 = vmatprep.subr.bf16.mxu0 0
      %602 = vmatpush1.bf16.msra.mxu0 0
      %603 = vmatprep.subr.bf16.mxu0 0
      %604 = vmatpush1.bf16.msra.mxu0 0
      %605 = vmatprep.mubr.bf16.mxu0 0
      %606 = vmatmul.mubr.bf16.gmra.mrb[0].mxu0 %v523
      %v607 = vpop.f32.mrb[0].mxu0
      %v608 = vadd.f32 0.0, %v607
      %v609 = vpop.f32.mrb[0].mxu0
      %v610 = vpop.f32.mrb[0].mxu0
      %v611 = vpop.f32.mrb[0].mxu0
      %612 = vdwg.mxu0
      %v613 = vadd.f32 %v497, %v608
      %v614 = vld [vmem:[%s2] sm:$0x1]
      %v616 = vlaneseq
      %v617 = vshrl.u32 %v616, 7
      %v618 = vsub.s32 0, %v617
      %v619 = vrot.slane %v614, %v618
      %v621 = vmul.f32 %v613, %v619
      %v622 = vld [vmem:[%s3] sm:$0x1]
      %v624 = vlaneseq
      %v625 = vshrl.u32 %v624, 7
      %v626 = vsub.s32 0, %v625
      %v627 = vrot.slane %v622, %v626
      %v629 = vadd.f32 %v621, %v627
      %v630 = vmax.f32 %v629, 0.0
      %631 = vst [vmem:[#allocation2] sm:$0xf] 0
      %632 = vst [vmem:[#allocation2 + $0x4] sm:$0xf] 0
      %633 = vst [vmem:[#allocation2 + $0x8] sm:$0xf] 0
      %634 = vst [vmem:[#allocation2 + $0xc] sm:$0xf] 0
      %635 = vst [vmem:[#allocation2 + $0x10] sm:$0xf] 0
      %v636 = vpack.c.bf16 %v630, %v630
      %637 = vst [vmem:[#allocation2 + $0x8] sm:$0xf] %v636
      %v638 = vld [vmem:[#allocation2 + $0x4] sm:$0x8]
      %v639 = vld [vmem:[#allocation2 + $0x8] sm:$0xf]
      %v640 = vld [vmem:[%s4] sm:$0xf]
      %v641 = vld [vmem:[%s4 + $0x4] sm:$0xf]
      %v642 = vld [vmem:[%s4 + $0x8] sm:$0xf]
      %v643 = vld [vmem:[%s4 + $0xc] sm:$0xf]
      %v644 = vld [vmem:[%s4 + $0x10] sm:$0xf]
      %v645 = vld [vmem:[%s4 + $0x14] sm:$0xf]
      %v646 = vld [vmem:[%s4 + $0x18] sm:$0xf]
      %v647 = vld [vmem:[%s4 + $0x1c] sm:$0xf]
      %v648 = vld [vmem:[%s4 + $0x20] sm:$0xf]
      %v649 = vld [vmem:[%s4 + $0x24] sm:$0xf]
      %v650 = vld [vmem:[%s4 + $0x28] sm:$0xf]
      %v651 = vld [vmem:[%s4 + $0x2c] sm:$0xf]
      %v652 = vld [vmem:[%s4 + $0x30] sm:$0xf]
      %v653 = vld [vmem:[%s4 + $0x34] sm:$0xf]
      %v654 = vld [vmem:[%s4 + $0x38] sm:$0xf]
      %v655 = vld [vmem:[%s4 + $0x3c] sm:$0xf]
      %s656 = scalar_lea.vmem %s4, 64
      %v657 = vld [vmem:[%s656] sm:$0xf]
      %v658 = vld [vmem:[%s656 + $0x4] sm:$0xf]
      %v659 = vld [vmem:[%s656 + $0x8] sm:$0xf]
      %v660 = vld [vmem:[%s656 + $0xc] sm:$0xf]
      %v661 = vld [vmem:[%s656 + $0x10] sm:$0xf]
      %v662 = vld [vmem:[%s656 + $0x14] sm:$0xf]
      %v663 = vld [vmem:[%s656 + $0x18] sm:$0xf]
      %v664 = vld [vmem:[%s656 + $0x1c] sm:$0xf]
      %v665 = vld [vmem:[%s656 + $0x20] sm:$0xf]
      %v666 = vld [vmem:[%s656 + $0x24] sm:$0xf]
      %v667 = vld [vmem:[%s656 + $0x28] sm:$0xf]
      %v668 = vld [vmem:[%s656 + $0x2c] sm:$0xf]
      %v669 = vld [vmem:[%s656 + $0x30] sm:$0xf]
      %v670 = vld [vmem:[%s656 + $0x34] sm:$0xf]
      %v671 = vld [vmem:[%s656 + $0x38] sm:$0xf]
      %v672 = vld [vmem:[%s656 + $0x3c] sm:$0xf]
      %v689 = vunpack.c.l.b16 %v657
      %v690 = vunpack.c.l.b16 %v658
      %v691 = vunpack.c.l.b16 %v659
      %v692 = vunpack.c.l.b16 %v660
      %v693 = vunpack.c.l.b16 %v661
      %v694 = vunpack.c.l.b16 %v662
      %v695 = vunpack.c.l.b16 %v663
      %v696 = vunpack.c.l.b16 %v664
      %v697 = vunpack.c.l.b16 %v665
      %v698 = vunpack.c.l.b16 %v666
      %v699 = vunpack.c.l.b16 %v667
      %v700 = vunpack.c.l.b16 %v668
      %v701 = vunpack.c.l.b16 %v669
      %v702 = vunpack.c.l.b16 %v670
      %v703 = vunpack.c.l.b16 %v671
      %v704 = vunpack.c.l.b16 %v672
      %v705 = vpack.c.b16 %v690, %v689
      %v706 = vpack.c.b16 %v692, %v691
      %v707 = vpack.c.b16 %v694, %v693
      %v708 = vpack.c.b16 %v696, %v695
      %v709 = vpack.c.b16 %v698, %v697
      %v710 = vpack.c.b16 %v700, %v699
      %v711 = vpack.c.b16 %v702, %v701
      %v712 = vpack.c.b16 %v704, %v703
      %721 = vmatprep.subr.bf16.mxu0 0
      %722 = vmatpush1.bf16.msra.mxu0 %v705
      %723 = vmatprep.subr.bf16.mxu0 0
      %724 = vmatpush1.bf16.msra.mxu0 %v706
      %725 = vmatprep.subr.bf16.mxu0 0
      %726 = vmatpush1.bf16.msra.mxu0 %v707
      %727 = vmatprep.subr.bf16.mxu0 0
      %728 = vmatpush1.bf16.msra.mxu0 %v708
      %729 = vmatprep.subr.bf16.mxu0 0
      %730 = vmatpush1.bf16.msra.mxu0 %v709
      %731 = vmatprep.subr.bf16.mxu0 0
      %732 = vmatpush1.bf16.msra.mxu0 %v710
      %733 = vmatprep.subr.bf16.mxu0 0
      %734 = vmatpush1.bf16.msra.mxu0 %v711
      %735 = vmatprep.subr.bf16.mxu0 0
      %736 = vmatpush1.bf16.msra.mxu0 %v712
      %737 = vmatprep.subr.bf16.mxu0 0
      %738 = vmatpush1.bf16.msra.mxu0 0
      %739 = vmatprep.subr.bf16.mxu0 0
      %740 = vmatpush1.bf16.msra.mxu0 0
      %741 = vmatprep.subr.bf16.mxu0 0
      %742 = vmatpush1.bf16.msra.mxu0 0
      %743 = vmatprep.subr.bf16.mxu0 0
      %744 = vmatpush1.bf16.msra.mxu0 0
      %745 = vmatprep.subr.bf16.mxu0 0
      %746 = vmatpush1.bf16.msra.mxu0 0
      %747 = vmatprep.subr.bf16.mxu0 0
      %748 = vmatpush1.bf16.msra.mxu0 0
      %749 = vmatprep.subr.bf16.mxu0 0
      %750 = vmatpush1.bf16.msra.mxu0 0
      %751 = vmatprep.subr.bf16.mxu0 0
      %752 = vmatpush1.bf16.msra.mxu0 0
      %753 = vmatprep.mubr.bf16.mxu0 0
      %754 = vmatmul.mubr.bf16.gmra.mrb[0].mxu0 %v639
      %v755 = vpop.f32.mrb[0].mxu0
      %v756 = vadd.f32 0.0, %v755
      %v757 = vpop.f32.mrb[0].mxu0
      %v758 = vpop.f32.mrb[0].mxu0
      %v759 = vpop.f32.mrb[0].mxu0
      %760 = vdwg.mxu0
      %v763 = vunpack.c.l.b16 %v638
      %v764 = vunpack.c.l.b16 %v639
      %v765 = vpack.c.b16 %v764, %v763
      %v767 = vshrl.u32 %v765, 16
      %v769 = vrot.slane %v767, 3
      %v770 = vshll.u32 %v765, 16
      %v772 = vrot.slane %v770, 4
      %v773 = vor.u32 %v769, %v772
      %v791 = vunpack.c.l.b16 %v640
      %v792 = vunpack.c.l.b16 %v641
      %v793 = vunpack.c.l.b16 %v642
      %v794 = vunpack.c.l.b16 %v643
      %v795 = vunpack.c.l.b16 %v644
      %v796 = vunpack.c.l.b16 %v645
      %v797 = vunpack.c.l.b16 %v646
      %v798 = vunpack.c.l.b16 %v647
      %v799 = vunpack.c.l.b16 %v648
      %v800 = vunpack.c.l.b16 %v649
      %v801 = vunpack.c.l.b16 %v650
      %v802 = vunpack.c.l.b16 %v651
      %v803 = vunpack.c.l.b16 %v652
      %v804 = vunpack.c.l.b16 %v653
      %v805 = vunpack.c.l.b16 %v654
      %v806 = vunpack.c.l.b16 %v655
      %v807 = vpack.c.b16 %v792, %v791
      %v808 = vpack.c.b16 %v794, %v793
      %v809 = vpack.c.b16 %v796, %v795
      %v810 = vpack.c.b16 %v798, %v797
      %v811 = vpack.c.b16 %v800, %v799
      %v812 = vpack.c.b16 %v802, %v801
      %v813 = vpack.c.b16 %v804, %v803
      %v814 = vpack.c.b16 %v806, %v805
      %823 = vmatprep.subr.bf16.mxu0 0
      %824 = vmatpush1.bf16.msra.mxu0 %v807
      %825 = vmatprep.subr.bf16.mxu0 0
      %826 = vmatpush1.bf16.msra.mxu0 %v808
      %827 = vmatprep.subr.bf16.mxu0 0
      %828 = vmatpush1.bf16.msra.mxu0 %v809
      %829 = vmatprep.subr.bf16.mxu0 0
      %830 = vmatpush1.bf16.msra.mxu0 %v810
      %831 = vmatprep.subr.bf16.mxu0 0
      %832 = vmatpush1.bf16.msra.mxu0 %v811
      %833 = vmatprep.subr.bf16.mxu0 0
      %834 = vmatpush1.bf16.msra.mxu0 %v812
      %835 = vmatprep.subr.bf16.mxu0 0
      %836 = vmatpush1.bf16.msra.mxu0 %v813
      %837 = vmatprep.subr.bf16.mxu0 0
      %838 = vmatpush1.bf16.msra.mxu0 %v814
      %839 = vmatprep.subr.bf16.mxu0 0
      %840 = vmatpush1.bf16.msra.mxu0 0
      %841 = vmatprep.subr.bf16.mxu0 0
      %842 = vmatpush1.bf16.msra.mxu0 0
      %843 = vmatprep.subr.bf16.mxu0 0
      %844 = vmatpush1.bf16.msra.mxu0 0
      %845 = vmatprep.subr.bf16.mxu0 0
      %846 = vmatpush1.bf16.msra.mxu0 0
      %847 = vmatprep.subr.bf16.mxu0 0
      %848 = vmatpush1.bf16.msra.mxu0 0
      %849 = vmatprep.subr.bf16.mxu0 0
      %850 = vmatpush1.bf16.msra.mxu0 0
      %851 = vmatprep.subr.bf16.mxu0 0
      %852 = vmatpush1.bf16.msra.mxu0 0
      %853 = vmatprep.subr.bf16.mxu0 0
      %854 = vmatpush1.bf16.msra.mxu0 0
      %855 = vmatprep.mubr.bf16.mxu0 0
      %856 = vmatmul.mubr.bf16.gmra.mrb[0].mxu0 %v773
      %v857 = vpop.f32.mrb[0].mxu0
      %v858 = vadd.f32 %v756, %v857
      %v859 = vpop.f32.mrb[0].mxu0
      %v860 = vpop.f32.mrb[0].mxu0
      %v861 = vpop.f32.mrb[0].mxu0
      %862 = vdwg.mxu0
      %v863 = vld [vmem:[#allocation2 + $0x8] sm:$0xf]
      %v864 = vld [vmem:[#allocation2 + $0xc] sm:$0x1]
      %s865 = scalar_lea.vmem %s4, 128
      %v866 = vld [vmem:[%s865] sm:$0xf]
      %v867 = vld [vmem:[%s865 + $0x4] sm:$0xf]
      %v868 = vld [vmem:[%s865 + $0x8] sm:$0xf]
      %v869 = vld [vmem:[%s865 + $0xc] sm:$0xf]
      %v870 = vld [vmem:[%s865 + $0x10] sm:$0xf]
      %v871 = vld [vmem:[%s865 + $0x14] sm:$0xf]
      %v872 = vld [vmem:[%s865 + $0x18] sm:$0xf]
      %v873 = vld [vmem:[%s865 + $0x1c] sm:$0xf]
      %v874 = vld [vmem:[%s865 + $0x20] sm:$0xf]
      %v875 = vld [vmem:[%s865 + $0x24] sm:$0xf]
      %v876 = vld [vmem:[%s865 + $0x28] sm:$0xf]
      %v877 = vld [vmem:[%s865 + $0x2c] sm:$0xf]
      %v878 = vld [vmem:[%s865 + $0x30] sm:$0xf]
      %v879 = vld [vmem:[%s865 + $0x34] sm:$0xf]
      %v880 = vld [vmem:[%s865 + $0x38] sm:$0xf]
      %v881 = vld [vmem:[%s865 + $0x3c] sm:$0xf]
      %v884 = vunpack.c.l.b16 %v863
      %v885 = vunpack.c.l.b16 %v864
      %v886 = vpack.c.b16 %v885, %v884
      %v888 = vshrl.u32 %v886, 16
      %v890 = vshll.u32 %v886, 16
      %v892 = vrot.slane %v890, 1
      %v893 = vor.u32 %v888, %v892
      %v911 = vunpack.c.l.b16 %v866
      %v912 = vunpack.c.l.b16 %v867
      %v913 = vunpack.c.l.b16 %v868
      %v914 = vunpack.c.l.b16 %v869
      %v915 = vunpack.c.l.b16 %v870
      %v916 = vunpack.c.l.b16 %v871
      %v917 = vunpack.c.l.b16 %v872
      %v918 = vunpack.c.l.b16 %v873
      %v919 = vunpack.c.l.b16 %v874
      %v920 = vunpack.c.l.b16 %v875
      %v921 = vunpack.c.l.b16 %v876
      %v922 = vunpack.c.l.b16 %v877
      %v923 = vunpack.c.l.b16 %v878
      %v924 = vunpack.c.l.b16 %v879
      %v925 = vunpack.c.l.b16 %v880
      %v926 = vunpack.c.l.b16 %v881
      %v927 = vpack.c.b16 %v912, %v911
      %v928 = vpack.c.b16 %v914, %v913
      %v929 = vpack.c.b16 %v916, %v915
      %v930 = vpack.c.b16 %v918, %v917
      %v931 = vpack.c.b16 %v920, %v919
      %v932 = vpack.c.b16 %v922, %v921
      %v933 = vpack.c.b16 %v924, %v923
      %v934 = vpack.c.b16 %v926, %v925
      %943 = vmatprep.subr.bf16.mxu0 0
      %944 = vmatpush1.bf16.msra.mxu0 %v927
      %945 = vmatprep.subr.bf16.mxu0 0
      %946 = vmatpush1.bf16.msra.mxu0 %v928
      %947 = vmatprep.subr.bf16.mxu0 0
      %948 = vmatpush1.bf16.msra.mxu0 %v929
      %949 = vmatprep.subr.bf16.mxu0 0
      %950 = vmatpush1.bf16.msra.mxu0 %v930
      %951 = vmatprep.subr.bf16.mxu0 0
      %952 = vmatpush1.bf16.msra.mxu0 %v931
      %953 = vmatprep.subr.bf16.mxu0 0
      %954 = vmatpush1.bf16.msra.mxu0 %v932
      %955 = vmatprep.subr.bf16.mxu0 0
      %956 = vmatpush1.bf16.msra.mxu0 %v933
      %957 = vmatprep.subr.bf16.mxu0 0
      %958 = vmatpush1.bf16.msra.mxu0 %v934
      %959 = vmatprep.subr.bf16.mxu0 0
      %960 = vmatpush1.bf16.msra.mxu0 0
      %961 = vmatprep.subr.bf16.mxu0 0
      %962 = vmatpush1.bf16.msra.mxu0 0
      %963 = vmatprep.subr.bf16.mxu0 0
      %964 = vmatpush1.bf16.msra.mxu0 0
      %965 = vmatprep.subr.bf16.mxu0 0
      %966 = vmatpush1.bf16.msra.mxu0 0
      %967 = vmatprep.subr.bf16.mxu0 0
      %968 = vmatpush1.bf16.msra.mxu0 0
      %969 = vmatprep.subr.bf16.mxu0 0
      %970 = vmatpush1.bf16.msra.mxu0 0
      %971 = vmatprep.subr.bf16.mxu0 0
      %972 = vmatpush1.bf16.msra.mxu0 0
      %973 = vmatprep.subr.bf16.mxu0 0
      %974 = vmatpush1.bf16.msra.mxu0 0
      %975 = vmatprep.mubr.bf16.mxu0 0
      %976 = vmatmul.mubr.bf16.gmra.mrb[0].mxu0 %v893
      %v977 = vpop.f32.mrb[0].mxu0
      %v978 = vadd.f32 0.0, %v977
      %v979 = vpop.f32.mrb[0].mxu0
      %v980 = vpop.f32.mrb[0].mxu0
      %v981 = vpop.f32.mrb[0].mxu0
      %982 = vdwg.mxu0
      %v983 = vadd.f32 %v858, %v978
      %v984 = vld [vmem:[%s272] sm:$0xf]
      %v985 = vld [vmem:[%s272 + $0x4] sm:$0x1]
      %v986 = vunpack.c.l.bf16 %v984
      %v987 = vunpack.c.l.bf16 %v985
      %v988 = vld [vmem:[%s5] sm:$0x1]
      %v990 = vlaneseq
      %v991 = vshrl.u32 %v990, 7
      %v992 = vsub.s32 0, %v991
      %v993 = vrot.slane %v988, %v992
      %v995 = vmul.f32 %v983, %v993
      %v996 = vld [vmem:[%s6] sm:$0x1]
      %v998 = vlaneseq
      %v999 = vshrl.u32 %v998, 7
      %v1000 = vsub.s32 0, %v999
      %v1001 = vrot.slane %v996, %v1000
      %v1003 = vadd.f32 %v995, %v1001
      %vm1006 = vcmask 1046528
      %v1007 = vrot.slane %v986, 1
      %v1008 = vrot.slane %v987, 1
      %v1009 = vsel %vm1006, %v1007, %v1008
      %v1011 = vadd.f32 %v1003, %v1009
      %v1012 = vmax.f32 %v1011, 0.0
      %v1013 = vpack.c.bf16 %v1012, %v1012
      %1014 = vst [vmem:[%s276] sm:$0xf] %v1013
      %p1015 = scmp.lt.s32.totalorder %s18, 1
      %s1016 = scalar_select %p1015, %s18, 1
      %s1017 = smul.addr %s1016, 4
      %s1018 = scalar_lea.vmem %s7, %s1017
      // Predicated region
      $region49: #{_lambda_.14} parent=47 // pred_check
        %p1019 = pneg %p188
      $region50: #{_lambda_.14} parent=47 // pred_check_branch
        %1021 = sbr.rel (%p1019) target = $region52
      $region51: #{_lambda_.14} parent=47 // pred_region
        _
      $region52: #{_lambda_.14} parent=47 // pred_fallthru
        _
    $region48: #{_lambda_.14} parent=5 // pred_fallthru
      _
    %p1022 = scmp.le.s32.totalorder 2, %s13
    // Predicated region
    $region53: #{_lambda_.14} parent=5 // pred_check
      %p1023 = pneg %p1022
    $region54: #{_lambda_.14} parent=5 // pred_check_branch
      %1025 = sbr.rel (%p1023) target = $region56
    $region55: #{_lambda_.14} parent=5 // pred_region
      %s1026 = ssub.s32 %s13, 2
      // Predicated region
      $region57: #{_lambda_.14} parent=55 // pred_check
        %p1027 = pneg %p194
      $region58: #{_lambda_.14} parent=55 // pred_check_branch
        %1029 = sbr.rel (%p1027) target = $region60
      $region59: #{_lambda_.14} parent=55 // pred_region
        %p1030 = scmp.lt.s32.totalorder %s19, 1
        %s1031 = scalar_select %p1030, %s19, 1
        %s1032 = smul.addr %s1031, 4
        %s1033 = scalar_lea.vmem %s7, %s1032
      $region60: #{_lambda_.14} parent=55 // pred_fallthru
        _
    $region56: #{_lambda_.14} parent=5 // pred_fallthru
      _
  $region6: #{_lambda_.14} parent=0 // loop_footer
    %s17 = sadd.s32 1, %s13
  $region7: #{_lambda_.14} parent=0 // loop_footer_branch
    %12 = sbr.rel target = $region3
  $region8: #{_lambda_.14} parent=0 // loop_exit
    _

// kernel: _lambda_.17
$region0: #{_lambda_.17}
  #allocation0 [shape = 'u32[]', space=smem, size = 0x4, offset = 0x4, fixed_abs, tag = 'smem constant byte address 0x4 - core index']
  #allocation1 [shape = 'u32[144,128]{1,0:T(1,128)}', space=vmem, size = 0x12000, scoped, tag = 'internal scratch']
  #allocation2 [shape = 'f32[1,1]{1,0:T(1,128)S(1)}', space=vmem, size = 0x200, scoped, tag = 'scoped memory for _lambda_.17']
  %s0 = inlined_call_operand.vmem [shape: bf16[2,4,256], index: 0, kind: input, shape index: {}]
  %s1 = inlined_call_operand.vmem [shape: bf16[256,128], index: 1, kind: input, shape index: {}]
  %s2 = inlined_call_operand.vmem [shape: f32[1,128], index: 2, kind: input, shape index: {}]
  %s3 = inlined_call_operand.vmem [shape: f32[1,128], index: 3, kind: input, shape index: {}]
  %s4 = inlined_call_operand.<no memory space> [shape: f32[1,1], index: 4, kind: input, shape index: {}]
  %s5 = inlined_call_operand.vmem [shape: f32[2,1,1], index: 5, kind: output, shape index: {}]
  %s6 = sld [smem:[#allocation0]]
  $region53: #{_lambda_.17} parent=0
    _
  %s8 = ssub.s32 1, %s6
  %s9 = scalar_select 0, %s8, %s6
  %v10 = vstv %s4
  %11 = vst [vmem:[#allocation2] sm:$0x1] %v10
  loop: start=0, step=1, limit=4
  $region2: #{_lambda_.17} parent=0 // loop_pre_header
    _
  $region3: #{_lambda_.17} parent=0 // loop_header
    %s13 = sphi 0, %s17
    %p14 = scmp.ge.s32.totalorder %s13, 4
    %s23 = sphi 0, %s25
    %s26 = sphi 0, %s23
    %s27 = sphi 0, %s26
    %s43 = sphi 0, %s27
    %s47 = sphi 0, %s47
    %s49 = sphi 0, %s47
    %s50 = sphi 0, %s49
    %s64 = sphi 0, %s50
    %s68 = sphi 0, %s68
    %s70 = sphi 0, %s68
    %s71 = sphi 0, %s70
    %s85 = sphi 0, %s71
    %s89 = sphi 0, %s89
    %s91 = sphi 0, %s89
    %s92 = sphi 0, %s91
    %s106 = sphi 0, %s92
    %s110 = sphi 0, %s110
    %s112 = sphi 0, %s110
    %s113 = sphi 0, %s112
    %s127 = sphi 0, %s113
    %s133 = sphi 0, %s135
    %s136 = sphi 0, %s133
    %s137 = sphi 0, %s136
    %s153 = sphi 0, %s137
  $region4: #{_lambda_.17} parent=0 // loop_header_branch
    %16 = sbr.rel (%p14) target = $region8
  $region5: #{_lambda_.17} parent=0 // loop_body
    %s18 = ssub.s32 %s13, 1
    %s19 = ssub.s32 %s13, 2
    %s20 = sadd.s32 %s13, 1
    %s21 = ssub.s32 %s13, %s20
    %p22 = scmp.eq.s32.totalorder %s21, 0
    %s24 = sadd.s32 %s23, 1
    %s25 = scalar_select %p22, %s23, %s24
    %p28 = pneg %p22
    %p29 = scmp.eq.s32.totalorder %s13, 1
    %p30 = por %p28, %p29
    %p31 = scmp.ne.s32.totalorder %s23, %s26
    %p32 = scmp.eq.s32.totalorder %s13, 0
    %p33 = por %p31, %p32
    %p34 = scmp.ne.s32.totalorder %s23, %s26
    %p35 = scmp.eq.s32.totalorder %s18, 1
    %p36 = por %p34, %p35
    %p37 = scmp.ne.s32.totalorder %s26, %s27
    %p38 = scmp.eq.s32.totalorder %s18, 0
    %p39 = por %p37, %p38
    %p40 = scmp.ne.s32.totalorder %s26, %s27
    %p41 = scmp.eq.s32.totalorder %s19, 1
    %p42 = por %p40, %p41
    %p44 = scmp.ne.s32.totalorder %s27, %s43
    %p45 = scmp.eq.s32.totalorder %s19, 0
    %p46 = por %p44, %p45
    %s48 = sadd.s32 %s47, 1
    %p51 = scmp.eq.s32.totalorder %s13, 1
    %p52 = scmp.ne.s32.totalorder %s47, %s49
    %p53 = scmp.eq.s32.totalorder %s13, 0
    %p54 = por %p52, %p53
    %p55 = scmp.ne.s32.totalorder %s47, %s49
    %p56 = scmp.eq.s32.totalorder %s18, 1
    %p57 = por %p55, %p56
    %p58 = scmp.ne.s32.totalorder %s49, %s50
    %p59 = scmp.eq.s32.totalorder %s18, 0
    %p60 = por %p58, %p59
    %p61 = scmp.ne.s32.totalorder %s49, %s50
    %p62 = scmp.eq.s32.totalorder %s19, 1
    %p63 = por %p61, %p62
    %p65 = scmp.ne.s32.totalorder %s50, %s64
    %p66 = scmp.eq.s32.totalorder %s19, 0
    %p67 = por %p65, %p66
    %s69 = sadd.s32 %s68, 1
    %p72 = scmp.eq.s32.totalorder %s13, 1
    %p73 = scmp.ne.s32.totalorder %s68, %s70
    %p74 = scmp.eq.s32.totalorder %s13, 0
    %p75 = por %p73, %p74
    %p76 = scmp.ne.s32.totalorder %s68, %s70
    %p77 = scmp.eq.s32.totalorder %s18, 1
    %p78 = por %p76, %p77
    %p79 = scmp.ne.s32.totalorder %s70, %s71
    %p80 = scmp.eq.s32.totalorder %s18, 0
    %p81 = por %p79, %p80
    %p82 = scmp.ne.s32.totalorder %s70, %s71
    %p83 = scmp.eq.s32.totalorder %s19, 1
    %p84 = por %p82, %p83
    %p86 = scmp.ne.s32.totalorder %s71, %s85
    %p87 = scmp.eq.s32.totalorder %s19, 0
    %p88 = por %p86, %p87
    %s90 = sadd.s32 %s89, 1
    %p93 = scmp.eq.s32.totalorder %s13, 1
    %p94 = scmp.ne.s32.totalorder %s89, %s91
    %p95 = scmp.eq.s32.totalorder %s13, 0
    %p96 = por %p94, %p95
    %p97 = scmp.ne.s32.totalorder %s89, %s91
    %p98 = scmp.eq.s32.totalorder %s18, 1
    %p99 = por %p97, %p98
    %p100 = scmp.ne.s32.totalorder %s91, %s92
    %p101 = scmp.eq.s32.totalorder %s18, 0
    %p102 = por %p100, %p101
    %p103 = scmp.ne.s32.totalorder %s91, %s92
    %p104 = scmp.eq.s32.totalorder %s19, 1
    %p105 = por %p103, %p104
    %p107 = scmp.ne.s32.totalorder %s92, %s106
    %p108 = scmp.eq.s32.totalorder %s19, 0
    %p109 = por %p107, %p108
    %s111 = sadd.s32 %s110, 1
    %p114 = scmp.eq.s32.totalorder %s13, 1
    %p115 = scmp.ne.s32.totalorder %s110, %s112
    %p116 = scmp.eq.s32.totalorder %s13, 0
    %p117 = por %p115, %p116
    %p118 = scmp.ne.s32.totalorder %s110, %s112
    %p119 = scmp.eq.s32.totalorder %s18, 1
    %p120 = por %p118, %p119
    %p121 = scmp.ne.s32.totalorder %s112, %s113
    %p122 = scmp.eq.s32.totalorder %s18, 0
    %p123 = por %p121, %p122
    %p124 = scmp.ne.s32.totalorder %s112, %s113
    %p125 = scmp.eq.s32.totalorder %s19, 1
    %p126 = por %p124, %p125
    %p128 = scmp.ne.s32.totalorder %s113, %s127
    %p129 = scmp.eq.s32.totalorder %s19, 0
    %p130 = por %p128, %p129
    %s131 = ssub.s32 %s13, %s20
    %p132 = scmp.eq.s32.totalorder %s131, 0
    %s134 = sadd.s32 %s133, 1
    %s135 = scalar_select %p132, %s133, %s134
    %p138 = pneg %p132
    %p139 = scmp.eq.s32.totalorder %s13, 1
    %p140 = por %p138, %p139
    %p141 = scmp.ne.s32.totalorder %s133, %s136
    %p142 = scmp.eq.s32.totalorder %s13, 0
    %p143 = por %p141, %p142
    %p144 = scmp.ne.s32.totalorder %s133, %s136
    %p145 = scmp.eq.s32.totalorder %s18, 1
    %p146 = por %p144, %p145
    %p147 = scmp.ne.s32.totalorder %s136, %s137
    %p148 = scmp.eq.s32.totalorder %s18, 0
    %p149 = por %p147, %p148
    %p150 = scmp.ne.s32.totalorder %s136, %s137
    %p151 = scmp.eq.s32.totalorder %s19, 1
    %p152 = por %p150, %p151
    %p154 = scmp.ne.s32.totalorder %s137, %s153
    %p155 = scmp.eq.s32.totalorder %s19, 0
    %p156 = por %p154, %p155
    %p157 = scmp.le.s32.totalorder 1, %s13
    %p158 = scmp.lt.s32.totalorder %s13, 3
    %p159 = pnand %p157, %p158
    %p160 = pneg %p159
    // Predicated region
    $region9: #{_lambda_.17} parent=5 // pred_check
      _
    $region10: #{_lambda_.17} parent=5 // pred_check_branch
      %162 = sbr.rel (%p159) target = $region12
    $region11: #{_lambda_.17} parent=5 // pred_region
      %s163 = ssub.s32 %s13, 1
      // Predicated region
      $region13: #{_lambda_.17} parent=11 // pred_check
        %p164 = pneg %p60
      $region14: #{_lambda_.17} parent=11 // pred_check_branch
        %166 = sbr.rel (%p164) target = $region16
      $region15: #{_lambda_.17} parent=11 // pred_region
        _
      $region16: #{_lambda_.17} parent=11 // pred_fallthru
        _
      // Predicated region
      $region17: #{_lambda_.17} parent=11 // pred_check
        %p167 = pneg %p81
      $region18: #{_lambda_.17} parent=11 // pred_check_branch
        %169 = sbr.rel (%p167) target = $region20
      $region19: #{_lambda_.17} parent=11 // pred_region
        _
      $region20: #{_lambda_.17} parent=11 // pred_fallthru
        _
      // Predicated region
      $region21: #{_lambda_.17} parent=11 // pred_check
        %p170 = pneg %p102
      $region22: #{_lambda_.17} parent=11 // pred_check_branch
        %172 = sbr.rel (%p170) target = $region24
      $region23: #{_lambda_.17} parent=11 // pred_region
        _
      $region24: #{_lambda_.17} parent=11 // pred_fallthru
        _
      // Predicated region
      $region25: #{_lambda_.17} parent=11 // pred_check
        %p173 = pneg %p123
      $region26: #{_lambda_.17} parent=11 // pred_check_branch
        %175 = sbr.rel (%p173) target = $region28
      $region27: #{_lambda_.17} parent=11 // pred_region
        _
      $region28: #{_lambda_.17} parent=11 // pred_fallthru
        _
    $region12: #{_lambda_.17} parent=5 // pred_fallthru
      _
    %p176 = scmp.lt.s32.totalorder %s13, 2
    // Predicated region
    $region29: #{_lambda_.17} parent=5 // pred_check
      %p177 = pneg %p176
    $region30: #{_lambda_.17} parent=5 // pred_check_branch
      %179 = sbr.rel (%p177) target = $region32
    $region31: #{_lambda_.17} parent=5 // pred_region
      // Predicated region
      $region33: #{_lambda_.17} parent=31 // pred_check
        %p180 = pneg %p33
      $region34: #{_lambda_.17} parent=31 // pred_check_branch
        %182 = sbr.rel (%p180) target = $region36
      $region35: #{_lambda_.17} parent=31 // pred_region
        %p183 = scmp.lt.s32.totalorder %s13, 1
        %s184 = scalar_select %p183, %s13, 1
        %s185 = smul.addr %s184, 2
        %s186 = smul.addr %s185, 2
        %s187 = scalar_lea.vmem %s0, %s186
      $region36: #{_lambda_.17} parent=31 // pred_fallthru
        _
    $region32: #{_lambda_.17} parent=5 // pred_fallthru
      _
    %p188 = scmp.le.s32.totalorder 1, %s13
    %p189 = scmp.lt.s32.totalorder %s13, 3
    %p190 = pnand %p188, %p189
    %p191 = pneg %p190
    // Predicated region
    $region37: #{_lambda_.17} parent=5 // pred_check
      _
    $region38: #{_lambda_.17} parent=5 // pred_check_branch
      %193 = sbr.rel (%p190) target = $region40
    $region39: #{_lambda_.17} parent=5 // pred_region
      %s194 = ssub.s32 %s13, 1
      %p195 = scmp.lt.s32.totalorder %s18, 1
      %s196 = scalar_select %p195, %s18, 1
      %s197 = smul.addr %s196, 2
      %s198 = smul.addr %s197, 2
      %s199 = scalar_lea.vmem %s0, %s198
      %p200 = pneg %p39
      %p201 = pneg %p36
      %p202 = pneg %p60
      %p203 = pneg %p57
      %p204 = pneg %p81
      %p205 = pneg %p78
      %p206 = pneg %p102
      %p207 = pneg %p99
      %p208 = pneg %p123
      %p209 = pneg %p120
      %p210 = pneg %p149
      %p211 = pneg %p146
      %p212 = scmp.lt.s32.totalorder %s18, 1
      %s213 = scalar_select %p212, %s18, 1
      %s214 = scalar_lea.vmem %s5, %s213
      %p215 = scmp.lt.s32.totalorder %s18, 1
      %s216 = scalar_select %p215, %s18, 1
      %s217 = smul.addr %s216, 2
      %s218 = smul.addr %s217, 2
      %s219 = scalar_lea.vmem %s0, %s218
      %p220 = scmp.lt.s32.totalorder %s18, 1
      %s221 = scalar_select %p220, %s18, 1
      %s222 = scalar_lea.vmem %s5, %s221
      %v224 = vld [vmem:[%s219] sm:$0xf]
      %v225 = vunpack.c.l.bf16 %v224
      %v227 = vcombine.high %v225, %v225
      %vm229 = vcmask 1043456
      %v230 = vsel %vm229, %v225, 0.0
      %v231 = vrot.slane %v230, 4
      %v232 = vadd.f32 %v230, %v231
      %v233 = vrot.slane %v232, 2
      %v234 = vadd.f32 %v232, %v233
      %v235 = vrot.slane %v234, 1
      %v236 = vadd.f32 %v234, %v235
      %v237 = vsel %vm229, %v227, 0.0
      %v238 = vrot.slane %v237, 4
      %v239 = vadd.f32 %v237, %v238
      %v240 = vrot.slane %v239, 2
      %v241 = vadd.f32 %v239, %v240
      %v242 = vrot.slane %v241, 1
      %v243 = vadd.f32 %v241, %v242
      %v244 = vrcp.pop 4.0
      %v245 = vmul.f32 %v236, %v244
      %v246 = vmul.f32 %v243, %v244
      %v247 = vpack.c.bf16 %v245, %v245
      %v248 = vpack.c.bf16 %v246, %v246
      %v249 = vld [vmem:[%s1] sm:$0xf]
      %v250 = vld [vmem:[%s1 + $0x4] sm:$0xf]
      %v251 = vld [vmem:[%s1 + $0x8] sm:$0xf]
      %v252 = vld [vmem:[%s1 + $0xc] sm:$0xf]
      %v253 = vld [vmem:[%s1 + $0x10] sm:$0xf]
      %v254 = vld [vmem:[%s1 + $0x14] sm:$0xf]
      %v255 = vld [vmem:[%s1 + $0x18] sm:$0xf]
      %v256 = vld [vmem:[%s1 + $0x1c] sm:$0xf]
      %v257 = vld [vmem:[%s1 + $0x20] sm:$0xf]
      %v258 = vld [vmem:[%s1 + $0x24] sm:$0xf]
      %v259 = vld [vmem:[%s1 + $0x28] sm:$0xf]
      %v260 = vld [vmem:[%s1 + $0x2c] sm:$0xf]
      %v261 = vld [vmem:[%s1 + $0x30] sm:$0xf]
      %v262 = vld [vmem:[%s1 + $0x34] sm:$0xf]
      %v263 = vld [vmem:[%s1 + $0x38] sm:$0xf]
      %v264 = vld [vmem:[%s1 + $0x3c] sm:$0xf]
      %v265 = vld [vmem:[%s1 + $0x40] sm:$0xf]
      %v266 = vld [vmem:[%s1 + $0x44] sm:$0xf]
      %v267 = vld [vmem:[%s1 + $0x48] sm:$0xf]
      %v268 = vld [vmem:[%s1 + $0x4c] sm:$0xf]
      %v269 = vld [vmem:[%s1 + $0x50] sm:$0xf]
      %v270 = vld [vmem:[%s1 + $0x54] sm:$0xf]
      %v271 = vld [vmem:[%s1 + $0x58] sm:$0xf]
      %v272 = vld [vmem:[%s1 + $0x5c] sm:$0xf]
      %v273 = vld [vmem:[%s1 + $0x60] sm:$0xf]
      %v274 = vld [vmem:[%s1 + $0x64] sm:$0xf]
      %v275 = vld [vmem:[%s1 + $0x68] sm:$0xf]
      %v276 = vld [vmem:[%s1 + $0x6c] sm:$0xf]
      %v277 = vld [vmem:[%s1 + $0x70] sm:$0xf]
      %v278 = vld [vmem:[%s1 + $0x74] sm:$0xf]
      %v279 = vld [vmem:[%s1 + $0x78] sm:$0xf]
      %v280 = vld [vmem:[%s1 + $0x7c] sm:$0xf]
      %v281 = vld [vmem:[%s2] sm:$0x1]
      %v314 = vunpack.c.l.b16 %v249
      %v315 = vunpack.c.l.b16 %v250
      %v316 = vunpack.c.l.b16 %v251
      %v317 = vunpack.c.l.b16 %v252
      %v318 = vunpack.c.l.b16 %v253
      %v319 = vunpack.c.l.b16 %v254
      %v320 = vunpack.c.l.b16 %v255
      %v321 = vunpack.c.l.b16 %v256
      %v322 = vunpack.c.l.b16 %v257
      %v323 = vunpack.c.l.b16 %v258
      %v324 = vunpack.c.l.b16 %v259
      %v325 = vunpack.c.l.b16 %v260
      %v326 = vunpack.c.l.b16 %v261
      %v327 = vunpack.c.l.b16 %v262
      %v328 = vunpack.c.l.b16 %v263
      %v329 = vunpack.c.l.b16 %v264
      %v330 = vunpack.c.l.b16 %v265
      %v331 = vunpack.c.l.b16 %v266
      %v332 = vunpack.c.l.b16 %v267
      %v333 = vunpack.c.l.b16 %v268
      %v334 = vunpack.c.l.b16 %v269
      %v335 = vunpack.c.l.b16 %v270
      %v336 = vunpack.c.l.b16 %v271
      %v337 = vunpack.c.l.b16 %v272
      %v338 = vunpack.c.l.b16 %v273
      %v339 = vunpack.c.l.b16 %v274
      %v340 = vunpack.c.l.b16 %v275
      %v341 = vunpack.c.l.b16 %v276
      %v342 = vunpack.c.l.b16 %v277
      %v343 = vunpack.c.l.b16 %v278
      %v344 = vunpack.c.l.b16 %v279
      %v345 = vunpack.c.l.b16 %v280
      %v346 = vpack.c.b16 %v315, %v314
      %v347 = vpack.c.b16 %v317, %v316
      %v348 = vpack.c.b16 %v319, %v318
      %v349 = vpack.c.b16 %v321, %v320
      %v350 = vpack.c.b16 %v323, %v322
      %v351 = vpack.c.b16 %v325, %v324
      %v352 = vpack.c.b16 %v327, %v326
      %v353 = vpack.c.b16 %v329, %v328
      %v354 = vpack.c.b16 %v331, %v330
      %v355 = vpack.c.b16 %v333, %v332
      %v356 = vpack.c.b16 %v335, %v334
      %v357 = vpack.c.b16 %v337, %v336
      %v358 = vpack.c.b16 %v339, %v338
      %v359 = vpack.c.b16 %v341, %v340
      %v360 = vpack.c.b16 %v343, %v342
      %v361 = vpack.c.b16 %v345, %v344
      %378 = vmatprep.subr.bf16.mxu0 0
      %379 = vmatpush1.bf16.msra.mxu0 %v346
      %380 = vmatprep.subr.bf16.mxu0 0
      %381 = vmatpush1.bf16.msra.mxu0 %v347
      %382 = vmatprep.subr.bf16.mxu0 0
      %383 = vmatpush1.bf16.msra.mxu0 %v348
      %384 = vmatprep.subr.bf16.mxu0 0
      %385 = vmatpush1.bf16.msra.mxu0 %v349
      %386 = vmatprep.subr.bf16.mxu0 0
      %387 = vmatpush1.bf16.msra.mxu0 %v350
      %388 = vmatprep.subr.bf16.mxu0 0
      %389 = vmatpush1.bf16.msra.mxu0 %v351
      %390 = vmatprep.subr.bf16.mxu0 0
      %391 = vmatpush1.bf16.msra.mxu0 %v352
      %392 = vmatprep.subr.bf16.mxu0 0
      %393 = vmatpush1.bf16.msra.mxu0 %v353
      %394 = vmatprep.subr.bf16.mxu0 0
      %395 = vmatpush1.bf16.msra.mxu0 %v354
      %396 = vmatprep.subr.bf16.mxu0 0
      %397 = vmatpush1.bf16.msra.mxu0 %v355
      %398 = vmatprep.subr.bf16.mxu0 0
      %399 = vmatpush1.bf16.msra.mxu0 %v356
      %400 = vmatprep.subr.bf16.mxu0 0
      %401 = vmatpush1.bf16.msra.mxu0 %v357
      %402 = vmatprep.subr.bf16.mxu0 0
      %403 = vmatpush1.bf16.msra.mxu0 %v358
      %404 = vmatprep.subr.bf16.mxu0 0
      %405 = vmatpush1.bf16.msra.mxu0 %v359
      %406 = vmatprep.subr.bf16.mxu0 0
      %407 = vmatpush1.bf16.msra.mxu0 %v360
      %408 = vmatprep.subr.bf16.mxu0 0
      %409 = vmatpush1.bf16.msra.mxu0 %v361
      %410 = vmatprep.mubr.bf16.mxu0 %v248
      %411 = vmatmul.mubr.bf16.gmra.mrb[0].mxu0 %v247
      %v412 = vpop.f32.mrb[0].mxu0
      %v413 = vadd.f32 %v281, %v412
      %v414 = vpop.f32.mrb[0].mxu0
      %v415 = vpop.f32.mrb[0].mxu0
      %v416 = vpop.f32.mrb[0].mxu0
      %417 = vdwg.mxu0
      %v418 = vmax.f32 %v413, 0.0
      %v419 = vld [vmem:[%s3] sm:$0x1]
      %v420 = vmul.f32 %v418, %v419
      %vm421 = vcmask 1040384
      %v422 = vsel %vm421, %v420, 0.0
      %423 = vadd.xlane.f32.xlu0 %v422
      %v424 = vpop.xlane.xlu0 %423
      %v425 = vld [vmem:[#allocation2] sm:$0x1]
      %v426 = vadd.f32 %v424, %v425
      %v427 = vxor.u32 %v426, 2147483648
      %v428 = vmul.f32 %v427, 1.442695
      %v429 = vpow.pop %v428
      %v430 = vadd.f32 %v429, 1.0
      %v431 = vrcp.pop %v430
      %v432 = vmul.f32 1.0, %v431
      %vm433 = vcmask 0
      %434 = vst.msk [vmem:[%s222] sm:$0x1] %vm433, %v432
      %p435 = scmp.lt.s32.totalorder %s18, 1
      %s436 = scalar_select %p435, %s18, 1
      %s437 = scalar_lea.vmem %s5, %s436
      // Predicated region
      $region41: #{_lambda_.17} parent=39 // pred_check
        %p438 = pneg %p146
      $region42: #{_lambda_.17} parent=39 // pred_check_branch
        %440 = sbr.rel (%p438) target = $region44
      $region43: #{_lambda_.17} parent=39 // pred_region
        _
      $region44: #{_lambda_.17} parent=39 // pred_fallthru
        _
    $region40: #{_lambda_.17} parent=5 // pred_fallthru
      _
    %p441 = scmp.le.s32.totalorder 2, %s13
    // Predicated region
    $region45: #{_lambda_.17} parent=5 // pred_check
      %p442 = pneg %p441
    $region46: #{_lambda_.17} parent=5 // pred_check_branch
      %444 = sbr.rel (%p442) target = $region48
    $region47: #{_lambda_.17} parent=5 // pred_region
      %s445 = ssub.s32 %s13, 2
      // Predicated region
      $region49: #{_lambda_.17} parent=47 // pred_check
        %p446 = pneg %p152
      $region50: #{_lambda_.17} parent=47 // pred_check_branch
        %448 = sbr.rel (%p446) target = $region52
      $region51: #{_lambda_.17} parent=47 // pred_region
        %p449 = scmp.lt.s32.totalorder %s19, 1
        %s450 = scalar_select %p449, %s19, 1
        %s451 = scalar_lea.vmem %s5, %s450
      $region52: #{_lambda_.17} parent=47 // pred_fallthru
        _
    $region48: #{_lambda_.17} parent=5 // pred_fallthru
      _
  $region6: #{_lambda_.17} parent=0 // loop_footer
    %s17 = sadd.s32 1, %s13
  $region7: #{_lambda_.17} parent=0 // loop_footer_branch
    %12 = sbr.rel target = $region3
  $region8: #{_lambda_.17} parent=0 // loop_exit
    _

// kernel: _lambda_.15
$region0: #{_lambda_.15}
  #allocation0 [shape = 'u32[]', space=smem, size = 0x4, offset = 0x4, fixed_abs, tag = 'smem constant byte address 0x4 - core index']
  #allocation1 [shape = 'u32[144,128]{1,0:T(1,128)}', space=vmem, size = 0x12000, scoped, tag = 'internal scratch']
  #allocation2 [shape = 'bf16[36,256]{1,0:T(8,128)(2,1)}', space=vmem, size = 0x5000, scoped, tag = 'scratch operand']
  %s0 = inlined_call_operand.vmem [shape: bf16[2,4,128], index: 0, kind: input, shape index: {}]
  %s1 = inlined_call_operand.vmem [shape: bf16[2,4,128], index: 1, kind: input, shape index: {}]
  %s2 = inlined_call_operand.vmem [shape: bf16[2,4,128], index: 2, kind: input, shape index: {}]
  %s3 = inlined_call_operand.vmem [shape: bf16[3,128,256], index: 3, kind: input, shape index: {}]
  %s4 = inlined_call_operand.vmem [shape: f32[1,256], index: 4, kind: input, shape index: {}]
  %s5 = inlined_call_operand.vmem [shape: f32[1,256], index: 5, kind: input, shape index: {}]
  %s6 = inlined_call_operand.vmem [shape: bf16[128,256], index: 6, kind: input, shape index: {}]
  %s7 = inlined_call_operand.vmem [shape: f32[1,256], index: 7, kind: input, shape index: {}]
  %s8 = inlined_call_operand.vmem [shape: f32[1,256], index: 8, kind: input, shape index: {}]
  %s9 = inlined_call_operand.vmem [shape: bf16[3,256,256], index: 9, kind: input, shape index: {}]
  %s10 = inlined_call_operand.vmem [shape: f32[1,256], index: 10, kind: input, shape index: {}]
  %s11 = inlined_call_operand.vmem [shape: f32[1,256], index: 11, kind: input, shape index: {}]
  %s12 = inlined_call_operand.vmem [shape: bf16[2,4,256], index: 12, kind: output, shape index: {}]
  %s13 = sld [smem:[#allocation0]]
  $region81: #{_lambda_.15} parent=0
    _
  %s15 = ssub.s32 1, %s13
  %s16 = scalar_select 0, %s15, %s13
  loop: start=0, step=1, limit=4
  $region2: #{_lambda_.15} parent=0 // loop_pre_header
    _
  $region3: #{_lambda_.15} parent=0 // loop_header
    %s18 = sphi 0, %s22
    %p19 = scmp.ge.s32.totalorder %s18, 4
    %s28 = sphi 0, %s30
    %s31 = sphi 0, %s28
    %s32 = sphi 0, %s31
    %s48 = sphi 0, %s32
    %s54 = sphi 0, %s56
    %s57 = sphi 0, %s54
    %s58 = sphi 0, %s57
    %s74 = sphi 0, %s58
    %s80 = sphi 0, %s82
    %s83 = sphi 0, %s80
    %s84 = sphi 0, %s83
    %s100 = sphi 0, %s84
    %s104 = sphi 0, %s104
    %s106 = sphi 0, %s104
    %s107 = sphi 0, %s106
    %s121 = sphi 0, %s107
    %s125 = sphi 0, %s125
    %s127 = sphi 0, %s125
    %s128 = sphi 0, %s127
    %s142 = sphi 0, %s128
    %s146 = sphi 0, %s146
    %s148 = sphi 0, %s146
    %s149 = sphi 0, %s148
    %s163 = sphi 0, %s149
    %s167 = sphi 0, %s167
    %s169 = sphi 0, %s167
    %s170 = sphi 0, %s169
    %s184 = sphi 0, %s170
    %s188 = sphi 0, %s188
    %s190 = sphi 0, %s188
    %s191 = sphi 0, %s190
    %s205 = sphi 0, %s191
    %s209 = sphi 0, %s209
    %s211 = sphi 0, %s209
    %s212 = sphi 0, %s211
    %s226 = sphi 0, %s212
    %s230 = sphi 0, %s230
    %s232 = sphi 0, %s230
    %s233 = sphi 0, %s232
    %s247 = sphi 0, %s233
    %s251 = sphi 0, %s251
    %s253 = sphi 0, %s251
    %s254 = sphi 0, %s253
    %s268 = sphi 0, %s254
    %s272 = sphi 0, %s272
    %s274 = sphi 0, %s272
    %s275 = sphi 0, %s274
    %s289 = sphi 0, %s275
    %s295 = sphi 0, %s297
    %s298 = sphi 0, %s295
    %s299 = sphi 0, %s298
    %s315 = sphi 0, %s299
  $region4: #{_lambda_.15} parent=0 // loop_header_branch
    %21 = sbr.rel (%p19) target = $region8
  $region5: #{_lambda_.15} parent=0 // loop_body
    %s23 = ssub.s32 %s18, 1
    %s24 = ssub.s32 %s18, 2
    %s25 = sadd.s32 %s18, 1
    %s26 = ssub.s32 %s18, %s25
    %p27 = scmp.eq.s32.totalorder %s26, 0
    %s29 = sadd.s32 %s28, 1
    %s30 = scalar_select %p27, %s28, %s29
    %p33 = pneg %p27
    %p34 = scmp.eq.s32.totalorder %s18, 1
    %p35 = por %p33, %p34
    %p36 = scmp.ne.s32.totalorder %s28, %s31
    %p37 = scmp.eq.s32.totalorder %s18, 0
    %p38 = por %p36, %p37
    %p39 = scmp.ne.s32.totalorder %s28, %s31
    %p40 = scmp.eq.s32.totalorder %s23, 1
    %p41 = por %p39, %p40
    %p42 = scmp.ne.s32.totalorder %s31, %s32
    %p43 = scmp.eq.s32.totalorder %s23, 0
    %p44 = por %p42, %p43
    %p45 = scmp.ne.s32.totalorder %s31, %s32
    %p46 = scmp.eq.s32.totalorder %s24, 1
    %p47 = por %p45, %p46
    %p49 = scmp.ne.s32.totalorder %s32, %s48
    %p50 = scmp.eq.s32.totalorder %s24, 0
    %p51 = por %p49, %p50
    %s52 = ssub.s32 %s18, %s25
    %p53 = scmp.eq.s32.totalorder %s52, 0
    %s55 = sadd.s32 %s54, 1
    %s56 = scalar_select %p53, %s54, %s55
    %p59 = pneg %p53
    %p60 = scmp.eq.s32.totalorder %s18, 1
    %p61 = por %p59, %p60
    %p62 = scmp.ne.s32.totalorder %s54, %s57
    %p63 = scmp.eq.s32.totalorder %s18, 0
    %p64 = por %p62, %p63
    %p65 = scmp.ne.s32.totalorder %s54, %s57
    %p66 = scmp.eq.s32.totalorder %s23, 1
    %p67 = por %p65, %p66
    %p68 = scmp.ne.s32.totalorder %s57, %s58
    %p69 = scmp.eq.s32.totalorder %s23, 0
    %p70 = por %p68, %p69
    %p71 = scmp.ne.s32.totalorder %s57, %s58
    %p72 = scmp.eq.s32.totalorder %s24, 1
    %p73 = por %p71, %p72
    %p75 = scmp.ne.s32.totalorder %s58, %s74
    %p76 = scmp.eq.s32.totalorder %s24, 0
    %p77 = por %p75, %p76
    %s78 = ssub.s32 %s18, %s25
    %p79 = scmp.eq.s32.totalorder %s78, 0
    %s81 = sadd.s32 %s80, 1
    %s82 = scalar_select %p79, %s80, %s81
    %p85 = pneg %p79
    %p86 = scmp.eq.s32.totalorder %s18, 1
    %p87 = por %p85, %p86
    %p88 = scmp.ne.s32.totalorder %s80, %s83
    %p89 = scmp.eq.s32.totalorder %s18, 0
    %p90 = por %p88, %p89
    %p91 = scmp.ne.s32.totalorder %s80, %s83
    %p92 = scmp.eq.s32.totalorder %s23, 1
    %p93 = por %p91, %p92
    %p94 = scmp.ne.s32.totalorder %s83, %s84
    %p95 = scmp.eq.s32.totalorder %s23, 0
    %p96 = por %p94, %p95
    %p97 = scmp.ne.s32.totalorder %s83, %s84
    %p98 = scmp.eq.s32.totalorder %s24, 1
    %p99 = por %p97, %p98
    %p101 = scmp.ne.s32.totalorder %s84, %s100
    %p102 = scmp.eq.s32.totalorder %s24, 0
    %p103 = por %p101, %p102
    %s105 = sadd.s32 %s104, 1
    %p108 = scmp.eq.s32.totalorder %s18, 1
    %p109 = scmp.ne.s32.totalorder %s104, %s106
    %p110 = scmp.eq.s32.totalorder %s18, 0
    %p111 = por %p109, %p110
    %p112 = scmp.ne.s32.totalorder %s104, %s106
    %p113 = scmp.eq.s32.totalorder %s23, 1
    %p114 = por %p112, %p113
    %p115 = scmp.ne.s32.totalorder %s106, %s107
    %p116 = scmp.eq.s32.totalorder %s23, 0
    %p117 = por %p115, %p116
    %p118 = scmp.ne.s32.totalorder %s106, %s107
    %p119 = scmp.eq.s32.totalorder %s24, 1
    %p120 = por %p118, %p119
    %p122 = scmp.ne.s32.totalorder %s107, %s121
    %p123 = scmp.eq.s32.totalorder %s24, 0
    %p124 = por %p122, %p123
    %s126 = sadd.s32 %s125, 1
    %p129 = scmp.eq.s32.totalorder %s18, 1
    %p130 = scmp.ne.s32.totalorder %s125, %s127
    %p131 = scmp.eq.s32.totalorder %s18, 0
    %p132 = por %p130, %p131
    %p133 = scmp.ne.s32.totalorder %s125, %s127
    %p134 = scmp.eq.s32.totalorder %s23, 1
    %p135 = por %p133, %p134
    %p136 = scmp.ne.s32.totalorder %s127, %s128
    %p137 = scmp.eq.s32.totalorder %s23, 0
    %p138 = por %p136, %p137
    %p139 = scmp.ne.s32.totalorder %s127, %s128
    %p140 = scmp.eq.s32.totalorder %s24, 1
    %p141 = por %p139, %p140
    %p143 = scmp.ne.s32.totalorder %s128, %s142
    %p144 = scmp.eq.s32.totalorder %s24, 0
    %p145 = por %p143, %p144
    %s147 = sadd.s32 %s146, 1
    %p150 = scmp.eq.s32.totalorder %s18, 1
    %p151 = scmp.ne.s32.totalorder %s146, %s148
    %p152 = scmp.eq.s32.totalorder %s18, 0
    %p153 = por %p151, %p152
    %p154 = scmp.ne.s32.totalorder %s146, %s148
    %p155 = scmp.eq.s32.totalorder %s23, 1
    %p156 = por %p154, %p155
    %p157 = scmp.ne.s32.totalorder %s148, %s149
    %p158 = scmp.eq.s32.totalorder %s23, 0
    %p159 = por %p157, %p158
    %p160 = scmp.ne.s32.totalorder %s148, %s149
    %p161 = scmp.eq.s32.totalorder %s24, 1
    %p162 = por %p160, %p161
    %p164 = scmp.ne.s32.totalorder %s149, %s163
    %p165 = scmp.eq.s32.totalorder %s24, 0
    %p166 = por %p164, %p165
    %s168 = sadd.s32 %s167, 1
    %p171 = scmp.eq.s32.totalorder %s18, 1
    %p172 = scmp.ne.s32.totalorder %s167, %s169
    %p173 = scmp.eq.s32.totalorder %s18, 0
    %p174 = por %p172, %p173
    %p175 = scmp.ne.s32.totalorder %s167, %s169
    %p176 = scmp.eq.s32.totalorder %s23, 1
    %p177 = por %p175, %p176
    %p178 = scmp.ne.s32.totalorder %s169, %s170
    %p179 = scmp.eq.s32.totalorder %s23, 0
    %p180 = por %p178, %p179
    %p181 = scmp.ne.s32.totalorder %s169, %s170
    %p182 = scmp.eq.s32.totalorder %s24, 1
    %p183 = por %p181, %p182
    %p185 = scmp.ne.s32.totalorder %s170, %s184
    %p186 = scmp.eq.s32.totalorder %s24, 0
    %p187 = por %p185, %p186
    %s189 = sadd.s32 %s188, 1
    %p192 = scmp.eq.s32.totalorder %s18, 1
    %p193 = scmp.ne.s32.totalorder %s188, %s190
    %p194 = scmp.eq.s32.totalorder %s18, 0
    %p195 = por %p193, %p194
    %p196 = scmp.ne.s32.totalorder %s188, %s190
    %p197 = scmp.eq.s32.totalorder %s23, 1
    %p198 = por %p196, %p197
    %p199 = scmp.ne.s32.totalorder %s190, %s191
    %p200 = scmp.eq.s32.totalorder %s23, 0
    %p201 = por %p199, %p200
    %p202 = scmp.ne.s32.totalorder %s190, %s191
    %p203 = scmp.eq.s32.totalorder %s24, 1
    %p204 = por %p202, %p203
    %p206 = scmp.ne.s32.totalorder %s191, %s205
    %p207 = scmp.eq.s32.totalorder %s24, 0
    %p208 = por %p206, %p207
    %s210 = sadd.s32 %s209, 1
    %p213 = scmp.eq.s32.totalorder %s18, 1
    %p214 = scmp.ne.s32.totalorder %s209, %s211
    %p215 = scmp.eq.s32.totalorder %s18, 0
    %p216 = por %p214, %p215
    %p217 = scmp.ne.s32.totalorder %s209, %s211
    %p218 = scmp.eq.s32.totalorder %s23, 1
    %p219 = por %p217, %p218
    %p220 = scmp.ne.s32.totalorder %s211, %s212
    %p221 = scmp.eq.s32.totalorder %s23, 0
    %p222 = por %p220, %p221
    %p223 = scmp.ne.s32.totalorder %s211, %s212
    %p224 = scmp.eq.s32.totalorder %s24, 1
    %p225 = por %p223, %p224
    %p227 = scmp.ne.s32.totalorder %s212, %s226
    %p228 = scmp.eq.s32.totalorder %s24, 0
    %p229 = por %p227, %p228
    %s231 = sadd.s32 %s230, 1
    %p234 = scmp.eq.s32.totalorder %s18, 1
    %p235 = scmp.ne.s32.totalorder %s230, %s232
    %p236 = scmp.eq.s32.totalorder %s18, 0
    %p237 = por %p235, %p236
    %p238 = scmp.ne.s32.totalorder %s230, %s232
    %p239 = scmp.eq.s32.totalorder %s23, 1
    %p240 = por %p238, %p239
    %p241 = scmp.ne.s32.totalorder %s232, %s233
    %p242 = scmp.eq.s32.totalorder %s23, 0
    %p243 = por %p241, %p242
    %p244 = scmp.ne.s32.totalorder %s232, %s233
    %p245 = scmp.eq.s32.totalorder %s24, 1
    %p246 = por %p244, %p245
    %p248 = scmp.ne.s32.totalorder %s233, %s247
    %p249 = scmp.eq.s32.totalorder %s24, 0
    %p250 = por %p248, %p249
    %s252 = sadd.s32 %s251, 1
    %p255 = scmp.eq.s32.totalorder %s18, 1
    %p256 = scmp.ne.s32.totalorder %s251, %s253
    %p257 = scmp.eq.s32.totalorder %s18, 0
    %p258 = por %p256, %p257
    %p259 = scmp.ne.s32.totalorder %s251, %s253
    %p260 = scmp.eq.s32.totalorder %s23, 1
    %p261 = por %p259, %p260
    %p262 = scmp.ne.s32.totalorder %s253, %s254
    %p263 = scmp.eq.s32.totalorder %s23, 0
    %p264 = por %p262, %p263
    %p265 = scmp.ne.s32.totalorder %s253, %s254
    %p266 = scmp.eq.s32.totalorder %s24, 1
    %p267 = por %p265, %p266
    %p269 = scmp.ne.s32.totalorder %s254, %s268
    %p270 = scmp.eq.s32.totalorder %s24, 0
    %p271 = por %p269, %p270
    %s273 = sadd.s32 %s272, 1
    %p276 = scmp.eq.s32.totalorder %s18, 1
    %p277 = scmp.ne.s32.totalorder %s272, %s274
    %p278 = scmp.eq.s32.totalorder %s18, 0
    %p279 = por %p277, %p278
    %p280 = scmp.ne.s32.totalorder %s272, %s274
    %p281 = scmp.eq.s32.totalorder %s23, 1
    %p282 = por %p280, %p281
    %p283 = scmp.ne.s32.totalorder %s274, %s275
    %p284 = scmp.eq.s32.totalorder %s23, 0
    %p285 = por %p283, %p284
    %p286 = scmp.ne.s32.totalorder %s274, %s275
    %p287 = scmp.eq.s32.totalorder %s24, 1
    %p288 = por %p286, %p287
    %p290 = scmp.ne.s32.totalorder %s275, %s289
    %p291 = scmp.eq.s32.totalorder %s24, 0
    %p292 = por %p290, %p291
    %s293 = ssub.s32 %s18, %s25
    %p294 = scmp.eq.s32.totalorder %s293, 0
    %s296 = sadd.s32 %s295, 1
    %s297 = scalar_select %p294, %s295, %s296
    %p300 = pneg %p294
    %p301 = scmp.eq.s32.totalorder %s18, 1
    %p302 = por %p300, %p301
    %p303 = scmp.ne.s32.totalorder %s295, %s298
    %p304 = scmp.eq.s32.totalorder %s18, 0
    %p305 = por %p303, %p304
    %p306 = scmp.ne.s32.totalorder %s295, %s298
    %p307 = scmp.eq.s32.totalorder %s23, 1
    %p308 = por %p306, %p307
    %p309 = scmp.ne.s32.totalorder %s298, %s299
    %p310 = scmp.eq.s32.totalorder %s23, 0
    %p311 = por %p309, %p310
    %p312 = scmp.ne.s32.totalorder %s298, %s299
    %p313 = scmp.eq.s32.totalorder %s24, 1
    %p314 = por %p312, %p313
    %p316 = scmp.ne.s32.totalorder %s299, %s315
    %p317 = scmp.eq.s32.totalorder %s24, 0
    %p318 = por %p316, %p317
    %p319 = scmp.le.s32.totalorder 1, %s18
    %p320 = scmp.lt.s32.totalorder %s18, 3
    %p321 = pnand %p319, %p320
    %p322 = pneg %p321
    // Predicated region
    $region9: #{_lambda_.15} parent=5 // pred_check
      _
    $region10: #{_lambda_.15} parent=5 // pred_check_branch
      %324 = sbr.rel (%p321) target = $region12
    $region11: #{_lambda_.15} parent=5 // pred_region
      %s325 = ssub.s32 %s18, 1
      // Predicated region
      $region13: #{_lambda_.15} parent=11 // pred_check
        %p326 = pneg %p117
      $region14: #{_lambda_.15} parent=11 // pred_check_branch
        %328 = sbr.rel (%p326) target = $region16
      $region15: #{_lambda_.15} parent=11 // pred_region
        _
      $region16: #{_lambda_.15} parent=11 // pred_fallthru
        _
      // Predicated region
      $region17: #{_lambda_.15} parent=11 // pred_check
        %p329 = pneg %p138
      $region18: #{_lambda_.15} parent=11 // pred_check_branch
        %331 = sbr.rel (%p329) target = $region20
      $region19: #{_lambda_.15} parent=11 // pred_region
        _
      $region20: #{_lambda_.15} parent=11 // pred_fallthru
        _
      // Predicated region
      $region21: #{_lambda_.15} parent=11 // pred_check
        %p332 = pneg %p159
      $region22: #{_lambda_.15} parent=11 // pred_check_branch
        %334 = sbr.rel (%p332) target = $region24
      $region23: #{_lambda_.15} parent=11 // pred_region
        _
      $region24: #{_lambda_.15} parent=11 // pred_fallthru
        _
      // Predicated region
      $region25: #{_lambda_.15} parent=11 // pred_check
        %p335 = pneg %p180
      $region26: #{_lambda_.15} parent=11 // pred_check_branch
        %337 = sbr.rel (%p335) target = $region28
      $region27: #{_lambda_.15} parent=11 // pred_region
        _
      $region28: #{_lambda_.15} parent=11 // pred_fallthru
        _
      // Predicated region
      $region29: #{_lambda_.15} parent=11 // pred_check
        %p338 = pneg %p201
      $region30: #{_lambda_.15} parent=11 // pred_check_branch
        %340 = sbr.rel (%p338) target = $region32
      $region31: #{_lambda_.15} parent=11 // pred_region
        _
      $region32: #{_lambda_.15} parent=11 // pred_fallthru
        _
      // Predicated region
      $region33: #{_lambda_.15} parent=11 // pred_check
        %p341 = pneg %p222
      $region34: #{_lambda_.15} parent=11 // pred_check_branch
        %343 = sbr.rel (%p341) target = $region36
      $region35: #{_lambda_.15} parent=11 // pred_region
        _
      $region36: #{_lambda_.15} parent=11 // pred_fallthru
        _
      // Predicated region
      $region37: #{_lambda_.15} parent=11 // pred_check
        %p344 = pneg %p243
      $region38: #{_lambda_.15} parent=11 // pred_check_branch
        %346 = sbr.rel (%p344) target = $region40
      $region39: #{_lambda_.15} parent=11 // pred_region
        _
      $region40: #{_lambda_.15} parent=11 // pred_fallthru
        _
      // Predicated region
      $region41: #{_lambda_.15} parent=11 // pred_check
        %p347 = pneg %p264
      $region42: #{_lambda_.15} parent=11 // pred_check_branch
        %349 = sbr.rel (%p347) target = $region44
      $region43: #{_lambda_.15} parent=11 // pred_region
        _
      $region44: #{_lambda_.15} parent=11 // pred_fallthru
        _
      // Predicated region
      $region45: #{_lambda_.15} parent=11 // pred_check
        %p350 = pneg %p285
      $region46: #{_lambda_.15} parent=11 // pred_check_branch
        %352 = sbr.rel (%p350) target = $region48
      $region47: #{_lambda_.15} parent=11 // pred_region
        _
      $region48: #{_lambda_.15} parent=11 // pred_fallthru
        _
    $region12: #{_lambda_.15} parent=5 // pred_fallthru
      _
    %p353 = scmp.lt.s32.totalorder %s18, 2
    // Predicated region
    $region49: #{_lambda_.15} parent=5 // pred_check
      %p354 = pneg %p353
    $region50: #{_lambda_.15} parent=5 // pred_check_branch
      %356 = sbr.rel (%p354) target = $region52
    $region51: #{_lambda_.15} parent=5 // pred_region
      // Predicated region
      $region53: #{_lambda_.15} parent=51 // pred_check
        %p357 = pneg %p38
      $region54: #{_lambda_.15} parent=51 // pred_check_branch
        %359 = sbr.rel (%p357) target = $region56
      $region55: #{_lambda_.15} parent=51 // pred_region
        %p360 = scmp.lt.s32.totalorder %s18, 1
        %s361 = scalar_select %p360, %s18, 1
        %s362 = smul.addr %s361, 2
        %s363 = scalar_lea.vmem %s0, %s362
      $region56: #{_lambda_.15} parent=51 // pred_fallthru
        _
      // Predicated region
      $region57: #{_lambda_.15} parent=51 // pred_check
        %p364 = pneg %p64
      $region58: #{_lambda_.15} parent=51 // pred_check_branch
        %366 = sbr.rel (%p364) target = $region60
      $region59: #{_lambda_.15} parent=51 // pred_region
        %p367 = scmp.lt.s32.totalorder %s18, 1
        %s368 = scalar_select %p367, %s18, 1
        %s369 = smul.addr %s368, 2
        %s370 = scalar_lea.vmem %s1, %s369
      $region60: #{_lambda_.15} parent=51 // pred_fallthru
        _
      // Predicated region
      $region61: #{_lambda_.15} parent=51 // pred_check
        %p371 = pneg %p90
      $region62: #{_lambda_.15} parent=51 // pred_check_branch
        %373 = sbr.rel (%p371) target = $region64
      $region63: #{_lambda_.15} parent=51 // pred_region
        %p374 = scmp.lt.s32.totalorder %s18, 1
        %s375 = scalar_select %p374, %s18, 1
        %s376 = smul.addr %s375, 2
        %s377 = scalar_lea.vmem %s2, %s376
      $region64: #{_lambda_.15} parent=51 // pred_fallthru
        _
    $region52: #{_lambda_.15} parent=5 // pred_fallthru
      _
    %p378 = scmp.le.s32.totalorder 1, %s18
    %p379 = scmp.lt.s32.totalorder %s18, 3
    %p380 = pnand %p378, %p379
    %p381 = pneg %p380
    // Predicated region
    $region65: #{_lambda_.15} parent=5 // pred_check
      _
    $region66: #{_lambda_.15} parent=5 // pred_check_branch
      %383 = sbr.rel (%p380) target = $region68
    $region67: #{_lambda_.15} parent=5 // pred_region
      %s384 = ssub.s32 %s18, 1
      %p385 = scmp.lt.s32.totalorder %s23, 1
      %s386 = scalar_select %p385, %s23, 1
      %s387 = smul.addr %s386, 2
      %s388 = scalar_lea.vmem %s0, %s387
      %p389 = pneg %p44
      %p390 = pneg %p41
      %p391 = scmp.lt.s32.totalorder %s23, 1
      %s392 = scalar_select %p391, %s23, 1
      %s393 = smul.addr %s392, 2
      %s394 = scalar_lea.vmem %s1, %s393
      %p395 = pneg %p70
      %p396 = pneg %p67
      %p397 = scmp.lt.s32.totalorder %s23, 1
      %s398 = scalar_select %p397, %s23, 1
      %s399 = smul.addr %s398, 2
      %s400 = scalar_lea.vmem %s2, %s399
      %p401 = pneg %p96
      %p402 = pneg %p93
      %p403 = pneg %p117
      %p404 = pneg %p114
      %p405 = pneg %p138
      %p406 = pneg %p135
      %p407 = pneg %p159
      %p408 = pneg %p156
      %p409 = pneg %p180
      %p410 = pneg %p177
      %p411 = pneg %p201
      %p412 = pneg %p198
      %p413 = pneg %p222
      %p414 = pneg %p219
      %p415 = pneg %p243
      %p416 = pneg %p240
      %p417 = pneg %p264
      %p418 = pneg %p261
      %p419 = pneg %p285
      %p420 = pneg %p282
      %p421 = pneg %p311
      %p422 = pneg %p308
      %p423 = scmp.lt.s32.totalorder %s23, 1
      %s424 = scalar_select %p423, %s23, 1
      %s425 = smul.addr %s424, 2
      %s426 = smul.addr %s425, 2
      %s427 = scalar_lea.vmem %s12, %s426
      %p428 = scmp.lt.s32.totalorder %s23, 1
      %s429 = scalar_select %p428, %s23, 1
      %s430 = smul.addr %s429, 2
      %s431 = scalar_lea.vmem %s0, %s430
      %p432 = scmp.lt.s32.totalorder %s23, 1
      %s433 = scalar_select %p432, %s23, 1
      %s434 = smul.addr %s433, 2
      %s435 = scalar_lea.vmem %s1, %s434
      %p436 = scmp.lt.s32.totalorder %s23, 1
      %s437 = scalar_select %p436, %s23, 1
      %s438 = smul.addr %s437, 2
      %s439 = scalar_lea.vmem %s2, %s438
      %p440 = scmp.lt.s32.totalorder %s23, 1
      %s441 = scalar_select %p440, %s23, 1
      %s442 = smul.addr %s441, 2
      %s443 = smul.addr %s442, 2
      %s444 = scalar_lea.vmem %s12, %s443
      %v446 = vld [vmem:[%s431] sm:$0x3]
      %v447 = vld [vmem:[%s3] sm:$0xff]
      %v448 = vld [vmem:[%s3 + $0x8] sm:$0xff]
      %v449 = vld [vmem:[%s3 + $0x10] sm:$0xff]
      %v450 = vld [vmem:[%s3 + $0x18] sm:$0xff]
      %v451 = vld [vmem:[%s3 + $0x20] sm:$0xff]
      %v452 = vld [vmem:[%s3 + $0x28] sm:$0xff]
      %v453 = vld [vmem:[%s3 + $0x30] sm:$0xff]
      %v454 = vld [vmem:[%s3 + $0x38] sm:$0xff]
      %v455 = vld [vmem:[%s3 + $0x40] sm:$0xff]
      %v456 = vld [vmem:[%s3 + $0x48] sm:$0xff]
      %v457 = vld [vmem:[%s3 + $0x50] sm:$0xff]
      %v458 = vld [vmem:[%s3 + $0x58] sm:$0xff]
      %v459 = vld [vmem:[%s3 + $0x60] sm:$0xff]
      %v460 = vld [vmem:[%s3 + $0x68] sm:$0xff]
      %v461 = vld [vmem:[%s3 + $0x70] sm:$0xff]
      %v462 = vld [vmem:[%s3 + $0x78] sm:$0xff]
      %v463 = vld [vmem:[%s435] sm:$0x3]
      %s464 = scalar_lea.vmem %s3, 128
      %v465 = vld [vmem:[%s464] sm:$0xff]
      %v466 = vld [vmem:[%s464 + $0x8] sm:$0xff]
      %v467 = vld [vmem:[%s464 + $0x10] sm:$0xff]
      %v468 = vld [vmem:[%s464 + $0x18] sm:$0xff]
      %v469 = vld [vmem:[%s464 + $0x20] sm:$0xff]
      %v470 = vld [vmem:[%s464 + $0x28] sm:$0xff]
      %v471 = vld [vmem:[%s464 + $0x30] sm:$0xff]
      %v472 = vld [vmem:[%s464 + $0x38] sm:$0xff]
      %v473 = vld [vmem:[%s464 + $0x40] sm:$0xff]
      %v474 = vld [vmem:[%s464 + $0x48] sm:$0xff]
      %v475 = vld [vmem:[%s464 + $0x50] sm:$0xff]
      %v476 = vld [vmem:[%s464 + $0x58] sm:$0xff]
      %v477 = vld [vmem:[%s464 + $0x60] sm:$0xff]
      %v478 = vld [vmem:[%s464 + $0x68] sm:$0xff]
      %v479 = vld [vmem:[%s464 + $0x70] sm:$0xff]
      %v480 = vld [vmem:[%s464 + $0x78] sm:$0xff]
      %v497 = vunpack.c.l.b16 %v465
      %v498 = vunpack.c.h.b16 %v465
      %v499 = vunpack.c.l.b16 %v466
      %v500 = vunpack.c.h.b16 %v466
      %v501 = vunpack.c.l.b16 %v467
      %v502 = vunpack.c.h.b16 %v467
      %v503 = vunpack.c.l.b16 %v468
      %v504 = vunpack.c.h.b16 %v468
      %v505 = vunpack.c.l.b16 %v469
      %v506 = vunpack.c.h.b16 %v469
      %v507 = vunpack.c.l.b16 %v470
      %v508 = vunpack.c.h.b16 %v470
      %v509 = vunpack.c.l.b16 %v471
      %v510 = vunpack.c.h.b16 %v471
      %v511 = vunpack.c.l.b16 %v472
      %v512 = vunpack.c.h.b16 %v472
      %v513 = vunpack.c.l.b16 %v473
      %v514 = vunpack.c.h.b16 %v473
      %v515 = vunpack.c.l.b16 %v474
      %v516 = vunpack.c.h.b16 %v474
      %v517 = vunpack.c.l.b16 %v475
      %v518 = vunpack.c.h.b16 %v475
      %v519 = vunpack.c.l.b16 %v476
      %v520 = vunpack.c.h.b16 %v476
      %v521 = vunpack.c.l.b16 %v477
      %v522 = vunpack.c.h.b16 %v477
      %v523 = vunpack.c.l.b16 %v478
      %v524 = vunpack.c.h.b16 %v478
      %v525 = vunpack.c.l.b16 %v479
      %v526 = vunpack.c.h.b16 %v479
      %v527 = vunpack.c.l.b16 %v480
      %v528 = vunpack.c.h.b16 %v480
      %v529 = vpack.c.b16 %v499, %v497
      %v530 = vpack.c.b16 %v500, %v498
      %v531 = vpack.c.b16 %v503, %v501
      %v532 = vpack.c.b16 %v504, %v502
      %v533 = vpack.c.b16 %v507, %v505
      %v534 = vpack.c.b16 %v508, %v506
      %v535 = vpack.c.b16 %v511, %v509
      %v536 = vpack.c.b16 %v512, %v510
      %v537 = vpack.c.b16 %v515, %v513
      %v538 = vpack.c.b16 %v516, %v514
      %v539 = vpack.c.b16 %v519, %v517
      %v540 = vpack.c.b16 %v520, %v518
      %v541 = vpack.c.b16 %v523, %v521
      %v542 = vpack.c.b16 %v524, %v522
      %v543 = vpack.c.b16 %v527, %v525
      %v544 = vpack.c.b16 %v528, %v526
      %561 = vmatprep.subr.bf16.mxu0 %v530
      %562 = vmatpush1.bf16.msra.mxu0 %v529
      %563 = vmatprep.subr.bf16.mxu0 %v532
      %564 = vmatpush1.bf16.msra.mxu0 %v531
      %565 = vmatprep.subr.bf16.mxu0 %v534
      %566 = vmatpush1.bf16.msra.mxu0 %v533
      %567 = vmatprep.subr.bf16.mxu0 %v536
      %568 = vmatpush1.bf16.msra.mxu0 %v535
      %569 = vmatprep.subr.bf16.mxu0 %v538
      %570 = vmatpush1.bf16.msra.mxu0 %v537
      %571 = vmatprep.subr.bf16.mxu0 %v540
      %572 = vmatpush1.bf16.msra.mxu0 %v539
      %573 = vmatprep.subr.bf16.mxu0 %v542
      %574 = vmatpush1.bf16.msra.mxu0 %v541
      %575 = vmatprep.subr.bf16.mxu0 %v544
      %576 = vmatpush1.bf16.msra.mxu0 %v543
      %577 = vmatprep.subr.bf16.mxu0 0
      %578 = vmatpush1.bf16.msra.mxu0 0
      %579 = vmatprep.subr.bf16.mxu0 0
      %580 = vmatpush1.bf16.msra.mxu0 0
      %581 = vmatprep.subr.bf16.mxu0 0
      %582 = vmatpush1.bf16.msra.mxu0 0
      %583 = vmatprep.subr.bf16.mxu0 0
      %584 = vmatpush1.bf16.msra.mxu0 0
      %585 = vmatprep.subr.bf16.mxu0 0
      %586 = vmatpush1.bf16.msra.mxu0 0
      %587 = vmatprep.subr.bf16.mxu0 0
      %588 = vmatpush1.bf16.msra.mxu0 0
      %589 = vmatprep.subr.bf16.mxu0 0
      %590 = vmatpush1.bf16.msra.mxu0 0
      %591 = vmatprep.subr.bf16.mxu0 0
      %592 = vmatpush1.bf16.msra.mxu0 0
      %593 = vmatprep.mubr.bf16.mxu0 0
      %594 = vmatmul.mubr.bf16.gmra.mrb[0].mxu0 %v463
      %v595 = vpop.f32.mrb[0].mxu0
      %v596 = vadd.f32 0.0, %v595
      %v597 = vpop.f32.mrb[0].mxu0
      %v598 = vadd.f32 0.0, %v597
      %v599 = vpop.f32.mrb[0].mxu0
      %v600 = vpop.f32.mrb[0].mxu0
      %601 = vdwg.mxu0
      %v618 = vunpack.c.l.b16 %v447
      %v619 = vunpack.c.h.b16 %v447
      %v620 = vunpack.c.l.b16 %v448
      %v621 = vunpack.c.h.b16 %v448
      %v622 = vunpack.c.l.b16 %v449
      %v623 = vunpack.c.h.b16 %v449
      %v624 = vunpack.c.l.b16 %v450
      %v625 = vunpack.c.h.b16 %v450
      %v626 = vunpack.c.l.b16 %v451
      %v627 = vunpack.c.h.b16 %v451
      %v628 = vunpack.c.l.b16 %v452
      %v629 = vunpack.c.h.b16 %v452
      %v630 = vunpack.c.l.b16 %v453
      %v631 = vunpack.c.h.b16 %v453
      %v632 = vunpack.c.l.b16 %v454
      %v633 = vunpack.c.h.b16 %v454
      %v634 = vunpack.c.l.b16 %v455
      %v635 = vunpack.c.h.b16 %v455
      %v636 = vunpack.c.l.b16 %v456
      %v637 = vunpack.c.h.b16 %v456
      %v638 = vunpack.c.l.b16 %v457
      %v639 = vunpack.c.h.b16 %v457
      %v640 = vunpack.c.l.b16 %v458
      %v641 = vunpack.c.h.b16 %v458
      %v642 = vunpack.c.l.b16 %v459
      %v643 = vunpack.c.h.b16 %v459
      %v644 = vunpack.c.l.b16 %v460
      %v645 = vunpack.c.h.b16 %v460
      %v646 = vunpack.c.l.b16 %v461
      %v647 = vunpack.c.h.b16 %v461
      %v648 = vunpack.c.l.b16 %v462
      %v649 = vunpack.c.h.b16 %v462
      %v650 = vpack.c.b16 %v620, %v618
      %v651 = vpack.c.b16 %v621, %v619
      %v652 = vpack.c.b16 %v624, %v622
      %v653 = vpack.c.b16 %v625, %v623
      %v654 = vpack.c.b16 %v628, %v626
      %v655 = vpack.c.b16 %v629, %v627
      %v656 = vpack.c.b16 %v632, %v630
      %v657 = vpack.c.b16 %v633, %v631
      %v658 = vpack.c.b16 %v636, %v634
      %v659 = vpack.c.b16 %v637, %v635
      %v660 = vpack.c.b16 %v640, %v638
      %v661 = vpack.c.b16 %v641, %v639
      %v662 = vpack.c.b16 %v644, %v642
      %v663 = vpack.c.b16 %v645, %v643
      %v664 = vpack.c.b16 %v648, %v646
      %v665 = vpack.c.b16 %v649, %v647
      %682 = vmatprep.subr.bf16.mxu0 %v651
      %683 = vmatpush1.bf16.msra.mxu0 %v650
      %684 = vmatprep.subr.bf16.mxu0 %v653
      %685 = vmatpush1.bf16.msra.mxu0 %v652
      %686 = vmatprep.subr.bf16.mxu0 %v655
      %687 = vmatpush1.bf16.msra.mxu0 %v654
      %688 = vmatprep.subr.bf16.mxu0 %v657
      %689 = vmatpush1.bf16.msra.mxu0 %v656
      %690 = vmatprep.subr.bf16.mxu0 %v659
      %691 = vmatpush1.bf16.msra.mxu0 %v658
      %692 = vmatprep.subr.bf16.mxu0 %v661
      %693 = vmatpush1.bf16.msra.mxu0 %v660
      %694 = vmatprep.subr.bf16.mxu0 %v663
      %695 = vmatpush1.bf16.msra.mxu0 %v662
      %696 = vmatprep.subr.bf16.mxu0 %v665
      %697 = vmatpush1.bf16.msra.mxu0 %v664
      %698 = vmatprep.subr.bf16.mxu0 0
      %699 = vmatpush1.bf16.msra.mxu0 0
      %700 = vmatprep.subr.bf16.mxu0 0
      %701 = vmatpush1.bf16.msra.mxu0 0
      %702 = vmatprep.subr.bf16.mxu0 0
      %703 = vmatpush1.bf16.msra.mxu0 0
      %704 = vmatprep.subr.bf16.mxu0 0
      %705 = vmatpush1.bf16.msra.mxu0 0
      %706 = vmatprep.subr.bf16.mxu0 0
      %707 = vmatpush1.bf16.msra.mxu0 0
      %708 = vmatprep.subr.bf16.mxu0 0
      %709 = vmatpush1.bf16.msra.mxu0 0
      %710 = vmatprep.subr.bf16.mxu0 0
      %711 = vmatpush1.bf16.msra.mxu0 0
      %712 = vmatprep.subr.bf16.mxu0 0
      %713 = vmatpush1.bf16.msra.mxu0 0
      %714 = vmatprep.mubr.bf16.mxu0 0
      %715 = vmatmul.mubr.bf16.gmra.mrb[0].mxu0 %v446
      %v716 = vpop.f32.mrb[0].mxu0
      %v717 = vadd.f32 %v596, %v716
      %v718 = vpop.f32.mrb[0].mxu0
      %v719 = vadd.f32 %v598, %v718
      %v720 = vpop.f32.mrb[0].mxu0
      %v721 = vpop.f32.mrb[0].mxu0
      %722 = vdwg.mxu0
      %v723 = vld [vmem:[%s439] sm:$0x3]
      %s724 = scalar_lea.vmem %s3, 256
      %v725 = vld [vmem:[%s724] sm:$0xff]
      %v726 = vld [vmem:[%s724 + $0x8] sm:$0xff]
      %v727 = vld [vmem:[%s724 + $0x10] sm:$0xff]
      %v728 = vld [vmem:[%s724 + $0x18] sm:$0xff]
      %v729 = vld [vmem:[%s724 + $0x20] sm:$0xff]
      %v730 = vld [vmem:[%s724 + $0x28] sm:$0xff]
      %v731 = vld [vmem:[%s724 + $0x30] sm:$0xff]
      %v732 = vld [vmem:[%s724 + $0x38] sm:$0xff]
      %v733 = vld [vmem:[%s724 + $0x40] sm:$0xff]
      %v734 = vld [vmem:[%s724 + $0x48] sm:$0xff]
      %v735 = vld [vmem:[%s724 + $0x50] sm:$0xff]
      %v736 = vld [vmem:[%s724 + $0x58] sm:$0xff]
      %v737 = vld [vmem:[%s724 + $0x60] sm:$0xff]
      %v738 = vld [vmem:[%s724 + $0x68] sm:$0xff]
      %v739 = vld [vmem:[%s724 + $0x70] sm:$0xff]
      %v740 = vld [vmem:[%s724 + $0x78] sm:$0xff]
      %v757 = vunpack.c.l.b16 %v725
      %v758 = vunpack.c.h.b16 %v725
      %v759 = vunpack.c.l.b16 %v726
      %v760 = vunpack.c.h.b16 %v726
      %v761 = vunpack.c.l.b16 %v727
      %v762 = vunpack.c.h.b16 %v727
      %v763 = vunpack.c.l.b16 %v728
      %v764 = vunpack.c.h.b16 %v728
      %v765 = vunpack.c.l.b16 %v729
      %v766 = vunpack.c.h.b16 %v729
      %v767 = vunpack.c.l.b16 %v730
      %v768 = vunpack.c.h.b16 %v730
      %v769 = vunpack.c.l.b16 %v731
      %v770 = vunpack.c.h.b16 %v731
      %v771 = vunpack.c.l.b16 %v732
      %v772 = vunpack.c.h.b16 %v732
      %v773 = vunpack.c.l.b16 %v733
      %v774 = vunpack.c.h.b16 %v733
      %v775 = vunpack.c.l.b16 %v734
      %v776 = vunpack.c.h.b16 %v734
      %v777 = vunpack.c.l.b16 %v735
      %v778 = vunpack.c.h.b16 %v735
      %v779 = vunpack.c.l.b16 %v736
      %v780 = vunpack.c.h.b16 %v736
      %v781 = vunpack.c.l.b16 %v737
      %v782 = vunpack.c.h.b16 %v737
      %v783 = vunpack.c.l.b16 %v738
      %v784 = vunpack.c.h.b16 %v738
      %v785 = vunpack.c.l.b16 %v739
      %v786 = vunpack.c.h.b16 %v739
      %v787 = vunpack.c.l.b16 %v740
      %v788 = vunpack.c.h.b16 %v740
      %v789 = vpack.c.b16 %v759, %v757
      %v790 = vpack.c.b16 %v760, %v758
      %v791 = vpack.c.b16 %v763, %v761
      %v792 = vpack.c.b16 %v764, %v762
      %v793 = vpack.c.b16 %v767, %v765
      %v794 = vpack.c.b16 %v768, %v766
      %v795 = vpack.c.b16 %v771, %v769
      %v796 = vpack.c.b16 %v772, %v770
      %v797 = vpack.c.b16 %v775, %v773
      %v798 = vpack.c.b16 %v776, %v774
      %v799 = vpack.c.b16 %v779, %v777
      %v800 = vpack.c.b16 %v780, %v778
      %v801 = vpack.c.b16 %v783, %v781
      %v802 = vpack.c.b16 %v784, %v782
      %v803 = vpack.c.b16 %v787, %v785
      %v804 = vpack.c.b16 %v788, %v786
      %821 = vmatprep.subr.bf16.mxu0 %v790
      %822 = vmatpush1.bf16.msra.mxu0 %v789
      %823 = vmatprep.subr.bf16.mxu0 %v792
      %824 = vmatpush1.bf16.msra.mxu0 %v791
      %825 = vmatprep.subr.bf16.mxu0 %v794
      %826 = vmatpush1.bf16.msra.mxu0 %v793
      %827 = vmatprep.subr.bf16.mxu0 %v796
      %828 = vmatpush1.bf16.msra.mxu0 %v795
      %829 = vmatprep.subr.bf16.mxu0 %v798
      %830 = vmatpush1.bf16.msra.mxu0 %v797
      %831 = vmatprep.subr.bf16.mxu0 %v800
      %832 = vmatpush1.bf16.msra.mxu0 %v799
      %833 = vmatprep.subr.bf16.mxu0 %v802
      %834 = vmatpush1.bf16.msra.mxu0 %v801
      %835 = vmatprep.subr.bf16.mxu0 %v804
      %836 = vmatpush1.bf16.msra.mxu0 %v803
      %837 = vmatprep.subr.bf16.mxu0 0
      %838 = vmatpush1.bf16.msra.mxu0 0
      %839 = vmatprep.subr.bf16.mxu0 0
      %840 = vmatpush1.bf16.msra.mxu0 0
      %841 = vmatprep.subr.bf16.mxu0 0
      %842 = vmatpush1.bf16.msra.mxu0 0
      %843 = vmatprep.subr.bf16.mxu0 0
      %844 = vmatpush1.bf16.msra.mxu0 0
      %845 = vmatprep.subr.bf16.mxu0 0
      %846 = vmatpush1.bf16.msra.mxu0 0
      %847 = vmatprep.subr.bf16.mxu0 0
      %848 = vmatpush1.bf16.msra.mxu0 0
      %849 = vmatprep.subr.bf16.mxu0 0
      %850 = vmatpush1.bf16.msra.mxu0 0
      %851 = vmatprep.subr.bf16.mxu0 0
      %852 = vmatpush1.bf16.msra.mxu0 0
      %853 = vmatprep.mubr.bf16.mxu0 0
      %854 = vmatmul.mubr.bf16.gmra.mrb[0].mxu0 %v723
      %v855 = vpop.f32.mrb[0].mxu0
      %v856 = vadd.f32 0.0, %v855
      %v857 = vpop.f32.mrb[0].mxu0
      %v858 = vadd.f32 0.0, %v857
      %v859 = vpop.f32.mrb[0].mxu0
      %v860 = vpop.f32.mrb[0].mxu0
      %861 = vdwg.mxu0
      %v862 = vadd.f32 %v717, %v856
      %v863 = vadd.f32 %v719, %v858
      %v864 = vld [vmem:[%s4] sm:$0x3]
      %v866 = vlaneseq
      %v867 = vshrl.u32 %v866, 7
      %v868 = vsub.s32 0, %v867
      %v869 = vrot.slane %v864, %v868
      %v870 = vlaneseq
      %v871 = vshrl.u32 %v870, 7
      %v872 = vsub.s32 1, %v871
      %v873 = vrot.slane %v864, %v872
      %v876 = vmul.f32 %v862, %v869
      %v877 = vmul.f32 %v863, %v873
      %v878 = vld [vmem:[%s5] sm:$0x3]
      %v880 = vlaneseq
      %v881 = vshrl.u32 %v880, 7
      %v882 = vsub.s32 0, %v881
      %v883 = vrot.slane %v878, %v882
      %v884 = vlaneseq
      %v885 = vshrl.u32 %v884, 7
      %v886 = vsub.s32 1, %v885
      %v887 = vrot.slane %v878, %v886
      %v890 = vadd.f32 %v876, %v883
      %v891 = vadd.f32 %v877, %v887
      %v892 = vmax.f32 %v890, 0.0
      %v893 = vmax.f32 %v891, 0.0
      %v894 = vld [vmem:[%s6] sm:$0xff]
      %v895 = vld [vmem:[%s6 + $0x8] sm:$0xff]
      %v896 = vld [vmem:[%s6 + $0x10] sm:$0xff]
      %v897 = vld [vmem:[%s6 + $0x18] sm:$0xff]
      %v898 = vld [vmem:[%s6 + $0x20] sm:$0xff]
      %v899 = vld [vmem:[%s6 + $0x28] sm:$0xff]
      %v900 = vld [vmem:[%s6 + $0x30] sm:$0xff]
      %v901 = vld [vmem:[%s6 + $0x38] sm:$0xff]
      %v902 = vld [vmem:[%s6 + $0x40] sm:$0xff]
      %v903 = vld [vmem:[%s6 + $0x48] sm:$0xff]
      %v904 = vld [vmem:[%s6 + $0x50] sm:$0xff]
      %v905 = vld [vmem:[%s6 + $0x58] sm:$0xff]
      %v906 = vld [vmem:[%s6 + $0x60] sm:$0xff]
      %v907 = vld [vmem:[%s6 + $0x68] sm:$0xff]
      %v908 = vld [vmem:[%s6 + $0x70] sm:$0xff]
      %v909 = vld [vmem:[%s6 + $0x78] sm:$0xff]
      %v926 = vunpack.c.l.b16 %v894
      %v927 = vunpack.c.h.b16 %v894
      %v928 = vunpack.c.l.b16 %v895
      %v929 = vunpack.c.h.b16 %v895
      %v930 = vunpack.c.l.b16 %v896
      %v931 = vunpack.c.h.b16 %v896
      %v932 = vunpack.c.l.b16 %v897
      %v933 = vunpack.c.h.b16 %v897
      %v934 = vunpack.c.l.b16 %v898
      %v935 = vunpack.c.h.b16 %v898
      %v936 = vunpack.c.l.b16 %v899
      %v937 = vunpack.c.h.b16 %v899
      %v938 = vunpack.c.l.b16 %v900
      %v939 = vunpack.c.h.b16 %v900
      %v940 = vunpack.c.l.b16 %v901
      %v941 = vunpack.c.h.b16 %v901
      %v942 = vunpack.c.l.b16 %v902
      %v943 = vunpack.c.h.b16 %v902
      %v944 = vunpack.c.l.b16 %v903
      %v945 = vunpack.c.h.b16 %v903
      %v946 = vunpack.c.l.b16 %v904
      %v947 = vunpack.c.h.b16 %v904
      %v948 = vunpack.c.l.b16 %v905
      %v949 = vunpack.c.h.b16 %v905
      %v950 = vunpack.c.l.b16 %v906
      %v951 = vunpack.c.h.b16 %v906
      %v952 = vunpack.c.l.b16 %v907
      %v953 = vunpack.c.h.b16 %v907
      %v954 = vunpack.c.l.b16 %v908
      %v955 = vunpack.c.h.b16 %v908
      %v956 = vunpack.c.l.b16 %v909
      %v957 = vunpack.c.h.b16 %v909
      %v958 = vpack.c.b16 %v928, %v926
      %v959 = vpack.c.b16 %v929, %v927
      %v960 = vpack.c.b16 %v932, %v930
      %v961 = vpack.c.b16 %v933, %v931
      %v962 = vpack.c.b16 %v936, %v934
      %v963 = vpack.c.b16 %v937, %v935
      %v964 = vpack.c.b16 %v940, %v938
      %v965 = vpack.c.b16 %v941, %v939
      %v966 = vpack.c.b16 %v944, %v942
      %v967 = vpack.c.b16 %v945, %v943
      %v968 = vpack.c.b16 %v948, %v946
      %v969 = vpack.c.b16 %v949, %v947
      %v970 = vpack.c.b16 %v952, %v950
      %v971 = vpack.c.b16 %v953, %v951
      %v972 = vpack.c.b16 %v956, %v954
      %v973 = vpack.c.b16 %v957, %v955
      %990 = vmatprep.subr.bf16.mxu0 %v959
      %991 = vmatpush1.bf16.msra.mxu0 %v958
      %992 = vmatprep.subr.bf16.mxu0 %v961
      %993 = vmatpush1.bf16.msra.mxu0 %v960
      %994 = vmatprep.subr.bf16.mxu0 %v963
      %995 = vmatpush1.bf16.msra.mxu0 %v962
      %996 = vmatprep.subr.bf16.mxu0 %v965
      %997 = vmatpush1.bf16.msra.mxu0 %v964
      %998 = vmatprep.subr.bf16.mxu0 %v967
      %999 = vmatpush1.bf16.msra.mxu0 %v966
      %1000 = vmatprep.subr.bf16.mxu0 %v969
      %1001 = vmatpush1.bf16.msra.mxu0 %v968
      %1002 = vmatprep.subr.bf16.mxu0 %v971
      %1003 = vmatpush1.bf16.msra.mxu0 %v970
      %1004 = vmatprep.subr.bf16.mxu0 %v973
      %1005 = vmatpush1.bf16.msra.mxu0 %v972
      %1006 = vmatprep.subr.bf16.mxu0 0
      %1007 = vmatpush1.bf16.msra.mxu0 0
      %1008 = vmatprep.subr.bf16.mxu0 0
      %1009 = vmatpush1.bf16.msra.mxu0 0
      %1010 = vmatprep.subr.bf16.mxu0 0
      %1011 = vmatpush1.bf16.msra.mxu0 0
      %1012 = vmatprep.subr.bf16.mxu0 0
      %1013 = vmatpush1.bf16.msra.mxu0 0
      %1014 = vmatprep.subr.bf16.mxu0 0
      %1015 = vmatpush1.bf16.msra.mxu0 0
      %1016 = vmatprep.subr.bf16.mxu0 0
      %1017 = vmatpush1.bf16.msra.mxu0 0
      %1018 = vmatprep.subr.bf16.mxu0 0
      %1019 = vmatpush1.bf16.msra.mxu0 0
      %1020 = vmatprep.subr.bf16.mxu0 0
      %1021 = vmatpush1.bf16.msra.mxu0 0
      %1022 = vmatprep.mubr.bf16.mxu0 0
      %1023 = vmatmul.mubr.bf16.gmra.mrb[0].mxu0 %v463
      %v1024 = vpop.f32.mrb[0].mxu0
      %v1025 = vadd.f32 0.0, %v1024
      %v1026 = vpop.f32.mrb[0].mxu0
      %v1027 = vadd.f32 0.0, %v1026
      %v1028 = vpop.f32.mrb[0].mxu0
      %v1029 = vpop.f32.mrb[0].mxu0
      %1030 = vdwg.mxu0
      %v1031 = vld [vmem:[%s7] sm:$0x3]
      %v1033 = vlaneseq
      %v1034 = vshrl.u32 %v1033, 7
      %v1035 = vsub.s32 0, %v1034
      %v1036 = vrot.slane %v1031, %v1035
      %v1037 = vlaneseq
      %v1038 = vshrl.u32 %v1037, 7
      %v1039 = vsub.s32 1, %v1038
      %v1040 = vrot.slane %v1031, %v1039
      %v1043 = vmul.f32 %v1025, %v1036
      %v1044 = vmul.f32 %v1027, %v1040
      %v1045 = vld [vmem:[%s8] sm:$0x3]
      %v1047 = vlaneseq
      %v1048 = vshrl.u32 %v1047, 7
      %v1049 = vsub.s32 0, %v1048
      %v1050 = vrot.slane %v1045, %v1049
      %v1051 = vlaneseq
      %v1052 = vshrl.u32 %v1051, 7
      %v1053 = vsub.s32 1, %v1052
      %v1054 = vrot.slane %v1045, %v1053
      %v1057 = vadd.f32 %v1043, %v1050
      %v1058 = vadd.f32 %v1044, %v1054
      %1059 = vst [vmem:[#allocation2] sm:$0xff] 0
      %1060 = vst [vmem:[#allocation2 + $0x8] sm:$0xff] 0
      %1061 = vst [vmem:[#allocation2 + $0x10] sm:$0xff] 0
      %1062 = vst [vmem:[#allocation2 + $0x18] sm:$0xff] 0
      %1063 = vst [vmem:[#allocation2 + $0x20] sm:$0x33] 0
      %v1064 = vpack.c.bf16 %v892, %v892
      %v1065 = vpack.c.bf16 %v893, %v893
      %v1068 = vunpack.c.l.b16 %v1064
      %v1069 = vunpack.c.l.b16 %v1065
      %v1070 = vpack.c.b16 %v1069, %v1068
      %1072 = vst [vmem:[#allocation2 + $0x10] sm:$0x33] %v1070
      %v1073 = vld [vmem:[#allocation2 + $0x8] sm:$0x88]
      %v1074 = vld [vmem:[#allocation2 + $0x10] sm:$0x33]
      %v1075 = vld [vmem:[%s9] sm:$0xff]
      %v1076 = vld [vmem:[%s9 + $0x8] sm:$0xff]
      %v1077 = vld [vmem:[%s9 + $0x10] sm:$0xff]
      %v1078 = vld [vmem:[%s9 + $0x18] sm:$0xff]
      %v1079 = vld [vmem:[%s9 + $0x20] sm:$0xff]
      %v1080 = vld [vmem:[%s9 + $0x28] sm:$0xff]
      %v1081 = vld [vmem:[%s9 + $0x30] sm:$0xff]
      %v1082 = vld [vmem:[%s9 + $0x38] sm:$0xff]
      %v1083 = vld [vmem:[%s9 + $0x40] sm:$0xff]
      %v1084 = vld [vmem:[%s9 + $0x48] sm:$0xff]
      %v1085 = vld [vmem:[%s9 + $0x50] sm:$0xff]
      %v1086 = vld [vmem:[%s9 + $0x58] sm:$0xff]
      %v1087 = vld [vmem:[%s9 + $0x60] sm:$0xff]
      %v1088 = vld [vmem:[%s9 + $0x68] sm:$0xff]
      %v1089 = vld [vmem:[%s9 + $0x70] sm:$0xff]
      %v1090 = vld [vmem:[%s9 + $0x78] sm:$0xff]
      %v1091 = vld [vmem:[%s9 + $0x80] sm:$0xff]
      %v1092 = vld [vmem:[%s9 + $0x88] sm:$0xff]
      %v1093 = vld [vmem:[%s9 + $0x90] sm:$0xff]
      %v1094 = vld [vmem:[%s9 + $0x98] sm:$0xff]
      %v1095 = vld [vmem:[%s9 + $0xa0] sm:$0xff]
      %v1096 = vld [vmem:[%s9 + $0xa8] sm:$0xff]
      %v1097 = vld [vmem:[%s9 + $0xb0] sm:$0xff]
      %v1098 = vld [vmem:[%s9 + $0xb8] sm:$0xff]
      %v1099 = vld [vmem:[%s9 + $0xc0] sm:$0xff]
      %v1100 = vld [vmem:[%s9 + $0xc8] sm:$0xff]
      %v1101 = vld [vmem:[%s9 + $0xd0] sm:$0xff]
      %v1102 = vld [vmem:[%s9 + $0xd8] sm:$0xff]
      %v1103 = vld [vmem:[%s9 + $0xe0] sm:$0xff]
      %v1104 = vld [vmem:[%s9 + $0xe8] sm:$0xff]
      %v1105 = vld [vmem:[%s9 + $0xf0] sm:$0xff]
      %v1106 = vld [vmem:[%s9 + $0xf8] sm:$0xff]
      %s1107 = scalar_lea.vmem %s9, 256
      %v1108 = vld [vmem:[%s1107] sm:$0xff]
      %v1109 = vld [vmem:[%s1107 + $0x8] sm:$0xff]
      %v1110 = vld [vmem:[%s1107 + $0x10] sm:$0xff]
      %v1111 = vld [vmem:[%s1107 + $0x18] sm:$0xff]
      %v1112 = vld [vmem:[%s1107 + $0x20] sm:$0xff]
      %v1113 = vld [vmem:[%s1107 + $0x28] sm:$0xff]
      %v1114 = vld [vmem:[%s1107 + $0x30] sm:$0xff]
      %v1115 = vld [vmem:[%s1107 + $0x38] sm:$0xff]
      %v1116 = vld [vmem:[%s1107 + $0x40] sm:$0xff]
      %v1117 = vld [vmem:[%s1107 + $0x48] sm:$0xff]
      %v1118 = vld [vmem:[%s1107 + $0x50] sm:$0xff]
      %v1119 = vld [vmem:[%s1107 + $0x58] sm:$0xff]
      %v1120 = vld [vmem:[%s1107 + $0x60] sm:$0xff]
      %v1121 = vld [vmem:[%s1107 + $0x68] sm:$0xff]
      %v1122 = vld [vmem:[%s1107 + $0x70] sm:$0xff]
      %v1123 = vld [vmem:[%s1107 + $0x78] sm:$0xff]
      %v1124 = vld [vmem:[%s1107 + $0x80] sm:$0xff]
      %v1125 = vld [vmem:[%s1107 + $0x88] sm:$0xff]
      %v1126 = vld [vmem:[%s1107 + $0x90] sm:$0xff]
      %v1127 = vld [vmem:[%s1107 + $0x98] sm:$0xff]
      %v1128 = vld [vmem:[%s1107 + $0xa0] sm:$0xff]
      %v1129 = vld [vmem:[%s1107 + $0xa8] sm:$0xff]
      %v1130 = vld [vmem:[%s1107 + $0xb0] sm:$0xff]
      %v1131 = vld [vmem:[%s1107 + $0xb8] sm:$0xff]
      %v1132 = vld [vmem:[%s1107 + $0xc0] sm:$0xff]
      %v1133 = vld [vmem:[%s1107 + $0xc8] sm:$0xff]
      %v1134 = vld [vmem:[%s1107 + $0xd0] sm:$0xff]
      %v1135 = vld [vmem:[%s1107 + $0xd8] sm:$0xff]
      %v1136 = vld [vmem:[%s1107 + $0xe0] sm:$0xff]
      %v1137 = vld [vmem:[%s1107 + $0xe8] sm:$0xff]
      %v1138 = vld [vmem:[%s1107 + $0xf0] sm:$0xff]
      %v1139 = vld [vmem:[%s1107 + $0xf8] sm:$0xff]
      %v1141 = vunpack.c.l.b16 %v1074
      %v1142 = vunpack.c.h.b16 %v1074
      %v1143 = vpack.c.b16 %v1141, %v1141
      %v1144 = vpack.c.b16 %v1142, %v1142
      %v1179 = vunpack.c.l.b16 %v1108
      %v1180 = vunpack.c.h.b16 %v1108
      %v1181 = vunpack.c.l.b16 %v1109
      %v1182 = vunpack.c.h.b16 %v1109
      %v1183 = vunpack.c.l.b16 %v1110
      %v1184 = vunpack.c.h.b16 %v1110
      %v1185 = vunpack.c.l.b16 %v1111
      %v1186 = vunpack.c.h.b16 %v1111
      %v1187 = vunpack.c.l.b16 %v1112
      %v1188 = vunpack.c.h.b16 %v1112
      %v1189 = vunpack.c.l.b16 %v1113
      %v1190 = vunpack.c.h.b16 %v1113
      %v1191 = vunpack.c.l.b16 %v1114
      %v1192 = vunpack.c.h.b16 %v1114
      %v1193 = vunpack.c.l.b16 %v1115
      %v1194 = vunpack.c.h.b16 %v1115
      %v1195 = vunpack.c.l.b16 %v1116
      %v1196 = vunpack.c.h.b16 %v1116
      %v1197 = vunpack.c.l.b16 %v1117
      %v1198 = vunpack.c.h.b16 %v1117
      %v1199 = vunpack.c.l.b16 %v1118
      %v1200 = vunpack.c.h.b16 %v1118
      %v1201 = vunpack.c.l.b16 %v1119
      %v1202 = vunpack.c.h.b16 %v1119
      %v1203 = vunpack.c.l.b16 %v1120
      %v1204 = vunpack.c.h.b16 %v1120
      %v1205 = vunpack.c.l.b16 %v1121
      %v1206 = vunpack.c.h.b16 %v1121
      %v1207 = vunpack.c.l.b16 %v1122
      %v1208 = vunpack.c.h.b16 %v1122
      %v1209 = vunpack.c.l.b16 %v1123
      %v1210 = vunpack.c.h.b16 %v1123
      %v1211 = vunpack.c.l.b16 %v1124
      %v1212 = vunpack.c.h.b16 %v1124
      %v1213 = vunpack.c.l.b16 %v1125
      %v1214 = vunpack.c.h.b16 %v1125
      %v1215 = vunpack.c.l.b16 %v1126
      %v1216 = vunpack.c.h.b16 %v1126
      %v1217 = vunpack.c.l.b16 %v1127
      %v1218 = vunpack.c.h.b16 %v1127
      %v1219 = vunpack.c.l.b16 %v1128
      %v1220 = vunpack.c.h.b16 %v1128
      %v1221 = vunpack.c.l.b16 %v1129
      %v1222 = vunpack.c.h.b16 %v1129
      %v1223 = vunpack.c.l.b16 %v1130
      %v1224 = vunpack.c.h.b16 %v1130
      %v1225 = vunpack.c.l.b16 %v1131
      %v1226 = vunpack.c.h.b16 %v1131
      %v1227 = vunpack.c.l.b16 %v1132
      %v1228 = vunpack.c.h.b16 %v1132
      %v1229 = vunpack.c.l.b16 %v1133
      %v1230 = vunpack.c.h.b16 %v1133
      %v1231 = vunpack.c.l.b16 %v1134
      %v1232 = vunpack.c.h.b16 %v1134
      %v1233 = vunpack.c.l.b16 %v1135
      %v1234 = vunpack.c.h.b16 %v1135
      %v1235 = vunpack.c.l.b16 %v1136
      %v1236 = vunpack.c.h.b16 %v1136
      %v1237 = vunpack.c.l.b16 %v1137
      %v1238 = vunpack.c.h.b16 %v1137
      %v1239 = vunpack.c.l.b16 %v1138
      %v1240 = vunpack.c.h.b16 %v1138
      %v1241 = vunpack.c.l.b16 %v1139
      %v1242 = vunpack.c.h.b16 %v1139
      %v1243 = vpack.c.b16 %v1181, %v1179
      %v1244 = vpack.c.b16 %v1182, %v1180
      %v1245 = vpack.c.b16 %v1185, %v1183
      %v1246 = vpack.c.b16 %v1186, %v1184
      %v1247 = vpack.c.b16 %v1189, %v1187
      %v1248 = vpack.c.b16 %v1190, %v1188
      %v1249 = vpack.c.b16 %v1193, %v1191
      %v1250 = vpack.c.b16 %v1194, %v1192
      %v1251 = vpack.c.b16 %v1197, %v1195
      %v1252 = vpack.c.b16 %v1198, %v1196
      %v1253 = vpack.c.b16 %v1201, %v1199
      %v1254 = vpack.c.b16 %v1202, %v1200
      %v1255 = vpack.c.b16 %v1205, %v1203
      %v1256 = vpack.c.b16 %v1206, %v1204
      %v1257 = vpack.c.b16 %v1209, %v1207
      %v1258 = vpack.c.b16 %v1210, %v1208
      %v1259 = vpack.c.b16 %v1213, %v1211
      %v1260 = vpack.c.b16 %v1214, %v1212
      %v1261 = vpack.c.b16 %v1217, %v1215
      %v1262 = vpack.c.b16 %v1218, %v1216
      %v1263 = vpack.c.b16 %v1221, %v1219
      %v1264 = vpack.c.b16 %v1222, %v1220
      %v1265 = vpack.c.b16 %v1225, %v1223
      %v1266 = vpack.c.b16 %v1226, %v1224
      %v1267 = vpack.c.b16 %v1229, %v1227
      %v1268 = vpack.c.b16 %v1230, %v1228
      %v1269 = vpack.c.b16 %v1233, %v1231
      %v1270 = vpack.c.b16 %v1234, %v1232
      %v1271 = vpack.c.b16 %v1237, %v1235
      %v1272 = vpack.c.b16 %v1238, %v1236
      %v1273 = vpack.c.b16 %v1241, %v1239
      %v1274 = vpack.c.b16 %v1242, %v1240
      %1307 = vmatprep.subr.bf16.mxu0 %v1244
      %1308 = vmatpush1.bf16.msra.mxu0 %v1243
      %1309 = vmatprep.subr.bf16.mxu0 %v1246
      %1310 = vmatpush1.bf16.msra.mxu0 %v1245
      %1311 = vmatprep.subr.bf16.mxu0 %v1248
      %1312 = vmatpush1.bf16.msra.mxu0 %v1247
      %1313 = vmatprep.subr.bf16.mxu0 %v1250
      %1314 = vmatpush1.bf16.msra.mxu0 %v1249
      %1315 = vmatprep.subr.bf16.mxu0 %v1252
      %1316 = vmatpush1.bf16.msra.mxu0 %v1251
      %1317 = vmatprep.subr.bf16.mxu0 %v1254
      %1318 = vmatpush1.bf16.msra.mxu0 %v1253
      %1319 = vmatprep.subr.bf16.mxu0 %v1256
      %1320 = vmatpush1.bf16.msra.mxu0 %v1255
      %1321 = vmatprep.subr.bf16.mxu0 %v1258
      %1322 = vmatpush1.bf16.msra.mxu0 %v1257
      %1323 = vmatprep.subr.bf16.mxu0 %v1260
      %1324 = vmatpush1.bf16.msra.mxu0 %v1259
      %1325 = vmatprep.subr.bf16.mxu0 %v1262
      %1326 = vmatpush1.bf16.msra.mxu0 %v1261
      %1327 = vmatprep.subr.bf16.mxu0 %v1264
      %1328 = vmatpush1.bf16.msra.mxu0 %v1263
      %1329 = vmatprep.subr.bf16.mxu0 %v1266
      %1330 = vmatpush1.bf16.msra.mxu0 %v1265
      %1331 = vmatprep.subr.bf16.mxu0 %v1268
      %1332 = vmatpush1.bf16.msra.mxu0 %v1267
      %1333 = vmatprep.subr.bf16.mxu0 %v1270
      %1334 = vmatpush1.bf16.msra.mxu0 %v1269
      %1335 = vmatprep.subr.bf16.mxu0 %v1272
      %1336 = vmatpush1.bf16.msra.mxu0 %v1271
      %1337 = vmatprep.subr.bf16.mxu0 %v1274
      %1338 = vmatpush1.bf16.msra.mxu0 %v1273
      %1339 = vmatprep.mubr.bf16.mxu0 %v1144
      %1340 = vmatmul.mubr.bf16.gmra.mrb[0].mxu0 %v1143
      %v1341 = vpop.f32.mrb[0].mxu0
      %v1342 = vadd.f32 0.0, %v1341
      %v1343 = vpop.f32.mrb[0].mxu0
      %v1344 = vadd.f32 0.0, %v1343
      %v1345 = vpop.f32.mrb[0].mxu0
      %v1346 = vpop.f32.mrb[0].mxu0
      %1347 = vdwg.mxu0
      %v1349 = vunpack.c.l.b16 %v1073
      %v1350 = vunpack.c.h.b16 %v1073
      %v1351 = vpack.c.b16 %v1141, %v1349
      %v1352 = vpack.c.b16 %v1142, %v1350
      %v1354 = vshrl.u32 %v1351, 16
      %v1356 = vrot.slane %v1354, 3
      %v1357 = vshll.u32 %v1351, 16
      %v1359 = vrot.slane %v1357, 4
      %v1360 = vor.u32 %v1356, %v1359
      %v1362 = vshrl.u32 %v1352, 16
      %v1364 = vrot.slane %v1362, 3
      %v1365 = vshll.u32 %v1352, 16
      %v1367 = vrot.slane %v1365, 4
      %v1368 = vor.u32 %v1364, %v1367
      %v1403 = vunpack.c.l.b16 %v1075
      %v1404 = vunpack.c.h.b16 %v1075
      %v1405 = vunpack.c.l.b16 %v1076
      %v1406 = vunpack.c.h.b16 %v1076
      %v1407 = vunpack.c.l.b16 %v1077
      %v1408 = vunpack.c.h.b16 %v1077
      %v1409 = vunpack.c.l.b16 %v1078
      %v1410 = vunpack.c.h.b16 %v1078
      %v1411 = vunpack.c.l.b16 %v1079
      %v1412 = vunpack.c.h.b16 %v1079
      %v1413 = vunpack.c.l.b16 %v1080
      %v1414 = vunpack.c.h.b16 %v1080
      %v1415 = vunpack.c.l.b16 %v1081
      %v1416 = vunpack.c.h.b16 %v1081
      %v1417 = vunpack.c.l.b16 %v1082
      %v1418 = vunpack.c.h.b16 %v1082
      %v1419 = vunpack.c.l.b16 %v1083
      %v1420 = vunpack.c.h.b16 %v1083
      %v1421 = vunpack.c.l.b16 %v1084
      %v1422 = vunpack.c.h.b16 %v1084
      %v1423 = vunpack.c.l.b16 %v1085
      %v1424 = vunpack.c.h.b16 %v1085
      %v1425 = vunpack.c.l.b16 %v1086
      %v1426 = vunpack.c.h.b16 %v1086
      %v1427 = vunpack.c.l.b16 %v1087
      %v1428 = vunpack.c.h.b16 %v1087
      %v1429 = vunpack.c.l.b16 %v1088
      %v1430 = vunpack.c.h.b16 %v1088
      %v1431 = vunpack.c.l.b16 %v1089
      %v1432 = vunpack.c.h.b16 %v1089
      %v1433 = vunpack.c.l.b16 %v1090
      %v1434 = vunpack.c.h.b16 %v1090
      %v1435 = vunpack.c.l.b16 %v1091
      %v1436 = vunpack.c.h.b16 %v1091
      %v1437 = vunpack.c.l.b16 %v1092
      %v1438 = vunpack.c.h.b16 %v1092
      %v1439 = vunpack.c.l.b16 %v1093
      %v1440 = vunpack.c.h.b16 %v1093
      %v1441 = vunpack.c.l.b16 %v1094
      %v1442 = vunpack.c.h.b16 %v1094
      %v1443 = vunpack.c.l.b16 %v1095
      %v1444 = vunpack.c.h.b16 %v1095
      %v1445 = vunpack.c.l.b16 %v1096
      %v1446 = vunpack.c.h.b16 %v1096
      %v1447 = vunpack.c.l.b16 %v1097
      %v1448 = vunpack.c.h.b16 %v1097
      %v1449 = vunpack.c.l.b16 %v1098
      %v1450 = vunpack.c.h.b16 %v1098
      %v1451 = vunpack.c.l.b16 %v1099
      %v1452 = vunpack.c.h.b16 %v1099
      %v1453 = vunpack.c.l.b16 %v1100
      %v1454 = vunpack.c.h.b16 %v1100
      %v1455 = vunpack.c.l.b16 %v1101
      %v1456 = vunpack.c.h.b16 %v1101
      %v1457 = vunpack.c.l.b16 %v1102
      %v1458 = vunpack.c.h.b16 %v1102
      %v1459 = vunpack.c.l.b16 %v1103
      %v1460 = vunpack.c.h.b16 %v1103
      %v1461 = vunpack.c.l.b16 %v1104
      %v1462 = vunpack.c.h.b16 %v1104
      %v1463 = vunpack.c.l.b16 %v1105
      %v1464 = vunpack.c.h.b16 %v1105
      %v1465 = vunpack.c.l.b16 %v1106
      %v1466 = vunpack.c.h.b16 %v1106
      %v1467 = vpack.c.b16 %v1405, %v1403
      %v1468 = vpack.c.b16 %v1406, %v1404
      %v1469 = vpack.c.b16 %v1409, %v1407
      %v1470 = vpack.c.b16 %v1410, %v1408
      %v1471 = vpack.c.b16 %v1413, %v1411
      %v1472 = vpack.c.b16 %v1414, %v1412
      %v1473 = vpack.c.b16 %v1417, %v1415
      %v1474 = vpack.c.b16 %v1418, %v1416
      %v1475 = vpack.c.b16 %v1421, %v1419
      %v1476 = vpack.c.b16 %v1422, %v1420
      %v1477 = vpack.c.b16 %v1425, %v1423
      %v1478 = vpack.c.b16 %v1426, %v1424
      %v1479 = vpack.c.b16 %v1429, %v1427
      %v1480 = vpack.c.b16 %v1430, %v1428
      %v1481 = vpack.c.b16 %v1433, %v1431
      %v1482 = vpack.c.b16 %v1434, %v1432
      %v1483 = vpack.c.b16 %v1437, %v1435
      %v1484 = vpack.c.b16 %v1438, %v1436
      %v1485 = vpack.c.b16 %v1441, %v1439
      %v1486 = vpack.c.b16 %v1442, %v1440
      %v1487 = vpack.c.b16 %v1445, %v1443
      %v1488 = vpack.c.b16 %v1446, %v1444
      %v1489 = vpack.c.b16 %v1449, %v1447
      %v1490 = vpack.c.b16 %v1450, %v1448
      %v1491 = vpack.c.b16 %v1453, %v1451
      %v1492 = vpack.c.b16 %v1454, %v1452
      %v1493 = vpack.c.b16 %v1457, %v1455
      %v1494 = vpack.c.b16 %v1458, %v1456
      %v1495 = vpack.c.b16 %v1461, %v1459
      %v1496 = vpack.c.b16 %v1462, %v1460
      %v1497 = vpack.c.b16 %v1465, %v1463
      %v1498 = vpack.c.b16 %v1466, %v1464
      %1531 = vmatprep.subr.bf16.mxu0 %v1468
      %1532 = vmatpush1.bf16.msra.mxu0 %v1467
      %1533 = vmatprep.subr.bf16.mxu0 %v1470
      %1534 = vmatpush1.bf16.msra.mxu0 %v1469
      %1535 = vmatprep.subr.bf16.mxu0 %v1472
      %1536 = vmatpush1.bf16.msra.mxu0 %v1471
      %1537 = vmatprep.subr.bf16.mxu0 %v1474
      %1538 = vmatpush1.bf16.msra.mxu0 %v1473
      %1539 = vmatprep.subr.bf16.mxu0 %v1476
      %1540 = vmatpush1.bf16.msra.mxu0 %v1475
      %1541 = vmatprep.subr.bf16.mxu0 %v1478
      %1542 = vmatpush1.bf16.msra.mxu0 %v1477
      %1543 = vmatprep.subr.bf16.mxu0 %v1480
      %1544 = vmatpush1.bf16.msra.mxu0 %v1479
      %1545 = vmatprep.subr.bf16.mxu0 %v1482
      %1546 = vmatpush1.bf16.msra.mxu0 %v1481
      %1547 = vmatprep.subr.bf16.mxu0 %v1484
      %1548 = vmatpush1.bf16.msra.mxu0 %v1483
      %1549 = vmatprep.subr.bf16.mxu0 %v1486
      %1550 = vmatpush1.bf16.msra.mxu0 %v1485
      %1551 = vmatprep.subr.bf16.mxu0 %v1488
      %1552 = vmatpush1.bf16.msra.mxu0 %v1487
      %1553 = vmatprep.subr.bf16.mxu0 %v1490
      %1554 = vmatpush1.bf16.msra.mxu0 %v1489
      %1555 = vmatprep.subr.bf16.mxu0 %v1492
      %1556 = vmatpush1.bf16.msra.mxu0 %v1491
      %1557 = vmatprep.subr.bf16.mxu0 %v1494
      %1558 = vmatpush1.bf16.msra.mxu0 %v1493
      %1559 = vmatprep.subr.bf16.mxu0 %v1496
      %1560 = vmatpush1.bf16.msra.mxu0 %v1495
      %1561 = vmatprep.subr.bf16.mxu0 %v1498
      %1562 = vmatpush1.bf16.msra.mxu0 %v1497
      %1563 = vmatprep.mubr.bf16.mxu0 %v1368
      %1564 = vmatmul.mubr.bf16.gmra.mrb[0].mxu0 %v1360
      %v1565 = vpop.f32.mrb[0].mxu0
      %v1566 = vadd.f32 %v1342, %v1565
      %v1567 = vpop.f32.mrb[0].mxu0
      %v1568 = vadd.f32 %v1344, %v1567
      %v1569 = vpop.f32.mrb[0].mxu0
      %v1570 = vpop.f32.mrb[0].mxu0
      %1571 = vdwg.mxu0
      %v1572 = vld [vmem:[#allocation2 + $0x10] sm:$0x77]
      %s1573 = scalar_lea.vmem %s9, 512
      %v1574 = vld [vmem:[%s1573] sm:$0xff]
      %v1575 = vld [vmem:[%s1573 + $0x8] sm:$0xff]
      %v1576 = vld [vmem:[%s1573 + $0x10] sm:$0xff]
      %v1577 = vld [vmem:[%s1573 + $0x18] sm:$0xff]
      %v1578 = vld [vmem:[%s1573 + $0x20] sm:$0xff]
      %v1579 = vld [vmem:[%s1573 + $0x28] sm:$0xff]
      %v1580 = vld [vmem:[%s1573 + $0x30] sm:$0xff]
      %v1581 = vld [vmem:[%s1573 + $0x38] sm:$0xff]
      %v1582 = vld [vmem:[%s1573 + $0x40] sm:$0xff]
      %v1583 = vld [vmem:[%s1573 + $0x48] sm:$0xff]
      %v1584 = vld [vmem:[%s1573 + $0x50] sm:$0xff]
      %v1585 = vld [vmem:[%s1573 + $0x58] sm:$0xff]
      %v1586 = vld [vmem:[%s1573 + $0x60] sm:$0xff]
      %v1587 = vld [vmem:[%s1573 + $0x68] sm:$0xff]
      %v1588 = vld [vmem:[%s1573 + $0x70] sm:$0xff]
      %v1589 = vld [vmem:[%s1573 + $0x78] sm:$0xff]
      %v1590 = vld [vmem:[%s1573 + $0x80] sm:$0xff]
      %v1591 = vld [vmem:[%s1573 + $0x88] sm:$0xff]
      %v1592 = vld [vmem:[%s1573 + $0x90] sm:$0xff]
      %v1593 = vld [vmem:[%s1573 + $0x98] sm:$0xff]
      %v1594 = vld [vmem:[%s1573 + $0xa0] sm:$0xff]
      %v1595 = vld [vmem:[%s1573 + $0xa8] sm:$0xff]
      %v1596 = vld [vmem:[%s1573 + $0xb0] sm:$0xff]
      %v1597 = vld [vmem:[%s1573 + $0xb8] sm:$0xff]
      %v1598 = vld [vmem:[%s1573 + $0xc0] sm:$0xff]
      %v1599 = vld [vmem:[%s1573 + $0xc8] sm:$0xff]
      %v1600 = vld [vmem:[%s1573 + $0xd0] sm:$0xff]
      %v1601 = vld [vmem:[%s1573 + $0xd8] sm:$0xff]
      %v1602 = vld [vmem:[%s1573 + $0xe0] sm:$0xff]
      %v1603 = vld [vmem:[%s1573 + $0xe8] sm:$0xff]
      %v1604 = vld [vmem:[%s1573 + $0xf0] sm:$0xff]
      %v1605 = vld [vmem:[%s1573 + $0xf8] sm:$0xff]
      %v1607 = vunpack.c.l.b16 %v1572
      %v1608 = vunpack.c.h.b16 %v1572
      %v1609 = vpack.c.b16 %v1607, %v1607
      %v1610 = vpack.c.b16 %v1608, %v1608
      %v1612 = vshrl.u32 %v1609, 16
      %v1614 = vshll.u32 %v1609, 16
      %v1616 = vrot.slane %v1614, 1
      %v1617 = vor.u32 %v1612, %v1616
      %v1619 = vshrl.u32 %v1610, 16
      %v1621 = vshll.u32 %v1610, 16
      %v1623 = vrot.slane %v1621, 1
      %v1624 = vor.u32 %v1619, %v1623
      %v1659 = vunpack.c.l.b16 %v1574
      %v1660 = vunpack.c.h.b16 %v1574
      %v1661 = vunpack.c.l.b16 %v1575
      %v1662 = vunpack.c.h.b16 %v1575
      %v1663 = vunpack.c.l.b16 %v1576
      %v1664 = vunpack.c.h.b16 %v1576
      %v1665 = vunpack.c.l.b16 %v1577
      %v1666 = vunpack.c.h.b16 %v1577
      %v1667 = vunpack.c.l.b16 %v1578
      %v1668 = vunpack.c.h.b16 %v1578
      %v1669 = vunpack.c.l.b16 %v1579
      %v1670 = vunpack.c.h.b16 %v1579
      %v1671 = vunpack.c.l.b16 %v1580
      %v1672 = vunpack.c.h.b16 %v1580
      %v1673 = vunpack.c.l.b16 %v1581
      %v1674 = vunpack.c.h.b16 %v1581
      %v1675 = vunpack.c.l.b16 %v1582
      %v1676 = vunpack.c.h.b16 %v1582
      %v1677 = vunpack.c.l.b16 %v1583
      %v1678 = vunpack.c.h.b16 %v1583
      %v1679 = vunpack.c.l.b16 %v1584
      %v1680 = vunpack.c.h.b16 %v1584
      %v1681 = vunpack.c.l.b16 %v1585
      %v1682 = vunpack.c.h.b16 %v1585
      %v1683 = vunpack.c.l.b16 %v1586
      %v1684 = vunpack.c.h.b16 %v1586
      %v1685 = vunpack.c.l.b16 %v1587
      %v1686 = vunpack.c.h.b16 %v1587
      %v1687 = vunpack.c.l.b16 %v1588
      %v1688 = vunpack.c.h.b16 %v1588
      %v1689 = vunpack.c.l.b16 %v1589
      %v1690 = vunpack.c.h.b16 %v1589
      %v1691 = vunpack.c.l.b16 %v1590
      %v1692 = vunpack.c.h.b16 %v1590
      %v1693 = vunpack.c.l.b16 %v1591
      %v1694 = vunpack.c.h.b16 %v1591
      %v1695 = vunpack.c.l.b16 %v1592
      %v1696 = vunpack.c.h.b16 %v1592
      %v1697 = vunpack.c.l.b16 %v1593
      %v1698 = vunpack.c.h.b16 %v1593
      %v1699 = vunpack.c.l.b16 %v1594
      %v1700 = vunpack.c.h.b16 %v1594
      %v1701 = vunpack.c.l.b16 %v1595
      %v1702 = vunpack.c.h.b16 %v1595
      %v1703 = vunpack.c.l.b16 %v1596
      %v1704 = vunpack.c.h.b16 %v1596
      %v1705 = vunpack.c.l.b16 %v1597
      %v1706 = vunpack.c.h.b16 %v1597
      %v1707 = vunpack.c.l.b16 %v1598
      %v1708 = vunpack.c.h.b16 %v1598
      %v1709 = vunpack.c.l.b16 %v1599
      %v1710 = vunpack.c.h.b16 %v1599
      %v1711 = vunpack.c.l.b16 %v1600
      %v1712 = vunpack.c.h.b16 %v1600
      %v1713 = vunpack.c.l.b16 %v1601
      %v1714 = vunpack.c.h.b16 %v1601
      %v1715 = vunpack.c.l.b16 %v1602
      %v1716 = vunpack.c.h.b16 %v1602
      %v1717 = vunpack.c.l.b16 %v1603
      %v1718 = vunpack.c.h.b16 %v1603
      %v1719 = vunpack.c.l.b16 %v1604
      %v1720 = vunpack.c.h.b16 %v1604
      %v1721 = vunpack.c.l.b16 %v1605
      %v1722 = vunpack.c.h.b16 %v1605
      %v1723 = vpack.c.b16 %v1661, %v1659
      %v1724 = vpack.c.b16 %v1662, %v1660
      %v1725 = vpack.c.b16 %v1665, %v1663
      %v1726 = vpack.c.b16 %v1666, %v1664
      %v1727 = vpack.c.b16 %v1669, %v1667
      %v1728 = vpack.c.b16 %v1670, %v1668
      %v1729 = vpack.c.b16 %v1673, %v1671
      %v1730 = vpack.c.b16 %v1674, %v1672
      %v1731 = vpack.c.b16 %v1677, %v1675
      %v1732 = vpack.c.b16 %v1678, %v1676
      %v1733 = vpack.c.b16 %v1681, %v1679
      %v1734 = vpack.c.b16 %v1682, %v1680
      %v1735 = vpack.c.b16 %v1685, %v1683
      %v1736 = vpack.c.b16 %v1686, %v1684
      %v1737 = vpack.c.b16 %v1689, %v1687
      %v1738 = vpack.c.b16 %v1690, %v1688
      %v1739 = vpack.c.b16 %v1693, %v1691
      %v1740 = vpack.c.b16 %v1694, %v1692
      %v1741 = vpack.c.b16 %v1697, %v1695
      %v1742 = vpack.c.b16 %v1698, %v1696
      %v1743 = vpack.c.b16 %v1701, %v1699
      %v1744 = vpack.c.b16 %v1702, %v1700
      %v1745 = vpack.c.b16 %v1705, %v1703
      %v1746 = vpack.c.b16 %v1706, %v1704
      %v1747 = vpack.c.b16 %v1709, %v1707
      %v1748 = vpack.c.b16 %v1710, %v1708
      %v1749 = vpack.c.b16 %v1713, %v1711
      %v1750 = vpack.c.b16 %v1714, %v1712
      %v1751 = vpack.c.b16 %v1717, %v1715
      %v1752 = vpack.c.b16 %v1718, %v1716
      %v1753 = vpack.c.b16 %v1721, %v1719
      %v1754 = vpack.c.b16 %v1722, %v1720
      %1787 = vmatprep.subr.bf16.mxu0 %v1724
      %1788 = vmatpush1.bf16.msra.mxu0 %v1723
      %1789 = vmatprep.subr.bf16.mxu0 %v1726
      %1790 = vmatpush1.bf16.msra.mxu0 %v1725
      %1791 = vmatprep.subr.bf16.mxu0 %v1728
      %1792 = vmatpush1.bf16.msra.mxu0 %v1727
      %1793 = vmatprep.subr.bf16.mxu0 %v1730
      %1794 = vmatpush1.bf16.msra.mxu0 %v1729
      %1795 = vmatprep.subr.bf16.mxu0 %v1732
      %1796 = vmatpush1.bf16.msra.mxu0 %v1731
      %1797 = vmatprep.subr.bf16.mxu0 %v1734
      %1798 = vmatpush1.bf16.msra.mxu0 %v1733
      %1799 = vmatprep.subr.bf16.mxu0 %v1736
      %1800 = vmatpush1.bf16.msra.mxu0 %v1735
      %1801 = vmatprep.subr.bf16.mxu0 %v1738
      %1802 = vmatpush1.bf16.msra.mxu0 %v1737
      %1803 = vmatprep.subr.bf16.mxu0 %v1740
      %1804 = vmatpush1.bf16.msra.mxu0 %v1739
      %1805 = vmatprep.subr.bf16.mxu0 %v1742
      %1806 = vmatpush1.bf16.msra.mxu0 %v1741
      %1807 = vmatprep.subr.bf16.mxu0 %v1744
      %1808 = vmatpush1.bf16.msra.mxu0 %v1743
      %1809 = vmatprep.subr.bf16.mxu0 %v1746
      %1810 = vmatpush1.bf16.msra.mxu0 %v1745
      %1811 = vmatprep.subr.bf16.mxu0 %v1748
      %1812 = vmatpush1.bf16.msra.mxu0 %v1747
      %1813 = vmatprep.subr.bf16.mxu0 %v1750
      %1814 = vmatpush1.bf16.msra.mxu0 %v1749
      %1815 = vmatprep.subr.bf16.mxu0 %v1752
      %1816 = vmatpush1.bf16.msra.mxu0 %v1751
      %1817 = vmatprep.subr.bf16.mxu0 %v1754
      %1818 = vmatpush1.bf16.msra.mxu0 %v1753
      %1819 = vmatprep.mubr.bf16.mxu0 %v1624
      %1820 = vmatmul.mubr.bf16.gmra.mrb[0].mxu0 %v1617
      %v1821 = vpop.f32.mrb[0].mxu0
      %v1822 = vadd.f32 0.0, %v1821
      %v1823 = vpop.f32.mrb[0].mxu0
      %v1824 = vadd.f32 0.0, %v1823
      %v1825 = vpop.f32.mrb[0].mxu0
      %v1826 = vpop.f32.mrb[0].mxu0
      %1827 = vdwg.mxu0
      %v1828 = vadd.f32 %v1566, %v1822
      %v1829 = vadd.f32 %v1568, %v1824
      %v1830 = vld [vmem:[%s10] sm:$0x3]
      %v1832 = vlaneseq
      %v1833 = vshrl.u32 %v1832, 7
      %v1834 = vsub.s32 0, %v1833
      %v1835 = vrot.slane %v1830, %v1834
      %v1836 = vlaneseq
      %v1837 = vshrl.u32 %v1836, 7
      %v1838 = vsub.s32 1, %v1837
      %v1839 = vrot.slane %v1830, %v1838
      %v1842 = vmul.f32 %v1828, %v1835
      %v1843 = vmul.f32 %v1829, %v1839
      %v1844 = vld [vmem:[%s11] sm:$0x3]
      %v1846 = vlaneseq
      %v1847 = vshrl.u32 %v1846, 7
      %v1848 = vsub.s32 0, %v1847
      %v1849 = vrot.slane %v1844, %v1848
      %v1850 = vlaneseq
      %v1851 = vshrl.u32 %v1850, 7
      %v1852 = vsub.s32 1, %v1851
      %v1853 = vrot.slane %v1844, %v1852
      %v1856 = vadd.f32 %v1842, %v1849
      %v1857 = vadd.f32 %v1843, %v1853
      %v1858 = vadd.f32 %v1856, %v1057
      %v1859 = vadd.f32 %v1857, %v1058
      %v1860 = vmax.f32 %v1858, 0.0
      %v1861 = vmax.f32 %v1859, 0.0
      %v1862 = vpack.c.bf16 %v1860, %v1860
      %v1863 = vpack.c.bf16 %v1861, %v1861
      %v1866 = vcombine.low %v1862, %v1863
      %v1868 = vunpack.c.l.s4 1983009808
      %v1869 = vunpack.c.0.s8 %v1868
      %v1870 = vlaneseq
      %v1871 = vshrl.u32 %v1870, 7
      %v1872 = vsub.s32 %v1869, %v1871
      %v1873 = vrot.slane %v1866, %v1872
      %1875 = vst [vmem:[%s444] sm:$0xf] %v1873
      %p1876 = scmp.lt.s32.totalorder %s23, 1
      %s1877 = scalar_select %p1876, %s23, 1
      %s1878 = smul.addr %s1877, 2
      %s1879 = smul.addr %s1878, 2
      %s1880 = scalar_lea.vmem %s12, %s1879
      // Predicated region
      $region69: #{_lambda_.15} parent=67 // pred_check
        %p1881 = pneg %p308
      $region70: #{_lambda_.15} parent=67 // pred_check_branch
        %1883 = sbr.rel (%p1881) target = $region72
      $region71: #{_lambda_.15} parent=67 // pred_region
        _
      $region72: #{_lambda_.15} parent=67 // pred_fallthru
        _
    $region68: #{_lambda_.15} parent=5 // pred_fallthru
      _
    %p1884 = scmp.le.s32.totalorder 2, %s18
    // Predicated region
    $region73: #{_lambda_.15} parent=5 // pred_check
      %p1885 = pneg %p1884
    $region74: #{_lambda_.15} parent=5 // pred_check_branch
      %1887 = sbr.rel (%p1885) target = $region76
    $region75: #{_lambda_.15} parent=5 // pred_region
      %s1888 = ssub.s32 %s18, 2
      // Predicated region
      $region77: #{_lambda_.15} parent=75 // pred_check
        %p1889 = pneg %p314
      $region78: #{_lambda_.15} parent=75 // pred_check_branch
        %1891 = sbr.rel (%p1889) target = $region80
      $region79: #{_lambda_.15} parent=75 // pred_region
        %p1892 = scmp.lt.s32.totalorder %s24, 1
        %s1893 = scalar_select %p1892, %s24, 1
        %s1894 = smul.addr %s1893, 2
        %s1895 = smul.addr %s1894, 2
        %s1896 = scalar_lea.vmem %s12, %s1895
      $region80: #{_lambda_.15} parent=75 // pred_fallthru
        _
    $region76: #{_lambda_.15} parent=5 // pred_fallthru
      _
  $region6: #{_lambda_.15} parent=0 // loop_footer
    %s22 = sadd.s32 1, %s18
  $region7: #{_lambda_.15} parent=0 // loop_footer_branch
    %17 = sbr.rel target = $region3
  $region8: #{_lambda_.15} parent=0 // loop_exit
    _

// kernel: _lambda_.16
$region0: #{_lambda_.16}
  #allocation0 [shape = 'u32[]', space=smem, size = 0x4, offset = 0x4, fixed_abs, tag = 'smem constant byte address 0x4 - core index']
  #allocation1 [shape = 'u32[144,128]{1,0:T(1,128)}', space=vmem, size = 0x12000, scoped, tag = 'internal scratch']
  #allocation2 [shape = 'bf16[36,256]{1,0:T(8,128)(2,1)}', space=vmem, size = 0x5000, scoped, tag = 'scratch operand']
  %s0 = inlined_call_operand.vmem [shape: bf16[2,6,256], index: 0, kind: input, shape index: {}]
  %s1 = inlined_call_operand.vmem [shape: bf16[3,256,256], index: 1, kind: input, shape index: {}]
  %s2 = inlined_call_operand.vmem [shape: f32[1,256], index: 2, kind: input, shape index: {}]
  %s3 = inlined_call_operand.vmem [shape: f32[1,256], index: 3, kind: input, shape index: {}]
  %s4 = inlined_call_operand.vmem [shape: bf16[3,256,256], index: 4, kind: input, shape index: {}]
  %s5 = inlined_call_operand.vmem [shape: f32[1,256], index: 5, kind: input, shape index: {}]
  %s6 = inlined_call_operand.vmem [shape: f32[1,256], index: 6, kind: input, shape index: {}]
  %s7 = inlined_call_operand.vmem [shape: bf16[2,4,256], index: 7, kind: output, shape index: {}]
  %s8 = sld [smem:[#allocation0]]
  $region61: #{_lambda_.16} parent=0
    _
  %s10 = ssub.s32 1, %s8
  %s11 = scalar_select 0, %s10, %s8
  loop: start=0, step=1, limit=4
  $region2: #{_lambda_.16} parent=0 // loop_pre_header
    _
  $region3: #{_lambda_.16} parent=0 // loop_header
    %s13 = sphi 0, %s17
    %p14 = scmp.ge.s32.totalorder %s13, 4
    %s23 = sphi 0, %s25
    %s26 = sphi 0, %s23
    %s27 = sphi 0, %s26
    %s43 = sphi 0, %s27
    %s47 = sphi 0, %s47
    %s49 = sphi 0, %s47
    %s50 = sphi 0, %s49
    %s64 = sphi 0, %s50
    %s68 = sphi 0, %s68
    %s70 = sphi 0, %s68
    %s71 = sphi 0, %s70
    %s85 = sphi 0, %s71
    %s89 = sphi 0, %s89
    %s91 = sphi 0, %s89
    %s92 = sphi 0, %s91
    %s106 = sphi 0, %s92
    %s110 = sphi 0, %s110
    %s112 = sphi 0, %s110
    %s113 = sphi 0, %s112
    %s127 = sphi 0, %s113
    %s131 = sphi 0, %s131
    %s133 = sphi 0, %s131
    %s134 = sphi 0, %s133
    %s148 = sphi 0, %s134
    %s152 = sphi 0, %s152
    %s154 = sphi 0, %s152
    %s155 = sphi 0, %s154
    %s169 = sphi 0, %s155
    %s175 = sphi 0, %s177
    %s178 = sphi 0, %s175
    %s179 = sphi 0, %s178
    %s195 = sphi 0, %s179
  $region4: #{_lambda_.16} parent=0 // loop_header_branch
    %16 = sbr.rel (%p14) target = $region8
  $region5: #{_lambda_.16} parent=0 // loop_body
    %s18 = ssub.s32 %s13, 1
    %s19 = ssub.s32 %s13, 2
    %s20 = sadd.s32 %s13, 1
    %s21 = ssub.s32 %s13, %s20
    %p22 = scmp.eq.s32.totalorder %s21, 0
    %s24 = sadd.s32 %s23, 1
    %s25 = scalar_select %p22, %s23, %s24
    %p28 = pneg %p22
    %p29 = scmp.eq.s32.totalorder %s13, 1
    %p30 = por %p28, %p29
    %p31 = scmp.ne.s32.totalorder %s23, %s26
    %p32 = scmp.eq.s32.totalorder %s13, 0
    %p33 = por %p31, %p32
    %p34 = scmp.ne.s32.totalorder %s23, %s26
    %p35 = scmp.eq.s32.totalorder %s18, 1
    %p36 = por %p34, %p35
    %p37 = scmp.ne.s32.totalorder %s26, %s27
    %p38 = scmp.eq.s32.totalorder %s18, 0
    %p39 = por %p37, %p38
    %p40 = scmp.ne.s32.totalorder %s26, %s27
    %p41 = scmp.eq.s32.totalorder %s19, 1
    %p42 = por %p40, %p41
    %p44 = scmp.ne.s32.totalorder %s27, %s43
    %p45 = scmp.eq.s32.totalorder %s19, 0
    %p46 = por %p44, %p45
    %s48 = sadd.s32 %s47, 1
    %p51 = scmp.eq.s32.totalorder %s13, 1
    %p52 = scmp.ne.s32.totalorder %s47, %s49
    %p53 = scmp.eq.s32.totalorder %s13, 0
    %p54 = por %p52, %p53
    %p55 = scmp.ne.s32.totalorder %s47, %s49
    %p56 = scmp.eq.s32.totalorder %s18, 1
    %p57 = por %p55, %p56
    %p58 = scmp.ne.s32.totalorder %s49, %s50
    %p59 = scmp.eq.s32.totalorder %s18, 0
    %p60 = por %p58, %p59
    %p61 = scmp.ne.s32.totalorder %s49, %s50
    %p62 = scmp.eq.s32.totalorder %s19, 1
    %p63 = por %p61, %p62
    %p65 = scmp.ne.s32.totalorder %s50, %s64
    %p66 = scmp.eq.s32.totalorder %s19, 0
    %p67 = por %p65, %p66
    %s69 = sadd.s32 %s68, 1
    %p72 = scmp.eq.s32.totalorder %s13, 1
    %p73 = scmp.ne.s32.totalorder %s68, %s70
    %p74 = scmp.eq.s32.totalorder %s13, 0
    %p75 = por %p73, %p74
    %p76 = scmp.ne.s32.totalorder %s68, %s70
    %p77 = scmp.eq.s32.totalorder %s18, 1
    %p78 = por %p76, %p77
    %p79 = scmp.ne.s32.totalorder %s70, %s71
    %p80 = scmp.eq.s32.totalorder %s18, 0
    %p81 = por %p79, %p80
    %p82 = scmp.ne.s32.totalorder %s70, %s71
    %p83 = scmp.eq.s32.totalorder %s19, 1
    %p84 = por %p82, %p83
    %p86 = scmp.ne.s32.totalorder %s71, %s85
    %p87 = scmp.eq.s32.totalorder %s19, 0
    %p88 = por %p86, %p87
    %s90 = sadd.s32 %s89, 1
    %p93 = scmp.eq.s32.totalorder %s13, 1
    %p94 = scmp.ne.s32.totalorder %s89, %s91
    %p95 = scmp.eq.s32.totalorder %s13, 0
    %p96 = por %p94, %p95
    %p97 = scmp.ne.s32.totalorder %s89, %s91
    %p98 = scmp.eq.s32.totalorder %s18, 1
    %p99 = por %p97, %p98
    %p100 = scmp.ne.s32.totalorder %s91, %s92
    %p101 = scmp.eq.s32.totalorder %s18, 0
    %p102 = por %p100, %p101
    %p103 = scmp.ne.s32.totalorder %s91, %s92
    %p104 = scmp.eq.s32.totalorder %s19, 1
    %p105 = por %p103, %p104
    %p107 = scmp.ne.s32.totalorder %s92, %s106
    %p108 = scmp.eq.s32.totalorder %s19, 0
    %p109 = por %p107, %p108
    %s111 = sadd.s32 %s110, 1
    %p114 = scmp.eq.s32.totalorder %s13, 1
    %p115 = scmp.ne.s32.totalorder %s110, %s112
    %p116 = scmp.eq.s32.totalorder %s13, 0
    %p117 = por %p115, %p116
    %p118 = scmp.ne.s32.totalorder %s110, %s112
    %p119 = scmp.eq.s32.totalorder %s18, 1
    %p120 = por %p118, %p119
    %p121 = scmp.ne.s32.totalorder %s112, %s113
    %p122 = scmp.eq.s32.totalorder %s18, 0
    %p123 = por %p121, %p122
    %p124 = scmp.ne.s32.totalorder %s112, %s113
    %p125 = scmp.eq.s32.totalorder %s19, 1
    %p126 = por %p124, %p125
    %p128 = scmp.ne.s32.totalorder %s113, %s127
    %p129 = scmp.eq.s32.totalorder %s19, 0
    %p130 = por %p128, %p129
    %s132 = sadd.s32 %s131, 1
    %p135 = scmp.eq.s32.totalorder %s13, 1
    %p136 = scmp.ne.s32.totalorder %s131, %s133
    %p137 = scmp.eq.s32.totalorder %s13, 0
    %p138 = por %p136, %p137
    %p139 = scmp.ne.s32.totalorder %s131, %s133
    %p140 = scmp.eq.s32.totalorder %s18, 1
    %p141 = por %p139, %p140
    %p142 = scmp.ne.s32.totalorder %s133, %s134
    %p143 = scmp.eq.s32.totalorder %s18, 0
    %p144 = por %p142, %p143
    %p145 = scmp.ne.s32.totalorder %s133, %s134
    %p146 = scmp.eq.s32.totalorder %s19, 1
    %p147 = por %p145, %p146
    %p149 = scmp.ne.s32.totalorder %s134, %s148
    %p150 = scmp.eq.s32.totalorder %s19, 0
    %p151 = por %p149, %p150
    %s153 = sadd.s32 %s152, 1
    %p156 = scmp.eq.s32.totalorder %s13, 1
    %p157 = scmp.ne.s32.totalorder %s152, %s154
    %p158 = scmp.eq.s32.totalorder %s13, 0
    %p159 = por %p157, %p158
    %p160 = scmp.ne.s32.totalorder %s152, %s154
    %p161 = scmp.eq.s32.totalorder %s18, 1
    %p162 = por %p160, %p161
    %p163 = scmp.ne.s32.totalorder %s154, %s155
    %p164 = scmp.eq.s32.totalorder %s18, 0
    %p165 = por %p163, %p164
    %p166 = scmp.ne.s32.totalorder %s154, %s155
    %p167 = scmp.eq.s32.totalorder %s19, 1
    %p168 = por %p166, %p167
    %p170 = scmp.ne.s32.totalorder %s155, %s169
    %p171 = scmp.eq.s32.totalorder %s19, 0
    %p172 = por %p170, %p171
    %s173 = ssub.s32 %s13, %s20
    %p174 = scmp.eq.s32.totalorder %s173, 0
    %s176 = sadd.s32 %s175, 1
    %s177 = scalar_select %p174, %s175, %s176
    %p180 = pneg %p174
    %p181 = scmp.eq.s32.totalorder %s13, 1
    %p182 = por %p180, %p181
    %p183 = scmp.ne.s32.totalorder %s175, %s178
    %p184 = scmp.eq.s32.totalorder %s13, 0
    %p185 = por %p183, %p184
    %p186 = scmp.ne.s32.totalorder %s175, %s178
    %p187 = scmp.eq.s32.totalorder %s18, 1
    %p188 = por %p186, %p187
    %p189 = scmp.ne.s32.totalorder %s178, %s179
    %p190 = scmp.eq.s32.totalorder %s18, 0
    %p191 = por %p189, %p190
    %p192 = scmp.ne.s32.totalorder %s178, %s179
    %p193 = scmp.eq.s32.totalorder %s19, 1
    %p194 = por %p192, %p193
    %p196 = scmp.ne.s32.totalorder %s179, %s195
    %p197 = scmp.eq.s32.totalorder %s19, 0
    %p198 = por %p196, %p197
    %p199 = scmp.le.s32.totalorder 1, %s13
    %p200 = scmp.lt.s32.totalorder %s13, 3
    %p201 = pnand %p199, %p200
    %p202 = pneg %p201
    // Predicated region
    $region9: #{_lambda_.16} parent=5 // pred_check
      _
    $region10: #{_lambda_.16} parent=5 // pred_check_branch
      %204 = sbr.rel (%p201) target = $region12
    $region11: #{_lambda_.16} parent=5 // pred_region
      %s205 = ssub.s32 %s13, 1
      // Predicated region
      $region13: #{_lambda_.16} parent=11 // pred_check
        %p206 = pneg %p60
      $region14: #{_lambda_.16} parent=11 // pred_check_branch
        %208 = sbr.rel (%p206) target = $region16
      $region15: #{_lambda_.16} parent=11 // pred_region
        _
      $region16: #{_lambda_.16} parent=11 // pred_fallthru
        _
      // Predicated region
      $region17: #{_lambda_.16} parent=11 // pred_check
        %p209 = pneg %p81
      $region18: #{_lambda_.16} parent=11 // pred_check_branch
        %211 = sbr.rel (%p209) target = $region20
      $region19: #{_lambda_.16} parent=11 // pred_region
        _
      $region20: #{_lambda_.16} parent=11 // pred_fallthru
        _
      // Predicated region
      $region21: #{_lambda_.16} parent=11 // pred_check
        %p212 = pneg %p102
      $region22: #{_lambda_.16} parent=11 // pred_check_branch
        %214 = sbr.rel (%p212) target = $region24
      $region23: #{_lambda_.16} parent=11 // pred_region
        _
      $region24: #{_lambda_.16} parent=11 // pred_fallthru
        _
      // Predicated region
      $region25: #{_lambda_.16} parent=11 // pred_check
        %p215 = pneg %p123
      $region26: #{_lambda_.16} parent=11 // pred_check_branch
        %217 = sbr.rel (%p215) target = $region28
      $region27: #{_lambda_.16} parent=11 // pred_region
        _
      $region28: #{_lambda_.16} parent=11 // pred_fallthru
        _
      // Predicated region
      $region29: #{_lambda_.16} parent=11 // pred_check
        %p218 = pneg %p144
      $region30: #{_lambda_.16} parent=11 // pred_check_branch
        %220 = sbr.rel (%p218) target = $region32
      $region31: #{_lambda_.16} parent=11 // pred_region
        _
      $region32: #{_lambda_.16} parent=11 // pred_fallthru
        _
      // Predicated region
      $region33: #{_lambda_.16} parent=11 // pred_check
        %p221 = pneg %p165
      $region34: #{_lambda_.16} parent=11 // pred_check_branch
        %223 = sbr.rel (%p221) target = $region36
      $region35: #{_lambda_.16} parent=11 // pred_region
        _
      $region36: #{_lambda_.16} parent=11 // pred_fallthru
        _
    $region12: #{_lambda_.16} parent=5 // pred_fallthru
      _
    %p224 = scmp.lt.s32.totalorder %s13, 2
    // Predicated region
    $region37: #{_lambda_.16} parent=5 // pred_check
      %p225 = pneg %p224
    $region38: #{_lambda_.16} parent=5 // pred_check_branch
      %227 = sbr.rel (%p225) target = $region40
    $region39: #{_lambda_.16} parent=5 // pred_region
      // Predicated region
      $region41: #{_lambda_.16} parent=39 // pred_check
        %p228 = pneg %p33
      $region42: #{_lambda_.16} parent=39 // pred_check_branch
        %230 = sbr.rel (%p228) target = $region44
      $region43: #{_lambda_.16} parent=39 // pred_region
        %p231 = scmp.lt.s32.totalorder %s13, 1
        %s232 = scalar_select %p231, %s13, 1
        %s233 = smul.addr %s232, 2
        %s234 = smul.addr %s233, 4
        %s235 = scalar_lea.vmem %s0, %s234
      $region44: #{_lambda_.16} parent=39 // pred_fallthru
        _
    $region40: #{_lambda_.16} parent=5 // pred_fallthru
      _
    %p236 = scmp.le.s32.totalorder 1, %s13
    %p237 = scmp.lt.s32.totalorder %s13, 3
    %p238 = pnand %p236, %p237
    %p239 = pneg %p238
    // Predicated region
    $region45: #{_lambda_.16} parent=5 // pred_check
      _
    $region46: #{_lambda_.16} parent=5 // pred_check_branch
      %241 = sbr.rel (%p238) target = $region48
    $region47: #{_lambda_.16} parent=5 // pred_region
      %s242 = ssub.s32 %s13, 1
      %p243 = scmp.lt.s32.totalorder %s18, 1
      %s244 = scalar_select %p243, %s18, 1
      %s245 = smul.addr %s244, 2
      %s246 = smul.addr %s245, 4
      %s247 = scalar_lea.vmem %s0, %s246
      %p248 = pneg %p39
      %p249 = pneg %p36
      %p250 = pneg %p60
      %p251 = pneg %p57
      %p252 = pneg %p81
      %p253 = pneg %p78
      %p254 = pneg %p102
      %p255 = pneg %p99
      %p256 = pneg %p123
      %p257 = pneg %p120
      %p258 = pneg %p144
      %p259 = pneg %p141
      %p260 = pneg %p165
      %p261 = pneg %p162
      %p262 = pneg %p191
      %p263 = pneg %p188
      %p264 = scmp.lt.s32.totalorder %s18, 1
      %s265 = scalar_select %p264, %s18, 1
      %s266 = smul.addr %s265, 2
      %s267 = smul.addr %s266, 2
      %s268 = scalar_lea.vmem %s7, %s267
      %p269 = scmp.lt.s32.totalorder %s18, 1
      %s270 = scalar_select %p269, %s18, 1
      %s271 = smul.addr %s270, 2
      %s272 = smul.addr %s271, 4
      %s273 = scalar_lea.vmem %s0, %s272
      %p274 = scmp.lt.s32.totalorder %s18, 1
      %s275 = scalar_select %p274, %s18, 1
      %s276 = smul.addr %s275, 2
      %s277 = smul.addr %s276, 2
      %s278 = scalar_lea.vmem %s7, %s277
      %v280 = vld [vmem:[%s273] sm:$0x33]
      %v281 = vld [vmem:[%s1] sm:$0xff]
      %v282 = vld [vmem:[%s1 + $0x8] sm:$0xff]
      %v283 = vld [vmem:[%s1 + $0x10] sm:$0xff]
      %v284 = vld [vmem:[%s1 + $0x18] sm:$0xff]
      %v285 = vld [vmem:[%s1 + $0x20] sm:$0xff]
      %v286 = vld [vmem:[%s1 + $0x28] sm:$0xff]
      %v287 = vld [vmem:[%s1 + $0x30] sm:$0xff]
      %v288 = vld [vmem:[%s1 + $0x38] sm:$0xff]
      %v289 = vld [vmem:[%s1 + $0x40] sm:$0xff]
      %v290 = vld [vmem:[%s1 + $0x48] sm:$0xff]
      %v291 = vld [vmem:[%s1 + $0x50] sm:$0xff]
      %v292 = vld [vmem:[%s1 + $0x58] sm:$0xff]
      %v293 = vld [vmem:[%s1 + $0x60] sm:$0xff]
      %v294 = vld [vmem:[%s1 + $0x68] sm:$0xff]
      %v295 = vld [vmem:[%s1 + $0x70] sm:$0xff]
      %v296 = vld [vmem:[%s1 + $0x78] sm:$0xff]
      %v297 = vld [vmem:[%s1 + $0x80] sm:$0xff]
      %v298 = vld [vmem:[%s1 + $0x88] sm:$0xff]
      %v299 = vld [vmem:[%s1 + $0x90] sm:$0xff]
      %v300 = vld [vmem:[%s1 + $0x98] sm:$0xff]
      %v301 = vld [vmem:[%s1 + $0xa0] sm:$0xff]
      %v302 = vld [vmem:[%s1 + $0xa8] sm:$0xff]
      %v303 = vld [vmem:[%s1 + $0xb0] sm:$0xff]
      %v304 = vld [vmem:[%s1 + $0xb8] sm:$0xff]
      %v305 = vld [vmem:[%s1 + $0xc0] sm:$0xff]
      %v306 = vld [vmem:[%s1 + $0xc8] sm:$0xff]
      %v307 = vld [vmem:[%s1 + $0xd0] sm:$0xff]
      %v308 = vld [vmem:[%s1 + $0xd8] sm:$0xff]
      %v309 = vld [vmem:[%s1 + $0xe0] sm:$0xff]
      %v310 = vld [vmem:[%s1 + $0xe8] sm:$0xff]
      %v311 = vld [vmem:[%s1 + $0xf0] sm:$0xff]
      %v312 = vld [vmem:[%s1 + $0xf8] sm:$0xff]
      %v313 = vld [vmem:[%s273] sm:$0x77]
      %s314 = scalar_lea.vmem %s1, 256
      %v315 = vld [vmem:[%s314] sm:$0xff]
      %v316 = vld [vmem:[%s314 + $0x8] sm:$0xff]
      %v317 = vld [vmem:[%s314 + $0x10] sm:$0xff]
      %v318 = vld [vmem:[%s314 + $0x18] sm:$0xff]
      %v319 = vld [vmem:[%s314 + $0x20] sm:$0xff]
      %v320 = vld [vmem:[%s314 + $0x28] sm:$0xff]
      %v321 = vld [vmem:[%s314 + $0x30] sm:$0xff]
      %v322 = vld [vmem:[%s314 + $0x38] sm:$0xff]
      %v323 = vld [vmem:[%s314 + $0x40] sm:$0xff]
      %v324 = vld [vmem:[%s314 + $0x48] sm:$0xff]
      %v325 = vld [vmem:[%s314 + $0x50] sm:$0xff]
      %v326 = vld [vmem:[%s314 + $0x58] sm:$0xff]
      %v327 = vld [vmem:[%s314 + $0x60] sm:$0xff]
      %v328 = vld [vmem:[%s314 + $0x68] sm:$0xff]
      %v329 = vld [vmem:[%s314 + $0x70] sm:$0xff]
      %v330 = vld [vmem:[%s314 + $0x78] sm:$0xff]
      %v331 = vld [vmem:[%s314 + $0x80] sm:$0xff]
      %v332 = vld [vmem:[%s314 + $0x88] sm:$0xff]
      %v333 = vld [vmem:[%s314 + $0x90] sm:$0xff]
      %v334 = vld [vmem:[%s314 + $0x98] sm:$0xff]
      %v335 = vld [vmem:[%s314 + $0xa0] sm:$0xff]
      %v336 = vld [vmem:[%s314 + $0xa8] sm:$0xff]
      %v337 = vld [vmem:[%s314 + $0xb0] sm:$0xff]
      %v338 = vld [vmem:[%s314 + $0xb8] sm:$0xff]
      %v339 = vld [vmem:[%s314 + $0xc0] sm:$0xff]
      %v340 = vld [vmem:[%s314 + $0xc8] sm:$0xff]
      %v341 = vld [vmem:[%s314 + $0xd0] sm:$0xff]
      %v342 = vld [vmem:[%s314 + $0xd8] sm:$0xff]
      %v343 = vld [vmem:[%s314 + $0xe0] sm:$0xff]
      %v344 = vld [vmem:[%s314 + $0xe8] sm:$0xff]
      %v345 = vld [vmem:[%s314 + $0xf0] sm:$0xff]
      %v346 = vld [vmem:[%s314 + $0xf8] sm:$0xff]
      %v348 = vunpack.c.l.b16 %v313
      %v349 = vunpack.c.h.b16 %v313
      %v350 = vpack.c.b16 %v348, %v348
      %v351 = vpack.c.b16 %v349, %v349
      %v353 = vshrl.u32 %v350, 16
      %v355 = vshll.u32 %v350, 16
      %v357 = vrot.slane %v355, 1
      %v358 = vor.u32 %v353, %v357
      %v360 = vshrl.u32 %v351, 16
      %v362 = vshll.u32 %v351, 16
      %v364 = vrot.slane %v362, 1
      %v365 = vor.u32 %v360, %v364
      %v400 = vunpack.c.l.b16 %v315
      %v401 = vunpack.c.h.b16 %v315
      %v402 = vunpack.c.l.b16 %v316
      %v403 = vunpack.c.h.b16 %v316
      %v404 = vunpack.c.l.b16 %v317
      %v405 = vunpack.c.h.b16 %v317
      %v406 = vunpack.c.l.b16 %v318
      %v407 = vunpack.c.h.b16 %v318
      %v408 = vunpack.c.l.b16 %v319
      %v409 = vunpack.c.h.b16 %v319
      %v410 = vunpack.c.l.b16 %v320
      %v411 = vunpack.c.h.b16 %v320
      %v412 = vunpack.c.l.b16 %v321
      %v413 = vunpack.c.h.b16 %v321
      %v414 = vunpack.c.l.b16 %v322
      %v415 = vunpack.c.h.b16 %v322
      %v416 = vunpack.c.l.b16 %v323
      %v417 = vunpack.c.h.b16 %v323
      %v418 = vunpack.c.l.b16 %v324
      %v419 = vunpack.c.h.b16 %v324
      %v420 = vunpack.c.l.b16 %v325
      %v421 = vunpack.c.h.b16 %v325
      %v422 = vunpack.c.l.b16 %v326
      %v423 = vunpack.c.h.b16 %v326
      %v424 = vunpack.c.l.b16 %v327
      %v425 = vunpack.c.h.b16 %v327
      %v426 = vunpack.c.l.b16 %v328
      %v427 = vunpack.c.h.b16 %v328
      %v428 = vunpack.c.l.b16 %v329
      %v429 = vunpack.c.h.b16 %v329
      %v430 = vunpack.c.l.b16 %v330
      %v431 = vunpack.c.h.b16 %v330
      %v432 = vunpack.c.l.b16 %v331
      %v433 = vunpack.c.h.b16 %v331
      %v434 = vunpack.c.l.b16 %v332
      %v435 = vunpack.c.h.b16 %v332
      %v436 = vunpack.c.l.b16 %v333
      %v437 = vunpack.c.h.b16 %v333
      %v438 = vunpack.c.l.b16 %v334
      %v439 = vunpack.c.h.b16 %v334
      %v440 = vunpack.c.l.b16 %v335
      %v441 = vunpack.c.h.b16 %v335
      %v442 = vunpack.c.l.b16 %v336
      %v443 = vunpack.c.h.b16 %v336
      %v444 = vunpack.c.l.b16 %v337
      %v445 = vunpack.c.h.b16 %v337
      %v446 = vunpack.c.l.b16 %v338
      %v447 = vunpack.c.h.b16 %v338
      %v448 = vunpack.c.l.b16 %v339
      %v449 = vunpack.c.h.b16 %v339
      %v450 = vunpack.c.l.b16 %v340
      %v451 = vunpack.c.h.b16 %v340
      %v452 = vunpack.c.l.b16 %v341
      %v453 = vunpack.c.h.b16 %v341
      %v454 = vunpack.c.l.b16 %v342
      %v455 = vunpack.c.h.b16 %v342
      %v456 = vunpack.c.l.b16 %v343
      %v457 = vunpack.c.h.b16 %v343
      %v458 = vunpack.c.l.b16 %v344
      %v459 = vunpack.c.h.b16 %v344
      %v460 = vunpack.c.l.b16 %v345
      %v461 = vunpack.c.h.b16 %v345
      %v462 = vunpack.c.l.b16 %v346
      %v463 = vunpack.c.h.b16 %v346
      %v464 = vpack.c.b16 %v402, %v400
      %v465 = vpack.c.b16 %v403, %v401
      %v466 = vpack.c.b16 %v406, %v404
      %v467 = vpack.c.b16 %v407, %v405
      %v468 = vpack.c.b16 %v410, %v408
      %v469 = vpack.c.b16 %v411, %v409
      %v470 = vpack.c.b16 %v414, %v412
      %v471 = vpack.c.b16 %v415, %v413
      %v472 = vpack.c.b16 %v418, %v416
      %v473 = vpack.c.b16 %v419, %v417
      %v474 = vpack.c.b16 %v422, %v420
      %v475 = vpack.c.b16 %v423, %v421
      %v476 = vpack.c.b16 %v426, %v424
      %v477 = vpack.c.b16 %v427, %v425
      %v478 = vpack.c.b16 %v430, %v428
      %v479 = vpack.c.b16 %v431, %v429
      %v480 = vpack.c.b16 %v434, %v432
      %v481 = vpack.c.b16 %v435, %v433
      %v482 = vpack.c.b16 %v438, %v436
      %v483 = vpack.c.b16 %v439, %v437
      %v484 = vpack.c.b16 %v442, %v440
      %v485 = vpack.c.b16 %v443, %v441
      %v486 = vpack.c.b16 %v446, %v444
      %v487 = vpack.c.b16 %v447, %v445
      %v488 = vpack.c.b16 %v450, %v448
      %v489 = vpack.c.b16 %v451, %v449
      %v490 = vpack.c.b16 %v454, %v452
      %v491 = vpack.c.b16 %v455, %v453
      %v492 = vpack.c.b16 %v458, %v456
      %v493 = vpack.c.b16 %v459, %v457
      %v494 = vpack.c.b16 %v462, %v460
      %v495 = vpack.c.b16 %v463, %v461
      %528 = vmatprep.subr.bf16.mxu0 %v465
      %529 = vmatpush1.bf16.msra.mxu0 %v464
      %530 = vmatprep.subr.bf16.mxu0 %v467
      %531 = vmatpush1.bf16.msra.mxu0 %v466
      %532 = vmatprep.subr.bf16.mxu0 %v469
      %533 = vmatpush1.bf16.msra.mxu0 %v468
      %534 = vmatprep.subr.bf16.mxu0 %v471
      %535 = vmatpush1.bf16.msra.mxu0 %v470
      %536 = vmatprep.subr.bf16.mxu0 %v473
      %537 = vmatpush1.bf16.msra.mxu0 %v472
      %538 = vmatprep.subr.bf16.mxu0 %v475
      %539 = vmatpush1.bf16.msra.mxu0 %v474
      %540 = vmatprep.subr.bf16.mxu0 %v477
      %541 = vmatpush1.bf16.msra.mxu0 %v476
      %542 = vmatprep.subr.bf16.mxu0 %v479
      %543 = vmatpush1.bf16.msra.mxu0 %v478
      %544 = vmatprep.subr.bf16.mxu0 %v481
      %545 = vmatpush1.bf16.msra.mxu0 %v480
      %546 = vmatprep.subr.bf16.mxu0 %v483
      %547 = vmatpush1.bf16.msra.mxu0 %v482
      %548 = vmatprep.subr.bf16.mxu0 %v485
      %549 = vmatpush1.bf16.msra.mxu0 %v484
      %550 = vmatprep.subr.bf16.mxu0 %v487
      %551 = vmatpush1.bf16.msra.mxu0 %v486
      %552 = vmatprep.subr.bf16.mxu0 %v489
      %553 = vmatpush1.bf16.msra.mxu0 %v488
      %554 = vmatprep.subr.bf16.mxu0 %v491
      %555 = vmatpush1.bf16.msra.mxu0 %v490
      %556 = vmatprep.subr.bf16.mxu0 %v493
      %557 = vmatpush1.bf16.msra.mxu0 %v492
      %558 = vmatprep.subr.bf16.mxu0 %v495
      %559 = vmatpush1.bf16.msra.mxu0 %v494
      %560 = vmatprep.mubr.bf16.mxu0 %v365
      %561 = vmatmul.mubr.bf16.gmra.mrb[0].mxu0 %v358
      %v562 = vpop.f32.mrb[0].mxu0
      %v563 = vadd.f32 0.0, %v562
      %v564 = vpop.f32.mrb[0].mxu0
      %v565 = vadd.f32 0.0, %v564
      %v566 = vpop.f32.mrb[0].mxu0
      %v567 = vpop.f32.mrb[0].mxu0
      %568 = vdwg.mxu0
      %v570 = vunpack.c.l.b16 %v280
      %v571 = vunpack.c.h.b16 %v280
      %v572 = vpack.c.b16 %v570, %v570
      %v573 = vpack.c.b16 %v571, %v571
      %v608 = vunpack.c.l.b16 %v281
      %v609 = vunpack.c.h.b16 %v281
      %v610 = vunpack.c.l.b16 %v282
      %v611 = vunpack.c.h.b16 %v282
      %v612 = vunpack.c.l.b16 %v283
      %v613 = vunpack.c.h.b16 %v283
      %v614 = vunpack.c.l.b16 %v284
      %v615 = vunpack.c.h.b16 %v284
      %v616 = vunpack.c.l.b16 %v285
      %v617 = vunpack.c.h.b16 %v285
      %v618 = vunpack.c.l.b16 %v286
      %v619 = vunpack.c.h.b16 %v286
      %v620 = vunpack.c.l.b16 %v287
      %v621 = vunpack.c.h.b16 %v287
      %v622 = vunpack.c.l.b16 %v288
      %v623 = vunpack.c.h.b16 %v288
      %v624 = vunpack.c.l.b16 %v289
      %v625 = vunpack.c.h.b16 %v289
      %v626 = vunpack.c.l.b16 %v290
      %v627 = vunpack.c.h.b16 %v290
      %v628 = vunpack.c.l.b16 %v291
      %v629 = vunpack.c.h.b16 %v291
      %v630 = vunpack.c.l.b16 %v292
      %v631 = vunpack.c.h.b16 %v292
      %v632 = vunpack.c.l.b16 %v293
      %v633 = vunpack.c.h.b16 %v293
      %v634 = vunpack.c.l.b16 %v294
      %v635 = vunpack.c.h.b16 %v294
      %v636 = vunpack.c.l.b16 %v295
      %v637 = vunpack.c.h.b16 %v295
      %v638 = vunpack.c.l.b16 %v296
      %v639 = vunpack.c.h.b16 %v296
      %v640 = vunpack.c.l.b16 %v297
      %v641 = vunpack.c.h.b16 %v297
      %v642 = vunpack.c.l.b16 %v298
      %v643 = vunpack.c.h.b16 %v298
      %v644 = vunpack.c.l.b16 %v299
      %v645 = vunpack.c.h.b16 %v299
      %v646 = vunpack.c.l.b16 %v300
      %v647 = vunpack.c.h.b16 %v300
      %v648 = vunpack.c.l.b16 %v301
      %v649 = vunpack.c.h.b16 %v301
      %v650 = vunpack.c.l.b16 %v302
      %v651 = vunpack.c.h.b16 %v302
      %v652 = vunpack.c.l.b16 %v303
      %v653 = vunpack.c.h.b16 %v303
      %v654 = vunpack.c.l.b16 %v304
      %v655 = vunpack.c.h.b16 %v304
      %v656 = vunpack.c.l.b16 %v305
      %v657 = vunpack.c.h.b16 %v305
      %v658 = vunpack.c.l.b16 %v306
      %v659 = vunpack.c.h.b16 %v306
      %v660 = vunpack.c.l.b16 %v307
      %v661 = vunpack.c.h.b16 %v307
      %v662 = vunpack.c.l.b16 %v308
      %v663 = vunpack.c.h.b16 %v308
      %v664 = vunpack.c.l.b16 %v309
      %v665 = vunpack.c.h.b16 %v309
      %v666 = vunpack.c.l.b16 %v310
      %v667 = vunpack.c.h.b16 %v310
      %v668 = vunpack.c.l.b16 %v311
      %v669 = vunpack.c.h.b16 %v311
      %v670 = vunpack.c.l.b16 %v312
      %v671 = vunpack.c.h.b16 %v312
      %v672 = vpack.c.b16 %v610, %v608
      %v673 = vpack.c.b16 %v611, %v609
      %v674 = vpack.c.b16 %v614, %v612
      %v675 = vpack.c.b16 %v615, %v613
      %v676 = vpack.c.b16 %v618, %v616
      %v677 = vpack.c.b16 %v619, %v617
      %v678 = vpack.c.b16 %v622, %v620
      %v679 = vpack.c.b16 %v623, %v621
      %v680 = vpack.c.b16 %v626, %v624
      %v681 = vpack.c.b16 %v627, %v625
      %v682 = vpack.c.b16 %v630, %v628
      %v683 = vpack.c.b16 %v631, %v629
      %v684 = vpack.c.b16 %v634, %v632
      %v685 = vpack.c.b16 %v635, %v633
      %v686 = vpack.c.b16 %v638, %v636
      %v687 = vpack.c.b16 %v639, %v637
      %v688 = vpack.c.b16 %v642, %v640
      %v689 = vpack.c.b16 %v643, %v641
      %v690 = vpack.c.b16 %v646, %v644
      %v691 = vpack.c.b16 %v647, %v645
      %v692 = vpack.c.b16 %v650, %v648
      %v693 = vpack.c.b16 %v651, %v649
      %v694 = vpack.c.b16 %v654, %v652
      %v695 = vpack.c.b16 %v655, %v653
      %v696 = vpack.c.b16 %v658, %v656
      %v697 = vpack.c.b16 %v659, %v657
      %v698 = vpack.c.b16 %v662, %v660
      %v699 = vpack.c.b16 %v663, %v661
      %v700 = vpack.c.b16 %v666, %v664
      %v701 = vpack.c.b16 %v667, %v665
      %v702 = vpack.c.b16 %v670, %v668
      %v703 = vpack.c.b16 %v671, %v669
      %736 = vmatprep.subr.bf16.mxu0 %v673
      %737 = vmatpush1.bf16.msra.mxu0 %v672
      %738 = vmatprep.subr.bf16.mxu0 %v675
      %739 = vmatpush1.bf16.msra.mxu0 %v674
      %740 = vmatprep.subr.bf16.mxu0 %v677
      %741 = vmatpush1.bf16.msra.mxu0 %v676
      %742 = vmatprep.subr.bf16.mxu0 %v679
      %743 = vmatpush1.bf16.msra.mxu0 %v678
      %744 = vmatprep.subr.bf16.mxu0 %v681
      %745 = vmatpush1.bf16.msra.mxu0 %v680
      %746 = vmatprep.subr.bf16.mxu0 %v683
      %747 = vmatpush1.bf16.msra.mxu0 %v682
      %748 = vmatprep.subr.bf16.mxu0 %v685
      %749 = vmatpush1.bf16.msra.mxu0 %v684
      %750 = vmatprep.subr.bf16.mxu0 %v687
      %751 = vmatpush1.bf16.msra.mxu0 %v686
      %752 = vmatprep.subr.bf16.mxu0 %v689
      %753 = vmatpush1.bf16.msra.mxu0 %v688
      %754 = vmatprep.subr.bf16.mxu0 %v691
      %755 = vmatpush1.bf16.msra.mxu0 %v690
      %756 = vmatprep.subr.bf16.mxu0 %v693
      %757 = vmatpush1.bf16.msra.mxu0 %v692
      %758 = vmatprep.subr.bf16.mxu0 %v695
      %759 = vmatpush1.bf16.msra.mxu0 %v694
      %760 = vmatprep.subr.bf16.mxu0 %v697
      %761 = vmatpush1.bf16.msra.mxu0 %v696
      %762 = vmatprep.subr.bf16.mxu0 %v699
      %763 = vmatpush1.bf16.msra.mxu0 %v698
      %764 = vmatprep.subr.bf16.mxu0 %v701
      %765 = vmatpush1.bf16.msra.mxu0 %v700
      %766 = vmatprep.subr.bf16.mxu0 %v703
      %767 = vmatpush1.bf16.msra.mxu0 %v702
      %768 = vmatprep.mubr.bf16.mxu0 %v573
      %769 = vmatmul.mubr.bf16.gmra.mrb[0].mxu0 %v572
      %v770 = vpop.f32.mrb[0].mxu0
      %v771 = vadd.f32 %v563, %v770
      %v772 = vpop.f32.mrb[0].mxu0
      %v773 = vadd.f32 %v565, %v772
      %v774 = vpop.f32.mrb[0].mxu0
      %v775 = vpop.f32.mrb[0].mxu0
      %776 = vdwg.mxu0
      %v777 = vld [vmem:[%s273] sm:$0x66]
      %s778 = scalar_lea.vmem %s1, 512
      %v779 = vld [vmem:[%s778] sm:$0xff]
      %v780 = vld [vmem:[%s778 + $0x8] sm:$0xff]
      %v781 = vld [vmem:[%s778 + $0x10] sm:$0xff]
      %v782 = vld [vmem:[%s778 + $0x18] sm:$0xff]
      %v783 = vld [vmem:[%s778 + $0x20] sm:$0xff]
      %v784 = vld [vmem:[%s778 + $0x28] sm:$0xff]
      %v785 = vld [vmem:[%s778 + $0x30] sm:$0xff]
      %v786 = vld [vmem:[%s778 + $0x38] sm:$0xff]
      %v787 = vld [vmem:[%s778 + $0x40] sm:$0xff]
      %v788 = vld [vmem:[%s778 + $0x48] sm:$0xff]
      %v789 = vld [vmem:[%s778 + $0x50] sm:$0xff]
      %v790 = vld [vmem:[%s778 + $0x58] sm:$0xff]
      %v791 = vld [vmem:[%s778 + $0x60] sm:$0xff]
      %v792 = vld [vmem:[%s778 + $0x68] sm:$0xff]
      %v793 = vld [vmem:[%s778 + $0x70] sm:$0xff]
      %v794 = vld [vmem:[%s778 + $0x78] sm:$0xff]
      %v795 = vld [vmem:[%s778 + $0x80] sm:$0xff]
      %v796 = vld [vmem:[%s778 + $0x88] sm:$0xff]
      %v797 = vld [vmem:[%s778 + $0x90] sm:$0xff]
      %v798 = vld [vmem:[%s778 + $0x98] sm:$0xff]
      %v799 = vld [vmem:[%s778 + $0xa0] sm:$0xff]
      %v800 = vld [vmem:[%s778 + $0xa8] sm:$0xff]
      %v801 = vld [vmem:[%s778 + $0xb0] sm:$0xff]
      %v802 = vld [vmem:[%s778 + $0xb8] sm:$0xff]
      %v803 = vld [vmem:[%s778 + $0xc0] sm:$0xff]
      %v804 = vld [vmem:[%s778 + $0xc8] sm:$0xff]
      %v805 = vld [vmem:[%s778 + $0xd0] sm:$0xff]
      %v806 = vld [vmem:[%s778 + $0xd8] sm:$0xff]
      %v807 = vld [vmem:[%s778 + $0xe0] sm:$0xff]
      %v808 = vld [vmem:[%s778 + $0xe8] sm:$0xff]
      %v809 = vld [vmem:[%s778 + $0xf0] sm:$0xff]
      %v810 = vld [vmem:[%s778 + $0xf8] sm:$0xff]
      %v812 = vunpack.c.l.b16 %v777
      %v813 = vunpack.c.h.b16 %v777
      %v814 = vpack.c.b16 %v812, %v812
      %v815 = vpack.c.b16 %v813, %v813
      %v816 = vrot.slane %v814, 1
      %v817 = vrot.slane %v815, 1
      %v852 = vunpack.c.l.b16 %v779
      %v853 = vunpack.c.h.b16 %v779
      %v854 = vunpack.c.l.b16 %v780
      %v855 = vunpack.c.h.b16 %v780
      %v856 = vunpack.c.l.b16 %v781
      %v857 = vunpack.c.h.b16 %v781
      %v858 = vunpack.c.l.b16 %v782
      %v859 = vunpack.c.h.b16 %v782
      %v860 = vunpack.c.l.b16 %v783
      %v861 = vunpack.c.h.b16 %v783
      %v862 = vunpack.c.l.b16 %v784
      %v863 = vunpack.c.h.b16 %v784
      %v864 = vunpack.c.l.b16 %v785
      %v865 = vunpack.c.h.b16 %v785
      %v866 = vunpack.c.l.b16 %v786
      %v867 = vunpack.c.h.b16 %v786
      %v868 = vunpack.c.l.b16 %v787
      %v869 = vunpack.c.h.b16 %v787
      %v870 = vunpack.c.l.b16 %v788
      %v871 = vunpack.c.h.b16 %v788
      %v872 = vunpack.c.l.b16 %v789
      %v873 = vunpack.c.h.b16 %v789
      %v874 = vunpack.c.l.b16 %v790
      %v875 = vunpack.c.h.b16 %v790
      %v876 = vunpack.c.l.b16 %v791
      %v877 = vunpack.c.h.b16 %v791
      %v878 = vunpack.c.l.b16 %v792
      %v879 = vunpack.c.h.b16 %v792
      %v880 = vunpack.c.l.b16 %v793
      %v881 = vunpack.c.h.b16 %v793
      %v882 = vunpack.c.l.b16 %v794
      %v883 = vunpack.c.h.b16 %v794
      %v884 = vunpack.c.l.b16 %v795
      %v885 = vunpack.c.h.b16 %v795
      %v886 = vunpack.c.l.b16 %v796
      %v887 = vunpack.c.h.b16 %v796
      %v888 = vunpack.c.l.b16 %v797
      %v889 = vunpack.c.h.b16 %v797
      %v890 = vunpack.c.l.b16 %v798
      %v891 = vunpack.c.h.b16 %v798
      %v892 = vunpack.c.l.b16 %v799
      %v893 = vunpack.c.h.b16 %v799
      %v894 = vunpack.c.l.b16 %v800
      %v895 = vunpack.c.h.b16 %v800
      %v896 = vunpack.c.l.b16 %v801
      %v897 = vunpack.c.h.b16 %v801
      %v898 = vunpack.c.l.b16 %v802
      %v899 = vunpack.c.h.b16 %v802
      %v900 = vunpack.c.l.b16 %v803
      %v901 = vunpack.c.h.b16 %v803
      %v902 = vunpack.c.l.b16 %v804
      %v903 = vunpack.c.h.b16 %v804
      %v904 = vunpack.c.l.b16 %v805
      %v905 = vunpack.c.h.b16 %v805
      %v906 = vunpack.c.l.b16 %v806
      %v907 = vunpack.c.h.b16 %v806
      %v908 = vunpack.c.l.b16 %v807
      %v909 = vunpack.c.h.b16 %v807
      %v910 = vunpack.c.l.b16 %v808
      %v911 = vunpack.c.h.b16 %v808
      %v912 = vunpack.c.l.b16 %v809
      %v913 = vunpack.c.h.b16 %v809
      %v914 = vunpack.c.l.b16 %v810
      %v915 = vunpack.c.h.b16 %v810
      %v916 = vpack.c.b16 %v854, %v852
      %v917 = vpack.c.b16 %v855, %v853
      %v918 = vpack.c.b16 %v858, %v856
      %v919 = vpack.c.b16 %v859, %v857
      %v920 = vpack.c.b16 %v862, %v860
      %v921 = vpack.c.b16 %v863, %v861
      %v922 = vpack.c.b16 %v866, %v864
      %v923 = vpack.c.b16 %v867, %v865
      %v924 = vpack.c.b16 %v870, %v868
      %v925 = vpack.c.b16 %v871, %v869
      %v926 = vpack.c.b16 %v874, %v872
      %v927 = vpack.c.b16 %v875, %v873
      %v928 = vpack.c.b16 %v878, %v876
      %v929 = vpack.c.b16 %v879, %v877
      %v930 = vpack.c.b16 %v882, %v880
      %v931 = vpack.c.b16 %v883, %v881
      %v932 = vpack.c.b16 %v886, %v884
      %v933 = vpack.c.b16 %v887, %v885
      %v934 = vpack.c.b16 %v890, %v888
      %v935 = vpack.c.b16 %v891, %v889
      %v936 = vpack.c.b16 %v894, %v892
      %v937 = vpack.c.b16 %v895, %v893
      %v938 = vpack.c.b16 %v898, %v896
      %v939 = vpack.c.b16 %v899, %v897
      %v940 = vpack.c.b16 %v902, %v900
      %v941 = vpack.c.b16 %v903, %v901
      %v942 = vpack.c.b16 %v906, %v904
      %v943 = vpack.c.b16 %v907, %v905
      %v944 = vpack.c.b16 %v910, %v908
      %v945 = vpack.c.b16 %v911, %v909
      %v946 = vpack.c.b16 %v914, %v912
      %v947 = vpack.c.b16 %v915, %v913
      %980 = vmatprep.subr.bf16.mxu0 %v917
      %981 = vmatpush1.bf16.msra.mxu0 %v916
      %982 = vmatprep.subr.bf16.mxu0 %v919
      %983 = vmatpush1.bf16.msra.mxu0 %v918
      %984 = vmatprep.subr.bf16.mxu0 %v921
      %985 = vmatpush1.bf16.msra.mxu0 %v920
      %986 = vmatprep.subr.bf16.mxu0 %v923
      %987 = vmatpush1.bf16.msra.mxu0 %v922
      %988 = vmatprep.subr.bf16.mxu0 %v925
      %989 = vmatpush1.bf16.msra.mxu0 %v924
      %990 = vmatprep.subr.bf16.mxu0 %v927
      %991 = vmatpush1.bf16.msra.mxu0 %v926
      %992 = vmatprep.subr.bf16.mxu0 %v929
      %993 = vmatpush1.bf16.msra.mxu0 %v928
      %994 = vmatprep.subr.bf16.mxu0 %v931
      %995 = vmatpush1.bf16.msra.mxu0 %v930
      %996 = vmatprep.subr.bf16.mxu0 %v933
      %997 = vmatpush1.bf16.msra.mxu0 %v932
      %998 = vmatprep.subr.bf16.mxu0 %v935
      %999 = vmatpush1.bf16.msra.mxu0 %v934
      %1000 = vmatprep.subr.bf16.mxu0 %v937
      %1001 = vmatpush1.bf16.msra.mxu0 %v936
      %1002 = vmatprep.subr.bf16.mxu0 %v939
      %1003 = vmatpush1.bf16.msra.mxu0 %v938
      %1004 = vmatprep.subr.bf16.mxu0 %v941
      %1005 = vmatpush1.bf16.msra.mxu0 %v940
      %1006 = vmatprep.subr.bf16.mxu0 %v943
      %1007 = vmatpush1.bf16.msra.mxu0 %v942
      %1008 = vmatprep.subr.bf16.mxu0 %v945
      %1009 = vmatpush1.bf16.msra.mxu0 %v944
      %1010 = vmatprep.subr.bf16.mxu0 %v947
      %1011 = vmatpush1.bf16.msra.mxu0 %v946
      %1012 = vmatprep.mubr.bf16.mxu0 %v817
      %1013 = vmatmul.mubr.bf16.gmra.mrb[0].mxu0 %v816
      %v1014 = vpop.f32.mrb[0].mxu0
      %v1015 = vadd.f32 0.0, %v1014
      %v1016 = vpop.f32.mrb[0].mxu0
      %v1017 = vadd.f32 0.0, %v1016
      %v1018 = vpop.f32.mrb[0].mxu0
      %v1019 = vpop.f32.mrb[0].mxu0
      %1020 = vdwg.mxu0
      %v1021 = vadd.f32 %v771, %v1015
      %v1022 = vadd.f32 %v773, %v1017
      %v1023 = vld [vmem:[%s2] sm:$0x3]
      %v1025 = vlaneseq
      %v1026 = vshrl.u32 %v1025, 7
      %v1027 = vsub.s32 0, %v1026
      %v1028 = vrot.slane %v1023, %v1027
      %v1029 = vlaneseq
      %v1030 = vshrl.u32 %v1029, 7
      %v1031 = vsub.s32 1, %v1030
      %v1032 = vrot.slane %v1023, %v1031
      %v1035 = vmul.f32 %v1021, %v1028
      %v1036 = vmul.f32 %v1022, %v1032
      %v1037 = vld [vmem:[%s3] sm:$0x3]
      %v1039 = vlaneseq
      %v1040 = vshrl.u32 %v1039, 7
      %v1041 = vsub.s32 0, %v1040
      %v1042 = vrot.slane %v1037, %v1041
      %v1043 = vlaneseq
      %v1044 = vshrl.u32 %v1043, 7
      %v1045 = vsub.s32 1, %v1044
      %v1046 = vrot.slane %v1037, %v1045
      %v1049 = vadd.f32 %v1035, %v1042
      %v1050 = vadd.f32 %v1036, %v1046
      %v1051 = vmax.f32 %v1049, 0.0
      %v1052 = vmax.f32 %v1050, 0.0
      %1053 = vst [vmem:[#allocation2] sm:$0xff] 0
      %1054 = vst [vmem:[#allocation2 + $0x8] sm:$0xff] 0
      %1055 = vst [vmem:[#allocation2 + $0x10] sm:$0xff] 0
      %1056 = vst [vmem:[#allocation2 + $0x18] sm:$0xff] 0
      %1057 = vst [vmem:[#allocation2 + $0x20] sm:$0x33] 0
      %v1058 = vpack.c.bf16 %v1051, %v1051
      %v1059 = vpack.c.bf16 %v1052, %v1052
      %v1062 = vunpack.c.l.b16 %v1058
      %v1063 = vunpack.c.l.b16 %v1059
      %v1064 = vpack.c.b16 %v1063, %v1062
      %1066 = vst [vmem:[#allocation2 + $0x10] sm:$0x33] %v1064
      %v1067 = vld [vmem:[#allocation2 + $0x8] sm:$0x88]
      %v1068 = vld [vmem:[#allocation2 + $0x10] sm:$0x33]
      %v1069 = vld [vmem:[%s4] sm:$0xff]
      %v1070 = vld [vmem:[%s4 + $0x8] sm:$0xff]
      %v1071 = vld [vmem:[%s4 + $0x10] sm:$0xff]
      %v1072 = vld [vmem:[%s4 + $0x18] sm:$0xff]
      %v1073 = vld [vmem:[%s4 + $0x20] sm:$0xff]
      %v1074 = vld [vmem:[%s4 + $0x28] sm:$0xff]
      %v1075 = vld [vmem:[%s4 + $0x30] sm:$0xff]
      %v1076 = vld [vmem:[%s4 + $0x38] sm:$0xff]
      %v1077 = vld [vmem:[%s4 + $0x40] sm:$0xff]
      %v1078 = vld [vmem:[%s4 + $0x48] sm:$0xff]
      %v1079 = vld [vmem:[%s4 + $0x50] sm:$0xff]
      %v1080 = vld [vmem:[%s4 + $0x58] sm:$0xff]
      %v1081 = vld [vmem:[%s4 + $0x60] sm:$0xff]
      %v1082 = vld [vmem:[%s4 + $0x68] sm:$0xff]
      %v1083 = vld [vmem:[%s4 + $0x70] sm:$0xff]
      %v1084 = vld [vmem:[%s4 + $0x78] sm:$0xff]
      %v1085 = vld [vmem:[%s4 + $0x80] sm:$0xff]
      %v1086 = vld [vmem:[%s4 + $0x88] sm:$0xff]
      %v1087 = vld [vmem:[%s4 + $0x90] sm:$0xff]
      %v1088 = vld [vmem:[%s4 + $0x98] sm:$0xff]
      %v1089 = vld [vmem:[%s4 + $0xa0] sm:$0xff]
      %v1090 = vld [vmem:[%s4 + $0xa8] sm:$0xff]
      %v1091 = vld [vmem:[%s4 + $0xb0] sm:$0xff]
      %v1092 = vld [vmem:[%s4 + $0xb8] sm:$0xff]
      %v1093 = vld [vmem:[%s4 + $0xc0] sm:$0xff]
      %v1094 = vld [vmem:[%s4 + $0xc8] sm:$0xff]
      %v1095 = vld [vmem:[%s4 + $0xd0] sm:$0xff]
      %v1096 = vld [vmem:[%s4 + $0xd8] sm:$0xff]
      %v1097 = vld [vmem:[%s4 + $0xe0] sm:$0xff]
      %v1098 = vld [vmem:[%s4 + $0xe8] sm:$0xff]
      %v1099 = vld [vmem:[%s4 + $0xf0] sm:$0xff]
      %v1100 = vld [vmem:[%s4 + $0xf8] sm:$0xff]
      %s1101 = scalar_lea.vmem %s4, 256
      %v1102 = vld [vmem:[%s1101] sm:$0xff]
      %v1103 = vld [vmem:[%s1101 + $0x8] sm:$0xff]
      %v1104 = vld [vmem:[%s1101 + $0x10] sm:$0xff]
      %v1105 = vld [vmem:[%s1101 + $0x18] sm:$0xff]
      %v1106 = vld [vmem:[%s1101 + $0x20] sm:$0xff]
      %v1107 = vld [vmem:[%s1101 + $0x28] sm:$0xff]
      %v1108 = vld [vmem:[%s1101 + $0x30] sm:$0xff]
      %v1109 = vld [vmem:[%s1101 + $0x38] sm:$0xff]
      %v1110 = vld [vmem:[%s1101 + $0x40] sm:$0xff]
      %v1111 = vld [vmem:[%s1101 + $0x48] sm:$0xff]
      %v1112 = vld [vmem:[%s1101 + $0x50] sm:$0xff]
      %v1113 = vld [vmem:[%s1101 + $0x58] sm:$0xff]
      %v1114 = vld [vmem:[%s1101 + $0x60] sm:$0xff]
      %v1115 = vld [vmem:[%s1101 + $0x68] sm:$0xff]
      %v1116 = vld [vmem:[%s1101 + $0x70] sm:$0xff]
      %v1117 = vld [vmem:[%s1101 + $0x78] sm:$0xff]
      %v1118 = vld [vmem:[%s1101 + $0x80] sm:$0xff]
      %v1119 = vld [vmem:[%s1101 + $0x88] sm:$0xff]
      %v1120 = vld [vmem:[%s1101 + $0x90] sm:$0xff]
      %v1121 = vld [vmem:[%s1101 + $0x98] sm:$0xff]
      %v1122 = vld [vmem:[%s1101 + $0xa0] sm:$0xff]
      %v1123 = vld [vmem:[%s1101 + $0xa8] sm:$0xff]
      %v1124 = vld [vmem:[%s1101 + $0xb0] sm:$0xff]
      %v1125 = vld [vmem:[%s1101 + $0xb8] sm:$0xff]
      %v1126 = vld [vmem:[%s1101 + $0xc0] sm:$0xff]
      %v1127 = vld [vmem:[%s1101 + $0xc8] sm:$0xff]
      %v1128 = vld [vmem:[%s1101 + $0xd0] sm:$0xff]
      %v1129 = vld [vmem:[%s1101 + $0xd8] sm:$0xff]
      %v1130 = vld [vmem:[%s1101 + $0xe0] sm:$0xff]
      %v1131 = vld [vmem:[%s1101 + $0xe8] sm:$0xff]
      %v1132 = vld [vmem:[%s1101 + $0xf0] sm:$0xff]
      %v1133 = vld [vmem:[%s1101 + $0xf8] sm:$0xff]
      %v1135 = vunpack.c.l.b16 %v1068
      %v1136 = vunpack.c.h.b16 %v1068
      %v1137 = vpack.c.b16 %v1135, %v1135
      %v1138 = vpack.c.b16 %v1136, %v1136
      %v1173 = vunpack.c.l.b16 %v1102
      %v1174 = vunpack.c.h.b16 %v1102
      %v1175 = vunpack.c.l.b16 %v1103
      %v1176 = vunpack.c.h.b16 %v1103
      %v1177 = vunpack.c.l.b16 %v1104
      %v1178 = vunpack.c.h.b16 %v1104
      %v1179 = vunpack.c.l.b16 %v1105
      %v1180 = vunpack.c.h.b16 %v1105
      %v1181 = vunpack.c.l.b16 %v1106
      %v1182 = vunpack.c.h.b16 %v1106
      %v1183 = vunpack.c.l.b16 %v1107
      %v1184 = vunpack.c.h.b16 %v1107
      %v1185 = vunpack.c.l.b16 %v1108
      %v1186 = vunpack.c.h.b16 %v1108
      %v1187 = vunpack.c.l.b16 %v1109
      %v1188 = vunpack.c.h.b16 %v1109
      %v1189 = vunpack.c.l.b16 %v1110
      %v1190 = vunpack.c.h.b16 %v1110
      %v1191 = vunpack.c.l.b16 %v1111
      %v1192 = vunpack.c.h.b16 %v1111
      %v1193 = vunpack.c.l.b16 %v1112
      %v1194 = vunpack.c.h.b16 %v1112
      %v1195 = vunpack.c.l.b16 %v1113
      %v1196 = vunpack.c.h.b16 %v1113
      %v1197 = vunpack.c.l.b16 %v1114
      %v1198 = vunpack.c.h.b16 %v1114
      %v1199 = vunpack.c.l.b16 %v1115
      %v1200 = vunpack.c.h.b16 %v1115
      %v1201 = vunpack.c.l.b16 %v1116
      %v1202 = vunpack.c.h.b16 %v1116
      %v1203 = vunpack.c.l.b16 %v1117
      %v1204 = vunpack.c.h.b16 %v1117
      %v1205 = vunpack.c.l.b16 %v1118
      %v1206 = vunpack.c.h.b16 %v1118
      %v1207 = vunpack.c.l.b16 %v1119
      %v1208 = vunpack.c.h.b16 %v1119
      %v1209 = vunpack.c.l.b16 %v1120
      %v1210 = vunpack.c.h.b16 %v1120
      %v1211 = vunpack.c.l.b16 %v1121
      %v1212 = vunpack.c.h.b16 %v1121
      %v1213 = vunpack.c.l.b16 %v1122
      %v1214 = vunpack.c.h.b16 %v1122
      %v1215 = vunpack.c.l.b16 %v1123
      %v1216 = vunpack.c.h.b16 %v1123
      %v1217 = vunpack.c.l.b16 %v1124
      %v1218 = vunpack.c.h.b16 %v1124
      %v1219 = vunpack.c.l.b16 %v1125
      %v1220 = vunpack.c.h.b16 %v1125
      %v1221 = vunpack.c.l.b16 %v1126
      %v1222 = vunpack.c.h.b16 %v1126
      %v1223 = vunpack.c.l.b16 %v1127
      %v1224 = vunpack.c.h.b16 %v1127
      %v1225 = vunpack.c.l.b16 %v1128
      %v1226 = vunpack.c.h.b16 %v1128
      %v1227 = vunpack.c.l.b16 %v1129
      %v1228 = vunpack.c.h.b16 %v1129
      %v1229 = vunpack.c.l.b16 %v1130
      %v1230 = vunpack.c.h.b16 %v1130
      %v1231 = vunpack.c.l.b16 %v1131
      %v1232 = vunpack.c.h.b16 %v1131
      %v1233 = vunpack.c.l.b16 %v1132
      %v1234 = vunpack.c.h.b16 %v1132
      %v1235 = vunpack.c.l.b16 %v1133
      %v1236 = vunpack.c.h.b16 %v1133
      %v1237 = vpack.c.b16 %v1175, %v1173
      %v1238 = vpack.c.b16 %v1176, %v1174
      %v1239 = vpack.c.b16 %v1179, %v1177
      %v1240 = vpack.c.b16 %v1180, %v1178
      %v1241 = vpack.c.b16 %v1183, %v1181
      %v1242 = vpack.c.b16 %v1184, %v1182
      %v1243 = vpack.c.b16 %v1187, %v1185
      %v1244 = vpack.c.b16 %v1188, %v1186
      %v1245 = vpack.c.b16 %v1191, %v1189
      %v1246 = vpack.c.b16 %v1192, %v1190
      %v1247 = vpack.c.b16 %v1195, %v1193
      %v1248 = vpack.c.b16 %v1196, %v1194
      %v1249 = vpack.c.b16 %v1199, %v1197
      %v1250 = vpack.c.b16 %v1200, %v1198
      %v1251 = vpack.c.b16 %v1203, %v1201
      %v1252 = vpack.c.b16 %v1204, %v1202
      %v1253 = vpack.c.b16 %v1207, %v1205
      %v1254 = vpack.c.b16 %v1208, %v1206
      %v1255 = vpack.c.b16 %v1211, %v1209
      %v1256 = vpack.c.b16 %v1212, %v1210
      %v1257 = vpack.c.b16 %v1215, %v1213
      %v1258 = vpack.c.b16 %v1216, %v1214
      %v1259 = vpack.c.b16 %v1219, %v1217
      %v1260 = vpack.c.b16 %v1220, %v1218
      %v1261 = vpack.c.b16 %v1223, %v1221
      %v1262 = vpack.c.b16 %v1224, %v1222
      %v1263 = vpack.c.b16 %v1227, %v1225
      %v1264 = vpack.c.b16 %v1228, %v1226
      %v1265 = vpack.c.b16 %v1231, %v1229
      %v1266 = vpack.c.b16 %v1232, %v1230
      %v1267 = vpack.c.b16 %v1235, %v1233
      %v1268 = vpack.c.b16 %v1236, %v1234
      %1301 = vmatprep.subr.bf16.mxu0 %v1238
      %1302 = vmatpush1.bf16.msra.mxu0 %v1237
      %1303 = vmatprep.subr.bf16.mxu0 %v1240
      %1304 = vmatpush1.bf16.msra.mxu0 %v1239
      %1305 = vmatprep.subr.bf16.mxu0 %v1242
      %1306 = vmatpush1.bf16.msra.mxu0 %v1241
      %1307 = vmatprep.subr.bf16.mxu0 %v1244
      %1308 = vmatpush1.bf16.msra.mxu0 %v1243
      %1309 = vmatprep.subr.bf16.mxu0 %v1246
      %1310 = vmatpush1.bf16.msra.mxu0 %v1245
      %1311 = vmatprep.subr.bf16.mxu0 %v1248
      %1312 = vmatpush1.bf16.msra.mxu0 %v1247
      %1313 = vmatprep.subr.bf16.mxu0 %v1250
      %1314 = vmatpush1.bf16.msra.mxu0 %v1249
      %1315 = vmatprep.subr.bf16.mxu0 %v1252
      %1316 = vmatpush1.bf16.msra.mxu0 %v1251
      %1317 = vmatprep.subr.bf16.mxu0 %v1254
      %1318 = vmatpush1.bf16.msra.mxu0 %v1253
      %1319 = vmatprep.subr.bf16.mxu0 %v1256
      %1320 = vmatpush1.bf16.msra.mxu0 %v1255
      %1321 = vmatprep.subr.bf16.mxu0 %v1258
      %1322 = vmatpush1.bf16.msra.mxu0 %v1257
      %1323 = vmatprep.subr.bf16.mxu0 %v1260
      %1324 = vmatpush1.bf16.msra.mxu0 %v1259
      %1325 = vmatprep.subr.bf16.mxu0 %v1262
      %1326 = vmatpush1.bf16.msra.mxu0 %v1261
      %1327 = vmatprep.subr.bf16.mxu0 %v1264
      %1328 = vmatpush1.bf16.msra.mxu0 %v1263
      %1329 = vmatprep.subr.bf16.mxu0 %v1266
      %1330 = vmatpush1.bf16.msra.mxu0 %v1265
      %1331 = vmatprep.subr.bf16.mxu0 %v1268
      %1332 = vmatpush1.bf16.msra.mxu0 %v1267
      %1333 = vmatprep.mubr.bf16.mxu0 %v1138
      %1334 = vmatmul.mubr.bf16.gmra.mrb[0].mxu0 %v1137
      %v1335 = vpop.f32.mrb[0].mxu0
      %v1336 = vadd.f32 0.0, %v1335
      %v1337 = vpop.f32.mrb[0].mxu0
      %v1338 = vadd.f32 0.0, %v1337
      %v1339 = vpop.f32.mrb[0].mxu0
      %v1340 = vpop.f32.mrb[0].mxu0
      %1341 = vdwg.mxu0
      %v1343 = vunpack.c.l.b16 %v1067
      %v1344 = vunpack.c.h.b16 %v1067
      %v1345 = vpack.c.b16 %v1135, %v1343
      %v1346 = vpack.c.b16 %v1136, %v1344
      %v1348 = vshrl.u32 %v1345, 16
      %v1350 = vrot.slane %v1348, 3
      %v1351 = vshll.u32 %v1345, 16
      %v1353 = vrot.slane %v1351, 4
      %v1354 = vor.u32 %v1350, %v1353
      %v1356 = vshrl.u32 %v1346, 16
      %v1358 = vrot.slane %v1356, 3
      %v1359 = vshll.u32 %v1346, 16
      %v1361 = vrot.slane %v1359, 4
      %v1362 = vor.u32 %v1358, %v1361
      %v1397 = vunpack.c.l.b16 %v1069
      %v1398 = vunpack.c.h.b16 %v1069
      %v1399 = vunpack.c.l.b16 %v1070
      %v1400 = vunpack.c.h.b16 %v1070
      %v1401 = vunpack.c.l.b16 %v1071
      %v1402 = vunpack.c.h.b16 %v1071
      %v1403 = vunpack.c.l.b16 %v1072
      %v1404 = vunpack.c.h.b16 %v1072
      %v1405 = vunpack.c.l.b16 %v1073
      %v1406 = vunpack.c.h.b16 %v1073
      %v1407 = vunpack.c.l.b16 %v1074
      %v1408 = vunpack.c.h.b16 %v1074
      %v1409 = vunpack.c.l.b16 %v1075
      %v1410 = vunpack.c.h.b16 %v1075
      %v1411 = vunpack.c.l.b16 %v1076
      %v1412 = vunpack.c.h.b16 %v1076
      %v1413 = vunpack.c.l.b16 %v1077
      %v1414 = vunpack.c.h.b16 %v1077
      %v1415 = vunpack.c.l.b16 %v1078
      %v1416 = vunpack.c.h.b16 %v1078
      %v1417 = vunpack.c.l.b16 %v1079
      %v1418 = vunpack.c.h.b16 %v1079
      %v1419 = vunpack.c.l.b16 %v1080
      %v1420 = vunpack.c.h.b16 %v1080
      %v1421 = vunpack.c.l.b16 %v1081
      %v1422 = vunpack.c.h.b16 %v1081
      %v1423 = vunpack.c.l.b16 %v1082
      %v1424 = vunpack.c.h.b16 %v1082
      %v1425 = vunpack.c.l.b16 %v1083
      %v1426 = vunpack.c.h.b16 %v1083
      %v1427 = vunpack.c.l.b16 %v1084
      %v1428 = vunpack.c.h.b16 %v1084
      %v1429 = vunpack.c.l.b16 %v1085
      %v1430 = vunpack.c.h.b16 %v1085
      %v1431 = vunpack.c.l.b16 %v1086
      %v1432 = vunpack.c.h.b16 %v1086
      %v1433 = vunpack.c.l.b16 %v1087
      %v1434 = vunpack.c.h.b16 %v1087
      %v1435 = vunpack.c.l.b16 %v1088
      %v1436 = vunpack.c.h.b16 %v1088
      %v1437 = vunpack.c.l.b16 %v1089
      %v1438 = vunpack.c.h.b16 %v1089
      %v1439 = vunpack.c.l.b16 %v1090
      %v1440 = vunpack.c.h.b16 %v1090
      %v1441 = vunpack.c.l.b16 %v1091
      %v1442 = vunpack.c.h.b16 %v1091
      %v1443 = vunpack.c.l.b16 %v1092
      %v1444 = vunpack.c.h.b16 %v1092
      %v1445 = vunpack.c.l.b16 %v1093
      %v1446 = vunpack.c.h.b16 %v1093
      %v1447 = vunpack.c.l.b16 %v1094
      %v1448 = vunpack.c.h.b16 %v1094
      %v1449 = vunpack.c.l.b16 %v1095
      %v1450 = vunpack.c.h.b16 %v1095
      %v1451 = vunpack.c.l.b16 %v1096
      %v1452 = vunpack.c.h.b16 %v1096
      %v1453 = vunpack.c.l.b16 %v1097
      %v1454 = vunpack.c.h.b16 %v1097
      %v1455 = vunpack.c.l.b16 %v1098
      %v1456 = vunpack.c.h.b16 %v1098
      %v1457 = vunpack.c.l.b16 %v1099
      %v1458 = vunpack.c.h.b16 %v1099
      %v1459 = vunpack.c.l.b16 %v1100
      %v1460 = vunpack.c.h.b16 %v1100
      %v1461 = vpack.c.b16 %v1399, %v1397
      %v1462 = vpack.c.b16 %v1400, %v1398
      %v1463 = vpack.c.b16 %v1403, %v1401
      %v1464 = vpack.c.b16 %v1404, %v1402
      %v1465 = vpack.c.b16 %v1407, %v1405
      %v1466 = vpack.c.b16 %v1408, %v1406
      %v1467 = vpack.c.b16 %v1411, %v1409
      %v1468 = vpack.c.b16 %v1412, %v1410
      %v1469 = vpack.c.b16 %v1415, %v1413
      %v1470 = vpack.c.b16 %v1416, %v1414
      %v1471 = vpack.c.b16 %v1419, %v1417
      %v1472 = vpack.c.b16 %v1420, %v1418
      %v1473 = vpack.c.b16 %v1423, %v1421
      %v1474 = vpack.c.b16 %v1424, %v1422
      %v1475 = vpack.c.b16 %v1427, %v1425
      %v1476 = vpack.c.b16 %v1428, %v1426
      %v1477 = vpack.c.b16 %v1431, %v1429
      %v1478 = vpack.c.b16 %v1432, %v1430
      %v1479 = vpack.c.b16 %v1435, %v1433
      %v1480 = vpack.c.b16 %v1436, %v1434
      %v1481 = vpack.c.b16 %v1439, %v1437
      %v1482 = vpack.c.b16 %v1440, %v1438
      %v1483 = vpack.c.b16 %v1443, %v1441
      %v1484 = vpack.c.b16 %v1444, %v1442
      %v1485 = vpack.c.b16 %v1447, %v1445
      %v1486 = vpack.c.b16 %v1448, %v1446
      %v1487 = vpack.c.b16 %v1451, %v1449
      %v1488 = vpack.c.b16 %v1452, %v1450
      %v1489 = vpack.c.b16 %v1455, %v1453
      %v1490 = vpack.c.b16 %v1456, %v1454
      %v1491 = vpack.c.b16 %v1459, %v1457
      %v1492 = vpack.c.b16 %v1460, %v1458
      %1525 = vmatprep.subr.bf16.mxu0 %v1462
      %1526 = vmatpush1.bf16.msra.mxu0 %v1461
      %1527 = vmatprep.subr.bf16.mxu0 %v1464
      %1528 = vmatpush1.bf16.msra.mxu0 %v1463
      %1529 = vmatprep.subr.bf16.mxu0 %v1466
      %1530 = vmatpush1.bf16.msra.mxu0 %v1465
      %1531 = vmatprep.subr.bf16.mxu0 %v1468
      %1532 = vmatpush1.bf16.msra.mxu0 %v1467
      %1533 = vmatprep.subr.bf16.mxu0 %v1470
      %1534 = vmatpush1.bf16.msra.mxu0 %v1469
      %1535 = vmatprep.subr.bf16.mxu0 %v1472
      %1536 = vmatpush1.bf16.msra.mxu0 %v1471
      %1537 = vmatprep.subr.bf16.mxu0 %v1474
      %1538 = vmatpush1.bf16.msra.mxu0 %v1473
      %1539 = vmatprep.subr.bf16.mxu0 %v1476
      %1540 = vmatpush1.bf16.msra.mxu0 %v1475
      %1541 = vmatprep.subr.bf16.mxu0 %v1478
      %1542 = vmatpush1.bf16.msra.mxu0 %v1477
      %1543 = vmatprep.subr.bf16.mxu0 %v1480
      %1544 = vmatpush1.bf16.msra.mxu0 %v1479
      %1545 = vmatprep.subr.bf16.mxu0 %v1482
      %1546 = vmatpush1.bf16.msra.mxu0 %v1481
      %1547 = vmatprep.subr.bf16.mxu0 %v1484
      %1548 = vmatpush1.bf16.msra.mxu0 %v1483
      %1549 = vmatprep.subr.bf16.mxu0 %v1486
      %1550 = vmatpush1.bf16.msra.mxu0 %v1485
      %1551 = vmatprep.subr.bf16.mxu0 %v1488
      %1552 = vmatpush1.bf16.msra.mxu0 %v1487
      %1553 = vmatprep.subr.bf16.mxu0 %v1490
      %1554 = vmatpush1.bf16.msra.mxu0 %v1489
      %1555 = vmatprep.subr.bf16.mxu0 %v1492
      %1556 = vmatpush1.bf16.msra.mxu0 %v1491
      %1557 = vmatprep.mubr.bf16.mxu0 %v1362
      %1558 = vmatmul.mubr.bf16.gmra.mrb[0].mxu0 %v1354
      %v1559 = vpop.f32.mrb[0].mxu0
      %v1560 = vadd.f32 %v1336, %v1559
      %v1561 = vpop.f32.mrb[0].mxu0
      %v1562 = vadd.f32 %v1338, %v1561
      %v1563 = vpop.f32.mrb[0].mxu0
      %v1564 = vpop.f32.mrb[0].mxu0
      %1565 = vdwg.mxu0
      %v1566 = vld [vmem:[#allocation2 + $0x10] sm:$0x77]
      %s1567 = scalar_lea.vmem %s4, 512
      %v1568 = vld [vmem:[%s1567] sm:$0xff]
      %v1569 = vld [vmem:[%s1567 + $0x8] sm:$0xff]
      %v1570 = vld [vmem:[%s1567 + $0x10] sm:$0xff]
      %v1571 = vld [vmem:[%s1567 + $0x18] sm:$0xff]
      %v1572 = vld [vmem:[%s1567 + $0x20] sm:$0xff]
      %v1573 = vld [vmem:[%s1567 + $0x28] sm:$0xff]
      %v1574 = vld [vmem:[%s1567 + $0x30] sm:$0xff]
      %v1575 = vld [vmem:[%s1567 + $0x38] sm:$0xff]
      %v1576 = vld [vmem:[%s1567 + $0x40] sm:$0xff]
      %v1577 = vld [vmem:[%s1567 + $0x48] sm:$0xff]
      %v1578 = vld [vmem:[%s1567 + $0x50] sm:$0xff]
      %v1579 = vld [vmem:[%s1567 + $0x58] sm:$0xff]
      %v1580 = vld [vmem:[%s1567 + $0x60] sm:$0xff]
      %v1581 = vld [vmem:[%s1567 + $0x68] sm:$0xff]
      %v1582 = vld [vmem:[%s1567 + $0x70] sm:$0xff]
      %v1583 = vld [vmem:[%s1567 + $0x78] sm:$0xff]
      %v1584 = vld [vmem:[%s1567 + $0x80] sm:$0xff]
      %v1585 = vld [vmem:[%s1567 + $0x88] sm:$0xff]
      %v1586 = vld [vmem:[%s1567 + $0x90] sm:$0xff]
      %v1587 = vld [vmem:[%s1567 + $0x98] sm:$0xff]
      %v1588 = vld [vmem:[%s1567 + $0xa0] sm:$0xff]
      %v1589 = vld [vmem:[%s1567 + $0xa8] sm:$0xff]
      %v1590 = vld [vmem:[%s1567 + $0xb0] sm:$0xff]
      %v1591 = vld [vmem:[%s1567 + $0xb8] sm:$0xff]
      %v1592 = vld [vmem:[%s1567 + $0xc0] sm:$0xff]
      %v1593 = vld [vmem:[%s1567 + $0xc8] sm:$0xff]
      %v1594 = vld [vmem:[%s1567 + $0xd0] sm:$0xff]
      %v1595 = vld [vmem:[%s1567 + $0xd8] sm:$0xff]
      %v1596 = vld [vmem:[%s1567 + $0xe0] sm:$0xff]
      %v1597 = vld [vmem:[%s1567 + $0xe8] sm:$0xff]
      %v1598 = vld [vmem:[%s1567 + $0xf0] sm:$0xff]
      %v1599 = vld [vmem:[%s1567 + $0xf8] sm:$0xff]
      %v1601 = vunpack.c.l.b16 %v1566
      %v1602 = vunpack.c.h.b16 %v1566
      %v1603 = vpack.c.b16 %v1601, %v1601
      %v1604 = vpack.c.b16 %v1602, %v1602
      %v1606 = vshrl.u32 %v1603, 16
      %v1608 = vshll.u32 %v1603, 16
      %v1610 = vrot.slane %v1608, 1
      %v1611 = vor.u32 %v1606, %v1610
      %v1613 = vshrl.u32 %v1604, 16
      %v1615 = vshll.u32 %v1604, 16
      %v1617 = vrot.slane %v1615, 1
      %v1618 = vor.u32 %v1613, %v1617
      %v1653 = vunpack.c.l.b16 %v1568
      %v1654 = vunpack.c.h.b16 %v1568
      %v1655 = vunpack.c.l.b16 %v1569
      %v1656 = vunpack.c.h.b16 %v1569
      %v1657 = vunpack.c.l.b16 %v1570
      %v1658 = vunpack.c.h.b16 %v1570
      %v1659 = vunpack.c.l.b16 %v1571
      %v1660 = vunpack.c.h.b16 %v1571
      %v1661 = vunpack.c.l.b16 %v1572
      %v1662 = vunpack.c.h.b16 %v1572
      %v1663 = vunpack.c.l.b16 %v1573
      %v1664 = vunpack.c.h.b16 %v1573
      %v1665 = vunpack.c.l.b16 %v1574
      %v1666 = vunpack.c.h.b16 %v1574
      %v1667 = vunpack.c.l.b16 %v1575
      %v1668 = vunpack.c.h.b16 %v1575
      %v1669 = vunpack.c.l.b16 %v1576
      %v1670 = vunpack.c.h.b16 %v1576
      %v1671 = vunpack.c.l.b16 %v1577
      %v1672 = vunpack.c.h.b16 %v1577
      %v1673 = vunpack.c.l.b16 %v1578
      %v1674 = vunpack.c.h.b16 %v1578
      %v1675 = vunpack.c.l.b16 %v1579
      %v1676 = vunpack.c.h.b16 %v1579
      %v1677 = vunpack.c.l.b16 %v1580
      %v1678 = vunpack.c.h.b16 %v1580
      %v1679 = vunpack.c.l.b16 %v1581
      %v1680 = vunpack.c.h.b16 %v1581
      %v1681 = vunpack.c.l.b16 %v1582
      %v1682 = vunpack.c.h.b16 %v1582
      %v1683 = vunpack.c.l.b16 %v1583
      %v1684 = vunpack.c.h.b16 %v1583
      %v1685 = vunpack.c.l.b16 %v1584
      %v1686 = vunpack.c.h.b16 %v1584
      %v1687 = vunpack.c.l.b16 %v1585
      %v1688 = vunpack.c.h.b16 %v1585
      %v1689 = vunpack.c.l.b16 %v1586
      %v1690 = vunpack.c.h.b16 %v1586
      %v1691 = vunpack.c.l.b16 %v1587
      %v1692 = vunpack.c.h.b16 %v1587
      %v1693 = vunpack.c.l.b16 %v1588
      %v1694 = vunpack.c.h.b16 %v1588
      %v1695 = vunpack.c.l.b16 %v1589
      %v1696 = vunpack.c.h.b16 %v1589
      %v1697 = vunpack.c.l.b16 %v1590
      %v1698 = vunpack.c.h.b16 %v1590
      %v1699 = vunpack.c.l.b16 %v1591
      %v1700 = vunpack.c.h.b16 %v1591
      %v1701 = vunpack.c.l.b16 %v1592
      %v1702 = vunpack.c.h.b16 %v1592
      %v1703 = vunpack.c.l.b16 %v1593
      %v1704 = vunpack.c.h.b16 %v1593
      %v1705 = vunpack.c.l.b16 %v1594
      %v1706 = vunpack.c.h.b16 %v1594
      %v1707 = vunpack.c.l.b16 %v1595
      %v1708 = vunpack.c.h.b16 %v1595
      %v1709 = vunpack.c.l.b16 %v1596
      %v1710 = vunpack.c.h.b16 %v1596
      %v1711 = vunpack.c.l.b16 %v1597
      %v1712 = vunpack.c.h.b16 %v1597
      %v1713 = vunpack.c.l.b16 %v1598
      %v1714 = vunpack.c.h.b16 %v1598
      %v1715 = vunpack.c.l.b16 %v1599
      %v1716 = vunpack.c.h.b16 %v1599
      %v1717 = vpack.c.b16 %v1655, %v1653
      %v1718 = vpack.c.b16 %v1656, %v1654
      %v1719 = vpack.c.b16 %v1659, %v1657
      %v1720 = vpack.c.b16 %v1660, %v1658
      %v1721 = vpack.c.b16 %v1663, %v1661
      %v1722 = vpack.c.b16 %v1664, %v1662
      %v1723 = vpack.c.b16 %v1667, %v1665
      %v1724 = vpack.c.b16 %v1668, %v1666
      %v1725 = vpack.c.b16 %v1671, %v1669
      %v1726 = vpack.c.b16 %v1672, %v1670
      %v1727 = vpack.c.b16 %v1675, %v1673
      %v1728 = vpack.c.b16 %v1676, %v1674
      %v1729 = vpack.c.b16 %v1679, %v1677
      %v1730 = vpack.c.b16 %v1680, %v1678
      %v1731 = vpack.c.b16 %v1683, %v1681
      %v1732 = vpack.c.b16 %v1684, %v1682
      %v1733 = vpack.c.b16 %v1687, %v1685
      %v1734 = vpack.c.b16 %v1688, %v1686
      %v1735 = vpack.c.b16 %v1691, %v1689
      %v1736 = vpack.c.b16 %v1692, %v1690
      %v1737 = vpack.c.b16 %v1695, %v1693
      %v1738 = vpack.c.b16 %v1696, %v1694
      %v1739 = vpack.c.b16 %v1699, %v1697
      %v1740 = vpack.c.b16 %v1700, %v1698
      %v1741 = vpack.c.b16 %v1703, %v1701
      %v1742 = vpack.c.b16 %v1704, %v1702
      %v1743 = vpack.c.b16 %v1707, %v1705
      %v1744 = vpack.c.b16 %v1708, %v1706
      %v1745 = vpack.c.b16 %v1711, %v1709
      %v1746 = vpack.c.b16 %v1712, %v1710
      %v1747 = vpack.c.b16 %v1715, %v1713
      %v1748 = vpack.c.b16 %v1716, %v1714
      %1781 = vmatprep.subr.bf16.mxu0 %v1718
      %1782 = vmatpush1.bf16.msra.mxu0 %v1717
      %1783 = vmatprep.subr.bf16.mxu0 %v1720
      %1784 = vmatpush1.bf16.msra.mxu0 %v1719
      %1785 = vmatprep.subr.bf16.mxu0 %v1722
      %1786 = vmatpush1.bf16.msra.mxu0 %v1721
      %1787 = vmatprep.subr.bf16.mxu0 %v1724
      %1788 = vmatpush1.bf16.msra.mxu0 %v1723
      %1789 = vmatprep.subr.bf16.mxu0 %v1726
      %1790 = vmatpush1.bf16.msra.mxu0 %v1725
      %1791 = vmatprep.subr.bf16.mxu0 %v1728
      %1792 = vmatpush1.bf16.msra.mxu0 %v1727
      %1793 = vmatprep.subr.bf16.mxu0 %v1730
      %1794 = vmatpush1.bf16.msra.mxu0 %v1729
      %1795 = vmatprep.subr.bf16.mxu0 %v1732
      %1796 = vmatpush1.bf16.msra.mxu0 %v1731
      %1797 = vmatprep.subr.bf16.mxu0 %v1734
      %1798 = vmatpush1.bf16.msra.mxu0 %v1733
      %1799 = vmatprep.subr.bf16.mxu0 %v1736
      %1800 = vmatpush1.bf16.msra.mxu0 %v1735
      %1801 = vmatprep.subr.bf16.mxu0 %v1738
      %1802 = vmatpush1.bf16.msra.mxu0 %v1737
      %1803 = vmatprep.subr.bf16.mxu0 %v1740
      %1804 = vmatpush1.bf16.msra.mxu0 %v1739
      %1805 = vmatprep.subr.bf16.mxu0 %v1742
      %1806 = vmatpush1.bf16.msra.mxu0 %v1741
      %1807 = vmatprep.subr.bf16.mxu0 %v1744
      %1808 = vmatpush1.bf16.msra.mxu0 %v1743
      %1809 = vmatprep.subr.bf16.mxu0 %v1746
      %1810 = vmatpush1.bf16.msra.mxu0 %v1745
      %1811 = vmatprep.subr.bf16.mxu0 %v1748
      %1812 = vmatpush1.bf16.msra.mxu0 %v1747
      %1813 = vmatprep.mubr.bf16.mxu0 %v1618
      %1814 = vmatmul.mubr.bf16.gmra.mrb[0].mxu0 %v1611
      %v1815 = vpop.f32.mrb[0].mxu0
      %v1816 = vadd.f32 0.0, %v1815
      %v1817 = vpop.f32.mrb[0].mxu0
      %v1818 = vadd.f32 0.0, %v1817
      %v1819 = vpop.f32.mrb[0].mxu0
      %v1820 = vpop.f32.mrb[0].mxu0
      %1821 = vdwg.mxu0
      %v1822 = vadd.f32 %v1560, %v1816
      %v1823 = vadd.f32 %v1562, %v1818
      %v1824 = vld [vmem:[%s273] sm:$0x77]
      %v1825 = vunpack.c.l.bf16 %v1824
      %v1826 = vunpack.c.h.bf16 %v1824
      %v1827 = vld [vmem:[%s5] sm:$0x3]
      %v1829 = vlaneseq
      %v1830 = vshrl.u32 %v1829, 7
      %v1831 = vsub.s32 0, %v1830
      %v1832 = vrot.slane %v1827, %v1831
      %v1833 = vlaneseq
      %v1834 = vshrl.u32 %v1833, 7
      %v1835 = vsub.s32 1, %v1834
      %v1836 = vrot.slane %v1827, %v1835
      %v1839 = vmul.f32 %v1822, %v1832
      %v1840 = vmul.f32 %v1823, %v1836
      %v1841 = vld [vmem:[%s6] sm:$0x3]
      %v1843 = vlaneseq
      %v1844 = vshrl.u32 %v1843, 7
      %v1845 = vsub.s32 0, %v1844
      %v1846 = vrot.slane %v1841, %v1845
      %v1847 = vlaneseq
      %v1848 = vshrl.u32 %v1847, 7
      %v1849 = vsub.s32 1, %v1848
      %v1850 = vrot.slane %v1841, %v1849
      %v1853 = vadd.f32 %v1839, %v1846
      %v1854 = vadd.f32 %v1840, %v1850
      %v1857 = vrot.slane %v1825, 1
      %v1858 = vrot.slane %v1826, 1
      %v1861 = vadd.f32 %v1853, %v1857
      %v1862 = vadd.f32 %v1854, %v1858
      %v1863 = vmax.f32 %v1861, 0.0
      %v1864 = vmax.f32 %v1862, 0.0
      %v1865 = vpack.c.bf16 %v1863, %v1863
      %v1866 = vpack.c.bf16 %v1864, %v1864
      %v1869 = vcombine.low %v1865, %v1866
      %v1871 = vunpack.c.l.s4 1983009808
      %v1872 = vunpack.c.0.s8 %v1871
      %v1873 = vlaneseq
      %v1874 = vshrl.u32 %v1873, 7
      %v1875 = vsub.s32 %v1872, %v1874
      %v1876 = vrot.slane %v1869, %v1875
      %1878 = vst [vmem:[%s278] sm:$0xf] %v1876
      %p1879 = scmp.lt.s32.totalorder %s18, 1
      %s1880 = scalar_select %p1879, %s18, 1
      %s1881 = smul.addr %s1880, 2
      %s1882 = smul.addr %s1881, 2
      %s1883 = scalar_lea.vmem %s7, %s1882
      // Predicated region
      $region49: #{_lambda_.16} parent=47 // pred_check
        %p1884 = pneg %p188
      $region50: #{_lambda_.16} parent=47 // pred_check_branch
        %1886 = sbr.rel (%p1884) target = $region52
      $region51: #{_lambda_.16} parent=47 // pred_region
        _
      $region52: #{_lambda_.16} parent=47 // pred_fallthru
        _
    $region48: #{_lambda_.16} parent=5 // pred_fallthru
      _
    %p1887 = scmp.le.s32.totalorder 2, %s13
    // Predicated region
    $region53: #{_lambda_.16} parent=5 // pred_check
      %p1888 = pneg %p1887
    $region54: #{_lambda_.16} parent=5 // pred_check_branch
      %1890 = sbr.rel (%p1888) target = $region56
    $region55: #{_lambda_.16} parent=5 // pred_region
      %s1891 = ssub.s32 %s13, 2
      // Predicated region
      $region57: #{_lambda_.16} parent=55 // pred_check
        %p1892 = pneg %p194
      $region58: #{_lambda_.16} parent=55 // pred_check_branch
        %1894 = sbr.rel (%p1892) target = $region60
      $region59: #{_lambda_.16} parent=55 // pred_region
        %p1895 = scmp.lt.s32.totalorder %s19, 1
        %s1896 = scalar_select %p1895, %s19, 1
        %s1897 = smul.addr %s1896, 2
        %s1898 = smul.addr %s1897, 2
        %s1899 = scalar_lea.vmem %s7, %s1898
      $region60: #{_lambda_.16} parent=55 // pred_fallthru
        _
    $region56: #{_lambda_.16} parent=5 // pred_fallthru
      _
  $region6: #{_lambda_.16} parent=0 // loop_footer
    %s17 = sadd.s32 1, %s13
  $region7: #{_lambda_.16} parent=0 // loop_footer_branch
    %12 = sbr.rel target = $region3
  $region8: #{_lambda_.16} parent=0 // loop_exit
    _

</llo_original>
